<compile_context>
chip_gen: v6e
topology: v6e:2x2x1
jax: 0.10.0
libtpu: 0.0.40
codegen_flags: <defaults>
</compile_context>

<pallas_src>
import numpy as np

import jax
import jax.numpy as jnp
from jax.experimental import pallas as pl
from jax.experimental.pallas import tpu as pltpu


# ----------------------------------------------------------------------------
# Network / layout constants
# ----------------------------------------------------------------------------
IN_CH = 3
CIN_PAD = 8          # input channels zero-padded 3 -> 8 (aligned staging rows)
HID = 32
LATENT = 4
LAT_PAD = 8          # latent channels zero-padded 4 -> 8
KH = KW = 3
NTAP = KH * KW

H = W = 16           # image resolution
H2 = W2 = 8          # latent resolution (after stride-2)

# per-image ring-padded geometry (1-pixel zero ring around each image)
HPA, WPA = H + 2, W + 2            # 18 x 18
HPB, WPB = H2 + 2, W2 + 2          # 10 x 10
MPA = HPA * WPA                    # 324   (flattened padded image, lane axis)
MPB = HPB * WPB                    # 100
MPA_PAD = 384                      # output lane width, multiple of 128
SA = 32                            # lane slack  > WPA + 1  (max tap shift)
SB = 16                            # lane slack  > WPB + 1
TA = MPA + 2 * SA                  # 388
TB = MPB + 2 * SB                  # 132
KSTK = NTAP * HID                  # 288 staging rows (largest K)


def _geometry():
    """Interior masks and resampling (selection / replication) matrices."""
    mask_a = np.zeros((1, MPA), np.float32)
    for h in range(1, H + 1):
        mask_a[0, h * WPA + 1: h * WPA + 1 + W] = 1.0
    mask_b = np.zeros((1, MPB), np.float32)
    for h in range(1, H2 + 1):
        mask_b[0, h * WPB + 1: h * WPB + 1 + W2] = 1.0

    # stride-2 selection: padded 16x16 flat -> padded 8x8 flat
    # (keeps the stride-2 tap centers, zeroes the target ring automatically)
    s_down = np.zeros((MPA, MPB), np.float32)
    for hb in range(1, H2 + 1):
        for wb in range(1, W2 + 1):
            s_down[(2 * hb - 1) * WPA + (2 * wb - 1), hb * WPB + wb] = 1.0

    # nearest-neighbour 2x replication: padded 8x8 flat -> padded 16x16 flat
    u_up = np.zeros((MPB, MPA), np.float32)
    for ha in range(1, H + 1):
        for wa in range(1, W + 1):
            hb = (ha - 1) // 2 + 1
            wb = (wa - 1) // 2 + 1
            u_up[hb * WPB + wb, ha * WPA + wa] = 1.0
    return mask_a, mask_b, s_down, u_up


# ----------------------------------------------------------------------------
# Fused VAE forward kernel (one grid step == one image)
# ----------------------------------------------------------------------------
def _fused_vae_kernel(
        x_ref,
        w_ei, b_ei, w_ed, b_ed, w_eoc, b_eoc,
        w_di, b_di, w_dm, b_dm, w_do, b_do,
        s_down, u_up, mask_a, mask_b,
        o_ref,
        stage, buf_a, buf_b):
    f32 = jnp.float32
    bf16 = jnp.bfloat16

    # Slack strips of the ring-padded activation buffers must read as zero for
    # the shifted im2col taps.  They are never written below, so only these
    # tiny strips (~6 KB total) are re-zeroed each step; all interiors are
    # fully overwritten every step.  (NaN-safety: NaN * mask would not be 0.)
    buf_a[:, :SA] = jnp.zeros((HID, SA), bf16)
    buf_a[:, SA + MPA:] = jnp.zeros((HID, TA - SA - MPA), bf16)
    buf_b[:, :SB] = jnp.zeros((HID, SB), bf16)
    buf_b[:, SB + MPB:] = jnp.zeros((HID, TB - SB - MPB), bf16)

    # hoisted once (JAX does not CSE broadcast_in_dim); reused by two convs
    ma32 = jnp.broadcast_to(mask_a[...], (HID, MPA))

    def im2col(src_ref, cin, wp, mp, slack):
        # Write each of the 9 shifted copies exactly once into the K-stacked
        # staging buffer; the single following matmul then has K = 9*cin.
        # (pltpu.roll on the slack buffer is an alternative routing of the
        # lane shift through the XLU; static slices are used here.)
        t = 0
        for di in (-1, 0, 1):
            for dj in (-1, 0, 1):
                off = slack + di * wp + dj
                stage[t * cin:(t + 1) * cin, :mp] = src_ref[:cin, off:off + mp]
                t += 1

    def conv(w_ref, b_ref, cin, mp, act):
        # one K-stacked MXU matmul per 3x3 conv
        y = jnp.dot(w_ref[...], stage[:NTAP * cin, :mp],
                    preferred_element_type=f32) + b_ref[...]
        if act:
            y = y * jax.nn.sigmoid(y)          # SiLU in f32 (v5e-safe)
        return y

    # ------------------------------- encoder -------------------------------
    im2col(x_ref, CIN_PAD, WPA, MPA, SA)
    h = conv(w_ei, b_ei, CIN_PAD, MPA, True) * ma32
    buf_a[:, SA:SA + MPA] = h.astype(bf16)

    im2col(buf_a, HID, WPA, MPA, SA)
    h = conv(w_ed, b_ed, HID, MPA, True)
    # stride-2 conv == full-res conv + 0/1 selection matmul (ring auto-zeroed)
    h = jnp.dot(h.astype(bf16), s_down[...], preferred_element_type=f32)
    buf_b[:, SB:SB + MPB] = h.astype(bf16)

    # enc_out 3x3 with the quant-mean (DiagonalGaussian .mode()) and
    # post_quant 1x1 convs constant-folded into its weights at trace time.
    im2col(buf_b, HID, WPB, MPB, SB)
    z = conv(w_eoc, b_eoc, HID, MPB, False) * mask_b[...]
    buf_b[:LAT_PAD, SB:SB + MPB] = z.astype(bf16)

    # ------------------------------- decoder -------------------------------
    im2col(buf_b, LAT_PAD, WPB, MPB, SB)
    d = conv(w_di, b_di, LAT_PAD, MPB, True)
    # nearest-neighbour 2x upsample as replication matmul (ring auto-zeroed)
    d = jnp.dot(d.astype(bf16), u_up[...], preferred_element_type=f32)
    buf_a[:, SA:SA + MPA] = d.astype(bf16)

    im2col(buf_a, HID, WPA, MPA, SA)
    d = conv(w_dm, b_dm, HID, MPA, True) * ma32
    buf_a[:, SA:SA + MPA] = d.astype(bf16)

    im2col(buf_a, HID, WPA, MPA, SA)
    # final conv: no mask multiply (wrapper strips the padding ring)
    d = conv(w_do, b_do, HID, MPA, False)
    o_ref[:, :MPA] = d
    o_ref[:, MPA:] = jnp.zeros((IN_CH, MPA_PAD - MPA), f32)


# ----------------------------------------------------------------------------
# Wrapper: layout / folding prep + single pallas_call
# ----------------------------------------------------------------------------
def _prep_w3(w, cin_pad=None):
    cout, cin = w.shape[0], w.shape[1]
    if cin_pad is not None and cin_pad > cin:
        w = jnp.pad(w, ((0, 0), (0, cin_pad - cin), (0, 0), (0, 0)))
        cin = cin_pad
    # (Cout, Cin, 3, 3) -> (Cout, 3, 3, Cin) -> (Cout, 9*Cin); column t*Cin + c
    # matches the staging-row order used by im2col() in the kernel.
    return jnp.transpose(w, (0, 2, 3, 1)).reshape(cout, KH * KW * cin).astype(jnp.bfloat16)


def _prep_b(b):
    return jnp.asarray(b, jnp.float32).reshape(-1, 1)


def _fold_enc_out(params):
    """Fold quant-mean (mode()) and post_quant 1x1s into the enc_out 3x3 conv."""
    w_eo, b_eo = params["enc_out"]          # (2L, HID, 3, 3), (2L,)
    w_q, b_q = params["quant"]              # (2L, 2L, 1, 1), (2L,)
    w_pq, b_pq = params["post_quant"]       # (L, L, 1, 1),  (L,)
    w_qm = jnp.asarray(w_q)[:LATENT, :, 0, 0]        # mean rows only
    b_qm = jnp.asarray(b_q)[:LATENT]
    w_pq2 = jnp.asarray(w_pq)[:, :, 0, 0]
    w_comb = w_pq2 @ w_qm                             # (L, 2L)
    b_comb = w_pq2 @ b_qm + jnp.asarray(b_pq)         # (L,)
    w_fold = jnp.einsum("po,ocij->pcij", w_comb, jnp.asarray(w_eo))   # (L,HID,3,3)
    b_fold = w_comb @ jnp.asarray(b_eo) + b_comb                      # (L,)
    # pad output channels L -> LAT_PAD with zeros (sublane-aligned staging rows)
    w_fold = jnp.pad(w_fold, ((0, LAT_PAD - LATENT), (0, 0), (0, 0), (0, 0)))
    b_fold = jnp.pad(b_fold, ((0, LAT_PAD - LATENT),))
    return w_fold, b_fold


def autoencoder_forward(params, x_nchw):
    N = x_nchw.shape[0]
    mask_a, mask_b, s_down, u_up = _geometry()

    # NCHW -> ring-padded, channel-padded (3->8), flattened, lane-slacked, bf16
    xp = jnp.pad(x_nchw.astype(jnp.float32),
                 ((0, 0), (0, CIN_PAD - IN_CH), (1, 1), (1, 1)))
    xf = xp.reshape(N, CIN_PAD, MPA)
    x_in = jnp.pad(xf, ((0, 0), (0, 0), (SA, SA))).astype(jnp.bfloat16)

    w_ei, b_ei = params["enc_in"]
    w_ed, b_ed = params["enc_down"]
    w_eoc, b_eoc = _fold_enc_out(params)
    w_di, b_di = params["dec_in"]
    w_dm, b_dm = params["dec_mid"]
    w_do, b_do = params["dec_out"]

    inputs = [
        x_in,
        _prep_w3(w_ei, CIN_PAD), _prep_b(b_ei),
        _prep_w3(w_ed), _prep_b(b_ed),
        _prep_w3(w_eoc), _prep_b(b_eoc),
        _prep_w3(w_di, LAT_PAD), _prep_b(b_di),
        _prep_w3(w_dm), _prep_b(b_dm),
        _prep_w3(w_do), _prep_b(b_do),
        jnp.asarray(s_down, jnp.bfloat16), jnp.asarray(u_up, jnp.bfloat16),
        jnp.asarray(mask_a, jnp.float32), jnp.asarray(mask_b, jnp.float32),
    ]

    def const_spec(arr):
        nd = arr.ndim
        return pl.BlockSpec(arr.shape, lambda i, _nd=nd: (0,) * _nd)

    in_specs = [pl.BlockSpec((None, CIN_PAD, TA), lambda i: (i, 0, 0))]
    in_specs += [const_spec(a) for a in inputs[1:]]

    out = pl.pallas_call(
        _fused_vae_kernel,
        out_shape=jax.ShapeDtypeStruct((N, IN_CH, MPA_PAD), jnp.float32),
        grid=(N,),
        in_specs=in_specs,
        out_specs=pl.BlockSpec((None, IN_CH, MPA_PAD), lambda i: (i, 0, 0)),
        scratch_shapes=[
            pltpu.VMEM((KSTK, MPA), jnp.bfloat16),   # K-stacked im2col staging
            pltpu.VMEM((HID, TA), jnp.bfloat16),     # slack-padded res-A activations
            pltpu.VMEM((HID, TB), jnp.bfloat16),     # slack-padded res-B activations
        ],
        compiler_params=pltpu.CompilerParams(
            dimension_semantics=("parallel",)),
    )(*inputs)

    # strip lane padding + the padding ring -> NCHW reconstruction (".sample")
    return out[:, :, :MPA].reshape(N, IN_CH, HPA, WPA)[:, :, 1:H + 1, 1:W + 1]


# ----------------------------------------------------------------------------
# Synthetic AutoencoderKL-style parameters (deterministic init)
# ----------------------------------------------------------------------------
def _init_conv(key, cout, cin, k):
    kw_, kb_ = jax.random.split(key)
    fan_in = cin * k * k
    w = jax.random.normal(kw_, (cout, cin, k, k), jnp.float32) * (fan_in ** -0.5)
    b = jax.random.normal(kb_, (cout,), jnp.float32) * 0.01
    return w, b


def init_params(key):
    keys = jax.random.split(key, 8)
    return {
        "enc_in": _init_conv(keys[0], HID, IN_CH, 3),        # 3x3 s1 p1
        "enc_down": _init_conv(keys[1], HID, HID, 3),        # 3x3 s2 p1
        "enc_out": _init_conv(keys[2], 2 * LATENT, HID, 3),  # 3x3 s1 p1
        "quant": _init_conv(keys[3], 2 * LATENT, 2 * LATENT, 1),
        "post_quant": _init_conv(keys[4], LATENT, LATENT, 1),
        "dec_in": _init_conv(keys[5], HID, LATENT, 3),
        "dec_mid": _init_conv(keys[6], HID, HID, 3),
        "dec_out": _init_conv(keys[7], IN_CH, HID, 3),
    }


# ----------------------------------------------------------------------------
# Pure-JAX reference of the same forward (f32, un-folded) for a loose check
# ----------------------------------------------------------------------------
def _ref_forward(params, x):
    def conv(t, w, b, stride, pad):
        y = jax.lax.conv_general_dilated(
            t, w, (stride, stride), [(pad, pad), (pad, pad)],
            dimension_numbers=("NCHW", "OIHW", "NCHW"))
        return y + b.reshape(1, -1, 1, 1)

    silu = lambda t: t * jax.nn.sigmoid(t)
    h = silu(conv(x, *params["enc_in"], 1, 1))
    h = silu(conv(h, *params["enc_down"], 2, 1))
    h = conv(h, *params["enc_out"], 1, 1)
    moments = conv(h, *params["quant"], 1, 0)
    z = moments[:, :LATENT]                                   # posterior.mode()
    d = conv(z, *params["post_quant"], 1, 0)
    d = silu(conv(d, *params["dec_in"], 1, 1))
    d = jnp.repeat(jnp.repeat(d, 2, axis=2), 2, axis=3)       # nearest 2x
    d = silu(conv(d, *params["dec_mid"], 1, 1))
    d = conv(d, *params["dec_out"], 1, 1)
    return d


# TODO(synk): encode_cond/decode paths require the pretrained LiftSplatShoot
# checkpoint (camera lift-splat geometry); not reproducible without weights,
# so only forward() (the VAE reconstruction) is implemented here.


if __name__ == "__main__":
    key = jax.random.PRNGKey(0)
    k_param, k_x = jax.random.split(key)
    params = init_params(k_param)

    x = jax.random.normal(k_x, (2, IN_CH, H, W), jnp.float32)

    out = jax.jit(autoencoder_forward)(params, x)
    out = jax.block_until_ready(out)
    assert out.shape == (2, IN_CH, H, W), out.shape
    assert bool(jnp.all(jnp.isfinite(out)))

    # loose check vs f32 reference (kernel uses bf16 matmul operands)
    ref = _ref_forward(params, x)
    err = float(jnp.max(jnp.abs(out - ref)))
    assert err < 0.15, f"max abs err {err}"

    print("KERNEL_OK")
</pallas_src>

<mosaic_0001>
module attributes {stable_mosaic.version = 11 : i64} {
  func.func @_fused_vae_kernel(%arg0: i32, %arg1: memref<1x8x388xbf16, #tpu.memory_space<vmem>>, %arg2: memref<32x72xbf16, #tpu.memory_space<vmem>>, %arg3: memref<32x1xf32, #tpu.memory_space<vmem>>, %arg4: memref<32x288xbf16, #tpu.memory_space<vmem>>, %arg5: memref<32x1xf32, #tpu.memory_space<vmem>>, %arg6: memref<8x288xbf16, #tpu.memory_space<vmem>>, %arg7: memref<8x1xf32, #tpu.memory_space<vmem>>, %arg8: memref<32x72xbf16, #tpu.memory_space<vmem>>, %arg9: memref<32x1xf32, #tpu.memory_space<vmem>>, %arg10: memref<32x288xbf16, #tpu.memory_space<vmem>>, %arg11: memref<32x1xf32, #tpu.memory_space<vmem>>, %arg12: memref<3x288xbf16, #tpu.memory_space<vmem>>, %arg13: memref<3x1xf32, #tpu.memory_space<vmem>>, %arg14: memref<324x100xbf16, #tpu.memory_space<vmem>>, %arg15: memref<100x324xbf16, #tpu.memory_space<vmem>>, %arg16: memref<1x324xf32, #tpu.memory_space<vmem>>, %arg17: memref<1x100xf32, #tpu.memory_space<vmem>>, %arg18: memref<1x3x384xf32, #tpu.memory_space<vmem>>, %arg19: memref<288x324xbf16, #tpu.memory_space<vmem>>, %arg20: memref<32x388xbf16, #tpu.memory_space<vmem>>, %arg21: memref<32x132xbf16, #tpu.memory_space<vmem>>) attributes {dimension_semantics = [#tpu.dimension_semantics<parallel>], iteration_bounds = array<i64: 2>, scalar_prefetch = 0 : i64, scratch_operands = 3 : i64, tpu.core_type = #tpu.core_type<tc>, window_params = [{transform_indices = @transform_0, window_bounds = array<i64: 1, 8, 388>}, {pipeline_mode = #tpu.pipeline_mode<synchronous>, transform_indices = @transform_1, window_bounds = array<i64: 32, 72>}, {pipeline_mode = #tpu.pipeline_mode<synchronous>, transform_indices = @transform_2, window_bounds = array<i64: 32, 1>}, {pipeline_mode = #tpu.pipeline_mode<synchronous>, transform_indices = @transform_3, window_bounds = array<i64: 32, 288>}, {pipeline_mode = #tpu.pipeline_mode<synchronous>, transform_indices = @transform_4, window_bounds = array<i64: 32, 1>}, {pipeline_mode = #tpu.pipeline_mode<synchronous>, transform_indices = @transform_5, window_bounds = array<i64: 8, 288>}, {pipeline_mode = #tpu.pipeline_mode<synchronous>, transform_indices = @transform_6, window_bounds = array<i64: 8, 1>}, {pipeline_mode = #tpu.pipeline_mode<synchronous>, transform_indices = @transform_7, window_bounds = array<i64: 32, 72>}, {pipeline_mode = #tpu.pipeline_mode<synchronous>, transform_indices = @transform_8, window_bounds = array<i64: 32, 1>}, {pipeline_mode = #tpu.pipeline_mode<synchronous>, transform_indices = @transform_9, window_bounds = array<i64: 32, 288>}, {pipeline_mode = #tpu.pipeline_mode<synchronous>, transform_indices = @transform_10, window_bounds = array<i64: 32, 1>}, {pipeline_mode = #tpu.pipeline_mode<synchronous>, transform_indices = @transform_11, window_bounds = array<i64: 3, 288>}, {pipeline_mode = #tpu.pipeline_mode<synchronous>, transform_indices = @transform_12, window_bounds = array<i64: 3, 1>}, {pipeline_mode = #tpu.pipeline_mode<synchronous>, transform_indices = @transform_13, window_bounds = array<i64: 324, 100>}, {pipeline_mode = #tpu.pipeline_mode<synchronous>, transform_indices = @transform_14, window_bounds = array<i64: 100, 324>}, {pipeline_mode = #tpu.pipeline_mode<synchronous>, transform_indices = @transform_15, window_bounds = array<i64: 1, 324>}, {pipeline_mode = #tpu.pipeline_mode<synchronous>, transform_indices = @transform_16, window_bounds = array<i64: 1, 100>}, {transform_indices = @transform_17, window_bounds = array<i64: 1, 3, 384>}]} {
    %cst = arith.constant 0.000000e+00 : bf16
    %0 = vector.broadcast %cst : bf16 to vector<32x32xbf16>
    %c0 = arith.constant 0 : index
    %c0_0 = arith.constant 0 : index
    %1 = vector.load %arg20[%c0, %c0_0] : memref<32x388xbf16, #tpu.memory_space<vmem>>, vector<32x32xbf16>
    tpu.vector_store %arg20[%c0, %c0_0], %0 {strides = array<i32>} : memref<32x388xbf16, #tpu.memory_space<vmem>>, vector<32x32xbf16>,
    %cst_1 = arith.constant 0.000000e+00 : bf16
    %2 = vector.broadcast %cst_1 : bf16 to vector<32x32xbf16>
    %c0_2 = arith.constant 0 : index
    %c356 = arith.constant 356 : index
    %3 = vector.load %arg20[%c0_2, %c356] : memref<32x388xbf16, #tpu.memory_space<vmem>>, vector<32x32xbf16>
    tpu.vector_store %arg20[%c0_2, %c356], %2 {strides = array<i32>} : memref<32x388xbf16, #tpu.memory_space<vmem>>, vector<32x32xbf16>,
    %cst_3 = arith.constant 0.000000e+00 : bf16
    %4 = vector.broadcast %cst_3 : bf16 to vector<32x16xbf16>
    %c0_4 = arith.constant 0 : index
    %c0_5 = arith.constant 0 : index
    %5 = vector.load %arg21[%c0_4, %c0_5] : memref<32x132xbf16, #tpu.memory_space<vmem>>, vector<32x16xbf16>
    tpu.vector_store %arg21[%c0_4, %c0_5], %4 {strides = array<i32>} : memref<32x132xbf16, #tpu.memory_space<vmem>>, vector<32x16xbf16>,
    %cst_6 = arith.constant 0.000000e+00 : bf16
    %6 = vector.broadcast %cst_6 : bf16 to vector<32x16xbf16>
    %c0_7 = arith.constant 0 : index
    %c116 = arith.constant 116 : index
    %7 = vector.load %arg21[%c0_7, %c116] : memref<32x132xbf16, #tpu.memory_space<vmem>>, vector<32x16xbf16>
    tpu.vector_store %arg21[%c0_7, %c116], %6 {strides = array<i32>} : memref<32x132xbf16, #tpu.memory_space<vmem>>, vector<32x16xbf16>,
    %c0_8 = arith.constant 0 : index
    %c0_9 = arith.constant 0 : index
    %8 = vector.load %arg16[%c0_8, %c0_9] : memref<1x324xf32, #tpu.memory_space<vmem>>, vector<1x324xf32>
    %9 = vector.shape_cast %8 : vector<1x324xf32> to vector<1x324xf32>
    %10 = vector.broadcast %9 : vector<1x324xf32> to vector<32x324xf32>
    %c0_10 = arith.constant 0 : index
    %c0_11 = arith.constant 0 : index
    %c13 = arith.constant 13 : index
    %11 = vector.load %arg1[%c0_10, %c0_11, %c13] : memref<1x8x388xbf16, #tpu.memory_space<vmem>>, vector<1x8x324xbf16>
    %12 = vector.shape_cast %11 : vector<1x8x324xbf16> to vector<8x324xbf16>
    %c0_12 = arith.constant 0 : index
    %c0_13 = arith.constant 0 : index
    %13 = vector.load %arg19[%c0_12, %c0_13] : memref<288x324xbf16, #tpu.memory_space<vmem>>, vector<8x324xbf16>
    tpu.vector_store %arg19[%c0_12, %c0_13], %12 {strides = array<i32>} : memref<288x324xbf16, #tpu.memory_space<vmem>>, vector<8x324xbf16>,
    %c0_14 = arith.constant 0 : index
    %c0_15 = arith.constant 0 : index
    %c14 = arith.constant 14 : index
    %14 = vector.load %arg1[%c0_14, %c0_15, %c14] : memref<1x8x388xbf16, #tpu.memory_space<vmem>>, vector<1x8x324xbf16>
    %15 = vector.shape_cast %14 : vector<1x8x324xbf16> to vector<8x324xbf16>
    %c8 = arith.constant 8 : index
    %c0_16 = arith.constant 0 : index
    %16 = vector.load %arg19[%c8, %c0_16] : memref<288x324xbf16, #tpu.memory_space<vmem>>, vector<8x324xbf16>
    tpu.vector_store %arg19[%c8, %c0_16], %15 {strides = array<i32>} : memref<288x324xbf16, #tpu.memory_space<vmem>>, vector<8x324xbf16>,
    %c0_17 = arith.constant 0 : index
    %c0_18 = arith.constant 0 : index
    %c15 = arith.constant 15 : index
    %17 = vector.load %arg1[%c0_17, %c0_18, %c15] : memref<1x8x388xbf16, #tpu.memory_space<vmem>>, vector<1x8x324xbf16>
    %18 = vector.shape_cast %17 : vector<1x8x324xbf16> to vector<8x324xbf16>
    %c16 = arith.constant 16 : index
    %c0_19 = arith.constant 0 : index
    %19 = vector.load %arg19[%c16, %c0_19] : memref<288x324xbf16, #tpu.memory_space<vmem>>, vector<8x324xbf16>
    tpu.vector_store %arg19[%c16, %c0_19], %18 {strides = array<i32>} : memref<288x324xbf16, #tpu.memory_space<vmem>>, vector<8x324xbf16>,
    %c0_20 = arith.constant 0 : index
    %c0_21 = arith.constant 0 : index
    %c31 = arith.constant 31 : index
    %20 = vector.load %arg1[%c0_20, %c0_21, %c31] : memref<1x8x388xbf16, #tpu.memory_space<vmem>>, vector<1x8x324xbf16>
    %21 = vector.shape_cast %20 : vector<1x8x324xbf16> to vector<8x324xbf16>
    %c24 = arith.constant 24 : index
    %c0_22 = arith.constant 0 : index
    %22 = vector.load %arg19[%c24, %c0_22] : memref<288x324xbf16, #tpu.memory_space<vmem>>, vector<8x324xbf16>
    tpu.vector_store %arg19[%c24, %c0_22], %21 {strides = array<i32>} : memref<288x324xbf16, #tpu.memory_space<vmem>>, vector<8x324xbf16>,
    %c0_23 = arith.constant 0 : index
    %c0_24 = arith.constant 0 : index
    %c32 = arith.constant 32 : index
    %23 = vector.load %arg1[%c0_23, %c0_24, %c32] : memref<1x8x388xbf16, #tpu.memory_space<vmem>>, vector<1x8x324xbf16>
    %24 = vector.shape_cast %23 : vector<1x8x324xbf16> to vector<8x324xbf16>
    %c32_25 = arith.constant 32 : index
    %c0_26 = arith.constant 0 : index
    %25 = vector.load %arg19[%c32_25, %c0_26] : memref<288x324xbf16, #tpu.memory_space<vmem>>, vector<8x324xbf16>
    tpu.vector_store %arg19[%c32_25, %c0_26], %24 {strides = array<i32>} : memref<288x324xbf16, #tpu.memory_space<vmem>>, vector<8x324xbf16>,
    %c0_27 = arith.constant 0 : index
    %c0_28 = arith.constant 0 : index
    %c33 = arith.constant 33 : index
    %26 = vector.load %arg1[%c0_27, %c0_28, %c33] : memref<1x8x388xbf16, #tpu.memory_space<vmem>>, vector<1x8x324xbf16>
    %27 = vector.shape_cast %26 : vector<1x8x324xbf16> to vector<8x324xbf16>
    %c40 = arith.constant 40 : index
    %c0_29 = arith.constant 0 : index
    %28 = vector.load %arg19[%c40, %c0_29] : memref<288x324xbf16, #tpu.memory_space<vmem>>, vector<8x324xbf16>
    tpu.vector_store %arg19[%c40, %c0_29], %27 {strides = array<i32>} : memref<288x324xbf16, #tpu.memory_space<vmem>>, vector<8x324xbf16>,
    %c0_30 = arith.constant 0 : index
    %c0_31 = arith.constant 0 : index
    %c49 = arith.constant 49 : index
    %29 = vector.load %arg1[%c0_30, %c0_31, %c49] : memref<1x8x388xbf16, #tpu.memory_space<vmem>>, vector<1x8x324xbf16>
    %30 = vector.shape_cast %29 : vector<1x8x324xbf16> to vector<8x324xbf16>
    %c48 = arith.constant 48 : index
    %c0_32 = arith.constant 0 : index
    %31 = vector.load %arg19[%c48, %c0_32] : memref<288x324xbf16, #tpu.memory_space<vmem>>, vector<8x324xbf16>
    tpu.vector_store %arg19[%c48, %c0_32], %30 {strides = array<i32>} : memref<288x324xbf16, #tpu.memory_space<vmem>>, vector<8x324xbf16>,
    %c0_33 = arith.constant 0 : index
    %c0_34 = arith.constant 0 : index
    %c50 = arith.constant 50 : index
    %32 = vector.load %arg1[%c0_33, %c0_34, %c50] : memref<1x8x388xbf16, #tpu.memory_space<vmem>>, vector<1x8x324xbf16>
    %33 = vector.shape_cast %32 : vector<1x8x324xbf16> to vector<8x324xbf16>
    %c56 = arith.constant 56 : index
    %c0_35 = arith.constant 0 : index
    %34 = vector.load %arg19[%c56, %c0_35] : memref<288x324xbf16, #tpu.memory_space<vmem>>, vector<8x324xbf16>
    tpu.vector_store %arg19[%c56, %c0_35], %33 {strides = array<i32>} : memref<288x324xbf16, #tpu.memory_space<vmem>>, vector<8x324xbf16>,
    %c0_36 = arith.constant 0 : index
    %c0_37 = arith.constant 0 : index
    %c51 = arith.constant 51 : index
    %35 = vector.load %arg1[%c0_36, %c0_37, %c51] : memref<1x8x388xbf16, #tpu.memory_space<vmem>>, vector<1x8x324xbf16>
    %36 = vector.shape_cast %35 : vector<1x8x324xbf16> to vector<8x324xbf16>
    %c64 = arith.constant 64 : index
    %c0_38 = arith.constant 0 : index
    %37 = vector.load %arg19[%c64, %c0_38] : memref<288x324xbf16, #tpu.memory_space<vmem>>, vector<8x324xbf16>
    tpu.vector_store %arg19[%c64, %c0_38], %36 {strides = array<i32>} : memref<288x324xbf16, #tpu.memory_space<vmem>>, vector<8x324xbf16>,
    %c0_39 = arith.constant 0 : index
    %c0_40 = arith.constant 0 : index
    %38 = vector.load %arg2[%c0_39, %c0_40] : memref<32x72xbf16, #tpu.memory_space<vmem>>, vector<32x72xbf16>
    %c0_41 = arith.constant 0 : index
    %c0_42 = arith.constant 0 : index
    %39 = vector.load %arg19[%c0_41, %c0_42] : memref<288x324xbf16, #tpu.memory_space<vmem>>, vector<72x324xbf16>
    %cst_43 = arith.constant dense<0.000000e+00> : vector<32x324xf32>
    %40 = tpu.matmul %38, %39, %cst_43 {dimension_numbers = #tpu.dot_dimension_numbers<[1], [0], [0], [1], [0, 0, 1, 1], [], []>} : vector<32x72xbf16>, vector<72x324xbf16>, vector<32x324xf32> -> vector<32x324xf32>
    %c0_44 = arith.constant 0 : index
    %c0_45 = arith.constant 0 : index
    %41 = vector.load %arg3[%c0_44, %c0_45] : memref<32x1xf32, #tpu.memory_space<vmem>>, vector<32x1xf32>
    %42 = vector.broadcast %41 : vector<32x1xf32> to vector<32x324xf32>
    %43 = arith.addf %40, %42 : vector<32x324xf32>
    %44 = arith.negf %43 : vector<32x324xf32>
    %45 = math.exp %44 : vector<32x324xf32>
    %cst_46 = arith.constant 1.000000e+00 : f32
    %46 = vector.broadcast %cst_46 : f32 to vector<32x324xf32>
    %47 = arith.addf %46, %45 : vector<32x324xf32>
    %48 = arith.divf %46, %47 : vector<32x324xf32>
    %49 = arith.mulf %43, %48 : vector<32x324xf32>
    %50 = arith.mulf %49, %10 : vector<32x324xf32>
    %51 = arith.truncf %50 : vector<32x324xf32> to vector<32x324xbf16>
    %c0_47 = arith.constant 0 : index
    %c32_48 = arith.constant 32 : index
    %52 = vector.load %arg20[%c0_47, %c32_48] : memref<32x388xbf16, #tpu.memory_space<vmem>>, vector<32x324xbf16>
    tpu.vector_store %arg20[%c0_47, %c32_48], %51 {strides = array<i32>} : memref<32x388xbf16, #tpu.memory_space<vmem>>, vector<32x324xbf16>,
    %c0_49 = arith.constant 0 : index
    %c13_50 = arith.constant 13 : index
    %53 = vector.load %arg20[%c0_49, %c13_50] : memref<32x388xbf16, #tpu.memory_space<vmem>>, vector<32x324xbf16>
    %c0_51 = arith.constant 0 : index
    %c0_52 = arith.constant 0 : index
    %54 = vector.load %arg19[%c0_51, %c0_52] : memref<288x324xbf16, #tpu.memory_space<vmem>>, vector<32x324xbf16>
    tpu.vector_store %arg19[%c0_51, %c0_52], %53 {strides = array<i32>} : memref<288x324xbf16, #tpu.memory_space<vmem>>, vector<32x324xbf16>,
    %c0_53 = arith.constant 0 : index
    %c14_54 = arith.constant 14 : index
    %55 = vector.load %arg20[%c0_53, %c14_54] : memref<32x388xbf16, #tpu.memory_space<vmem>>, vector<32x324xbf16>
    %c32_55 = arith.constant 32 : index
    %c0_56 = arith.constant 0 : index
    %56 = vector.load %arg19[%c32_55, %c0_56] : memref<288x324xbf16, #tpu.memory_space<vmem>>, vector<32x324xbf16>
    tpu.vector_store %arg19[%c32_55, %c0_56], %55 {strides = array<i32>} : memref<288x324xbf16, #tpu.memory_space<vmem>>, vector<32x324xbf16>,
    %c0_57 = arith.constant 0 : index
    %c15_58 = arith.constant 15 : index
    %57 = vector.load %arg20[%c0_57, %c15_58] : memref<32x388xbf16, #tpu.memory_space<vmem>>, vector<32x324xbf16>
    %c64_59 = arith.constant 64 : index
    %c0_60 = arith.constant 0 : index
    %58 = vector.load %arg19[%c64_59, %c0_60] : memref<288x324xbf16, #tpu.memory_space<vmem>>, vector<32x324xbf16>
    tpu.vector_store %arg19[%c64_59, %c0_60], %57 {strides = array<i32>} : memref<288x324xbf16, #tpu.memory_space<vmem>>, vector<32x324xbf16>,
    %c0_61 = arith.constant 0 : index
    %c31_62 = arith.constant 31 : index
    %59 = vector.load %arg20[%c0_61, %c31_62] : memref<32x388xbf16, #tpu.memory_space<vmem>>, vector<32x324xbf16>
    %c96 = arith.constant 96 : index
    %c0_63 = arith.constant 0 : index
    %60 = vector.load %arg19[%c96, %c0_63] : memref<288x324xbf16, #tpu.memory_space<vmem>>, vector<32x324xbf16>
    tpu.vector_store %arg19[%c96, %c0_63], %59 {strides = array<i32>} : memref<288x324xbf16, #tpu.memory_space<vmem>>, vector<32x324xbf16>,
    %c0_64 = arith.constant 0 : index
    %c32_65 = arith.constant 32 : index
    %61 = vector.load %arg20[%c0_64, %c32_65] : memref<32x388xbf16, #tpu.memory_space<vmem>>, vector<32x324xbf16>
    %c128 = arith.constant 128 : index
    %c0_66 = arith.constant 0 : index
    %62 = vector.load %arg19[%c128, %c0_66] : memref<288x324xbf16, #tpu.memory_space<vmem>>, vector<32x324xbf16>
    tpu.vector_store %arg19[%c128, %c0_66], %61 {strides = array<i32>} : memref<288x324xbf16, #tpu.memory_space<vmem>>, vector<32x324xbf16>,
    %c0_67 = arith.constant 0 : index
    %c33_68 = arith.constant 33 : index
    %63 = vector.load %arg20[%c0_67, %c33_68] : memref<32x388xbf16, #tpu.memory_space<vmem>>, vector<32x324xbf16>
    %c160 = arith.constant 160 : index
    %c0_69 = arith.constant 0 : index
    %64 = vector.load %arg19[%c160, %c0_69] : memref<288x324xbf16, #tpu.memory_space<vmem>>, vector<32x324xbf16>
    tpu.vector_store %arg19[%c160, %c0_69], %63 {strides = array<i32>} : memref<288x324xbf16, #tpu.memory_space<vmem>>, vector<32x324xbf16>,
    %c0_70 = arith.constant 0 : index
    %c49_71 = arith.constant 49 : index
    %65 = vector.load %arg20[%c0_70, %c49_71] : memref<32x388xbf16, #tpu.memory_space<vmem>>, vector<32x324xbf16>
    %c192 = arith.constant 192 : index
    %c0_72 = arith.constant 0 : index
    %66 = vector.load %arg19[%c192, %c0_72] : memref<288x324xbf16, #tpu.memory_space<vmem>>, vector<32x324xbf16>
    tpu.vector_store %arg19[%c192, %c0_72], %65 {strides = array<i32>} : memref<288x324xbf16, #tpu.memory_space<vmem>>, vector<32x324xbf16>,
    %c0_73 = arith.constant 0 : index
    %c50_74 = arith.constant 50 : index
    %67 = vector.load %arg20[%c0_73, %c50_74] : memref<32x388xbf16, #tpu.memory_space<vmem>>, vector<32x324xbf16>
    %c224 = arith.constant 224 : index
    %c0_75 = arith.constant 0 : index
    %68 = vector.load %arg19[%c224, %c0_75] : memref<288x324xbf16, #tpu.memory_space<vmem>>, vector<32x324xbf16>
    tpu.vector_store %arg19[%c224, %c0_75], %67 {strides = array<i32>} : memref<288x324xbf16, #tpu.memory_space<vmem>>, vector<32x324xbf16>,
    %c0_76 = arith.constant 0 : index
    %c51_77 = arith.constant 51 : index
    %69 = vector.load %arg20[%c0_76, %c51_77] : memref<32x388xbf16, #tpu.memory_space<vmem>>, vector<32x324xbf16>
    %c256 = arith.constant 256 : index
    %c0_78 = arith.constant 0 : index
    %70 = vector.load %arg19[%c256, %c0_78] : memref<288x324xbf16, #tpu.memory_space<vmem>>, vector<32x324xbf16>
    tpu.vector_store %arg19[%c256, %c0_78], %69 {strides = array<i32>} : memref<288x324xbf16, #tpu.memory_space<vmem>>, vector<32x324xbf16>,
    %c0_79 = arith.constant 0 : index
    %c0_80 = arith.constant 0 : index
    %71 = vector.load %arg4[%c0_79, %c0_80] : memref<32x288xbf16, #tpu.memory_space<vmem>>, vector<32x288xbf16>
    %c0_81 = arith.constant 0 : index
    %c0_82 = arith.constant 0 : index
    %72 = vector.load %arg19[%c0_81, %c0_82] : memref<288x324xbf16, #tpu.memory_space<vmem>>, vector<288x324xbf16>
    %cst_83 = arith.constant dense<0.000000e+00> : vector<32x324xf32>
    %73 = tpu.matmul %71, %72, %cst_83 {dimension_numbers = #tpu.dot_dimension_numbers<[1], [0], [0], [1], [0, 0, 1, 1], [], []>} : vector<32x288xbf16>, vector<288x324xbf16>, vector<32x324xf32> -> vector<32x324xf32>
    %c0_84 = arith.constant 0 : index
    %c0_85 = arith.constant 0 : index
    %74 = vector.load %arg5[%c0_84, %c0_85] : memref<32x1xf32, #tpu.memory_space<vmem>>, vector<32x1xf32>
    %75 = vector.broadcast %74 : vector<32x1xf32> to vector<32x324xf32>
    %76 = arith.addf %73, %75 : vector<32x324xf32>
    %77 = arith.negf %76 : vector<32x324xf32>
    %78 = math.exp %77 : vector<32x324xf32>
    %cst_86 = arith.constant 1.000000e+00 : f32
    %79 = vector.broadcast %cst_86 : f32 to vector<32x324xf32>
    %80 = arith.addf %79, %78 : vector<32x324xf32>
    %81 = arith.divf %79, %80 : vector<32x324xf32>
    %82 = arith.mulf %76, %81 : vector<32x324xf32>
    %83 = arith.truncf %82 : vector<32x324xf32> to vector<32x324xbf16>
    %c0_87 = arith.constant 0 : index
    %c0_88 = arith.constant 0 : index
    %84 = vector.load %arg14[%c0_87, %c0_88] : memref<324x100xbf16, #tpu.memory_space<vmem>>, vector<324x100xbf16>
    %cst_89 = arith.constant dense<0.000000e+00> : vector<32x100xf32>
    %85 = tpu.matmul %83, %84, %cst_89 {dimension_numbers = #tpu.dot_dimension_numbers<[1], [0], [0], [1], [0, 0, 1, 1], [], []>} : vector<32x324xbf16>, vector<324x100xbf16>, vector<32x100xf32> -> vector<32x100xf32>
    %86 = arith.truncf %85 : vector<32x100xf32> to vector<32x100xbf16>
    %c0_90 = arith.constant 0 : index
    %c16_91 = arith.constant 16 : index
    %87 = vector.load %arg21[%c0_90, %c16_91] : memref<32x132xbf16, #tpu.memory_space<vmem>>, vector<32x100xbf16>
    tpu.vector_store %arg21[%c0_90, %c16_91], %86 {strides = array<i32>} : memref<32x132xbf16, #tpu.memory_space<vmem>>, vector<32x100xbf16>,
    %c0_92 = arith.constant 0 : index
    %c5 = arith.constant 5 : index
    %88 = vector.load %arg21[%c0_92, %c5] : memref<32x132xbf16, #tpu.memory_space<vmem>>, vector<32x100xbf16>
    %c0_93 = arith.constant 0 : index
    %c0_94 = arith.constant 0 : index
    %89 = vector.load %arg19[%c0_93, %c0_94] : memref<288x324xbf16, #tpu.memory_space<vmem>>, vector<32x100xbf16>
    tpu.vector_store %arg19[%c0_93, %c0_94], %88 {strides = array<i32>} : memref<288x324xbf16, #tpu.memory_space<vmem>>, vector<32x100xbf16>,
    %c0_95 = arith.constant 0 : index
    %c6 = arith.constant 6 : index
    %90 = vector.load %arg21[%c0_95, %c6] : memref<32x132xbf16, #tpu.memory_space<vmem>>, vector<32x100xbf16>
    %c32_96 = arith.constant 32 : index
    %c0_97 = arith.constant 0 : index
    %91 = vector.load %arg19[%c32_96, %c0_97] : memref<288x324xbf16, #tpu.memory_space<vmem>>, vector<32x100xbf16>
    tpu.vector_store %arg19[%c32_96, %c0_97], %90 {strides = array<i32>} : memref<288x324xbf16, #tpu.memory_space<vmem>>, vector<32x100xbf16>,
    %c0_98 = arith.constant 0 : index
    %c7 = arith.constant 7 : index
    %92 = vector.load %arg21[%c0_98, %c7] : memref<32x132xbf16, #tpu.memory_space<vmem>>, vector<32x100xbf16>
    %c64_99 = arith.constant 64 : index
    %c0_100 = arith.constant 0 : index
    %93 = vector.load %arg19[%c64_99, %c0_100] : memref<288x324xbf16, #tpu.memory_space<vmem>>, vector<32x100xbf16>
    tpu.vector_store %arg19[%c64_99, %c0_100], %92 {strides = array<i32>} : memref<288x324xbf16, #tpu.memory_space<vmem>>, vector<32x100xbf16>,
    %c0_101 = arith.constant 0 : index
    %c15_102 = arith.constant 15 : index
    %94 = vector.load %arg21[%c0_101, %c15_102] : memref<32x132xbf16, #tpu.memory_space<vmem>>, vector<32x100xbf16>
    %c96_103 = arith.constant 96 : index
    %c0_104 = arith.constant 0 : index
    %95 = vector.load %arg19[%c96_103, %c0_104] : memref<288x324xbf16, #tpu.memory_space<vmem>>, vector<32x100xbf16>
    tpu.vector_store %arg19[%c96_103, %c0_104], %94 {strides = array<i32>} : memref<288x324xbf16, #tpu.memory_space<vmem>>, vector<32x100xbf16>,
    %c0_105 = arith.constant 0 : index
    %c16_106 = arith.constant 16 : index
    %96 = vector.load %arg21[%c0_105, %c16_106] : memref<32x132xbf16, #tpu.memory_space<vmem>>, vector<32x100xbf16>
    %c128_107 = arith.constant 128 : index
    %c0_108 = arith.constant 0 : index
    %97 = vector.load %arg19[%c128_107, %c0_108] : memref<288x324xbf16, #tpu.memory_space<vmem>>, vector<32x100xbf16>
    tpu.vector_store %arg19[%c128_107, %c0_108], %96 {strides = array<i32>} : memref<288x324xbf16, #tpu.memory_space<vmem>>, vector<32x100xbf16>,
    %c0_109 = arith.constant 0 : index
    %c17 = arith.constant 17 : index
    %98 = vector.load %arg21[%c0_109, %c17] : memref<32x132xbf16, #tpu.memory_space<vmem>>, vector<32x100xbf16>
    %c160_110 = arith.constant 160 : index
    %c0_111 = arith.constant 0 : index
    %99 = vector.load %arg19[%c160_110, %c0_111] : memref<288x324xbf16, #tpu.memory_space<vmem>>, vector<32x100xbf16>
    tpu.vector_store %arg19[%c160_110, %c0_111], %98 {strides = array<i32>} : memref<288x324xbf16, #tpu.memory_space<vmem>>, vector<32x100xbf16>,
    %c0_112 = arith.constant 0 : index
    %c25 = arith.constant 25 : index
    %100 = vector.load %arg21[%c0_112, %c25] : memref<32x132xbf16, #tpu.memory_space<vmem>>, vector<32x100xbf16>
    %c192_113 = arith.constant 192 : index
    %c0_114 = arith.constant 0 : index
    %101 = vector.load %arg19[%c192_113, %c0_114] : memref<288x324xbf16, #tpu.memory_space<vmem>>, vector<32x100xbf16>
    tpu.vector_store %arg19[%c192_113, %c0_114], %100 {strides = array<i32>} : memref<288x324xbf16, #tpu.memory_space<vmem>>, vector<32x100xbf16>,
    %c0_115 = arith.constant 0 : index
    %c26 = arith.constant 26 : index
    %102 = vector.load %arg21[%c0_115, %c26] : memref<32x132xbf16, #tpu.memory_space<vmem>>, vector<32x100xbf16>
    %c224_116 = arith.constant 224 : index
    %c0_117 = arith.constant 0 : index
    %103 = vector.load %arg19[%c224_116, %c0_117] : memref<288x324xbf16, #tpu.memory_space<vmem>>, vector<32x100xbf16>
    tpu.vector_store %arg19[%c224_116, %c0_117], %102 {strides = array<i32>} : memref<288x324xbf16, #tpu.memory_space<vmem>>, vector<32x100xbf16>,
    %c0_118 = arith.constant 0 : index
    %c27 = arith.constant 27 : index
    %104 = vector.load %arg21[%c0_118, %c27] : memref<32x132xbf16, #tpu.memory_space<vmem>>, vector<32x100xbf16>
    %c256_119 = arith.constant 256 : index
    %c0_120 = arith.constant 0 : index
    %105 = vector.load %arg19[%c256_119, %c0_120] : memref<288x324xbf16, #tpu.memory_space<vmem>>, vector<32x100xbf16>
    tpu.vector_store %arg19[%c256_119, %c0_120], %104 {strides = array<i32>} : memref<288x324xbf16, #tpu.memory_space<vmem>>, vector<32x100xbf16>,
    %c0_121 = arith.constant 0 : index
    %c0_122 = arith.constant 0 : index
    %106 = vector.load %arg6[%c0_121, %c0_122] : memref<8x288xbf16, #tpu.memory_space<vmem>>, vector<8x288xbf16>
    %c0_123 = arith.constant 0 : index
    %c0_124 = arith.constant 0 : index
    %107 = vector.load %arg19[%c0_123, %c0_124] : memref<288x324xbf16, #tpu.memory_space<vmem>>, vector<288x100xbf16>
    %cst_125 = arith.constant dense<0.000000e+00> : vector<8x100xf32>
    %108 = tpu.matmul %106, %107, %cst_125 {dimension_numbers = #tpu.dot_dimension_numbers<[1], [0], [0], [1], [0, 0, 1, 1], [], []>} : vector<8x288xbf16>, vector<288x100xbf16>, vector<8x100xf32> -> vector<8x100xf32>
    %c0_126 = arith.constant 0 : index
    %c0_127 = arith.constant 0 : index
    %109 = vector.load %arg7[%c0_126, %c0_127] : memref<8x1xf32, #tpu.memory_space<vmem>>, vector<8x1xf32>
    %110 = vector.broadcast %109 : vector<8x1xf32> to vector<8x100xf32>
    %111 = arith.addf %108, %110 : vector<8x100xf32>
    %c0_128 = arith.constant 0 : index
    %c0_129 = arith.constant 0 : index
    %112 = vector.load %arg17[%c0_128, %c0_129] : memref<1x100xf32, #tpu.memory_space<vmem>>, vector<1x100xf32>
    %113 = vector.broadcast %112 : vector<1x100xf32> to vector<8x100xf32>
    %114 = arith.mulf %111, %113 : vector<8x100xf32>
    %115 = arith.truncf %114 : vector<8x100xf32> to vector<8x100xbf16>
    %c0_130 = arith.constant 0 : index
    %c16_131 = arith.constant 16 : index
    %116 = vector.load %arg21[%c0_130, %c16_131] : memref<32x132xbf16, #tpu.memory_space<vmem>>, vector<8x100xbf16>
    tpu.vector_store %arg21[%c0_130, %c16_131], %115 {strides = array<i32>} : memref<32x132xbf16, #tpu.memory_space<vmem>>, vector<8x100xbf16>,
    %c0_132 = arith.constant 0 : index
    %c5_133 = arith.constant 5 : index
    %117 = vector.load %arg21[%c0_132, %c5_133] : memref<32x132xbf16, #tpu.memory_space<vmem>>, vector<8x100xbf16>
    %c0_134 = arith.constant 0 : index
    %c0_135 = arith.constant 0 : index
    %118 = vector.load %arg19[%c0_134, %c0_135] : memref<288x324xbf16, #tpu.memory_space<vmem>>, vector<8x100xbf16>
    tpu.vector_store %arg19[%c0_134, %c0_135], %117 {strides = array<i32>} : memref<288x324xbf16, #tpu.memory_space<vmem>>, vector<8x100xbf16>,
    %c0_136 = arith.constant 0 : index
    %c6_137 = arith.constant 6 : index
    %119 = vector.load %arg21[%c0_136, %c6_137] : memref<32x132xbf16, #tpu.memory_space<vmem>>, vector<8x100xbf16>
    %c8_138 = arith.constant 8 : index
    %c0_139 = arith.constant 0 : index
    %120 = vector.load %arg19[%c8_138, %c0_139] : memref<288x324xbf16, #tpu.memory_space<vmem>>, vector<8x100xbf16>
    tpu.vector_store %arg19[%c8_138, %c0_139], %119 {strides = array<i32>} : memref<288x324xbf16, #tpu.memory_space<vmem>>, vector<8x100xbf16>,
    %c0_140 = arith.constant 0 : index
    %c7_141 = arith.constant 7 : index
    %121 = vector.load %arg21[%c0_140, %c7_141] : memref<32x132xbf16, #tpu.memory_space<vmem>>, vector<8x100xbf16>
    %c16_142 = arith.constant 16 : index
    %c0_143 = arith.constant 0 : index
    %122 = vector.load %arg19[%c16_142, %c0_143] : memref<288x324xbf16, #tpu.memory_space<vmem>>, vector<8x100xbf16>
    tpu.vector_store %arg19[%c16_142, %c0_143], %121 {strides = array<i32>} : memref<288x324xbf16, #tpu.memory_space<vmem>>, vector<8x100xbf16>,
    %c0_144 = arith.constant 0 : index
    %c15_145 = arith.constant 15 : index
    %123 = vector.load %arg21[%c0_144, %c15_145] : memref<32x132xbf16, #tpu.memory_space<vmem>>, vector<8x100xbf16>
    %c24_146 = arith.constant 24 : index
    %c0_147 = arith.constant 0 : index
    %124 = vector.load %arg19[%c24_146, %c0_147] : memref<288x324xbf16, #tpu.memory_space<vmem>>, vector<8x100xbf16>
    tpu.vector_store %arg19[%c24_146, %c0_147], %123 {strides = array<i32>} : memref<288x324xbf16, #tpu.memory_space<vmem>>, vector<8x100xbf16>,
    %c0_148 = arith.constant 0 : index
    %c16_149 = arith.constant 16 : index
    %125 = vector.load %arg21[%c0_148, %c16_149] : memref<32x132xbf16, #tpu.memory_space<vmem>>, vector<8x100xbf16>
    %c32_150 = arith.constant 32 : index
    %c0_151 = arith.constant 0 : index
    %126 = vector.load %arg19[%c32_150, %c0_151] : memref<288x324xbf16, #tpu.memory_space<vmem>>, vector<8x100xbf16>
    tpu.vector_store %arg19[%c32_150, %c0_151], %125 {strides = array<i32>} : memref<288x324xbf16, #tpu.memory_space<vmem>>, vector<8x100xbf16>,
    %c0_152 = arith.constant 0 : index
    %c17_153 = arith.constant 17 : index
    %127 = vector.load %arg21[%c0_152, %c17_153] : memref<32x132xbf16, #tpu.memory_space<vmem>>, vector<8x100xbf16>
    %c40_154 = arith.constant 40 : index
    %c0_155 = arith.constant 0 : index
    %128 = vector.load %arg19[%c40_154, %c0_155] : memref<288x324xbf16, #tpu.memory_space<vmem>>, vector<8x100xbf16>
    tpu.vector_store %arg19[%c40_154, %c0_155], %127 {strides = array<i32>} : memref<288x324xbf16, #tpu.memory_space<vmem>>, vector<8x100xbf16>,
    %c0_156 = arith.constant 0 : index
    %c25_157 = arith.constant 25 : index
    %129 = vector.load %arg21[%c0_156, %c25_157] : memref<32x132xbf16, #tpu.memory_space<vmem>>, vector<8x100xbf16>
    %c48_158 = arith.constant 48 : index
    %c0_159 = arith.constant 0 : index
    %130 = vector.load %arg19[%c48_158, %c0_159] : memref<288x324xbf16, #tpu.memory_space<vmem>>, vector<8x100xbf16>
    tpu.vector_store %arg19[%c48_158, %c0_159], %129 {strides = array<i32>} : memref<288x324xbf16, #tpu.memory_space<vmem>>, vector<8x100xbf16>,
    %c0_160 = arith.constant 0 : index
    %c26_161 = arith.constant 26 : index
    %131 = vector.load %arg21[%c0_160, %c26_161] : memref<32x132xbf16, #tpu.memory_space<vmem>>, vector<8x100xbf16>
    %c56_162 = arith.constant 56 : index
    %c0_163 = arith.constant 0 : index
    %132 = vector.load %arg19[%c56_162, %c0_163] : memref<288x324xbf16, #tpu.memory_space<vmem>>, vector<8x100xbf16>
    tpu.vector_store %arg19[%c56_162, %c0_163], %131 {strides = array<i32>} : memref<288x324xbf16, #tpu.memory_space<vmem>>, vector<8x100xbf16>,
    %c0_164 = arith.constant 0 : index
    %c27_165 = arith.constant 27 : index
    %133 = vector.load %arg21[%c0_164, %c27_165] : memref<32x132xbf16, #tpu.memory_space<vmem>>, vector<8x100xbf16>
    %c64_166 = arith.constant 64 : index
    %c0_167 = arith.constant 0 : index
    %134 = vector.load %arg19[%c64_166, %c0_167] : memref<288x324xbf16, #tpu.memory_space<vmem>>, vector<8x100xbf16>
    tpu.vector_store %arg19[%c64_166, %c0_167], %133 {strides = array<i32>} : memref<288x324xbf16, #tpu.memory_space<vmem>>, vector<8x100xbf16>,
    %c0_168 = arith.constant 0 : index
    %c0_169 = arith.constant 0 : index
    %135 = vector.load %arg8[%c0_168, %c0_169] : memref<32x72xbf16, #tpu.memory_space<vmem>>, vector<32x72xbf16>
    %c0_170 = arith.constant 0 : index
    %c0_171 = arith.constant 0 : index
    %136 = vector.load %arg19[%c0_170, %c0_171] : memref<288x324xbf16, #tpu.memory_space<vmem>>, vector<72x100xbf16>
    %cst_172 = arith.constant dense<0.000000e+00> : vector<32x100xf32>
    %137 = tpu.matmul %135, %136, %cst_172 {dimension_numbers = #tpu.dot_dimension_numbers<[1], [0], [0], [1], [0, 0, 1, 1], [], []>} : vector<32x72xbf16>, vector<72x100xbf16>, vector<32x100xf32> -> vector<32x100xf32>
    %c0_173 = arith.constant 0 : index
    %c0_174 = arith.constant 0 : index
    %138 = vector.load %arg9[%c0_173, %c0_174] : memref<32x1xf32, #tpu.memory_space<vmem>>, vector<32x1xf32>
    %139 = vector.broadcast %138 : vector<32x1xf32> to vector<32x100xf32>
    %140 = arith.addf %137, %139 : vector<32x100xf32>
    %141 = arith.negf %140 : vector<32x100xf32>
    %142 = math.exp %141 : vector<32x100xf32>
    %cst_175 = arith.constant 1.000000e+00 : f32
    %143 = vector.broadcast %cst_175 : f32 to vector<32x100xf32>
    %144 = arith.addf %143, %142 : vector<32x100xf32>
    %145 = arith.divf %143, %144 : vector<32x100xf32>
    %146 = arith.mulf %140, %145 : vector<32x100xf32>
    %147 = arith.truncf %146 : vector<32x100xf32> to vector<32x100xbf16>
    %c0_176 = arith.constant 0 : index
    %c0_177 = arith.constant 0 : index
    %148 = vector.load %arg15[%c0_176, %c0_177] : memref<100x324xbf16, #tpu.memory_space<vmem>>, vector<100x324xbf16>
    %cst_178 = arith.constant dense<0.000000e+00> : vector<32x324xf32>
    %149 = tpu.matmul %147, %148, %cst_178 {dimension_numbers = #tpu.dot_dimension_numbers<[1], [0], [0], [1], [0, 0, 1, 1], [], []>} : vector<32x100xbf16>, vector<100x324xbf16>, vector<32x324xf32> -> vector<32x324xf32>
    %150 = arith.truncf %149 : vector<32x324xf32> to vector<32x324xbf16>
    %c0_179 = arith.constant 0 : index
    %c32_180 = arith.constant 32 : index
    %151 = vector.load %arg20[%c0_179, %c32_180] : memref<32x388xbf16, #tpu.memory_space<vmem>>, vector<32x324xbf16>
    tpu.vector_store %arg20[%c0_179, %c32_180], %150 {strides = array<i32>} : memref<32x388xbf16, #tpu.memory_space<vmem>>, vector<32x324xbf16>,
    %c0_181 = arith.constant 0 : index
    %c13_182 = arith.constant 13 : index
    %152 = vector.load %arg20[%c0_181, %c13_182] : memref<32x388xbf16, #tpu.memory_space<vmem>>, vector<32x324xbf16>
    %c0_183 = arith.constant 0 : index
    %c0_184 = arith.constant 0 : index
    %153 = vector.load %arg19[%c0_183, %c0_184] : memref<288x324xbf16, #tpu.memory_space<vmem>>, vector<32x324xbf16>
    tpu.vector_store %arg19[%c0_183, %c0_184], %152 {strides = array<i32>} : memref<288x324xbf16, #tpu.memory_space<vmem>>, vector<32x324xbf16>,
    %c0_185 = arith.constant 0 : index
    %c14_186 = arith.constant 14 : index
    %154 = vector.load %arg20[%c0_185, %c14_186] : memref<32x388xbf16, #tpu.memory_space<vmem>>, vector<32x324xbf16>
    %c32_187 = arith.constant 32 : index
    %c0_188 = arith.constant 0 : index
    %155 = vector.load %arg19[%c32_187, %c0_188] : memref<288x324xbf16, #tpu.memory_space<vmem>>, vector<32x324xbf16>
    tpu.vector_store %arg19[%c32_187, %c0_188], %154 {strides = array<i32>} : memref<288x324xbf16, #tpu.memory_space<vmem>>, vector<32x324xbf16>,
    %c0_189 = arith.constant 0 : index
    %c15_190 = arith.constant 15 : index
    %156 = vector.load %arg20[%c0_189, %c15_190] : memref<32x388xbf16, #tpu.memory_space<vmem>>, vector<32x324xbf16>
    %c64_191 = arith.constant 64 : index
    %c0_192 = arith.constant 0 : index
    %157 = vector.load %arg19[%c64_191, %c0_192] : memref<288x324xbf16, #tpu.memory_space<vmem>>, vector<32x324xbf16>
    tpu.vector_store %arg19[%c64_191, %c0_192], %156 {strides = array<i32>} : memref<288x324xbf16, #tpu.memory_space<vmem>>, vector<32x324xbf16>,
    %c0_193 = arith.constant 0 : index
    %c31_194 = arith.constant 31 : index
    %158 = vector.load %arg20[%c0_193, %c31_194] : memref<32x388xbf16, #tpu.memory_space<vmem>>, vector<32x324xbf16>
    %c96_195 = arith.constant 96 : index
    %c0_196 = arith.constant 0 : index
    %159 = vector.load %arg19[%c96_195, %c0_196] : memref<288x324xbf16, #tpu.memory_space<vmem>>, vector<32x324xbf16>
    tpu.vector_store %arg19[%c96_195, %c0_196], %158 {strides = array<i32>} : memref<288x324xbf16, #tpu.memory_space<vmem>>, vector<32x324xbf16>,
    %c0_197 = arith.constant 0 : index
    %c32_198 = arith.constant 32 : index
    %160 = vector.load %arg20[%c0_197, %c32_198] : memref<32x388xbf16, #tpu.memory_space<vmem>>, vector<32x324xbf16>
    %c128_199 = arith.constant 128 : index
    %c0_200 = arith.constant 0 : index
    %161 = vector.load %arg19[%c128_199, %c0_200] : memref<288x324xbf16, #tpu.memory_space<vmem>>, vector<32x324xbf16>
    tpu.vector_store %arg19[%c128_199, %c0_200], %160 {strides = array<i32>} : memref<288x324xbf16, #tpu.memory_space<vmem>>, vector<32x324xbf16>,
    %c0_201 = arith.constant 0 : index
    %c33_202 = arith.constant 33 : index
    %162 = vector.load %arg20[%c0_201, %c33_202] : memref<32x388xbf16, #tpu.memory_space<vmem>>, vector<32x324xbf16>
    %c160_203 = arith.constant 160 : index
    %c0_204 = arith.constant 0 : index
    %163 = vector.load %arg19[%c160_203, %c0_204] : memref<288x324xbf16, #tpu.memory_space<vmem>>, vector<32x324xbf16>
    tpu.vector_store %arg19[%c160_203, %c0_204], %162 {strides = array<i32>} : memref<288x324xbf16, #tpu.memory_space<vmem>>, vector<32x324xbf16>,
    %c0_205 = arith.constant 0 : index
    %c49_206 = arith.constant 49 : index
    %164 = vector.load %arg20[%c0_205, %c49_206] : memref<32x388xbf16, #tpu.memory_space<vmem>>, vector<32x324xbf16>
    %c192_207 = arith.constant 192 : index
    %c0_208 = arith.constant 0 : index
    %165 = vector.load %arg19[%c192_207, %c0_208] : memref<288x324xbf16, #tpu.memory_space<vmem>>, vector<32x324xbf16>
    tpu.vector_store %arg19[%c192_207, %c0_208], %164 {strides = array<i32>} : memref<288x324xbf16, #tpu.memory_space<vmem>>, vector<32x324xbf16>,
    %c0_209 = arith.constant 0 : index
    %c50_210 = arith.constant 50 : index
    %166 = vector.load %arg20[%c0_209, %c50_210] : memref<32x388xbf16, #tpu.memory_space<vmem>>, vector<32x324xbf16>
    %c224_211 = arith.constant 224 : index
    %c0_212 = arith.constant 0 : index
    %167 = vector.load %arg19[%c224_211, %c0_212] : memref<288x324xbf16, #tpu.memory_space<vmem>>, vector<32x324xbf16>
    tpu.vector_store %arg19[%c224_211, %c0_212], %166 {strides = array<i32>} : memref<288x324xbf16, #tpu.memory_space<vmem>>, vector<32x324xbf16>,
    %c0_213 = arith.constant 0 : index
    %c51_214 = arith.constant 51 : index
    %168 = vector.load %arg20[%c0_213, %c51_214] : memref<32x388xbf16, #tpu.memory_space<vmem>>, vector<32x324xbf16>
    %c256_215 = arith.constant 256 : index
    %c0_216 = arith.constant 0 : index
    %169 = vector.load %arg19[%c256_215, %c0_216] : memref<288x324xbf16, #tpu.memory_space<vmem>>, vector<32x324xbf16>
    tpu.vector_store %arg19[%c256_215, %c0_216], %168 {strides = array<i32>} : memref<288x324xbf16, #tpu.memory_space<vmem>>, vector<32x324xbf16>,
    %c0_217 = arith.constant 0 : index
    %c0_218 = arith.constant 0 : index
    %170 = vector.load %arg10[%c0_217, %c0_218] : memref<32x288xbf16, #tpu.memory_space<vmem>>, vector<32x288xbf16>
    %c0_219 = arith.constant 0 : index
    %c0_220 = arith.constant 0 : index
    %171 = vector.load %arg19[%c0_219, %c0_220] : memref<288x324xbf16, #tpu.memory_space<vmem>>, vector<288x324xbf16>
    %cst_221 = arith.constant dense<0.000000e+00> : vector<32x324xf32>
    %172 = tpu.matmul %170, %171, %cst_221 {dimension_numbers = #tpu.dot_dimension_numbers<[1], [0], [0], [1], [0, 0, 1, 1], [], []>} : vector<32x288xbf16>, vector<288x324xbf16>, vector<32x324xf32> -> vector<32x324xf32>
    %c0_222 = arith.constant 0 : index
    %c0_223 = arith.constant 0 : index
    %173 = vector.load %arg11[%c0_222, %c0_223] : memref<32x1xf32, #tpu.memory_space<vmem>>, vector<32x1xf32>
    %174 = vector.broadcast %173 : vector<32x1xf32> to vector<32x324xf32>
    %175 = arith.addf %172, %174 : vector<32x324xf32>
    %176 = arith.negf %175 : vector<32x324xf32>
    %177 = math.exp %176 : vector<32x324xf32>
    %cst_224 = arith.constant 1.000000e+00 : f32
    %178 = vector.broadcast %cst_224 : f32 to vector<32x324xf32>
    %179 = arith.addf %178, %177 : vector<32x324xf32>
    %180 = arith.divf %178, %179 : vector<32x324xf32>
    %181 = arith.mulf %175, %180 : vector<32x324xf32>
    %182 = arith.mulf %181, %10 : vector<32x324xf32>
    %183 = arith.truncf %182 : vector<32x324xf32> to vector<32x324xbf16>
    %c0_225 = arith.constant 0 : index
    %c32_226 = arith.constant 32 : index
    %184 = vector.load %arg20[%c0_225, %c32_226] : memref<32x388xbf16, #tpu.memory_space<vmem>>, vector<32x324xbf16>
    tpu.vector_store %arg20[%c0_225, %c32_226], %183 {strides = array<i32>} : memref<32x388xbf16, #tpu.memory_space<vmem>>, vector<32x324xbf16>,
    %c0_227 = arith.constant 0 : index
    %c13_228 = arith.constant 13 : index
    %185 = vector.load %arg20[%c0_227, %c13_228] : memref<32x388xbf16, #tpu.memory_space<vmem>>, vector<32x324xbf16>
    %c0_229 = arith.constant 0 : index
    %c0_230 = arith.constant 0 : index
    %186 = vector.load %arg19[%c0_229, %c0_230] : memref<288x324xbf16, #tpu.memory_space<vmem>>, vector<32x324xbf16>
    tpu.vector_store %arg19[%c0_229, %c0_230], %185 {strides = array<i32>} : memref<288x324xbf16, #tpu.memory_space<vmem>>, vector<32x324xbf16>,
    %c0_231 = arith.constant 0 : index
    %c14_232 = arith.constant 14 : index
    %187 = vector.load %arg20[%c0_231, %c14_232] : memref<32x388xbf16, #tpu.memory_space<vmem>>, vector<32x324xbf16>
    %c32_233 = arith.constant 32 : index
    %c0_234 = arith.constant 0 : index
    %188 = vector.load %arg19[%c32_233, %c0_234] : memref<288x324xbf16, #tpu.memory_space<vmem>>, vector<32x324xbf16>
    tpu.vector_store %arg19[%c32_233, %c0_234], %187 {strides = array<i32>} : memref<288x324xbf16, #tpu.memory_space<vmem>>, vector<32x324xbf16>,
    %c0_235 = arith.constant 0 : index
    %c15_236 = arith.constant 15 : index
    %189 = vector.load %arg20[%c0_235, %c15_236] : memref<32x388xbf16, #tpu.memory_space<vmem>>, vector<32x324xbf16>
    %c64_237 = arith.constant 64 : index
    %c0_238 = arith.constant 0 : index
    %190 = vector.load %arg19[%c64_237, %c0_238] : memref<288x324xbf16, #tpu.memory_space<vmem>>, vector<32x324xbf16>
    tpu.vector_store %arg19[%c64_237, %c0_238], %189 {strides = array<i32>} : memref<288x324xbf16, #tpu.memory_space<vmem>>, vector<32x324xbf16>,
    %c0_239 = arith.constant 0 : index
    %c31_240 = arith.constant 31 : index
    %191 = vector.load %arg20[%c0_239, %c31_240] : memref<32x388xbf16, #tpu.memory_space<vmem>>, vector<32x324xbf16>
    %c96_241 = arith.constant 96 : index
    %c0_242 = arith.constant 0 : index
    %192 = vector.load %arg19[%c96_241, %c0_242] : memref<288x324xbf16, #tpu.memory_space<vmem>>, vector<32x324xbf16>
    tpu.vector_store %arg19[%c96_241, %c0_242], %191 {strides = array<i32>} : memref<288x324xbf16, #tpu.memory_space<vmem>>, vector<32x324xbf16>,
    %c0_243 = arith.constant 0 : index
    %c32_244 = arith.constant 32 : index
    %193 = vector.load %arg20[%c0_243, %c32_244] : memref<32x388xbf16, #tpu.memory_space<vmem>>, vector<32x324xbf16>
    %c128_245 = arith.constant 128 : index
    %c0_246 = arith.constant 0 : index
    %194 = vector.load %arg19[%c128_245, %c0_246] : memref<288x324xbf16, #tpu.memory_space<vmem>>, vector<32x324xbf16>
    tpu.vector_store %arg19[%c128_245, %c0_246], %193 {strides = array<i32>} : memref<288x324xbf16, #tpu.memory_space<vmem>>, vector<32x324xbf16>,
    %c0_247 = arith.constant 0 : index
    %c33_248 = arith.constant 33 : index
    %195 = vector.load %arg20[%c0_247, %c33_248] : memref<32x388xbf16, #tpu.memory_space<vmem>>, vector<32x324xbf16>
    %c160_249 = arith.constant 160 : index
    %c0_250 = arith.constant 0 : index
    %196 = vector.load %arg19[%c160_249, %c0_250] : memref<288x324xbf16, #tpu.memory_space<vmem>>, vector<32x324xbf16>
    tpu.vector_store %arg19[%c160_249, %c0_250], %195 {strides = array<i32>} : memref<288x324xbf16, #tpu.memory_space<vmem>>, vector<32x324xbf16>,
    %c0_251 = arith.constant 0 : index
    %c49_252 = arith.constant 49 : index
    %197 = vector.load %arg20[%c0_251, %c49_252] : memref<32x388xbf16, #tpu.memory_space<vmem>>, vector<32x324xbf16>
    %c192_253 = arith.constant 192 : index
    %c0_254 = arith.constant 0 : index
    %198 = vector.load %arg19[%c192_253, %c0_254] : memref<288x324xbf16, #tpu.memory_space<vmem>>, vector<32x324xbf16>
    tpu.vector_store %arg19[%c192_253, %c0_254], %197 {strides = array<i32>} : memref<288x324xbf16, #tpu.memory_space<vmem>>, vector<32x324xbf16>,
    %c0_255 = arith.constant 0 : index
    %c50_256 = arith.constant 50 : index
    %199 = vector.load %arg20[%c0_255, %c50_256] : memref<32x388xbf16, #tpu.memory_space<vmem>>, vector<32x324xbf16>
    %c224_257 = arith.constant 224 : index
    %c0_258 = arith.constant 0 : index
    %200 = vector.load %arg19[%c224_257, %c0_258] : memref<288x324xbf16, #tpu.memory_space<vmem>>, vector<32x324xbf16>
    tpu.vector_store %arg19[%c224_257, %c0_258], %199 {strides = array<i32>} : memref<288x324xbf16, #tpu.memory_space<vmem>>, vector<32x324xbf16>,
    %c0_259 = arith.constant 0 : index
    %c51_260 = arith.constant 51 : index
    %201 = vector.load %arg20[%c0_259, %c51_260] : memref<32x388xbf16, #tpu.memory_space<vmem>>, vector<32x324xbf16>
    %c256_261 = arith.constant 256 : index
    %c0_262 = arith.constant 0 : index
    %202 = vector.load %arg19[%c256_261, %c0_262] : memref<288x324xbf16, #tpu.memory_space<vmem>>, vector<32x324xbf16>
    tpu.vector_store %arg19[%c256_261, %c0_262], %201 {strides = array<i32>} : memref<288x324xbf16, #tpu.memory_space<vmem>>, vector<32x324xbf16>,
    %c0_263 = arith.constant 0 : index
    %c0_264 = arith.constant 0 : index
    %203 = vector.load %arg12[%c0_263, %c0_264] : memref<3x288xbf16, #tpu.memory_space<vmem>>, vector<3x288xbf16>
    %c0_265 = arith.constant 0 : index
    %c0_266 = arith.constant 0 : index
    %204 = vector.load %arg19[%c0_265, %c0_266] : memref<288x324xbf16, #tpu.memory_space<vmem>>, vector<288x324xbf16>
    %cst_267 = arith.constant dense<0.000000e+00> : vector<3x324xf32>
    %205 = tpu.matmul %203, %204, %cst_267 {dimension_numbers = #tpu.dot_dimension_numbers<[1], [0], [0], [1], [0, 0, 1, 1], [], []>} : vector<3x288xbf16>, vector<288x324xbf16>, vector<3x324xf32> -> vector<3x324xf32>
    %c0_268 = arith.constant 0 : index
    %c0_269 = arith.constant 0 : index
    %206 = vector.load %arg13[%c0_268, %c0_269] : memref<3x1xf32, #tpu.memory_space<vmem>>, vector<3x1xf32>
    %207 = vector.broadcast %206 : vector<3x1xf32> to vector<3x324xf32>
    %208 = arith.addf %205, %207 : vector<3x324xf32>
    %c0_270 = arith.constant 0 : index
    %c0_271 = arith.constant 0 : index
    %c0_272 = arith.constant 0 : index
    %209 = vector.load %arg18[%c0_270, %c0_271, %c0_272] : memref<1x3x384xf32, #tpu.memory_space<vmem>>, vector<1x3x324xf32>
    %210 = vector.shape_cast %209 : vector<1x3x324xf32> to vector<3x324xf32>
    %211 = vector.shape_cast %208 : vector<3x324xf32> to vector<1x3x324xf32>
    tpu.vector_store %arg18[%c0_270, %c0_271, %c0_272], %211 {strides = array<i32>} : memref<1x3x384xf32, #tpu.memory_space<vmem>>, vector<1x3x324xf32>,
    %cst_273 = arith.constant 0.000000e+00 : f32
    %212 = vector.broadcast %cst_273 : f32 to vector<3x60xf32>
    %c0_274 = arith.constant 0 : index
    %c0_275 = arith.constant 0 : index
    %c324 = arith.constant 324 : index
    %213 = vector.load %arg18[%c0_274, %c0_275, %c324] : memref<1x3x384xf32, #tpu.memory_space<vmem>>, vector<1x3x60xf32>
    %214 = vector.shape_cast %213 : vector<1x3x60xf32> to vector<3x60xf32>
    %215 = vector.shape_cast %212 : vector<3x60xf32> to vector<1x3x60xf32>
    tpu.vector_store %arg18[%c0_274, %c0_275, %c324], %215 {strides = array<i32>} : memref<1x3x384xf32, #tpu.memory_space<vmem>>, vector<1x3x60xf32>,
    return
  }
  func.func @transform_0(%arg0: i32) -> (i32, i32, i32) {
    %c0_i32 = arith.constant 0 : i32
    %c0_i32_0 = arith.constant 0 : i32
    %c0_i32_1 = arith.constant 0 : i32
    return %arg0, %c0_i32, %c0_i32_0 : i32, i32, i32
  }
  func.func @transform_1(%arg0: i32) -> (i32, i32) {
    %c0_i32 = arith.constant 0 : i32
    %c0_i32_0 = arith.constant 0 : i32
    %c0_i32_1 = arith.constant 0 : i32
    return %c0_i32, %c0_i32_0 : i32, i32
  }
  func.func @transform_2(%arg0: i32) -> (i32, i32) {
    %c0_i32 = arith.constant 0 : i32
    %c0_i32_0 = arith.constant 0 : i32
    %c0_i32_1 = arith.constant 0 : i32
    return %c0_i32, %c0_i32_0 : i32, i32
  }
  func.func @transform_3(%arg0: i32) -> (i32, i32) {
    %c0_i32 = arith.constant 0 : i32
    %c0_i32_0 = arith.constant 0 : i32
    %c0_i32_1 = arith.constant 0 : i32
    return %c0_i32, %c0_i32_0 : i32, i32
  }
  func.func @transform_4(%arg0: i32) -> (i32, i32) {
    %c0_i32 = arith.constant 0 : i32
    %c0_i32_0 = arith.constant 0 : i32
    %c0_i32_1 = arith.constant 0 : i32
    return %c0_i32, %c0_i32_0 : i32, i32
  }
  func.func @transform_5(%arg0: i32) -> (i32, i32) {
    %c0_i32 = arith.constant 0 : i32
    %c0_i32_0 = arith.constant 0 : i32
    %c0_i32_1 = arith.constant 0 : i32
    return %c0_i32, %c0_i32_0 : i32, i32
  }
  func.func @transform_6(%arg0: i32) -> (i32, i32) {
    %c0_i32 = arith.constant 0 : i32
    %c0_i32_0 = arith.constant 0 : i32
    %c0_i32_1 = arith.constant 0 : i32
    return %c0_i32, %c0_i32_0 : i32, i32
  }
  func.func @transform_7(%arg0: i32) -> (i32, i32) {
    %c0_i32 = arith.constant 0 : i32
    %c0_i32_0 = arith.constant 0 : i32
    %c0_i32_1 = arith.constant 0 : i32
    return %c0_i32, %c0_i32_0 : i32, i32
  }
  func.func @transform_8(%arg0: i32) -> (i32, i32) {
    %c0_i32 = arith.constant 0 : i32
    %c0_i32_0 = arith.constant 0 : i32
    %c0_i32_1 = arith.constant 0 : i32
    return %c0_i32, %c0_i32_0 : i32, i32
  }
  func.func @transform_9(%arg0: i32) -> (i32, i32) {
    %c0_i32 = arith.constant 0 : i32
    %c0_i32_0 = arith.constant 0 : i32
    %c0_i32_1 = arith.constant 0 : i32
    return %c0_i32, %c0_i32_0 : i32, i32
  }
  func.func @transform_10(%arg0: i32) -> (i32, i32) {
    %c0_i32 = arith.constant 0 : i32
    %c0_i32_0 = arith.constant 0 : i32
    %c0_i32_1 = arith.constant 0 : i32
    return %c0_i32, %c0_i32_0 : i32, i32
  }
  func.func @transform_11(%arg0: i32) -> (i32, i32) {
    %c0_i32 = arith.constant 0 : i32
    %c0_i32_0 = arith.constant 0 : i32
    %c0_i32_1 = arith.constant 0 : i32
    return %c0_i32, %c0_i32_0 : i32, i32
  }
  func.func @transform_12(%arg0: i32) -> (i32, i32) {
    %c0_i32 = arith.constant 0 : i32
    %c0_i32_0 = arith.constant 0 : i32
    %c0_i32_1 = arith.constant 0 : i32
    return %c0_i32, %c0_i32_0 : i32, i32
  }
  func.func @transform_13(%arg0: i32) -> (i32, i32) {
    %c0_i32 = arith.constant 0 : i32
    %c0_i32_0 = arith.constant 0 : i32
    %c0_i32_1 = arith.constant 0 : i32
    return %c0_i32, %c0_i32_0 : i32, i32
  }
  func.func @transform_14(%arg0: i32) -> (i32, i32) {
    %c0_i32 = arith.constant 0 : i32
    %c0_i32_0 = arith.constant 0 : i32
    %c0_i32_1 = arith.constant 0 : i32
    return %c0_i32, %c0_i32_0 : i32, i32
  }
  func.func @transform_15(%arg0: i32) -> (i32, i32) {
    %c0_i32 = arith.constant 0 : i32
    %c0_i32_0 = arith.constant 0 : i32
    %c0_i32_1 = arith.constant 0 : i32
    return %c0_i32, %c0_i32_0 : i32, i32
  }
  func.func @transform_16(%arg0: i32) -> (i32, i32) {
    %c0_i32 = arith.constant 0 : i32
    %c0_i32_0 = arith.constant 0 : i32
    %c0_i32_1 = arith.constant 0 : i32
    return %c0_i32, %c0_i32_0 : i32, i32
  }
  func.func @transform_17(%arg0: i32) -> (i32, i32, i32) {
    %c0_i32 = arith.constant 0 : i32
    %c0_i32_0 = arith.constant 0 : i32
    %c0_i32_1 = arith.constant 0 : i32
    return %arg0, %c0_i32, %c0_i32_0 : i32, i32, i32
  }
}

</mosaic_0001>

<llo_original>
// kernel: autoencoder_forward.1
$region0: #{autoencoder_forward.1}
  #allocation0 [shape = 'u32[]', space=smem, size = 0x4, offset = 0x4, fixed_abs, tag = 'smem constant byte address 0x4 - core index']
  #allocation1 [shape = 'u32[144,128]{1,0:T(1,128)}', space=vmem, size = 0x12000, scoped, tag = 'internal scratch']
  #allocation2 [shape = 'bf16[288,324]{1,0:T(8,128)(2,1)}', space=vmem, size = 0x36000, scoped, tag = 'scratch operand']
  #allocation3 [shape = 'bf16[32,388]{1,0:T(8,128)(2,1)}', space=vmem, size = 0x8000, scoped, tag = 'scratch operand']
  #allocation4 [shape = 'bf16[32,132]{1,0:T(8,128)(2,1)}', space=vmem, size = 0x4000, scoped, tag = 'scratch operand']
  %s0 = inlined_call_operand.vmem [shape: bf16[2,8,388], index: 0, kind: input, shape index: {}]
  %s1 = inlined_call_operand.vmem [shape: bf16[32,72], index: 1, kind: input, shape index: {}]
  %s2 = inlined_call_operand.vmem [shape: f32[32,1], index: 2, kind: input, shape index: {}]
  %s3 = inlined_call_operand.vmem [shape: bf16[32,288], index: 3, kind: input, shape index: {}]
  %s4 = inlined_call_operand.vmem [shape: f32[32,1], index: 4, kind: input, shape index: {}]
  %s5 = inlined_call_operand.vmem [shape: bf16[8,288], index: 5, kind: input, shape index: {}]
  %s6 = inlined_call_operand.vmem [shape: f32[8,1], index: 6, kind: input, shape index: {}]
  %s7 = inlined_call_operand.vmem [shape: bf16[32,72], index: 7, kind: input, shape index: {}]
  %s8 = inlined_call_operand.vmem [shape: f32[32,1], index: 8, kind: input, shape index: {}]
  %s9 = inlined_call_operand.vmem [shape: bf16[32,288], index: 9, kind: input, shape index: {}]
  %s10 = inlined_call_operand.vmem [shape: f32[32,1], index: 10, kind: input, shape index: {}]
  %s11 = inlined_call_operand.vmem [shape: bf16[3,288], index: 11, kind: input, shape index: {}]
  %s12 = inlined_call_operand.vmem [shape: f32[3,1], index: 12, kind: input, shape index: {}]
  %s13 = inlined_call_operand.vmem [shape: bf16[324,100], index: 13, kind: input, shape index: {}]
  %s14 = inlined_call_operand.vmem [shape: bf16[100,324], index: 14, kind: input, shape index: {}]
  %s15 = inlined_call_operand.vmem [shape: f32[1,324], index: 15, kind: input, shape index: {}]
  %s16 = inlined_call_operand.vmem [shape: f32[1,100], index: 16, kind: input, shape index: {}]
  %s17 = inlined_call_operand.vmem [shape: f32[2,3,384], index: 17, kind: output, shape index: {}]
  %s18 = sld [smem:[#allocation0]]
  $region101: #{autoencoder_forward.1} parent=0
    _
  %s20 = ssub.s32 1, %s18
  %s21 = scalar_select 0, %s20, %s18
  loop: start=0, step=1, limit=4
  $region2: #{autoencoder_forward.1} parent=0 // loop_pre_header
    _
  $region3: #{autoencoder_forward.1} parent=0 // loop_header
    %s23 = sphi 0, %s27
    %p24 = scmp.ge.s32.totalorder %s23, 4
    %s33 = sphi 0, %s35
    %s36 = sphi 0, %s33
    %s37 = sphi 0, %s36
    %s53 = sphi 0, %s37
    %s57 = sphi 0, %s57
    %s59 = sphi 0, %s57
    %s60 = sphi 0, %s59
    %s74 = sphi 0, %s60
    %s78 = sphi 0, %s78
    %s80 = sphi 0, %s78
    %s81 = sphi 0, %s80
    %s95 = sphi 0, %s81
    %s99 = sphi 0, %s99
    %s101 = sphi 0, %s99
    %s102 = sphi 0, %s101
    %s116 = sphi 0, %s102
    %s120 = sphi 0, %s120
    %s122 = sphi 0, %s120
    %s123 = sphi 0, %s122
    %s137 = sphi 0, %s123
    %s141 = sphi 0, %s141
    %s143 = sphi 0, %s141
    %s144 = sphi 0, %s143
    %s158 = sphi 0, %s144
    %s162 = sphi 0, %s162
    %s164 = sphi 0, %s162
    %s165 = sphi 0, %s164
    %s179 = sphi 0, %s165
    %s183 = sphi 0, %s183
    %s185 = sphi 0, %s183
    %s186 = sphi 0, %s185
    %s200 = sphi 0, %s186
    %s204 = sphi 0, %s204
    %s206 = sphi 0, %s204
    %s207 = sphi 0, %s206
    %s221 = sphi 0, %s207
    %s225 = sphi 0, %s225
    %s227 = sphi 0, %s225
    %s228 = sphi 0, %s227
    %s242 = sphi 0, %s228
    %s246 = sphi 0, %s246
    %s248 = sphi 0, %s246
    %s249 = sphi 0, %s248
    %s263 = sphi 0, %s249
    %s267 = sphi 0, %s267
    %s269 = sphi 0, %s267
    %s270 = sphi 0, %s269
    %s284 = sphi 0, %s270
    %s288 = sphi 0, %s288
    %s290 = sphi 0, %s288
    %s291 = sphi 0, %s290
    %s305 = sphi 0, %s291
    %s309 = sphi 0, %s309
    %s311 = sphi 0, %s309
    %s312 = sphi 0, %s311
    %s326 = sphi 0, %s312
    %s330 = sphi 0, %s330
    %s332 = sphi 0, %s330
    %s333 = sphi 0, %s332
    %s347 = sphi 0, %s333
    %s351 = sphi 0, %s351
    %s353 = sphi 0, %s351
    %s354 = sphi 0, %s353
    %s368 = sphi 0, %s354
    %s372 = sphi 0, %s372
    %s374 = sphi 0, %s372
    %s375 = sphi 0, %s374
    %s389 = sphi 0, %s375
    %s395 = sphi 0, %s397
    %s398 = sphi 0, %s395
    %s399 = sphi 0, %s398
    %s415 = sphi 0, %s399
  $region4: #{autoencoder_forward.1} parent=0 // loop_header_branch
    %26 = sbr.rel (%p24) target = $region8
  $region5: #{autoencoder_forward.1} parent=0 // loop_body
    %s28 = ssub.s32 %s23, 1
    %s29 = ssub.s32 %s23, 2
    %s30 = sadd.s32 %s23, 1
    %s31 = ssub.s32 %s23, %s30
    %p32 = scmp.eq.s32.totalorder %s31, 0
    %s34 = sadd.s32 %s33, 1
    %s35 = scalar_select %p32, %s33, %s34
    %p38 = pneg %p32
    %p39 = scmp.eq.s32.totalorder %s23, 1
    %p40 = por %p38, %p39
    %p41 = scmp.ne.s32.totalorder %s33, %s36
    %p42 = scmp.eq.s32.totalorder %s23, 0
    %p43 = por %p41, %p42
    %p44 = scmp.ne.s32.totalorder %s33, %s36
    %p45 = scmp.eq.s32.totalorder %s28, 1
    %p46 = por %p44, %p45
    %p47 = scmp.ne.s32.totalorder %s36, %s37
    %p48 = scmp.eq.s32.totalorder %s28, 0
    %p49 = por %p47, %p48
    %p50 = scmp.ne.s32.totalorder %s36, %s37
    %p51 = scmp.eq.s32.totalorder %s29, 1
    %p52 = por %p50, %p51
    %p54 = scmp.ne.s32.totalorder %s37, %s53
    %p55 = scmp.eq.s32.totalorder %s29, 0
    %p56 = por %p54, %p55
    %s58 = sadd.s32 %s57, 1
    %p61 = scmp.eq.s32.totalorder %s23, 1
    %p62 = scmp.ne.s32.totalorder %s57, %s59
    %p63 = scmp.eq.s32.totalorder %s23, 0
    %p64 = por %p62, %p63
    %p65 = scmp.ne.s32.totalorder %s57, %s59
    %p66 = scmp.eq.s32.totalorder %s28, 1
    %p67 = por %p65, %p66
    %p68 = scmp.ne.s32.totalorder %s59, %s60
    %p69 = scmp.eq.s32.totalorder %s28, 0
    %p70 = por %p68, %p69
    %p71 = scmp.ne.s32.totalorder %s59, %s60
    %p72 = scmp.eq.s32.totalorder %s29, 1
    %p73 = por %p71, %p72
    %p75 = scmp.ne.s32.totalorder %s60, %s74
    %p76 = scmp.eq.s32.totalorder %s29, 0
    %p77 = por %p75, %p76
    %s79 = sadd.s32 %s78, 1
    %p82 = scmp.eq.s32.totalorder %s23, 1
    %p83 = scmp.ne.s32.totalorder %s78, %s80
    %p84 = scmp.eq.s32.totalorder %s23, 0
    %p85 = por %p83, %p84
    %p86 = scmp.ne.s32.totalorder %s78, %s80
    %p87 = scmp.eq.s32.totalorder %s28, 1
    %p88 = por %p86, %p87
    %p89 = scmp.ne.s32.totalorder %s80, %s81
    %p90 = scmp.eq.s32.totalorder %s28, 0
    %p91 = por %p89, %p90
    %p92 = scmp.ne.s32.totalorder %s80, %s81
    %p93 = scmp.eq.s32.totalorder %s29, 1
    %p94 = por %p92, %p93
    %p96 = scmp.ne.s32.totalorder %s81, %s95
    %p97 = scmp.eq.s32.totalorder %s29, 0
    %p98 = por %p96, %p97
    %s100 = sadd.s32 %s99, 1
    %p103 = scmp.eq.s32.totalorder %s23, 1
    %p104 = scmp.ne.s32.totalorder %s99, %s101
    %p105 = scmp.eq.s32.totalorder %s23, 0
    %p106 = por %p104, %p105
    %p107 = scmp.ne.s32.totalorder %s99, %s101
    %p108 = scmp.eq.s32.totalorder %s28, 1
    %p109 = por %p107, %p108
    %p110 = scmp.ne.s32.totalorder %s101, %s102
    %p111 = scmp.eq.s32.totalorder %s28, 0
    %p112 = por %p110, %p111
    %p113 = scmp.ne.s32.totalorder %s101, %s102
    %p114 = scmp.eq.s32.totalorder %s29, 1
    %p115 = por %p113, %p114
    %p117 = scmp.ne.s32.totalorder %s102, %s116
    %p118 = scmp.eq.s32.totalorder %s29, 0
    %p119 = por %p117, %p118
    %s121 = sadd.s32 %s120, 1
    %p124 = scmp.eq.s32.totalorder %s23, 1
    %p125 = scmp.ne.s32.totalorder %s120, %s122
    %p126 = scmp.eq.s32.totalorder %s23, 0
    %p127 = por %p125, %p126
    %p128 = scmp.ne.s32.totalorder %s120, %s122
    %p129 = scmp.eq.s32.totalorder %s28, 1
    %p130 = por %p128, %p129
    %p131 = scmp.ne.s32.totalorder %s122, %s123
    %p132 = scmp.eq.s32.totalorder %s28, 0
    %p133 = por %p131, %p132
    %p134 = scmp.ne.s32.totalorder %s122, %s123
    %p135 = scmp.eq.s32.totalorder %s29, 1
    %p136 = por %p134, %p135
    %p138 = scmp.ne.s32.totalorder %s123, %s137
    %p139 = scmp.eq.s32.totalorder %s29, 0
    %p140 = por %p138, %p139
    %s142 = sadd.s32 %s141, 1
    %p145 = scmp.eq.s32.totalorder %s23, 1
    %p146 = scmp.ne.s32.totalorder %s141, %s143
    %p147 = scmp.eq.s32.totalorder %s23, 0
    %p148 = por %p146, %p147
    %p149 = scmp.ne.s32.totalorder %s141, %s143
    %p150 = scmp.eq.s32.totalorder %s28, 1
    %p151 = por %p149, %p150
    %p152 = scmp.ne.s32.totalorder %s143, %s144
    %p153 = scmp.eq.s32.totalorder %s28, 0
    %p154 = por %p152, %p153
    %p155 = scmp.ne.s32.totalorder %s143, %s144
    %p156 = scmp.eq.s32.totalorder %s29, 1
    %p157 = por %p155, %p156
    %p159 = scmp.ne.s32.totalorder %s144, %s158
    %p160 = scmp.eq.s32.totalorder %s29, 0
    %p161 = por %p159, %p160
    %s163 = sadd.s32 %s162, 1
    %p166 = scmp.eq.s32.totalorder %s23, 1
    %p167 = scmp.ne.s32.totalorder %s162, %s164
    %p168 = scmp.eq.s32.totalorder %s23, 0
    %p169 = por %p167, %p168
    %p170 = scmp.ne.s32.totalorder %s162, %s164
    %p171 = scmp.eq.s32.totalorder %s28, 1
    %p172 = por %p170, %p171
    %p173 = scmp.ne.s32.totalorder %s164, %s165
    %p174 = scmp.eq.s32.totalorder %s28, 0
    %p175 = por %p173, %p174
    %p176 = scmp.ne.s32.totalorder %s164, %s165
    %p177 = scmp.eq.s32.totalorder %s29, 1
    %p178 = por %p176, %p177
    %p180 = scmp.ne.s32.totalorder %s165, %s179
    %p181 = scmp.eq.s32.totalorder %s29, 0
    %p182 = por %p180, %p181
    %s184 = sadd.s32 %s183, 1
    %p187 = scmp.eq.s32.totalorder %s23, 1
    %p188 = scmp.ne.s32.totalorder %s183, %s185
    %p189 = scmp.eq.s32.totalorder %s23, 0
    %p190 = por %p188, %p189
    %p191 = scmp.ne.s32.totalorder %s183, %s185
    %p192 = scmp.eq.s32.totalorder %s28, 1
    %p193 = por %p191, %p192
    %p194 = scmp.ne.s32.totalorder %s185, %s186
    %p195 = scmp.eq.s32.totalorder %s28, 0
    %p196 = por %p194, %p195
    %p197 = scmp.ne.s32.totalorder %s185, %s186
    %p198 = scmp.eq.s32.totalorder %s29, 1
    %p199 = por %p197, %p198
    %p201 = scmp.ne.s32.totalorder %s186, %s200
    %p202 = scmp.eq.s32.totalorder %s29, 0
    %p203 = por %p201, %p202
    %s205 = sadd.s32 %s204, 1
    %p208 = scmp.eq.s32.totalorder %s23, 1
    %p209 = scmp.ne.s32.totalorder %s204, %s206
    %p210 = scmp.eq.s32.totalorder %s23, 0
    %p211 = por %p209, %p210
    %p212 = scmp.ne.s32.totalorder %s204, %s206
    %p213 = scmp.eq.s32.totalorder %s28, 1
    %p214 = por %p212, %p213
    %p215 = scmp.ne.s32.totalorder %s206, %s207
    %p216 = scmp.eq.s32.totalorder %s28, 0
    %p217 = por %p215, %p216
    %p218 = scmp.ne.s32.totalorder %s206, %s207
    %p219 = scmp.eq.s32.totalorder %s29, 1
    %p220 = por %p218, %p219
    %p222 = scmp.ne.s32.totalorder %s207, %s221
    %p223 = scmp.eq.s32.totalorder %s29, 0
    %p224 = por %p222, %p223
    %s226 = sadd.s32 %s225, 1
    %p229 = scmp.eq.s32.totalorder %s23, 1
    %p230 = scmp.ne.s32.totalorder %s225, %s227
    %p231 = scmp.eq.s32.totalorder %s23, 0
    %p232 = por %p230, %p231
    %p233 = scmp.ne.s32.totalorder %s225, %s227
    %p234 = scmp.eq.s32.totalorder %s28, 1
    %p235 = por %p233, %p234
    %p236 = scmp.ne.s32.totalorder %s227, %s228
    %p237 = scmp.eq.s32.totalorder %s28, 0
    %p238 = por %p236, %p237
    %p239 = scmp.ne.s32.totalorder %s227, %s228
    %p240 = scmp.eq.s32.totalorder %s29, 1
    %p241 = por %p239, %p240
    %p243 = scmp.ne.s32.totalorder %s228, %s242
    %p244 = scmp.eq.s32.totalorder %s29, 0
    %p245 = por %p243, %p244
    %s247 = sadd.s32 %s246, 1
    %p250 = scmp.eq.s32.totalorder %s23, 1
    %p251 = scmp.ne.s32.totalorder %s246, %s248
    %p252 = scmp.eq.s32.totalorder %s23, 0
    %p253 = por %p251, %p252
    %p254 = scmp.ne.s32.totalorder %s246, %s248
    %p255 = scmp.eq.s32.totalorder %s28, 1
    %p256 = por %p254, %p255
    %p257 = scmp.ne.s32.totalorder %s248, %s249
    %p258 = scmp.eq.s32.totalorder %s28, 0
    %p259 = por %p257, %p258
    %p260 = scmp.ne.s32.totalorder %s248, %s249
    %p261 = scmp.eq.s32.totalorder %s29, 1
    %p262 = por %p260, %p261
    %p264 = scmp.ne.s32.totalorder %s249, %s263
    %p265 = scmp.eq.s32.totalorder %s29, 0
    %p266 = por %p264, %p265
    %s268 = sadd.s32 %s267, 1
    %p271 = scmp.eq.s32.totalorder %s23, 1
    %p272 = scmp.ne.s32.totalorder %s267, %s269
    %p273 = scmp.eq.s32.totalorder %s23, 0
    %p274 = por %p272, %p273
    %p275 = scmp.ne.s32.totalorder %s267, %s269
    %p276 = scmp.eq.s32.totalorder %s28, 1
    %p277 = por %p275, %p276
    %p278 = scmp.ne.s32.totalorder %s269, %s270
    %p279 = scmp.eq.s32.totalorder %s28, 0
    %p280 = por %p278, %p279
    %p281 = scmp.ne.s32.totalorder %s269, %s270
    %p282 = scmp.eq.s32.totalorder %s29, 1
    %p283 = por %p281, %p282
    %p285 = scmp.ne.s32.totalorder %s270, %s284
    %p286 = scmp.eq.s32.totalorder %s29, 0
    %p287 = por %p285, %p286
    %s289 = sadd.s32 %s288, 1
    %p292 = scmp.eq.s32.totalorder %s23, 1
    %p293 = scmp.ne.s32.totalorder %s288, %s290
    %p294 = scmp.eq.s32.totalorder %s23, 0
    %p295 = por %p293, %p294
    %p296 = scmp.ne.s32.totalorder %s288, %s290
    %p297 = scmp.eq.s32.totalorder %s28, 1
    %p298 = por %p296, %p297
    %p299 = scmp.ne.s32.totalorder %s290, %s291
    %p300 = scmp.eq.s32.totalorder %s28, 0
    %p301 = por %p299, %p300
    %p302 = scmp.ne.s32.totalorder %s290, %s291
    %p303 = scmp.eq.s32.totalorder %s29, 1
    %p304 = por %p302, %p303
    %p306 = scmp.ne.s32.totalorder %s291, %s305
    %p307 = scmp.eq.s32.totalorder %s29, 0
    %p308 = por %p306, %p307
    %s310 = sadd.s32 %s309, 1
    %p313 = scmp.eq.s32.totalorder %s23, 1
    %p314 = scmp.ne.s32.totalorder %s309, %s311
    %p315 = scmp.eq.s32.totalorder %s23, 0
    %p316 = por %p314, %p315
    %p317 = scmp.ne.s32.totalorder %s309, %s311
    %p318 = scmp.eq.s32.totalorder %s28, 1
    %p319 = por %p317, %p318
    %p320 = scmp.ne.s32.totalorder %s311, %s312
    %p321 = scmp.eq.s32.totalorder %s28, 0
    %p322 = por %p320, %p321
    %p323 = scmp.ne.s32.totalorder %s311, %s312
    %p324 = scmp.eq.s32.totalorder %s29, 1
    %p325 = por %p323, %p324
    %p327 = scmp.ne.s32.totalorder %s312, %s326
    %p328 = scmp.eq.s32.totalorder %s29, 0
    %p329 = por %p327, %p328
    %s331 = sadd.s32 %s330, 1
    %p334 = scmp.eq.s32.totalorder %s23, 1
    %p335 = scmp.ne.s32.totalorder %s330, %s332
    %p336 = scmp.eq.s32.totalorder %s23, 0
    %p337 = por %p335, %p336
    %p338 = scmp.ne.s32.totalorder %s330, %s332
    %p339 = scmp.eq.s32.totalorder %s28, 1
    %p340 = por %p338, %p339
    %p341 = scmp.ne.s32.totalorder %s332, %s333
    %p342 = scmp.eq.s32.totalorder %s28, 0
    %p343 = por %p341, %p342
    %p344 = scmp.ne.s32.totalorder %s332, %s333
    %p345 = scmp.eq.s32.totalorder %s29, 1
    %p346 = por %p344, %p345
    %p348 = scmp.ne.s32.totalorder %s333, %s347
    %p349 = scmp.eq.s32.totalorder %s29, 0
    %p350 = por %p348, %p349
    %s352 = sadd.s32 %s351, 1
    %p355 = scmp.eq.s32.totalorder %s23, 1
    %p356 = scmp.ne.s32.totalorder %s351, %s353
    %p357 = scmp.eq.s32.totalorder %s23, 0
    %p358 = por %p356, %p357
    %p359 = scmp.ne.s32.totalorder %s351, %s353
    %p360 = scmp.eq.s32.totalorder %s28, 1
    %p361 = por %p359, %p360
    %p362 = scmp.ne.s32.totalorder %s353, %s354
    %p363 = scmp.eq.s32.totalorder %s28, 0
    %p364 = por %p362, %p363
    %p365 = scmp.ne.s32.totalorder %s353, %s354
    %p366 = scmp.eq.s32.totalorder %s29, 1
    %p367 = por %p365, %p366
    %p369 = scmp.ne.s32.totalorder %s354, %s368
    %p370 = scmp.eq.s32.totalorder %s29, 0
    %p371 = por %p369, %p370
    %s373 = sadd.s32 %s372, 1
    %p376 = scmp.eq.s32.totalorder %s23, 1
    %p377 = scmp.ne.s32.totalorder %s372, %s374
    %p378 = scmp.eq.s32.totalorder %s23, 0
    %p379 = por %p377, %p378
    %p380 = scmp.ne.s32.totalorder %s372, %s374
    %p381 = scmp.eq.s32.totalorder %s28, 1
    %p382 = por %p380, %p381
    %p383 = scmp.ne.s32.totalorder %s374, %s375
    %p384 = scmp.eq.s32.totalorder %s28, 0
    %p385 = por %p383, %p384
    %p386 = scmp.ne.s32.totalorder %s374, %s375
    %p387 = scmp.eq.s32.totalorder %s29, 1
    %p388 = por %p386, %p387
    %p390 = scmp.ne.s32.totalorder %s375, %s389
    %p391 = scmp.eq.s32.totalorder %s29, 0
    %p392 = por %p390, %p391
    %s393 = ssub.s32 %s23, %s30
    %p394 = scmp.eq.s32.totalorder %s393, 0
    %s396 = sadd.s32 %s395, 1
    %s397 = scalar_select %p394, %s395, %s396
    %p400 = pneg %p394
    %p401 = scmp.eq.s32.totalorder %s23, 1
    %p402 = por %p400, %p401
    %p403 = scmp.ne.s32.totalorder %s395, %s398
    %p404 = scmp.eq.s32.totalorder %s23, 0
    %p405 = por %p403, %p404
    %p406 = scmp.ne.s32.totalorder %s395, %s398
    %p407 = scmp.eq.s32.totalorder %s28, 1
    %p408 = por %p406, %p407
    %p409 = scmp.ne.s32.totalorder %s398, %s399
    %p410 = scmp.eq.s32.totalorder %s28, 0
    %p411 = por %p409, %p410
    %p412 = scmp.ne.s32.totalorder %s398, %s399
    %p413 = scmp.eq.s32.totalorder %s29, 1
    %p414 = por %p412, %p413
    %p416 = scmp.ne.s32.totalorder %s399, %s415
    %p417 = scmp.eq.s32.totalorder %s29, 0
    %p418 = por %p416, %p417
    %p419 = scmp.le.s32.totalorder 1, %s23
    %p420 = scmp.lt.s32.totalorder %s23, 3
    %p421 = pnand %p419, %p420
    %p422 = pneg %p421
    // Predicated region
    $region9: #{autoencoder_forward.1} parent=5 // pred_check
      _
    $region10: #{autoencoder_forward.1} parent=5 // pred_check_branch
      %424 = sbr.rel (%p421) target = $region12
    $region11: #{autoencoder_forward.1} parent=5 // pred_region
      %s425 = ssub.s32 %s23, 1
      // Predicated region
      $region13: #{autoencoder_forward.1} parent=11 // pred_check
        %p426 = pneg %p70
      $region14: #{autoencoder_forward.1} parent=11 // pred_check_branch
        %428 = sbr.rel (%p426) target = $region16
      $region15: #{autoencoder_forward.1} parent=11 // pred_region
        _
      $region16: #{autoencoder_forward.1} parent=11 // pred_fallthru
        _
      // Predicated region
      $region17: #{autoencoder_forward.1} parent=11 // pred_check
        %p429 = pneg %p91
      $region18: #{autoencoder_forward.1} parent=11 // pred_check_branch
        %431 = sbr.rel (%p429) target = $region20
      $region19: #{autoencoder_forward.1} parent=11 // pred_region
        _
      $region20: #{autoencoder_forward.1} parent=11 // pred_fallthru
        _
      // Predicated region
      $region21: #{autoencoder_forward.1} parent=11 // pred_check
        %p432 = pneg %p112
      $region22: #{autoencoder_forward.1} parent=11 // pred_check_branch
        %434 = sbr.rel (%p432) target = $region24
      $region23: #{autoencoder_forward.1} parent=11 // pred_region
        _
      $region24: #{autoencoder_forward.1} parent=11 // pred_fallthru
        _
      // Predicated region
      $region25: #{autoencoder_forward.1} parent=11 // pred_check
        %p435 = pneg %p133
      $region26: #{autoencoder_forward.1} parent=11 // pred_check_branch
        %437 = sbr.rel (%p435) target = $region28
      $region27: #{autoencoder_forward.1} parent=11 // pred_region
        _
      $region28: #{autoencoder_forward.1} parent=11 // pred_fallthru
        _
      // Predicated region
      $region29: #{autoencoder_forward.1} parent=11 // pred_check
        %p438 = pneg %p154
      $region30: #{autoencoder_forward.1} parent=11 // pred_check_branch
        %440 = sbr.rel (%p438) target = $region32
      $region31: #{autoencoder_forward.1} parent=11 // pred_region
        _
      $region32: #{autoencoder_forward.1} parent=11 // pred_fallthru
        _
      // Predicated region
      $region33: #{autoencoder_forward.1} parent=11 // pred_check
        %p441 = pneg %p175
      $region34: #{autoencoder_forward.1} parent=11 // pred_check_branch
        %443 = sbr.rel (%p441) target = $region36
      $region35: #{autoencoder_forward.1} parent=11 // pred_region
        _
      $region36: #{autoencoder_forward.1} parent=11 // pred_fallthru
        _
      // Predicated region
      $region37: #{autoencoder_forward.1} parent=11 // pred_check
        %p444 = pneg %p196
      $region38: #{autoencoder_forward.1} parent=11 // pred_check_branch
        %446 = sbr.rel (%p444) target = $region40
      $region39: #{autoencoder_forward.1} parent=11 // pred_region
        _
      $region40: #{autoencoder_forward.1} parent=11 // pred_fallthru
        _
      // Predicated region
      $region41: #{autoencoder_forward.1} parent=11 // pred_check
        %p447 = pneg %p217
      $region42: #{autoencoder_forward.1} parent=11 // pred_check_branch
        %449 = sbr.rel (%p447) target = $region44
      $region43: #{autoencoder_forward.1} parent=11 // pred_region
        _
      $region44: #{autoencoder_forward.1} parent=11 // pred_fallthru
        _
      // Predicated region
      $region45: #{autoencoder_forward.1} parent=11 // pred_check
        %p450 = pneg %p238
      $region46: #{autoencoder_forward.1} parent=11 // pred_check_branch
        %452 = sbr.rel (%p450) target = $region48
      $region47: #{autoencoder_forward.1} parent=11 // pred_region
        _
      $region48: #{autoencoder_forward.1} parent=11 // pred_fallthru
        _
      // Predicated region
      $region49: #{autoencoder_forward.1} parent=11 // pred_check
        %p453 = pneg %p259
      $region50: #{autoencoder_forward.1} parent=11 // pred_check_branch
        %455 = sbr.rel (%p453) target = $region52
      $region51: #{autoencoder_forward.1} parent=11 // pred_region
        _
      $region52: #{autoencoder_forward.1} parent=11 // pred_fallthru
        _
      // Predicated region
      $region53: #{autoencoder_forward.1} parent=11 // pred_check
        %p456 = pneg %p280
      $region54: #{autoencoder_forward.1} parent=11 // pred_check_branch
        %458 = sbr.rel (%p456) target = $region56
      $region55: #{autoencoder_forward.1} parent=11 // pred_region
        _
      $region56: #{autoencoder_forward.1} parent=11 // pred_fallthru
        _
      // Predicated region
      $region57: #{autoencoder_forward.1} parent=11 // pred_check
        %p459 = pneg %p301
      $region58: #{autoencoder_forward.1} parent=11 // pred_check_branch
        %461 = sbr.rel (%p459) target = $region60
      $region59: #{autoencoder_forward.1} parent=11 // pred_region
        _
      $region60: #{autoencoder_forward.1} parent=11 // pred_fallthru
        _
      // Predicated region
      $region61: #{autoencoder_forward.1} parent=11 // pred_check
        %p462 = pneg %p322
      $region62: #{autoencoder_forward.1} parent=11 // pred_check_branch
        %464 = sbr.rel (%p462) target = $region64
      $region63: #{autoencoder_forward.1} parent=11 // pred_region
        _
      $region64: #{autoencoder_forward.1} parent=11 // pred_fallthru
        _
      // Predicated region
      $region65: #{autoencoder_forward.1} parent=11 // pred_check
        %p465 = pneg %p343
      $region66: #{autoencoder_forward.1} parent=11 // pred_check_branch
        %467 = sbr.rel (%p465) target = $region68
      $region67: #{autoencoder_forward.1} parent=11 // pred_region
        _
      $region68: #{autoencoder_forward.1} parent=11 // pred_fallthru
        _
      // Predicated region
      $region69: #{autoencoder_forward.1} parent=11 // pred_check
        %p468 = pneg %p364
      $region70: #{autoencoder_forward.1} parent=11 // pred_check_branch
        %470 = sbr.rel (%p468) target = $region72
      $region71: #{autoencoder_forward.1} parent=11 // pred_region
        _
      $region72: #{autoencoder_forward.1} parent=11 // pred_fallthru
        _
      // Predicated region
      $region73: #{autoencoder_forward.1} parent=11 // pred_check
        %p471 = pneg %p385
      $region74: #{autoencoder_forward.1} parent=11 // pred_check_branch
        %473 = sbr.rel (%p471) target = $region76
      $region75: #{autoencoder_forward.1} parent=11 // pred_region
        _
      $region76: #{autoencoder_forward.1} parent=11 // pred_fallthru
        _
    $region12: #{autoencoder_forward.1} parent=5 // pred_fallthru
      _
    %p474 = scmp.lt.s32.totalorder %s23, 2
    // Predicated region
    $region77: #{autoencoder_forward.1} parent=5 // pred_check
      %p475 = pneg %p474
    $region78: #{autoencoder_forward.1} parent=5 // pred_check_branch
      %477 = sbr.rel (%p475) target = $region80
    $region79: #{autoencoder_forward.1} parent=5 // pred_region
      // Predicated region
      $region81: #{autoencoder_forward.1} parent=79 // pred_check
        %p478 = pneg %p43
      $region82: #{autoencoder_forward.1} parent=79 // pred_check_branch
        %480 = sbr.rel (%p478) target = $region84
      $region83: #{autoencoder_forward.1} parent=79 // pred_region
        %p481 = scmp.lt.s32.totalorder %s23, 1
        %s482 = scalar_select %p481, %s23, 1
        %s483 = smul.addr %s482, 4
        %s484 = smul.addr %s483, 4
        %s485 = scalar_lea.vmem %s0, %s484
      $region84: #{autoencoder_forward.1} parent=79 // pred_fallthru
        _
    $region80: #{autoencoder_forward.1} parent=5 // pred_fallthru
      _
    %p486 = scmp.le.s32.totalorder 1, %s23
    %p487 = scmp.lt.s32.totalorder %s23, 3
    %p488 = pnand %p486, %p487
    %p489 = pneg %p488
    // Predicated region
    $region85: #{autoencoder_forward.1} parent=5 // pred_check
      _
    $region86: #{autoencoder_forward.1} parent=5 // pred_check_branch
      %491 = sbr.rel (%p488) target = $region88
    $region87: #{autoencoder_forward.1} parent=5 // pred_region
      %s492 = ssub.s32 %s23, 1
      %p493 = scmp.lt.s32.totalorder %s28, 1
      %s494 = scalar_select %p493, %s28, 1
      %s495 = smul.addr %s494, 4
      %s496 = smul.addr %s495, 4
      %s497 = scalar_lea.vmem %s0, %s496
      %p498 = pneg %p49
      %p499 = pneg %p46
      %p500 = pneg %p70
      %p501 = pneg %p67
      %p502 = pneg %p91
      %p503 = pneg %p88
      %p504 = pneg %p112
      %p505 = pneg %p109
      %p506 = pneg %p133
      %p507 = pneg %p130
      %p508 = pneg %p154
      %p509 = pneg %p151
      %p510 = pneg %p175
      %p511 = pneg %p172
      %p512 = pneg %p196
      %p513 = pneg %p193
      %p514 = pneg %p217
      %p515 = pneg %p214
      %p516 = pneg %p238
      %p517 = pneg %p235
      %p518 = pneg %p259
      %p519 = pneg %p256
      %p520 = pneg %p280
      %p521 = pneg %p277
      %p522 = pneg %p301
      %p523 = pneg %p298
      %p524 = pneg %p322
      %p525 = pneg %p319
      %p526 = pneg %p343
      %p527 = pneg %p340
      %p528 = pneg %p364
      %p529 = pneg %p361
      %p530 = pneg %p385
      %p531 = pneg %p382
      %p532 = pneg %p411
      %p533 = pneg %p408
      %p534 = scmp.lt.s32.totalorder %s28, 1
      %s535 = scalar_select %p534, %s28, 1
      %s536 = smul.addr %s535, 3
      %s537 = smul.addr %s536, 4
      %s538 = scalar_lea.vmem %s17, %s537
      %p539 = scmp.lt.s32.totalorder %s28, 1
      %s540 = scalar_select %p539, %s28, 1
      %s541 = smul.addr %s540, 4
      %s542 = smul.addr %s541, 4
      %s543 = scalar_lea.vmem %s0, %s542
      %p544 = scmp.lt.s32.totalorder %s28, 1
      %s545 = scalar_select %p544, %s28, 1
      %s546 = smul.addr %s545, 3
      %s547 = smul.addr %s546, 4
      %s548 = scalar_lea.vmem %s17, %s547
      %vm550 = vcmask 257024
      %551 = vst.msk [vmem:[#allocation3] sm:$0xf] %vm550, 0
      %552 = vst.msk [vmem:[#allocation3 + $0x10] sm:$0xf] %vm550, 0
      %553 = vst.msk [vmem:[#allocation3 + $0x20] sm:$0xf] %vm550, 0
      %554 = vst.msk [vmem:[#allocation3 + $0x30] sm:$0xf] %vm550, 0
      %vm555 = vcmask 1044256
      %vm556 = vcmask 31748
      %vm557 = vmor %vm556, %vm555
      %558 = vst.msk [vmem:[#allocation3 + $0x8] sm:$0xff] %vm557, 0
      %559 = vst.msk [vmem:[#allocation3 + $0x18] sm:$0xff] %vm557, 0
      %560 = vst.msk [vmem:[#allocation3 + $0x28] sm:$0xff] %vm557, 0
      %561 = vst.msk [vmem:[#allocation3 + $0x38] sm:$0xff] %vm557, 0
      %vm562 = vcmask 125952
      %563 = vst.msk [vmem:[#allocation4] sm:$0xf] %vm562, 0
      %564 = vst.msk [vmem:[#allocation4 + $0x8] sm:$0xf] %vm562, 0
      %565 = vst.msk [vmem:[#allocation4 + $0x10] sm:$0xf] %vm562, 0
      %566 = vst.msk [vmem:[#allocation4 + $0x18] sm:$0xf] %vm562, 0
      %vm567 = vcmask 1044384
      %vm568 = vmor %vm556, %vm567
      %569 = vst.msk [vmem:[#allocation4] sm:$0xff] %vm568, 0
      %570 = vst.msk [vmem:[#allocation4 + $0x8] sm:$0xff] %vm568, 0
      %571 = vst.msk [vmem:[#allocation4 + $0x10] sm:$0xff] %vm568, 0
      %572 = vst.msk [vmem:[#allocation4 + $0x18] sm:$0xff] %vm568, 0
      %v573 = vld [vmem:[%s15] sm:$0x7]
      %v575 = vlaneseq
      %v576 = vshrl.u32 %v575, 7
      %v577 = vsub.s32 0, %v576
      %v578 = vrot.slane %v573, %v577
      %v579 = vlaneseq
      %v580 = vshrl.u32 %v579, 7
      %v581 = vsub.s32 1, %v580
      %v582 = vrot.slane %v573, %v581
      %v583 = vlaneseq
      %v584 = vshrl.u32 %v583, 7
      %v585 = vsub.s32 2, %v584
      %v586 = vrot.slane %v573, %v585
      %v590 = vld [vmem:[%s543] sm:$0xff]
      %v591 = vld [vmem:[%s543 + $0x8] sm:$0xf]
      %594 = vrot.lane.b32.xlu0 %v590, 115
      %v595 = vpop.permute.xlu0 %594
      %596 = vrot.lane.b32.xlu0 %v591, 115
      %v597 = vpop.permute.xlu0 %596
      %v598 = vrot.slane %v595, 4
      %v599 = vrot.slane %v597, 4
      %vm600 = vcmask 1043456
      %v601 = vsel %vm600, %v598, %v599
      %vm602 = vcmask 941056
      %v603 = vsel %vm602, %v595, %v601
      %606 = vst [vmem:[#allocation2] sm:$0xff] %v603
      %vm607 = vcmask 551936
      %608 = vst.msk [vmem:[#allocation2 + $0x8] sm:$0xf] %vm607, %v597
      %v609 = vld [vmem:[%s543] sm:$0xff]
      %v610 = vld [vmem:[%s543 + $0x8] sm:$0xf]
      %613 = vrot.lane.b32.xlu0 %v609, 114
      %v614 = vpop.permute.xlu0 %613
      %615 = vrot.lane.b32.xlu0 %v610, 114
      %v616 = vpop.permute.xlu0 %615
      %v617 = vrot.slane %v614, 4
      %v618 = vrot.slane %v616, 4
      %v619 = vsel %vm600, %v617, %v618
      %vm620 = vcmask 932864
      %v621 = vsel %vm620, %v614, %v619
      %624 = vst [vmem:[#allocation2 + $0xc] sm:$0xff] %v621
      %625 = vst.msk [vmem:[#allocation2 + $0x14] sm:$0xf] %vm607, %v616
      %v626 = vld [vmem:[%s543] sm:$0xff]
      %v627 = vld [vmem:[%s543 + $0x8] sm:$0xf]
      %630 = vrot.lane.b32.xlu0 %v626, 113
      %v631 = vpop.permute.xlu0 %630
      %632 = vrot.lane.b32.xlu0 %v627, 113
      %v633 = vpop.permute.xlu0 %632
      %v634 = vrot.slane %v631, 4
      %v635 = vrot.slane %v633, 4
      %v636 = vsel %vm600, %v634, %v635
      %vm637 = vcmask 924672
      %v638 = vsel %vm637, %v631, %v636
      %641 = vst [vmem:[#allocation2 + $0x18] sm:$0xff] %v638
      %642 = vst.msk [vmem:[#allocation2 + $0x20] sm:$0xf] %vm607, %v633
      %v643 = vld [vmem:[%s543] sm:$0xff]
      %v644 = vld [vmem:[%s543 + $0x8] sm:$0xf]
      %647 = vrot.lane.b32.xlu0 %v643, 97
      %v648 = vpop.permute.xlu0 %647
      %649 = vrot.lane.b32.xlu0 %v644, 97
      %v650 = vpop.permute.xlu0 %649
      %v651 = vrot.slane %v648, 4
      %v652 = vrot.slane %v650, 4
      %v653 = vsel %vm600, %v651, %v652
      %vm654 = vcmask 793600
      %v655 = vsel %vm654, %v648, %v653
      %658 = vst [vmem:[#allocation2 + $0x24] sm:$0xff] %v655
      %659 = vst.msk [vmem:[#allocation2 + $0x2c] sm:$0xf] %vm607, %v650
      %v660 = vld [vmem:[%s543] sm:$0xff]
      %v661 = vld [vmem:[%s543 + $0x8] sm:$0xf]
      %664 = vrot.lane.b32.xlu0 %v660, 96
      %v665 = vpop.permute.xlu0 %664
      %666 = vrot.lane.b32.xlu0 %v661, 96
      %v667 = vpop.permute.xlu0 %666
      %v668 = vrot.slane %v665, 4
      %v669 = vrot.slane %v667, 4
      %v670 = vsel %vm600, %v668, %v669
      %vm671 = vcmask 785408
      %v672 = vsel %vm671, %v665, %v670
      %675 = vst [vmem:[#allocation2 + $0x30] sm:$0xff] %v672
      %676 = vst.msk [vmem:[#allocation2 + $0x38] sm:$0xf] %vm607, %v667
      %v677 = vld [vmem:[%s543] sm:$0xff]
      %v678 = vld [vmem:[%s543 + $0x8] sm:$0xf]
      %681 = vrot.lane.b32.xlu0 %v677, 95
      %v682 = vpop.permute.xlu0 %681
      %683 = vrot.lane.b32.xlu0 %v678, 95
      %v684 = vpop.permute.xlu0 %683
      %v685 = vrot.slane %v682, 4
      %v686 = vrot.slane %v684, 4
      %v687 = vsel %vm600, %v685, %v686
      %vm688 = vcmask 777216
      %v689 = vsel %vm688, %v682, %v687
      %692 = vst [vmem:[#allocation2 + $0x3c] sm:$0xff] %v689
      %693 = vst.msk [vmem:[#allocation2 + $0x44] sm:$0xf] %vm607, %v684
      %v694 = vld [vmem:[%s543] sm:$0xff]
      %v695 = vld [vmem:[%s543 + $0x8] sm:$0xf]
      %698 = vrot.lane.b32.xlu0 %v694, 79
      %v699 = vpop.permute.xlu0 %698
      %700 = vrot.lane.b32.xlu0 %v695, 79
      %v701 = vpop.permute.xlu0 %700
      %v702 = vrot.slane %v699, 4
      %v703 = vrot.slane %v701, 4
      %v704 = vsel %vm600, %v702, %v703
      %vm705 = vcmask 646144
      %v706 = vsel %vm705, %v699, %v704
      %709 = vst [vmem:[#allocation2 + $0x48] sm:$0xff] %v706
      %710 = vst.msk [vmem:[#allocation2 + $0x50] sm:$0xf] %vm607, %v701
      %v711 = vld [vmem:[%s543] sm:$0xff]
      %v712 = vld [vmem:[%s543 + $0x8] sm:$0xf]
      %715 = vrot.lane.b32.xlu0 %v711, 78
      %v716 = vpop.permute.xlu0 %715
      %717 = vrot.lane.b32.xlu0 %v712, 78
      %v718 = vpop.permute.xlu0 %717
      %v719 = vrot.slane %v716, 4
      %v720 = vrot.slane %v718, 4
      %v721 = vsel %vm600, %v719, %v720
      %vm722 = vcmask 637952
      %v723 = vsel %vm722, %v716, %v721
      %726 = vst [vmem:[#allocation2 + $0x54] sm:$0xff] %v723
      %727 = vst.msk [vmem:[#allocation2 + $0x5c] sm:$0xf] %vm607, %v718
      %v728 = vld [vmem:[%s543] sm:$0xff]
      %v729 = vld [vmem:[%s543 + $0x8] sm:$0xf]
      %732 = vrot.lane.b32.xlu0 %v728, 77
      %v733 = vpop.permute.xlu0 %732
      %734 = vrot.lane.b32.xlu0 %v729, 77
      %v735 = vpop.permute.xlu0 %734
      %v736 = vrot.slane %v733, 4
      %v737 = vrot.slane %v735, 4
      %v738 = vsel %vm600, %v736, %v737
      %vm739 = vcmask 629760
      %v740 = vsel %vm739, %v733, %v738
      %743 = vst [vmem:[#allocation2 + $0x60] sm:$0xff] %v740
      %744 = vst.msk [vmem:[#allocation2 + $0x68] sm:$0xf] %vm607, %v735
      %v745 = vld [vmem:[%s1] sm:$0xf]
      %v746 = vld [vmem:[%s1 + $0x4] sm:$0xf]
      %v747 = vld [vmem:[%s1 + $0x8] sm:$0xf]
      %v748 = vld [vmem:[%s1 + $0xc] sm:$0xf]
      %v749 = vld [vmem:[#allocation2] sm:$0xff]
      %v750 = vld [vmem:[#allocation2 + $0x8] sm:$0xf]
      %v751 = vld [vmem:[#allocation2 + $0xc] sm:$0xff]
      %v752 = vld [vmem:[#allocation2 + $0x14] sm:$0xf]
      %v753 = vld [vmem:[#allocation2 + $0x18] sm:$0xff]
      %v754 = vld [vmem:[#allocation2 + $0x20] sm:$0xf]
      %v755 = vld [vmem:[#allocation2 + $0x24] sm:$0xff]
      %v756 = vld [vmem:[#allocation2 + $0x2c] sm:$0xf]
      %v757 = vld [vmem:[#allocation2 + $0x30] sm:$0xff]
      %v758 = vld [vmem:[#allocation2 + $0x38] sm:$0xf]
      %v759 = vld [vmem:[#allocation2 + $0x3c] sm:$0xff]
      %v760 = vld [vmem:[#allocation2 + $0x44] sm:$0xf]
      %v761 = vld [vmem:[#allocation2 + $0x48] sm:$0xff]
      %v762 = vld [vmem:[#allocation2 + $0x50] sm:$0xf]
      %v763 = vld [vmem:[#allocation2 + $0x54] sm:$0xff]
      %v764 = vld [vmem:[#allocation2 + $0x5c] sm:$0xf]
      %v765 = vld [vmem:[#allocation2 + $0x60] sm:$0xff]
      %v766 = vld [vmem:[#allocation2 + $0x68] sm:$0xf]
      %v767 = vld [vmem:[%s2] sm:$0xff]
      %v768 = vld [vmem:[%s2 + $0x8] sm:$0xff]
      %v769 = vld [vmem:[%s2 + $0x10] sm:$0xff]
      %v770 = vld [vmem:[%s2 + $0x18] sm:$0xff]
      %772 = vset.pattern.permute.xlu0 0
      %773 = vperm.xlu0 %772, %v767
      %v774 = vpop.permute.xlu0 %773
      %777 = vset.pattern.permute.xlu0 0
      %778 = vperm.xlu0 %777, %v768
      %v779 = vpop.permute.xlu0 %778
      %782 = vset.pattern.permute.xlu0 0
      %783 = vperm.xlu0 %782, %v769
      %v784 = vpop.permute.xlu0 %783
      %787 = vset.pattern.permute.xlu0 0
      %788 = vperm.xlu0 %787, %v770
      %v789 = vpop.permute.xlu0 %788
      %v795 = vunpack.c.l.b16 %v745
      %v796 = vunpack.c.l.b16 %v746
      %v797 = vunpack.c.l.b16 %v747
      %v798 = vunpack.c.l.b16 %v748
      %v799 = vpack.c.b16 %v796, %v795
      %v800 = vpack.c.b16 %v798, %v797
      %v819 = vunpack.c.l.b16 %v749
      %v820 = vunpack.c.h.b16 %v749
      %v821 = vunpack.c.l.b16 %v750
      %v822 = vunpack.c.l.b16 %v751
      %v823 = vunpack.c.h.b16 %v751
      %v824 = vunpack.c.l.b16 %v752
      %v825 = vunpack.c.l.b16 %v753
      %v826 = vunpack.c.h.b16 %v753
      %v827 = vunpack.c.l.b16 %v754
      %v828 = vunpack.c.l.b16 %v755
      %v829 = vunpack.c.h.b16 %v755
      %v830 = vunpack.c.l.b16 %v756
      %v831 = vunpack.c.l.b16 %v757
      %v832 = vunpack.c.h.b16 %v757
      %v833 = vunpack.c.l.b16 %v758
      %v834 = vunpack.c.l.b16 %v759
      %v835 = vunpack.c.h.b16 %v759
      %v836 = vunpack.c.l.b16 %v760
      %v837 = vunpack.c.l.b16 %v761
      %v838 = vunpack.c.h.b16 %v761
      %v839 = vunpack.c.l.b16 %v762
      %v840 = vunpack.c.l.b16 %v763
      %v841 = vunpack.c.h.b16 %v763
      %v842 = vunpack.c.l.b16 %v764
      %v843 = vunpack.c.l.b16 %v765
      %v844 = vunpack.c.h.b16 %v765
      %v845 = vunpack.c.l.b16 %v766
      %v846 = vpack.c.b16 %v822, %v819
      %v847 = vpack.c.b16 %v823, %v820
      %v848 = vpack.c.b16 %v824, %v821
      %v849 = vpack.c.b16 %v828, %v825
      %v850 = vpack.c.b16 %v829, %v826
      %v851 = vpack.c.b16 %v830, %v827
      %v852 = vpack.c.b16 %v834, %v831
      %v853 = vpack.c.b16 %v835, %v832
      %v854 = vpack.c.b16 %v836, %v833
      %v855 = vpack.c.b16 %v840, %v837
      %v856 = vpack.c.b16 %v841, %v838
      %v857 = vpack.c.b16 %v842, %v839
      %v858 = vpack.c.b16 %v843, %v843
      %v859 = vpack.c.b16 %v844, %v844
      %v860 = vpack.c.b16 %v845, %v845
      %vm873 = vcmask 588800
      %v875 = vsel %vm873, %v799, 0
      %v878 = vsel %vm873, %v800, 0
      %vm880 = vcmask 1043456
      %v882 = vsel %vm880, %v858, 0
      %v885 = vsel %vm880, %v859, 0
      %v888 = vsel %vm880, %v860, 0
      %890 = vmatprep.subr.bf16.mxu0 0
      %891 = vmatpush1.bf16.msra.mxu0 0
      %892 = vmatprep.subr.bf16.mxu0 0
      %893 = vmatpush1.bf16.msra.mxu0 0
      %894 = vmatprep.subr.bf16.mxu0 0
      %895 = vmatpush1.bf16.msra.mxu0 0
      %896 = vmatprep.subr.bf16.mxu0 %v885
      %897 = vmatpush1.bf16.msra.mxu0 %v882
      %898 = vmatprep.subr.bf16.mxu0 %v856
      %899 = vmatpush1.bf16.msra.mxu0 %v855
      %900 = vmatprep.subr.bf16.mxu0 %v853
      %901 = vmatpush1.bf16.msra.mxu0 %v852
      %902 = vmatprep.subr.bf16.mxu0 %v850
      %903 = vmatpush1.bf16.msra.mxu0 %v849
      %904 = vmatprep.subr.bf16.mxu0 %v847
      %905 = vmatpush1.bf16.msra.mxu0 %v846
      %906 = vmatprep.subr.bf16.mxu0 0
      %907 = vmatpush2.bf16.msra.mxu0 0
      %908 = vmatprep.subr.bf16.mxu0 0
      %909 = vmatpush2.bf16.msra.mxu0 0
      %910 = vmatprep.subr.bf16.mxu0 0
      %911 = vmatpush2.bf16.msra.mxu0 0
      %912 = vmatprep.subr.bf16.mxu0 0
      %913 = vmatpush2.bf16.msra.mxu0 0
      %914 = vmatprep.subr.bf16.mxu0 0
      %915 = vmatpush2.bf16.msra.mxu0 0
      %916 = vmatprep.subr.bf16.mxu0 0
      %917 = vmatpush2.bf16.msra.mxu0 0
      %918 = vmatprep.subr.bf16.mxu0 0
      %919 = vmatpush2.bf16.msra.mxu0 0
      %920 = vmatprep.subr.bf16.mxu0 0
      %921 = vmatpush2.bf16.msra.mxu0 0
      %922 = vmatprep.mubr.bf16.mxu0 0
      %923 = vmatmul.mubr.bf16.gmra.mxu0 %v875
      %v924 = vpop.f32.mrf.mxu0
      %v925 = vadd.f32 %v774, %v924
      %v926 = vpop.f32.mrf.mxu0
      %v927 = vadd.f32 %v774, %v926
      %v928 = vpop.f32.mrf.mxu0
      %v929 = vadd.f32 %v779, %v928
      %v930 = vpop.f32.mrf.mxu0
      %v931 = vadd.f32 %v779, %v930
      %932 = vmatprep.mubr.bf16.mxu0 0
      %933 = vmatmul.mubr.bf16.gmra.mxu0 %v878
      %v934 = vpop.f32.mrf.mxu0
      %v935 = vadd.f32 %v784, %v934
      %v936 = vpop.f32.mrf.mxu0
      %v937 = vadd.f32 %v784, %v936
      %v938 = vpop.f32.mrf.mxu0
      %v939 = vadd.f32 %v789, %v938
      %v940 = vpop.f32.mrf.mxu0
      %v941 = vadd.f32 %v789, %v940
      %942 = vdwg.mxu0
      %943 = vmatprep.subr.bf16.mxu0 0
      %944 = vmatpush1.bf16.msra.mxu0 0
      %945 = vmatprep.subr.bf16.mxu0 0
      %946 = vmatpush1.bf16.msra.mxu0 0
      %947 = vmatprep.subr.bf16.mxu0 0
      %948 = vmatpush1.bf16.msra.mxu0 0
      %949 = vmatprep.subr.bf16.mxu0 0
      %950 = vmatpush1.bf16.msra.mxu0 %v888
      %951 = vmatprep.subr.bf16.mxu0 0
      %952 = vmatpush1.bf16.msra.mxu0 %v857
      %953 = vmatprep.subr.bf16.mxu0 0
      %954 = vmatpush1.bf16.msra.mxu0 %v854
      %955 = vmatprep.subr.bf16.mxu0 0
      %956 = vmatpush1.bf16.msra.mxu0 %v851
      %957 = vmatprep.subr.bf16.mxu0 0
      %958 = vmatpush1.bf16.msra.mxu0 %v848
      %959 = vmatprep.subr.bf16.mxu0 0
      %960 = vmatpush2.bf16.msra.mxu0 0
      %961 = vmatprep.subr.bf16.mxu0 0
      %962 = vmatpush2.bf16.msra.mxu0 0
      %963 = vmatprep.subr.bf16.mxu0 0
      %964 = vmatpush2.bf16.msra.mxu0 0
      %965 = vmatprep.subr.bf16.mxu0 0
      %966 = vmatpush2.bf16.msra.mxu0 0
      %967 = vmatprep.subr.bf16.mxu0 0
      %968 = vmatpush2.bf16.msra.mxu0 0
      %969 = vmatprep.subr.bf16.mxu0 0
      %970 = vmatpush2.bf16.msra.mxu0 0
      %971 = vmatprep.subr.bf16.mxu0 0
      %972 = vmatpush2.bf16.msra.mxu0 0
      %973 = vmatprep.subr.bf16.mxu0 0
      %974 = vmatpush2.bf16.msra.mxu0 0
      %975 = vmatprep.mubr.bf16.mxu0 0
      %976 = vmatmul.mubr.bf16.gmra.mxu0 %v875
      %v977 = vpop.f32.mrf.mxu0
      %v978 = vadd.f32 %v774, %v977
      %v979 = vpop.f32.mrf.mxu0
      %v980 = vpop.f32.mrf.mxu0
      %v981 = vadd.f32 %v779, %v980
      %v982 = vpop.f32.mrf.mxu0
      %983 = vmatprep.mubr.bf16.mxu0 0
      %984 = vmatmul.mubr.bf16.gmra.mxu0 %v878
      %v985 = vpop.f32.mrf.mxu0
      %v986 = vadd.f32 %v784, %v985
      %v987 = vpop.f32.mrf.mxu0
      %v988 = vpop.f32.mrf.mxu0
      %v989 = vadd.f32 %v789, %v988
      %v990 = vpop.f32.mrf.mxu0
      %991 = vdwg.mxu0
      %v992 = vxor.u32 %v925, 2147483648
      %v993 = vxor.u32 %v927, 2147483648
      %v994 = vxor.u32 %v978, 2147483648
      %v995 = vxor.u32 %v929, 2147483648
      %v996 = vxor.u32 %v931, 2147483648
      %v997 = vxor.u32 %v981, 2147483648
      %v998 = vxor.u32 %v935, 2147483648
      %v999 = vxor.u32 %v937, 2147483648
      %v1000 = vxor.u32 %v986, 2147483648
      %v1001 = vxor.u32 %v939, 2147483648
      %v1002 = vxor.u32 %v941, 2147483648
      %v1003 = vxor.u32 %v989, 2147483648
      %v1004 = vmul.f32 %v992, 1.442695
      %v1005 = vpow.pop %v1004
      %v1006 = vmul.f32 %v993, 1.442695
      %v1007 = vpow.pop %v1006
      %v1008 = vmul.f32 %v994, 1.442695
      %v1009 = vpow.pop %v1008
      %v1010 = vmul.f32 %v995, 1.442695
      %v1011 = vpow.pop %v1010
      %v1012 = vmul.f32 %v996, 1.442695
      %v1013 = vpow.pop %v1012
      %v1014 = vmul.f32 %v997, 1.442695
      %v1015 = vpow.pop %v1014
      %v1016 = vmul.f32 %v998, 1.442695
      %v1017 = vpow.pop %v1016
      %v1018 = vmul.f32 %v999, 1.442695
      %v1019 = vpow.pop %v1018
      %v1020 = vmul.f32 %v1000, 1.442695
      %v1021 = vpow.pop %v1020
      %v1022 = vmul.f32 %v1001, 1.442695
      %v1023 = vpow.pop %v1022
      %v1024 = vmul.f32 %v1002, 1.442695
      %v1025 = vpow.pop %v1024
      %v1026 = vmul.f32 %v1003, 1.442695
      %v1027 = vpow.pop %v1026
      %v1028 = vadd.f32 %v1005, 1.0
      %v1029 = vadd.f32 %v1007, 1.0
      %v1030 = vadd.f32 %v1009, 1.0
      %v1031 = vadd.f32 %v1011, 1.0
      %v1032 = vadd.f32 %v1013, 1.0
      %v1033 = vadd.f32 %v1015, 1.0
      %v1034 = vadd.f32 %v1017, 1.0
      %v1035 = vadd.f32 %v1019, 1.0
      %v1036 = vadd.f32 %v1021, 1.0
      %v1037 = vadd.f32 %v1023, 1.0
      %v1038 = vadd.f32 %v1025, 1.0
      %v1039 = vadd.f32 %v1027, 1.0
      %v1040 = vrcp.pop %v1028
      %v1041 = vmul.f32 1.0, %v1040
      %v1042 = vrcp.pop %v1029
      %v1043 = vmul.f32 1.0, %v1042
      %v1044 = vrcp.pop %v1030
      %v1045 = vmul.f32 1.0, %v1044
      %v1046 = vrcp.pop %v1031
      %v1047 = vmul.f32 1.0, %v1046
      %v1048 = vrcp.pop %v1032
      %v1049 = vmul.f32 1.0, %v1048
      %v1050 = vrcp.pop %v1033
      %v1051 = vmul.f32 1.0, %v1050
      %v1052 = vrcp.pop %v1034
      %v1053 = vmul.f32 1.0, %v1052
      %v1054 = vrcp.pop %v1035
      %v1055 = vmul.f32 1.0, %v1054
      %v1056 = vrcp.pop %v1036
      %v1057 = vmul.f32 1.0, %v1056
      %v1058 = vrcp.pop %v1037
      %v1059 = vmul.f32 1.0, %v1058
      %v1060 = vrcp.pop %v1038
      %v1061 = vmul.f32 1.0, %v1060
      %v1062 = vrcp.pop %v1039
      %v1063 = vmul.f32 1.0, %v1062
      %v1064 = vmul.f32 %v925, %v1041
      %v1065 = vmul.f32 %v927, %v1043
      %v1066 = vmul.f32 %v978, %v1045
      %v1067 = vmul.f32 %v929, %v1047
      %v1068 = vmul.f32 %v931, %v1049
      %v1069 = vmul.f32 %v981, %v1051
      %v1070 = vmul.f32 %v935, %v1053
      %v1071 = vmul.f32 %v937, %v1055
      %v1072 = vmul.f32 %v986, %v1057
      %v1073 = vmul.f32 %v939, %v1059
      %v1074 = vmul.f32 %v941, %v1061
      %v1075 = vmul.f32 %v989, %v1063
      %v1076 = vmul.f32 %v1064, %v578
      %v1077 = vmul.f32 %v1065, %v582
      %v1078 = vmul.f32 %v1066, %v586
      %v1079 = vmul.f32 %v1067, %v578
      %v1080 = vmul.f32 %v1068, %v582
      %v1081 = vmul.f32 %v1069, %v586
      %v1082 = vmul.f32 %v1070, %v578
      %v1083 = vmul.f32 %v1071, %v582
      %v1084 = vmul.f32 %v1072, %v586
      %v1085 = vmul.f32 %v1073, %v578
      %v1086 = vmul.f32 %v1074, %v582
      %v1087 = vmul.f32 %v1075, %v586
      %v1088 = vpack.c.bf16 %v1079, %v1076
      %v1089 = vpack.c.bf16 %v1080, %v1077
      %v1090 = vpack.c.bf16 %v1081, %v1078
      %v1091 = vpack.c.bf16 %v1085, %v1082
      %v1092 = vpack.c.bf16 %v1086, %v1083
      %v1093 = vpack.c.bf16 %v1087, %v1084
      %v1100 = vunpack.c.l.b16 %v1088
      %v1101 = vunpack.c.l.b16 %v1089
      %v1102 = vunpack.c.l.b16 %v1090
      %v1103 = vunpack.c.h.b16 %v1088
      %v1104 = vunpack.c.h.b16 %v1089
      %v1105 = vunpack.c.h.b16 %v1090
      %v1106 = vunpack.c.l.b16 %v1091
      %v1107 = vunpack.c.l.b16 %v1092
      %v1108 = vunpack.c.l.b16 %v1093
      %v1109 = vunpack.c.h.b16 %v1091
      %v1110 = vunpack.c.h.b16 %v1092
      %v1111 = vunpack.c.h.b16 %v1093
      %v1112 = vpack.c.b16 %v1101, %v1100
      %v1113 = vpack.c.b16 %v1102, %v1102
      %v1114 = vpack.c.b16 %v1104, %v1103
      %v1115 = vpack.c.b16 %v1105, %v1105
      %v1116 = vpack.c.b16 %v1107, %v1106
      %v1117 = vpack.c.b16 %v1108, %v1108
      %v1118 = vpack.c.b16 %v1110, %v1109
      %v1119 = vpack.c.b16 %v1111, %v1111
      %1120 = vrot.lane.b32.xlu0 %v1112, 32
      %v1121 = vpop.permute.xlu0 %1120
      %1122 = vrot.lane.b32.xlu0 %v1113, 32
      %v1123 = vpop.permute.xlu0 %1122
      %1124 = vrot.lane.b32.xlu0 %v1114, 32
      %v1125 = vpop.permute.xlu0 %1124
      %1126 = vrot.lane.b32.xlu0 %v1115, 32
      %v1127 = vpop.permute.xlu0 %1126
      %1128 = vrot.lane.b32.xlu0 %v1116, 32
      %v1129 = vpop.permute.xlu0 %1128
      %1130 = vrot.lane.b32.xlu0 %v1117, 32
      %v1131 = vpop.permute.xlu0 %1130
      %1132 = vrot.lane.b32.xlu0 %v1118, 32
      %v1133 = vpop.permute.xlu0 %1132
      %1134 = vrot.lane.b32.xlu0 %v1119, 32
      %v1135 = vpop.permute.xlu0 %1134
      %v1136 = vrot.slane %v1121, 4
      %v1137 = vrot.slane %v1125, 4
      %v1138 = vrot.slane %v1129, 4
      %v1139 = vrot.slane %v1133, 4
      %vm1140 = vcmask 261120
      %v1141 = vsel %vm1140, %v1136, %v1121
      %v1142 = vsel %vm1140, %v1136, %v1123
      %v1143 = vsel %vm1140, %v1137, %v1125
      %v1144 = vsel %vm1140, %v1137, %v1127
      %v1145 = vsel %vm1140, %v1138, %v1129
      %v1146 = vsel %vm1140, %v1138, %v1131
      %v1147 = vsel %vm1140, %v1139, %v1133
      %v1148 = vsel %vm1140, %v1139, %v1135
      %vm1157 = vcmask 1043712
      %vm1158 = vcmask 1047556
      %vm1159 = vmor %vm1158, %vm1157
      %1160 = vst.msk [vmem:[#allocation3] sm:$0xff] %vm1159, %v1141
      %vm1161 = vcmask 814080
      %1162 = vst.msk [vmem:[#allocation3 + $0x8] sm:$0xf] %vm1161, %v1142
      %1163 = vst.msk [vmem:[#allocation3 + $0x10] sm:$0xff] %vm1159, %v1143
      %1164 = vst.msk [vmem:[#allocation3 + $0x18] sm:$0xf] %vm1161, %v1144
      %1165 = vst.msk [vmem:[#allocation3 + $0x20] sm:$0xff] %vm1159, %v1145
      %1166 = vst.msk [vmem:[#allocation3 + $0x28] sm:$0xf] %vm1161, %v1146
      %1167 = vst.msk [vmem:[#allocation3 + $0x30] sm:$0xff] %vm1159, %v1147
      %1168 = vst.msk [vmem:[#allocation3 + $0x38] sm:$0xf] %vm1161, %v1148
      %v1169 = vld [vmem:[#allocation3] sm:$0xff]
      %v1170 = vld [vmem:[#allocation3 + $0x8] sm:$0xf]
      %v1171 = vld [vmem:[#allocation3 + $0x10] sm:$0xff]
      %v1172 = vld [vmem:[#allocation3 + $0x18] sm:$0xf]
      %v1173 = vld [vmem:[#allocation3 + $0x20] sm:$0xff]
      %v1174 = vld [vmem:[#allocation3 + $0x28] sm:$0xf]
      %v1175 = vld [vmem:[#allocation3 + $0x30] sm:$0xff]
      %v1176 = vld [vmem:[#allocation3 + $0x38] sm:$0xf]
      %1185 = vrot.lane.b32.xlu0 %v1169, 115
      %v1186 = vpop.permute.xlu0 %1185
      %1187 = vrot.lane.b32.xlu0 %v1170, 115
      %v1188 = vpop.permute.xlu0 %1187
      %1189 = vrot.lane.b32.xlu0 %v1171, 115
      %v1190 = vpop.permute.xlu0 %1189
      %1191 = vrot.lane.b32.xlu0 %v1172, 115
      %v1192 = vpop.permute.xlu0 %1191
      %1193 = vrot.lane.b32.xlu0 %v1173, 115
      %v1194 = vpop.permute.xlu0 %1193
      %1195 = vrot.lane.b32.xlu0 %v1174, 115
      %v1196 = vpop.permute.xlu0 %1195
      %1197 = vrot.lane.b32.xlu0 %v1175, 115
      %v1198 = vpop.permute.xlu0 %1197
      %1199 = vrot.lane.b32.xlu0 %v1176, 115
      %v1200 = vpop.permute.xlu0 %1199
      %v1201 = vrot.slane %v1186, 4
      %v1202 = vrot.slane %v1188, 4
      %v1203 = vrot.slane %v1190, 4
      %v1204 = vrot.slane %v1192, 4
      %v1205 = vrot.slane %v1194, 4
      %v1206 = vrot.slane %v1196, 4
      %v1207 = vrot.slane %v1198, 4
      %v1208 = vrot.slane %v1200, 4
      %v1209 = vsel %vm600, %v1201, %v1202
      %v1210 = vsel %vm602, %v1186, %v1209
      %v1211 = vsel %vm600, %v1203, %v1204
      %v1212 = vsel %vm602, %v1190, %v1211
      %v1213 = vsel %vm600, %v1205, %v1206
      %v1214 = vsel %vm602, %v1194, %v1213
      %v1215 = vsel %vm600, %v1207, %v1208
      %v1216 = vsel %vm602, %v1198, %v1215
      %1225 = vst [vmem:[#allocation2] sm:$0xff] %v1210
      %1226 = vst.msk [vmem:[#allocation2 + $0x8] sm:$0xf] %vm607, %v1188
      %1227 = vst [vmem:[#allocation2 + $0xc] sm:$0xff] %v1212
      %1228 = vst.msk [vmem:[#allocation2 + $0x14] sm:$0xf] %vm607, %v1192
      %1229 = vst [vmem:[#allocation2 + $0x18] sm:$0xff] %v1214
      %1230 = vst.msk [vmem:[#allocation2 + $0x20] sm:$0xf] %vm607, %v1196
      %1231 = vst [vmem:[#allocation2 + $0x24] sm:$0xff] %v1216
      %1232 = vst.msk [vmem:[#allocation2 + $0x2c] sm:$0xf] %vm607, %v1200
      %v1233 = vld [vmem:[#allocation3] sm:$0xff]
      %v1234 = vld [vmem:[#allocation3 + $0x8] sm:$0xf]
      %v1235 = vld [vmem:[#allocation3 + $0x10] sm:$0xff]
      %v1236 = vld [vmem:[#allocation3 + $0x18] sm:$0xf]
      %v1237 = vld [vmem:[#allocation3 + $0x20] sm:$0xff]
      %v1238 = vld [vmem:[#allocation3 + $0x28] sm:$0xf]
      %v1239 = vld [vmem:[#allocation3 + $0x30] sm:$0xff]
      %v1240 = vld [vmem:[#allocation3 + $0x38] sm:$0xf]
      %1249 = vrot.lane.b32.xlu0 %v1233, 114
      %v1250 = vpop.permute.xlu0 %1249
      %1251 = vrot.lane.b32.xlu0 %v1234, 114
      %v1252 = vpop.permute.xlu0 %1251
      %1253 = vrot.lane.b32.xlu0 %v1235, 114
      %v1254 = vpop.permute.xlu0 %1253
      %1255 = vrot.lane.b32.xlu0 %v1236, 114
      %v1256 = vpop.permute.xlu0 %1255
      %1257 = vrot.lane.b32.xlu0 %v1237, 114
      %v1258 = vpop.permute.xlu0 %1257
      %1259 = vrot.lane.b32.xlu0 %v1238, 114
      %v1260 = vpop.permute.xlu0 %1259
      %1261 = vrot.lane.b32.xlu0 %v1239, 114
      %v1262 = vpop.permute.xlu0 %1261
      %1263 = vrot.lane.b32.xlu0 %v1240, 114
      %v1264 = vpop.permute.xlu0 %1263
      %v1265 = vrot.slane %v1250, 4
      %v1266 = vrot.slane %v1252, 4
      %v1267 = vrot.slane %v1254, 4
      %v1268 = vrot.slane %v1256, 4
      %v1269 = vrot.slane %v1258, 4
      %v1270 = vrot.slane %v1260, 4
      %v1271 = vrot.slane %v1262, 4
      %v1272 = vrot.slane %v1264, 4
      %v1273 = vsel %vm600, %v1265, %v1266
      %v1274 = vsel %vm620, %v1250, %v1273
      %v1275 = vsel %vm600, %v1267, %v1268
      %v1276 = vsel %vm620, %v1254, %v1275
      %v1277 = vsel %vm600, %v1269, %v1270
      %v1278 = vsel %vm620, %v1258, %v1277
      %v1279 = vsel %vm600, %v1271, %v1272
      %v1280 = vsel %vm620, %v1262, %v1279
      %1289 = vst [vmem:[#allocation2 + $0x30] sm:$0xff] %v1274
      %1290 = vst.msk [vmem:[#allocation2 + $0x38] sm:$0xf] %vm607, %v1252
      %1291 = vst [vmem:[#allocation2 + $0x3c] sm:$0xff] %v1276
      %1292 = vst.msk [vmem:[#allocation2 + $0x44] sm:$0xf] %vm607, %v1256
      %1293 = vst [vmem:[#allocation2 + $0x48] sm:$0xff] %v1278
      %1294 = vst.msk [vmem:[#allocation2 + $0x50] sm:$0xf] %vm607, %v1260
      %1295 = vst [vmem:[#allocation2 + $0x54] sm:$0xff] %v1280
      %1296 = vst.msk [vmem:[#allocation2 + $0x5c] sm:$0xf] %vm607, %v1264
      %v1297 = vld [vmem:[#allocation3] sm:$0xff]
      %v1298 = vld [vmem:[#allocation3 + $0x8] sm:$0xf]
      %v1299 = vld [vmem:[#allocation3 + $0x10] sm:$0xff]
      %v1300 = vld [vmem:[#allocation3 + $0x18] sm:$0xf]
      %v1301 = vld [vmem:[#allocation3 + $0x20] sm:$0xff]
      %v1302 = vld [vmem:[#allocation3 + $0x28] sm:$0xf]
      %v1303 = vld [vmem:[#allocation3 + $0x30] sm:$0xff]
      %v1304 = vld [vmem:[#allocation3 + $0x38] sm:$0xf]
      %1313 = vrot.lane.b32.xlu0 %v1297, 113
      %v1314 = vpop.permute.xlu0 %1313
      %1315 = vrot.lane.b32.xlu0 %v1298, 113
      %v1316 = vpop.permute.xlu0 %1315
      %1317 = vrot.lane.b32.xlu0 %v1299, 113
      %v1318 = vpop.permute.xlu0 %1317
      %1319 = vrot.lane.b32.xlu0 %v1300, 113
      %v1320 = vpop.permute.xlu0 %1319
      %1321 = vrot.lane.b32.xlu0 %v1301, 113
      %v1322 = vpop.permute.xlu0 %1321
      %1323 = vrot.lane.b32.xlu0 %v1302, 113
      %v1324 = vpop.permute.xlu0 %1323
      %1325 = vrot.lane.b32.xlu0 %v1303, 113
      %v1326 = vpop.permute.xlu0 %1325
      %1327 = vrot.lane.b32.xlu0 %v1304, 113
      %v1328 = vpop.permute.xlu0 %1327
      %v1329 = vrot.slane %v1314, 4
      %v1330 = vrot.slane %v1316, 4
      %v1331 = vrot.slane %v1318, 4
      %v1332 = vrot.slane %v1320, 4
      %v1333 = vrot.slane %v1322, 4
      %v1334 = vrot.slane %v1324, 4
      %v1335 = vrot.slane %v1326, 4
      %v1336 = vrot.slane %v1328, 4
      %v1337 = vsel %vm600, %v1329, %v1330
      %v1338 = vsel %vm637, %v1314, %v1337
      %v1339 = vsel %vm600, %v1331, %v1332
      %v1340 = vsel %vm637, %v1318, %v1339
      %v1341 = vsel %vm600, %v1333, %v1334
      %v1342 = vsel %vm637, %v1322, %v1341
      %v1343 = vsel %vm600, %v1335, %v1336
      %v1344 = vsel %vm637, %v1326, %v1343
      %1353 = vst [vmem:[#allocation2 + $0x60] sm:$0xff] %v1338
      %1354 = vst.msk [vmem:[#allocation2 + $0x68] sm:$0xf] %vm607, %v1316
      %1355 = vst [vmem:[#allocation2 + $0x6c] sm:$0xff] %v1340
      %1356 = vst.msk [vmem:[#allocation2 + $0x74] sm:$0xf] %vm607, %v1320
      %1357 = vst [vmem:[#allocation2 + $0x78] sm:$0xff] %v1342
      %1358 = vst.msk [vmem:[#allocation2 + $0x80] sm:$0xf] %vm607, %v1324
      %1359 = vst [vmem:[#allocation2 + $0x84] sm:$0xff] %v1344
      %1360 = vst.msk [vmem:[#allocation2 + $0x8c] sm:$0xf] %vm607, %v1328
      %v1361 = vld [vmem:[#allocation3] sm:$0xff]
      %v1362 = vld [vmem:[#allocation3 + $0x8] sm:$0xf]
      %v1363 = vld [vmem:[#allocation3 + $0x10] sm:$0xff]
      %v1364 = vld [vmem:[#allocation3 + $0x18] sm:$0xf]
      %v1365 = vld [vmem:[#allocation3 + $0x20] sm:$0xff]
      %v1366 = vld [vmem:[#allocation3 + $0x28] sm:$0xf]
      %v1367 = vld [vmem:[#allocation3 + $0x30] sm:$0xff]
      %v1368 = vld [vmem:[#allocation3 + $0x38] sm:$0xf]
      %1377 = vrot.lane.b32.xlu0 %v1361, 97
      %v1378 = vpop.permute.xlu0 %1377
      %1379 = vrot.lane.b32.xlu0 %v1362, 97
      %v1380 = vpop.permute.xlu0 %1379
      %1381 = vrot.lane.b32.xlu0 %v1363, 97
      %v1382 = vpop.permute.xlu0 %1381
      %1383 = vrot.lane.b32.xlu0 %v1364, 97
      %v1384 = vpop.permute.xlu0 %1383
      %1385 = vrot.lane.b32.xlu0 %v1365, 97
      %v1386 = vpop.permute.xlu0 %1385
      %1387 = vrot.lane.b32.xlu0 %v1366, 97
      %v1388 = vpop.permute.xlu0 %1387
      %1389 = vrot.lane.b32.xlu0 %v1367, 97
      %v1390 = vpop.permute.xlu0 %1389
      %1391 = vrot.lane.b32.xlu0 %v1368, 97
      %v1392 = vpop.permute.xlu0 %1391
      %v1393 = vrot.slane %v1378, 4
      %v1394 = vrot.slane %v1380, 4
      %v1395 = vrot.slane %v1382, 4
      %v1396 = vrot.slane %v1384, 4
      %v1397 = vrot.slane %v1386, 4
      %v1398 = vrot.slane %v1388, 4
      %v1399 = vrot.slane %v1390, 4
      %v1400 = vrot.slane %v1392, 4
      %v1401 = vsel %vm600, %v1393, %v1394
      %v1402 = vsel %vm654, %v1378, %v1401
      %v1403 = vsel %vm600, %v1395, %v1396
      %v1404 = vsel %vm654, %v1382, %v1403
      %v1405 = vsel %vm600, %v1397, %v1398
      %v1406 = vsel %vm654, %v1386, %v1405
      %v1407 = vsel %vm600, %v1399, %v1400
      %v1408 = vsel %vm654, %v1390, %v1407
      %1417 = vst [vmem:[#allocation2 + $0x90] sm:$0xff] %v1402
      %1418 = vst.msk [vmem:[#allocation2 + $0x98] sm:$0xf] %vm607, %v1380
      %1419 = vst [vmem:[#allocation2 + $0x9c] sm:$0xff] %v1404
      %1420 = vst.msk [vmem:[#allocation2 + $0xa4] sm:$0xf] %vm607, %v1384
      %1421 = vst [vmem:[#allocation2 + $0xa8] sm:$0xff] %v1406
      %1422 = vst.msk [vmem:[#allocation2 + $0xb0] sm:$0xf] %vm607, %v1388
      %1423 = vst [vmem:[#allocation2 + $0xb4] sm:$0xff] %v1408
      %1424 = vst.msk [vmem:[#allocation2 + $0xbc] sm:$0xf] %vm607, %v1392
      %v1425 = vld [vmem:[#allocation3] sm:$0xff]
      %v1426 = vld [vmem:[#allocation3 + $0x8] sm:$0xf]
      %v1427 = vld [vmem:[#allocation3 + $0x10] sm:$0xff]
      %v1428 = vld [vmem:[#allocation3 + $0x18] sm:$0xf]
      %v1429 = vld [vmem:[#allocation3 + $0x20] sm:$0xff]
      %v1430 = vld [vmem:[#allocation3 + $0x28] sm:$0xf]
      %v1431 = vld [vmem:[#allocation3 + $0x30] sm:$0xff]
      %v1432 = vld [vmem:[#allocation3 + $0x38] sm:$0xf]
      %1441 = vrot.lane.b32.xlu0 %v1425, 96
      %v1442 = vpop.permute.xlu0 %1441
      %1443 = vrot.lane.b32.xlu0 %v1426, 96
      %v1444 = vpop.permute.xlu0 %1443
      %1445 = vrot.lane.b32.xlu0 %v1427, 96
      %v1446 = vpop.permute.xlu0 %1445
      %1447 = vrot.lane.b32.xlu0 %v1428, 96
      %v1448 = vpop.permute.xlu0 %1447
      %1449 = vrot.lane.b32.xlu0 %v1429, 96
      %v1450 = vpop.permute.xlu0 %1449
      %1451 = vrot.lane.b32.xlu0 %v1430, 96
      %v1452 = vpop.permute.xlu0 %1451
      %1453 = vrot.lane.b32.xlu0 %v1431, 96
      %v1454 = vpop.permute.xlu0 %1453
      %1455 = vrot.lane.b32.xlu0 %v1432, 96
      %v1456 = vpop.permute.xlu0 %1455
      %v1457 = vrot.slane %v1442, 4
      %v1458 = vrot.slane %v1444, 4
      %v1459 = vrot.slane %v1446, 4
      %v1460 = vrot.slane %v1448, 4
      %v1461 = vrot.slane %v1450, 4
      %v1462 = vrot.slane %v1452, 4
      %v1463 = vrot.slane %v1454, 4
      %v1464 = vrot.slane %v1456, 4
      %v1465 = vsel %vm600, %v1457, %v1458
      %v1466 = vsel %vm671, %v1442, %v1465
      %v1467 = vsel %vm600, %v1459, %v1460
      %v1468 = vsel %vm671, %v1446, %v1467
      %v1469 = vsel %vm600, %v1461, %v1462
      %v1470 = vsel %vm671, %v1450, %v1469
      %v1471 = vsel %vm600, %v1463, %v1464
      %v1472 = vsel %vm671, %v1454, %v1471
      %1481 = vst [vmem:[#allocation2 + $0xc0] sm:$0xff] %v1466
      %1482 = vst.msk [vmem:[#allocation2 + $0xc8] sm:$0xf] %vm607, %v1444
      %1483 = vst [vmem:[#allocation2 + $0xcc] sm:$0xff] %v1468
      %1484 = vst.msk [vmem:[#allocation2 + $0xd4] sm:$0xf] %vm607, %v1448
      %1485 = vst [vmem:[#allocation2 + $0xd8] sm:$0xff] %v1470
      %1486 = vst.msk [vmem:[#allocation2 + $0xe0] sm:$0xf] %vm607, %v1452
      %1487 = vst [vmem:[#allocation2 + $0xe4] sm:$0xff] %v1472
      %1488 = vst.msk [vmem:[#allocation2 + $0xec] sm:$0xf] %vm607, %v1456
      %v1489 = vld [vmem:[#allocation3] sm:$0xff]
      %v1490 = vld [vmem:[#allocation3 + $0x8] sm:$0xf]
      %v1491 = vld [vmem:[#allocation3 + $0x10] sm:$0xff]
      %v1492 = vld [vmem:[#allocation3 + $0x18] sm:$0xf]
      %v1493 = vld [vmem:[#allocation3 + $0x20] sm:$0xff]
      %v1494 = vld [vmem:[#allocation3 + $0x28] sm:$0xf]
      %v1495 = vld [vmem:[#allocation3 + $0x30] sm:$0xff]
      %v1496 = vld [vmem:[#allocation3 + $0x38] sm:$0xf]
      %1505 = vrot.lane.b32.xlu0 %v1489, 95
      %v1506 = vpop.permute.xlu0 %1505
      %1507 = vrot.lane.b32.xlu0 %v1490, 95
      %v1508 = vpop.permute.xlu0 %1507
      %1509 = vrot.lane.b32.xlu0 %v1491, 95
      %v1510 = vpop.permute.xlu0 %1509
      %1511 = vrot.lane.b32.xlu0 %v1492, 95
      %v1512 = vpop.permute.xlu0 %1511
      %1513 = vrot.lane.b32.xlu0 %v1493, 95
      %v1514 = vpop.permute.xlu0 %1513
      %1515 = vrot.lane.b32.xlu0 %v1494, 95
      %v1516 = vpop.permute.xlu0 %1515
      %1517 = vrot.lane.b32.xlu0 %v1495, 95
      %v1518 = vpop.permute.xlu0 %1517
      %1519 = vrot.lane.b32.xlu0 %v1496, 95
      %v1520 = vpop.permute.xlu0 %1519
      %v1521 = vrot.slane %v1506, 4
      %v1522 = vrot.slane %v1508, 4
      %v1523 = vrot.slane %v1510, 4
      %v1524 = vrot.slane %v1512, 4
      %v1525 = vrot.slane %v1514, 4
      %v1526 = vrot.slane %v1516, 4
      %v1527 = vrot.slane %v1518, 4
      %v1528 = vrot.slane %v1520, 4
      %v1529 = vsel %vm600, %v1521, %v1522
      %v1530 = vsel %vm688, %v1506, %v1529
      %v1531 = vsel %vm600, %v1523, %v1524
      %v1532 = vsel %vm688, %v1510, %v1531
      %v1533 = vsel %vm600, %v1525, %v1526
      %v1534 = vsel %vm688, %v1514, %v1533
      %v1535 = vsel %vm600, %v1527, %v1528
      %v1536 = vsel %vm688, %v1518, %v1535
      %1545 = vst [vmem:[#allocation2 + $0xf0] sm:$0xff] %v1530
      %1546 = vst.msk [vmem:[#allocation2 + $0xf8] sm:$0xf] %vm607, %v1508
      %1547 = vst [vmem:[#allocation2 + $0xfc] sm:$0xff] %v1532
      %1548 = vst.msk [vmem:[#allocation2 + $0x104] sm:$0xf] %vm607, %v1512
      %1549 = vst [vmem:[#allocation2 + $0x108] sm:$0xff] %v1534
      %1550 = vst.msk [vmem:[#allocation2 + $0x110] sm:$0xf] %vm607, %v1516
      %1551 = vst [vmem:[#allocation2 + $0x114] sm:$0xff] %v1536
      %1552 = vst.msk [vmem:[#allocation2 + $0x11c] sm:$0xf] %vm607, %v1520
      %v1553 = vld [vmem:[#allocation3] sm:$0xff]
      %v1554 = vld [vmem:[#allocation3 + $0x8] sm:$0xf]
      %v1555 = vld [vmem:[#allocation3 + $0x10] sm:$0xff]
      %v1556 = vld [vmem:[#allocation3 + $0x18] sm:$0xf]
      %v1557 = vld [vmem:[#allocation3 + $0x20] sm:$0xff]
      %v1558 = vld [vmem:[#allocation3 + $0x28] sm:$0xf]
      %v1559 = vld [vmem:[#allocation3 + $0x30] sm:$0xff]
      %v1560 = vld [vmem:[#allocation3 + $0x38] sm:$0xf]
      %1569 = vrot.lane.b32.xlu0 %v1553, 79
      %v1570 = vpop.permute.xlu0 %1569
      %1571 = vrot.lane.b32.xlu0 %v1554, 79
      %v1572 = vpop.permute.xlu0 %1571
      %1573 = vrot.lane.b32.xlu0 %v1555, 79
      %v1574 = vpop.permute.xlu0 %1573
      %1575 = vrot.lane.b32.xlu0 %v1556, 79
      %v1576 = vpop.permute.xlu0 %1575
      %1577 = vrot.lane.b32.xlu0 %v1557, 79
      %v1578 = vpop.permute.xlu0 %1577
      %1579 = vrot.lane.b32.xlu0 %v1558, 79
      %v1580 = vpop.permute.xlu0 %1579
      %1581 = vrot.lane.b32.xlu0 %v1559, 79
      %v1582 = vpop.permute.xlu0 %1581
      %1583 = vrot.lane.b32.xlu0 %v1560, 79
      %v1584 = vpop.permute.xlu0 %1583
      %v1585 = vrot.slane %v1570, 4
      %v1586 = vrot.slane %v1572, 4
      %v1587 = vrot.slane %v1574, 4
      %v1588 = vrot.slane %v1576, 4
      %v1589 = vrot.slane %v1578, 4
      %v1590 = vrot.slane %v1580, 4
      %v1591 = vrot.slane %v1582, 4
      %v1592 = vrot.slane %v1584, 4
      %v1593 = vsel %vm600, %v1585, %v1586
      %v1594 = vsel %vm705, %v1570, %v1593
      %v1595 = vsel %vm600, %v1587, %v1588
      %v1596 = vsel %vm705, %v1574, %v1595
      %v1597 = vsel %vm600, %v1589, %v1590
      %v1598 = vsel %vm705, %v1578, %v1597
      %v1599 = vsel %vm600, %v1591, %v1592
      %v1600 = vsel %vm705, %v1582, %v1599
      %1609 = vst [vmem:[#allocation2 + $0x120] sm:$0xff] %v1594
      %1610 = vst.msk [vmem:[#allocation2 + $0x128] sm:$0xf] %vm607, %v1572
      %1611 = vst [vmem:[#allocation2 + $0x12c] sm:$0xff] %v1596
      %1612 = vst.msk [vmem:[#allocation2 + $0x134] sm:$0xf] %vm607, %v1576
      %1613 = vst [vmem:[#allocation2 + $0x138] sm:$0xff] %v1598
      %1614 = vst.msk [vmem:[#allocation2 + $0x140] sm:$0xf] %vm607, %v1580
      %1615 = vst [vmem:[#allocation2 + $0x144] sm:$0xff] %v1600
      %1616 = vst.msk [vmem:[#allocation2 + $0x14c] sm:$0xf] %vm607, %v1584
      %v1617 = vld [vmem:[#allocation3] sm:$0xff]
      %v1618 = vld [vmem:[#allocation3 + $0x8] sm:$0xf]
      %v1619 = vld [vmem:[#allocation3 + $0x10] sm:$0xff]
      %v1620 = vld [vmem:[#allocation3 + $0x18] sm:$0xf]
      %v1621 = vld [vmem:[#allocation3 + $0x20] sm:$0xff]
      %v1622 = vld [vmem:[#allocation3 + $0x28] sm:$0xf]
      %v1623 = vld [vmem:[#allocation3 + $0x30] sm:$0xff]
      %v1624 = vld [vmem:[#allocation3 + $0x38] sm:$0xf]
      %1633 = vrot.lane.b32.xlu0 %v1617, 78
      %v1634 = vpop.permute.xlu0 %1633
      %1635 = vrot.lane.b32.xlu0 %v1618, 78
      %v1636 = vpop.permute.xlu0 %1635
      %1637 = vrot.lane.b32.xlu0 %v1619, 78
      %v1638 = vpop.permute.xlu0 %1637
      %1639 = vrot.lane.b32.xlu0 %v1620, 78
      %v1640 = vpop.permute.xlu0 %1639
      %1641 = vrot.lane.b32.xlu0 %v1621, 78
      %v1642 = vpop.permute.xlu0 %1641
      %1643 = vrot.lane.b32.xlu0 %v1622, 78
      %v1644 = vpop.permute.xlu0 %1643
      %1645 = vrot.lane.b32.xlu0 %v1623, 78
      %v1646 = vpop.permute.xlu0 %1645
      %1647 = vrot.lane.b32.xlu0 %v1624, 78
      %v1648 = vpop.permute.xlu0 %1647
      %v1649 = vrot.slane %v1634, 4
      %v1650 = vrot.slane %v1636, 4
      %v1651 = vrot.slane %v1638, 4
      %v1652 = vrot.slane %v1640, 4
      %v1653 = vrot.slane %v1642, 4
      %v1654 = vrot.slane %v1644, 4
      %v1655 = vrot.slane %v1646, 4
      %v1656 = vrot.slane %v1648, 4
      %v1657 = vsel %vm600, %v1649, %v1650
      %v1658 = vsel %vm722, %v1634, %v1657
      %v1659 = vsel %vm600, %v1651, %v1652
      %v1660 = vsel %vm722, %v1638, %v1659
      %v1661 = vsel %vm600, %v1653, %v1654
      %v1662 = vsel %vm722, %v1642, %v1661
      %v1663 = vsel %vm600, %v1655, %v1656
      %v1664 = vsel %vm722, %v1646, %v1663
      %1673 = vst [vmem:[#allocation2 + $0x150] sm:$0xff] %v1658
      %1674 = vst.msk [vmem:[#allocation2 + $0x158] sm:$0xf] %vm607, %v1636
      %1675 = vst [vmem:[#allocation2 + $0x15c] sm:$0xff] %v1660
      %1676 = vst.msk [vmem:[#allocation2 + $0x164] sm:$0xf] %vm607, %v1640
      %1677 = vst [vmem:[#allocation2 + $0x168] sm:$0xff] %v1662
      %1678 = vst.msk [vmem:[#allocation2 + $0x170] sm:$0xf] %vm607, %v1644
      %1679 = vst [vmem:[#allocation2 + $0x174] sm:$0xff] %v1664
      %1680 = vst.msk [vmem:[#allocation2 + $0x17c] sm:$0xf] %vm607, %v1648
      %v1681 = vld [vmem:[#allocation3] sm:$0xff]
      %v1682 = vld [vmem:[#allocation3 + $0x8] sm:$0xf]
      %v1683 = vld [vmem:[#allocation3 + $0x10] sm:$0xff]
      %v1684 = vld [vmem:[#allocation3 + $0x18] sm:$0xf]
      %v1685 = vld [vmem:[#allocation3 + $0x20] sm:$0xff]
      %v1686 = vld [vmem:[#allocation3 + $0x28] sm:$0xf]
      %v1687 = vld [vmem:[#allocation3 + $0x30] sm:$0xff]
      %v1688 = vld [vmem:[#allocation3 + $0x38] sm:$0xf]
      %1697 = vrot.lane.b32.xlu0 %v1681, 77
      %v1698 = vpop.permute.xlu0 %1697
      %1699 = vrot.lane.b32.xlu0 %v1682, 77
      %v1700 = vpop.permute.xlu0 %1699
      %1701 = vrot.lane.b32.xlu0 %v1683, 77
      %v1702 = vpop.permute.xlu0 %1701
      %1703 = vrot.lane.b32.xlu0 %v1684, 77
      %v1704 = vpop.permute.xlu0 %1703
      %1705 = vrot.lane.b32.xlu0 %v1685, 77
      %v1706 = vpop.permute.xlu0 %1705
      %1707 = vrot.lane.b32.xlu0 %v1686, 77
      %v1708 = vpop.permute.xlu0 %1707
      %1709 = vrot.lane.b32.xlu0 %v1687, 77
      %v1710 = vpop.permute.xlu0 %1709
      %1711 = vrot.lane.b32.xlu0 %v1688, 77
      %v1712 = vpop.permute.xlu0 %1711
      %v1713 = vrot.slane %v1698, 4
      %v1714 = vrot.slane %v1700, 4
      %v1715 = vrot.slane %v1702, 4
      %v1716 = vrot.slane %v1704, 4
      %v1717 = vrot.slane %v1706, 4
      %v1718 = vrot.slane %v1708, 4
      %v1719 = vrot.slane %v1710, 4
      %v1720 = vrot.slane %v1712, 4
      %v1721 = vsel %vm600, %v1713, %v1714
      %v1722 = vsel %vm739, %v1698, %v1721
      %v1723 = vsel %vm600, %v1715, %v1716
      %v1724 = vsel %vm739, %v1702, %v1723
      %v1725 = vsel %vm600, %v1717, %v1718
      %v1726 = vsel %vm739, %v1706, %v1725
      %v1727 = vsel %vm600, %v1719, %v1720
      %v1728 = vsel %vm739, %v1710, %v1727
      %1737 = vst [vmem:[#allocation2 + $0x180] sm:$0xff] %v1722
      %1738 = vst.msk [vmem:[#allocation2 + $0x188] sm:$0xf] %vm607, %v1700
      %1739 = vst [vmem:[#allocation2 + $0x18c] sm:$0xff] %v1724
      %1740 = vst.msk [vmem:[#allocation2 + $0x194] sm:$0xf] %vm607, %v1704
      %1741 = vst [vmem:[#allocation2 + $0x198] sm:$0xff] %v1726
      %1742 = vst.msk [vmem:[#allocation2 + $0x1a0] sm:$0xf] %vm607, %v1708
      %1743 = vst [vmem:[#allocation2 + $0x1a4] sm:$0xff] %v1728
      %1744 = vst.msk [vmem:[#allocation2 + $0x1ac] sm:$0xf] %vm607, %v1712
      %v1745 = vld [vmem:[%s3] sm:$0xff]
      %v1746 = vld [vmem:[%s3 + $0x8] sm:$0xf]
      %v1747 = vld [vmem:[%s3 + $0xc] sm:$0xff]
      %v1748 = vld [vmem:[%s3 + $0x14] sm:$0xf]
      %v1749 = vld [vmem:[%s3 + $0x18] sm:$0xff]
      %v1750 = vld [vmem:[%s3 + $0x20] sm:$0xf]
      %v1751 = vld [vmem:[%s3 + $0x24] sm:$0xff]
      %v1752 = vld [vmem:[%s3 + $0x2c] sm:$0xf]
      %v1753 = vld [vmem:[#allocation2] sm:$0xff]
      %v1754 = vld [vmem:[#allocation2 + $0x8] sm:$0xf]
      %v1755 = vld [vmem:[#allocation2 + $0xc] sm:$0xff]
      %v1756 = vld [vmem:[#allocation2 + $0x14] sm:$0xf]
      %v1757 = vld [vmem:[#allocation2 + $0x18] sm:$0xff]
      %v1758 = vld [vmem:[#allocation2 + $0x20] sm:$0xf]
      %v1759 = vld [vmem:[#allocation2 + $0x24] sm:$0xff]
      %v1760 = vld [vmem:[#allocation2 + $0x2c] sm:$0xf]
      %v1761 = vld [vmem:[#allocation2 + $0x30] sm:$0xff]
      %v1762 = vld [vmem:[#allocation2 + $0x38] sm:$0xf]
      %v1763 = vld [vmem:[#allocation2 + $0x3c] sm:$0xff]
      %v1764 = vld [vmem:[#allocation2 + $0x44] sm:$0xf]
      %v1765 = vld [vmem:[#allocation2 + $0x48] sm:$0xff]
      %v1766 = vld [vmem:[#allocation2 + $0x50] sm:$0xf]
      %v1767 = vld [vmem:[#allocation2 + $0x54] sm:$0xff]
      %v1768 = vld [vmem:[#allocation2 + $0x5c] sm:$0xf]
      %v1769 = vld [vmem:[#allocation2 + $0x60] sm:$0xff]
      %v1770 = vld [vmem:[#allocation2 + $0x68] sm:$0xf]
      %v1771 = vld [vmem:[#allocation2 + $0x6c] sm:$0xff]
      %v1772 = vld [vmem:[#allocation2 + $0x74] sm:$0xf]
      %v1773 = vld [vmem:[#allocation2 + $0x78] sm:$0xff]
      %v1774 = vld [vmem:[#allocation2 + $0x80] sm:$0xf]
      %v1775 = vld [vmem:[#allocation2 + $0x84] sm:$0xff]
      %v1776 = vld [vmem:[#allocation2 + $0x8c] sm:$0xf]
      %v1777 = vld [vmem:[#allocation2 + $0x90] sm:$0xff]
      %v1778 = vld [vmem:[#allocation2 + $0x98] sm:$0xf]
      %v1779 = vld [vmem:[#allocation2 + $0x9c] sm:$0xff]
      %v1780 = vld [vmem:[#allocation2 + $0xa4] sm:$0xf]
      %v1781 = vld [vmem:[#allocation2 + $0xa8] sm:$0xff]
      %v1782 = vld [vmem:[#allocation2 + $0xb0] sm:$0xf]
      %v1783 = vld [vmem:[#allocation2 + $0xb4] sm:$0xff]
      %v1784 = vld [vmem:[#allocation2 + $0xbc] sm:$0xf]
      %v1785 = vld [vmem:[#allocation2 + $0xc0] sm:$0xff]
      %v1786 = vld [vmem:[#allocation2 + $0xc8] sm:$0xf]
      %v1787 = vld [vmem:[#allocation2 + $0xcc] sm:$0xff]
      %v1788 = vld [vmem:[#allocation2 + $0xd4] sm:$0xf]
      %v1789 = vld [vmem:[#allocation2 + $0xd8] sm:$0xff]
      %v1790 = vld [vmem:[#allocation2 + $0xe0] sm:$0xf]
      %v1791 = vld [vmem:[#allocation2 + $0xe4] sm:$0xff]
      %v1792 = vld [vmem:[#allocation2 + $0xec] sm:$0xf]
      %v1793 = vld [vmem:[#allocation2 + $0xf0] sm:$0xff]
      %v1794 = vld [vmem:[#allocation2 + $0xf8] sm:$0xf]
      %v1795 = vld [vmem:[#allocation2 + $0xfc] sm:$0xff]
      %v1796 = vld [vmem:[#allocation2 + $0x104] sm:$0xf]
      %v1797 = vld [vmem:[#allocation2 + $0x108] sm:$0xff]
      %v1798 = vld [vmem:[#allocation2 + $0x110] sm:$0xf]
      %v1799 = vld [vmem:[#allocation2 + $0x114] sm:$0xff]
      %v1800 = vld [vmem:[#allocation2 + $0x11c] sm:$0xf]
      %v1801 = vld [vmem:[#allocation2 + $0x120] sm:$0xff]
      %v1802 = vld [vmem:[#allocation2 + $0x128] sm:$0xf]
      %v1803 = vld [vmem:[#allocation2 + $0x12c] sm:$0xff]
      %v1804 = vld [vmem:[#allocation2 + $0x134] sm:$0xf]
      %v1805 = vld [vmem:[#allocation2 + $0x138] sm:$0xff]
      %v1806 = vld [vmem:[#allocation2 + $0x140] sm:$0xf]
      %v1807 = vld [vmem:[#allocation2 + $0x144] sm:$0xff]
      %v1808 = vld [vmem:[#allocation2 + $0x14c] sm:$0xf]
      %v1809 = vld [vmem:[#allocation2 + $0x150] sm:$0xff]
      %v1810 = vld [vmem:[#allocation2 + $0x158] sm:$0xf]
      %v1811 = vld [vmem:[#allocation2 + $0x15c] sm:$0xff]
      %v1812 = vld [vmem:[#allocation2 + $0x164] sm:$0xf]
      %v1813 = vld [vmem:[#allocation2 + $0x168] sm:$0xff]
      %v1814 = vld [vmem:[#allocation2 + $0x170] sm:$0xf]
      %v1815 = vld [vmem:[#allocation2 + $0x174] sm:$0xff]
      %v1816 = vld [vmem:[#allocation2 + $0x17c] sm:$0xf]
      %v1817 = vld [vmem:[#allocation2 + $0x180] sm:$0xff]
      %v1818 = vld [vmem:[#allocation2 + $0x188] sm:$0xf]
      %v1819 = vld [vmem:[#allocation2 + $0x18c] sm:$0xff]
      %v1820 = vld [vmem:[#allocation2 + $0x194] sm:$0xf]
      %v1821 = vld [vmem:[#allocation2 + $0x198] sm:$0xff]
      %v1822 = vld [vmem:[#allocation2 + $0x1a0] sm:$0xf]
      %v1823 = vld [vmem:[#allocation2 + $0x1a4] sm:$0xff]
      %v1824 = vld [vmem:[#allocation2 + $0x1ac] sm:$0xf]
      %v1825 = vld [vmem:[%s4] sm:$0xff]
      %v1826 = vld [vmem:[%s4 + $0x8] sm:$0xff]
      %v1827 = vld [vmem:[%s4 + $0x10] sm:$0xff]
      %v1828 = vld [vmem:[%s4 + $0x18] sm:$0xff]
      %1830 = vset.pattern.permute.xlu0 0
      %1831 = vperm.xlu0 %1830, %v1825
      %v1832 = vpop.permute.xlu0 %1831
      %1835 = vset.pattern.permute.xlu0 0
      %1836 = vperm.xlu0 %1835, %v1826
      %v1837 = vpop.permute.xlu0 %1836
      %1840 = vset.pattern.permute.xlu0 0
      %1841 = vperm.xlu0 %1840, %v1827
      %v1842 = vpop.permute.xlu0 %1841
      %1845 = vset.pattern.permute.xlu0 0
      %1846 = vperm.xlu0 %1845, %v1828
      %v1847 = vpop.permute.xlu0 %1846
      %v1857 = vunpack.c.l.b16 %v1745
      %v1858 = vunpack.c.h.b16 %v1745
      %v1859 = vunpack.c.l.b16 %v1746
      %v1860 = vunpack.c.l.b16 %v1747
      %v1861 = vunpack.c.h.b16 %v1747
      %v1862 = vunpack.c.l.b16 %v1748
      %v1863 = vunpack.c.l.b16 %v1749
      %v1864 = vunpack.c.h.b16 %v1749
      %v1865 = vunpack.c.l.b16 %v1750
      %v1866 = vunpack.c.l.b16 %v1751
      %v1867 = vunpack.c.h.b16 %v1751
      %v1868 = vunpack.c.l.b16 %v1752
      %v1869 = vpack.c.b16 %v1860, %v1857
      %v1870 = vpack.c.b16 %v1861, %v1858
      %v1871 = vpack.c.b16 %v1862, %v1859
      %v1872 = vpack.c.b16 %v1866, %v1863
      %v1873 = vpack.c.b16 %v1867, %v1864
      %v1874 = vpack.c.b16 %v1868, %v1865
      %v1951 = vunpack.c.l.b16 %v1753
      %v1952 = vunpack.c.h.b16 %v1753
      %v1953 = vunpack.c.l.b16 %v1754
      %v1954 = vunpack.c.l.b16 %v1755
      %v1955 = vunpack.c.h.b16 %v1755
      %v1956 = vunpack.c.l.b16 %v1756
      %v1957 = vunpack.c.l.b16 %v1757
      %v1958 = vunpack.c.h.b16 %v1757
      %v1959 = vunpack.c.l.b16 %v1758
      %v1960 = vunpack.c.l.b16 %v1759
      %v1961 = vunpack.c.h.b16 %v1759
      %v1962 = vunpack.c.l.b16 %v1760
      %v1963 = vunpack.c.l.b16 %v1761
      %v1964 = vunpack.c.h.b16 %v1761
      %v1965 = vunpack.c.l.b16 %v1762
      %v1966 = vunpack.c.l.b16 %v1763
      %v1967 = vunpack.c.h.b16 %v1763
      %v1968 = vunpack.c.l.b16 %v1764
      %v1969 = vunpack.c.l.b16 %v1765
      %v1970 = vunpack.c.h.b16 %v1765
      %v1971 = vunpack.c.l.b16 %v1766
      %v1972 = vunpack.c.l.b16 %v1767
      %v1973 = vunpack.c.h.b16 %v1767
      %v1974 = vunpack.c.l.b16 %v1768
      %v1975 = vunpack.c.l.b16 %v1769
      %v1976 = vunpack.c.h.b16 %v1769
      %v1977 = vunpack.c.l.b16 %v1770
      %v1978 = vunpack.c.l.b16 %v1771
      %v1979 = vunpack.c.h.b16 %v1771
      %v1980 = vunpack.c.l.b16 %v1772
      %v1981 = vunpack.c.l.b16 %v1773
      %v1982 = vunpack.c.h.b16 %v1773
      %v1983 = vunpack.c.l.b16 %v1774
      %v1984 = vunpack.c.l.b16 %v1775
      %v1985 = vunpack.c.h.b16 %v1775
      %v1986 = vunpack.c.l.b16 %v1776
      %v1987 = vunpack.c.l.b16 %v1777
      %v1988 = vunpack.c.h.b16 %v1777
      %v1989 = vunpack.c.l.b16 %v1778
      %v1990 = vunpack.c.l.b16 %v1779
      %v1991 = vunpack.c.h.b16 %v1779
      %v1992 = vunpack.c.l.b16 %v1780
      %v1993 = vunpack.c.l.b16 %v1781
      %v1994 = vunpack.c.h.b16 %v1781
      %v1995 = vunpack.c.l.b16 %v1782
      %v1996 = vunpack.c.l.b16 %v1783
      %v1997 = vunpack.c.h.b16 %v1783
      %v1998 = vunpack.c.l.b16 %v1784
      %v1999 = vunpack.c.l.b16 %v1785
      %v2000 = vunpack.c.h.b16 %v1785
      %v2001 = vunpack.c.l.b16 %v1786
      %v2002 = vunpack.c.l.b16 %v1787
      %v2003 = vunpack.c.h.b16 %v1787
      %v2004 = vunpack.c.l.b16 %v1788
      %v2005 = vunpack.c.l.b16 %v1789
      %v2006 = vunpack.c.h.b16 %v1789
      %v2007 = vunpack.c.l.b16 %v1790
      %v2008 = vunpack.c.l.b16 %v1791
      %v2009 = vunpack.c.h.b16 %v1791
      %v2010 = vunpack.c.l.b16 %v1792
      %v2011 = vunpack.c.l.b16 %v1793
      %v2012 = vunpack.c.h.b16 %v1793
      %v2013 = vunpack.c.l.b16 %v1794
      %v2014 = vunpack.c.l.b16 %v1795
      %v2015 = vunpack.c.h.b16 %v1795
      %v2016 = vunpack.c.l.b16 %v1796
      %v2017 = vunpack.c.l.b16 %v1797
      %v2018 = vunpack.c.h.b16 %v1797
      %v2019 = vunpack.c.l.b16 %v1798
      %v2020 = vunpack.c.l.b16 %v1799
      %v2021 = vunpack.c.h.b16 %v1799
      %v2022 = vunpack.c.l.b16 %v1800
      %v2023 = vunpack.c.l.b16 %v1801
      %v2024 = vunpack.c.h.b16 %v1801
      %v2025 = vunpack.c.l.b16 %v1802
      %v2026 = vunpack.c.l.b16 %v1803
      %v2027 = vunpack.c.h.b16 %v1803
      %v2028 = vunpack.c.l.b16 %v1804
      %v2029 = vunpack.c.l.b16 %v1805
      %v2030 = vunpack.c.h.b16 %v1805
      %v2031 = vunpack.c.l.b16 %v1806
      %v2032 = vunpack.c.l.b16 %v1807
      %v2033 = vunpack.c.h.b16 %v1807
      %v2034 = vunpack.c.l.b16 %v1808
      %v2035 = vunpack.c.l.b16 %v1809
      %v2036 = vunpack.c.h.b16 %v1809
      %v2037 = vunpack.c.l.b16 %v1810
      %v2038 = vunpack.c.l.b16 %v1811
      %v2039 = vunpack.c.h.b16 %v1811
      %v2040 = vunpack.c.l.b16 %v1812
      %v2041 = vunpack.c.l.b16 %v1813
      %v2042 = vunpack.c.h.b16 %v1813
      %v2043 = vunpack.c.l.b16 %v1814
      %v2044 = vunpack.c.l.b16 %v1815
      %v2045 = vunpack.c.h.b16 %v1815
      %v2046 = vunpack.c.l.b16 %v1816
      %v2047 = vunpack.c.l.b16 %v1817
      %v2048 = vunpack.c.h.b16 %v1817
      %v2049 = vunpack.c.l.b16 %v1818
      %v2050 = vunpack.c.l.b16 %v1819
      %v2051 = vunpack.c.h.b16 %v1819
      %v2052 = vunpack.c.l.b16 %v1820
      %v2053 = vunpack.c.l.b16 %v1821
      %v2054 = vunpack.c.h.b16 %v1821
      %v2055 = vunpack.c.l.b16 %v1822
      %v2056 = vunpack.c.l.b16 %v1823
      %v2057 = vunpack.c.h.b16 %v1823
      %v2058 = vunpack.c.l.b16 %v1824
      %v2059 = vpack.c.b16 %v1954, %v1951
      %v2060 = vpack.c.b16 %v1955, %v1952
      %v2061 = vpack.c.b16 %v1956, %v1953
      %v2062 = vpack.c.b16 %v1960, %v1957
      %v2063 = vpack.c.b16 %v1961, %v1958
      %v2064 = vpack.c.b16 %v1962, %v1959
      %v2065 = vpack.c.b16 %v1966, %v1963
      %v2066 = vpack.c.b16 %v1967, %v1964
      %v2067 = vpack.c.b16 %v1968, %v1965
      %v2068 = vpack.c.b16 %v1972, %v1969
      %v2069 = vpack.c.b16 %v1973, %v1970
      %v2070 = vpack.c.b16 %v1974, %v1971
      %v2071 = vpack.c.b16 %v1978, %v1975
      %v2072 = vpack.c.b16 %v1979, %v1976
      %v2073 = vpack.c.b16 %v1980, %v1977
      %v2074 = vpack.c.b16 %v1984, %v1981
      %v2075 = vpack.c.b16 %v1985, %v1982
      %v2076 = vpack.c.b16 %v1986, %v1983
      %v2077 = vpack.c.b16 %v1990, %v1987
      %v2078 = vpack.c.b16 %v1991, %v1988
      %v2079 = vpack.c.b16 %v1992, %v1989
      %v2080 = vpack.c.b16 %v1996, %v1993
      %v2081 = vpack.c.b16 %v1997, %v1994
      %v2082 = vpack.c.b16 %v1998, %v1995
      %v2083 = vpack.c.b16 %v2002, %v1999
      %v2084 = vpack.c.b16 %v2003, %v2000
      %v2085 = vpack.c.b16 %v2004, %v2001
      %v2086 = vpack.c.b16 %v2008, %v2005
      %v2087 = vpack.c.b16 %v2009, %v2006
      %v2088 = vpack.c.b16 %v2010, %v2007
      %v2089 = vpack.c.b16 %v2014, %v2011
      %v2090 = vpack.c.b16 %v2015, %v2012
      %v2091 = vpack.c.b16 %v2016, %v2013
      %v2092 = vpack.c.b16 %v2020, %v2017
      %v2093 = vpack.c.b16 %v2021, %v2018
      %v2094 = vpack.c.b16 %v2022, %v2019
      %v2095 = vpack.c.b16 %v2026, %v2023
      %v2096 = vpack.c.b16 %v2027, %v2024
      %v2097 = vpack.c.b16 %v2028, %v2025
      %v2098 = vpack.c.b16 %v2032, %v2029
      %v2099 = vpack.c.b16 %v2033, %v2030
      %v2100 = vpack.c.b16 %v2034, %v2031
      %v2101 = vpack.c.b16 %v2038, %v2035
      %v2102 = vpack.c.b16 %v2039, %v2036
      %v2103 = vpack.c.b16 %v2040, %v2037
      %v2104 = vpack.c.b16 %v2044, %v2041
      %v2105 = vpack.c.b16 %v2045, %v2042
      %v2106 = vpack.c.b16 %v2046, %v2043
      %v2107 = vpack.c.b16 %v2050, %v2047
      %v2108 = vpack.c.b16 %v2051, %v2048
      %v2109 = vpack.c.b16 %v2052, %v2049
      %v2110 = vpack.c.b16 %v2056, %v2053
      %v2111 = vpack.c.b16 %v2057, %v2054
      %v2112 = vpack.c.b16 %v2058, %v2055
      %vm2167 = vcmask 261120
      %v2169 = vsel %vm2167, %v1871, 0
      %v2172 = vsel %vm2167, %v1874, 0
      %2174 = vmatprep.subr.bf16.mxu0 %v2081
      %2175 = vmatpush1.bf16.msra.mxu0 %v2080
      %2176 = vmatprep.subr.bf16.mxu0 %v2078
      %2177 = vmatpush1.bf16.msra.mxu0 %v2077
      %2178 = vmatprep.subr.bf16.mxu0 %v2075
      %2179 = vmatpush1.bf16.msra.mxu0 %v2074
      %2180 = vmatprep.subr.bf16.mxu0 %v2072
      %2181 = vmatpush1.bf16.msra.mxu0 %v2071
      %2182 = vmatprep.subr.bf16.mxu0 %v2069
      %2183 = vmatpush1.bf16.msra.mxu0 %v2068
      %2184 = vmatprep.subr.bf16.mxu0 %v2066
      %2185 = vmatpush1.bf16.msra.mxu0 %v2065
      %2186 = vmatprep.subr.bf16.mxu0 %v2063
      %2187 = vmatpush1.bf16.msra.mxu0 %v2062
      %2188 = vmatprep.subr.bf16.mxu0 %v2060
      %2189 = vmatpush1.bf16.msra.mxu0 %v2059
      %2190 = vmatprep.subr.bf16.mxu0 %v2105
      %2191 = vmatpush2.bf16.msra.mxu0 %v2104
      %2192 = vmatprep.subr.bf16.mxu0 %v2102
      %2193 = vmatpush2.bf16.msra.mxu0 %v2101
      %2194 = vmatprep.subr.bf16.mxu0 %v2099
      %2195 = vmatpush2.bf16.msra.mxu0 %v2098
      %2196 = vmatprep.subr.bf16.mxu0 %v2096
      %2197 = vmatpush2.bf16.msra.mxu0 %v2095
      %2198 = vmatprep.subr.bf16.mxu0 %v2093
      %2199 = vmatpush2.bf16.msra.mxu0 %v2092
      %2200 = vmatprep.subr.bf16.mxu0 %v2090
      %2201 = vmatpush2.bf16.msra.mxu0 %v2089
      %2202 = vmatprep.subr.bf16.mxu0 %v2087
      %2203 = vmatpush2.bf16.msra.mxu0 %v2086
      %2204 = vmatprep.subr.bf16.mxu0 %v2084
      %2205 = vmatpush2.bf16.msra.mxu0 %v2083
      %2206 = vmatprep.mubr.bf16.mxu0 %v1870
      %2207 = vmatmul.mubr.bf16.gmra.mxu0 %v1869
      %v2208 = vpop.f32.mrf.mxu0
      %v2209 = vadd.f32 %v1832, %v2208
      %v2210 = vpop.f32.mrf.mxu0
      %v2211 = vadd.f32 %v1832, %v2210
      %v2212 = vpop.f32.mrf.mxu0
      %v2213 = vadd.f32 %v1837, %v2212
      %v2214 = vpop.f32.mrf.mxu0
      %v2215 = vadd.f32 %v1837, %v2214
      %2216 = vmatprep.mubr.bf16.mxu0 %v1873
      %2217 = vmatmul.mubr.bf16.gmra.mxu0 %v1872
      %v2218 = vpop.f32.mrf.mxu0
      %v2219 = vadd.f32 %v1842, %v2218
      %v2220 = vpop.f32.mrf.mxu0
      %v2221 = vadd.f32 %v1842, %v2220
      %v2222 = vpop.f32.mrf.mxu0
      %v2223 = vadd.f32 %v1847, %v2222
      %v2224 = vpop.f32.mrf.mxu0
      %v2225 = vadd.f32 %v1847, %v2224
      %2226 = vdwg.mxu0
      %2227 = vmatprep.subr.bf16.mxu0 0
      %2228 = vmatpush1.bf16.msra.mxu0 0
      %2229 = vmatprep.subr.bf16.mxu0 0
      %2230 = vmatpush1.bf16.msra.mxu0 0
      %2231 = vmatprep.subr.bf16.mxu0 0
      %2232 = vmatpush1.bf16.msra.mxu0 0
      %2233 = vmatprep.subr.bf16.mxu0 0
      %2234 = vmatpush1.bf16.msra.mxu0 0
      %2235 = vmatprep.subr.bf16.mxu0 0
      %2236 = vmatpush1.bf16.msra.mxu0 0
      %2237 = vmatprep.subr.bf16.mxu0 0
      %2238 = vmatpush1.bf16.msra.mxu0 0
      %2239 = vmatprep.subr.bf16.mxu0 %v2111
      %2240 = vmatpush1.bf16.msra.mxu0 %v2110
      %2241 = vmatprep.subr.bf16.mxu0 %v2108
      %2242 = vmatpush1.bf16.msra.mxu0 %v2107
      %2243 = vmatprep.subr.bf16.mxu0 0
      %2244 = vmatpush2.bf16.msra.mxu0 0
      %2245 = vmatprep.subr.bf16.mxu0 0
      %2246 = vmatpush2.bf16.msra.mxu0 0
      %2247 = vmatprep.subr.bf16.mxu0 0
      %2248 = vmatpush2.bf16.msra.mxu0 0
      %2249 = vmatprep.subr.bf16.mxu0 0
      %2250 = vmatpush2.bf16.msra.mxu0 0
      %2251 = vmatprep.subr.bf16.mxu0 0
      %2252 = vmatpush2.bf16.msra.mxu0 0
      %2253 = vmatprep.subr.bf16.mxu0 0
      %2254 = vmatpush2.bf16.msra.mxu0 0
      %2255 = vmatprep.subr.bf16.mxu0 0
      %2256 = vmatpush2.bf16.msra.mxu0 0
      %2257 = vmatprep.subr.bf16.mxu0 0
      %2258 = vmatpush2.bf16.msra.mxu0 0
      %2259 = vmatprep.mubr.bf16.mxu0 0
      %2260 = vmatmul.mubr.bf16.gmra.mxu0 %v2169
      %v2261 = vpop.f32.mrf.mxu0
      %v2262 = vadd.f32 %v2209, %v2261
      %v2263 = vpop.f32.mrf.mxu0
      %v2264 = vadd.f32 %v2211, %v2263
      %v2265 = vpop.f32.mrf.mxu0
      %v2266 = vadd.f32 %v2213, %v2265
      %v2267 = vpop.f32.mrf.mxu0
      %v2268 = vadd.f32 %v2215, %v2267
      %2269 = vmatprep.mubr.bf16.mxu0 0
      %2270 = vmatmul.mubr.bf16.gmra.mxu0 %v2172
      %v2271 = vpop.f32.mrf.mxu0
      %v2272 = vadd.f32 %v2219, %v2271
      %v2273 = vpop.f32.mrf.mxu0
      %v2274 = vadd.f32 %v2221, %v2273
      %v2275 = vpop.f32.mrf.mxu0
      %v2276 = vadd.f32 %v2223, %v2275
      %v2277 = vpop.f32.mrf.mxu0
      %v2278 = vadd.f32 %v2225, %v2277
      %2279 = vdwg.mxu0
      %2280 = vmatprep.subr.bf16.mxu0 0
      %2281 = vmatpush1.bf16.msra.mxu0 %v2082
      %2282 = vmatprep.subr.bf16.mxu0 0
      %2283 = vmatpush1.bf16.msra.mxu0 %v2079
      %2284 = vmatprep.subr.bf16.mxu0 0
      %2285 = vmatpush1.bf16.msra.mxu0 %v2076
      %2286 = vmatprep.subr.bf16.mxu0 0
      %2287 = vmatpush1.bf16.msra.mxu0 %v2073
      %2288 = vmatprep.subr.bf16.mxu0 0
      %2289 = vmatpush1.bf16.msra.mxu0 %v2070
      %2290 = vmatprep.subr.bf16.mxu0 0
      %2291 = vmatpush1.bf16.msra.mxu0 %v2067
      %2292 = vmatprep.subr.bf16.mxu0 0
      %2293 = vmatpush1.bf16.msra.mxu0 %v2064
      %2294 = vmatprep.subr.bf16.mxu0 0
      %2295 = vmatpush1.bf16.msra.mxu0 %v2061
      %2296 = vmatprep.subr.bf16.mxu0 0
      %2297 = vmatpush2.bf16.msra.mxu0 %v2106
      %2298 = vmatprep.subr.bf16.mxu0 0
      %2299 = vmatpush2.bf16.msra.mxu0 %v2103
      %2300 = vmatprep.subr.bf16.mxu0 0
      %2301 = vmatpush2.bf16.msra.mxu0 %v2100
      %2302 = vmatprep.subr.bf16.mxu0 0
      %2303 = vmatpush2.bf16.msra.mxu0 %v2097
      %2304 = vmatprep.subr.bf16.mxu0 0
      %2305 = vmatpush2.bf16.msra.mxu0 %v2094
      %2306 = vmatprep.subr.bf16.mxu0 0
      %2307 = vmatpush2.bf16.msra.mxu0 %v2091
      %2308 = vmatprep.subr.bf16.mxu0 0
      %2309 = vmatpush2.bf16.msra.mxu0 %v2088
      %2310 = vmatprep.subr.bf16.mxu0 0
      %2311 = vmatpush2.bf16.msra.mxu0 %v2085
      %2312 = vmatprep.mubr.bf16.mxu0 %v1870
      %2313 = vmatmul.mubr.bf16.gmra.mxu0 %v1869
      %v2314 = vpop.f32.mrf.mxu0
      %v2315 = vadd.f32 %v1832, %v2314
      %v2316 = vpop.f32.mrf.mxu0
      %v2317 = vpop.f32.mrf.mxu0
      %v2318 = vadd.f32 %v1837, %v2317
      %v2319 = vpop.f32.mrf.mxu0
      %2320 = vmatprep.mubr.bf16.mxu0 %v1873
      %2321 = vmatmul.mubr.bf16.gmra.mxu0 %v1872
      %v2322 = vpop.f32.mrf.mxu0
      %v2323 = vadd.f32 %v1842, %v2322
      %v2324 = vpop.f32.mrf.mxu0
      %v2325 = vpop.f32.mrf.mxu0
      %v2326 = vadd.f32 %v1847, %v2325
      %v2327 = vpop.f32.mrf.mxu0
      %2328 = vdwg.mxu0
      %2329 = vmatprep.subr.bf16.mxu0 0
      %2330 = vmatpush1.bf16.msra.mxu0 0
      %2331 = vmatprep.subr.bf16.mxu0 0
      %2332 = vmatpush1.bf16.msra.mxu0 0
      %2333 = vmatprep.subr.bf16.mxu0 0
      %2334 = vmatpush1.bf16.msra.mxu0 0
      %2335 = vmatprep.subr.bf16.mxu0 0
      %2336 = vmatpush1.bf16.msra.mxu0 0
      %2337 = vmatprep.subr.bf16.mxu0 0
      %2338 = vmatpush1.bf16.msra.mxu0 0
      %2339 = vmatprep.subr.bf16.mxu0 0
      %2340 = vmatpush1.bf16.msra.mxu0 0
      %2341 = vmatprep.subr.bf16.mxu0 0
      %2342 = vmatpush1.bf16.msra.mxu0 %v2112
      %2343 = vmatprep.subr.bf16.mxu0 0
      %2344 = vmatpush1.bf16.msra.mxu0 %v2109
      %2345 = vmatprep.subr.bf16.mxu0 0
      %2346 = vmatpush2.bf16.msra.mxu0 0
      %2347 = vmatprep.subr.bf16.mxu0 0
      %2348 = vmatpush2.bf16.msra.mxu0 0
      %2349 = vmatprep.subr.bf16.mxu0 0
      %2350 = vmatpush2.bf16.msra.mxu0 0
      %2351 = vmatprep.subr.bf16.mxu0 0
      %2352 = vmatpush2.bf16.msra.mxu0 0
      %2353 = vmatprep.subr.bf16.mxu0 0
      %2354 = vmatpush2.bf16.msra.mxu0 0
      %2355 = vmatprep.subr.bf16.mxu0 0
      %2356 = vmatpush2.bf16.msra.mxu0 0
      %2357 = vmatprep.subr.bf16.mxu0 0
      %2358 = vmatpush2.bf16.msra.mxu0 0
      %2359 = vmatprep.subr.bf16.mxu0 0
      %2360 = vmatpush2.bf16.msra.mxu0 0
      %2361 = vmatprep.mubr.bf16.mxu0 0
      %2362 = vmatmul.mubr.bf16.gmra.mxu0 %v2169
      %v2363 = vpop.f32.mrf.mxu0
      %v2364 = vadd.f32 %v2315, %v2363
      %v2365 = vpop.f32.mrf.mxu0
      %v2366 = vpop.f32.mrf.mxu0
      %v2367 = vadd.f32 %v2318, %v2366
      %v2368 = vpop.f32.mrf.mxu0
      %2369 = vmatprep.mubr.bf16.mxu0 0
      %2370 = vmatmul.mubr.bf16.gmra.mxu0 %v2172
      %v2371 = vpop.f32.mrf.mxu0
      %v2372 = vadd.f32 %v2323, %v2371
      %v2373 = vpop.f32.mrf.mxu0
      %v2374 = vpop.f32.mrf.mxu0
      %v2375 = vadd.f32 %v2326, %v2374
      %v2376 = vpop.f32.mrf.mxu0
      %2377 = vdwg.mxu0
      %v2378 = vxor.u32 %v2262, 2147483648
      %v2379 = vxor.u32 %v2264, 2147483648
      %v2380 = vxor.u32 %v2364, 2147483648
      %v2381 = vxor.u32 %v2266, 2147483648
      %v2382 = vxor.u32 %v2268, 2147483648
      %v2383 = vxor.u32 %v2367, 2147483648
      %v2384 = vxor.u32 %v2272, 2147483648
      %v2385 = vxor.u32 %v2274, 2147483648
      %v2386 = vxor.u32 %v2372, 2147483648
      %v2387 = vxor.u32 %v2276, 2147483648
      %v2388 = vxor.u32 %v2278, 2147483648
      %v2389 = vxor.u32 %v2375, 2147483648
      %v2390 = vmul.f32 %v2378, 1.442695
      %v2391 = vpow.pop %v2390
      %v2392 = vmul.f32 %v2379, 1.442695
      %v2393 = vpow.pop %v2392
      %v2394 = vmul.f32 %v2380, 1.442695
      %v2395 = vpow.pop %v2394
      %v2396 = vmul.f32 %v2381, 1.442695
      %v2397 = vpow.pop %v2396
      %v2398 = vmul.f32 %v2382, 1.442695
      %v2399 = vpow.pop %v2398
      %v2400 = vmul.f32 %v2383, 1.442695
      %v2401 = vpow.pop %v2400
      %v2402 = vmul.f32 %v2384, 1.442695
      %v2403 = vpow.pop %v2402
      %v2404 = vmul.f32 %v2385, 1.442695
      %v2405 = vpow.pop %v2404
      %v2406 = vmul.f32 %v2386, 1.442695
      %v2407 = vpow.pop %v2406
      %v2408 = vmul.f32 %v2387, 1.442695
      %v2409 = vpow.pop %v2408
      %v2410 = vmul.f32 %v2388, 1.442695
      %v2411 = vpow.pop %v2410
      %v2412 = vmul.f32 %v2389, 1.442695
      %v2413 = vpow.pop %v2412
      %v2414 = vadd.f32 %v2391, 1.0
      %v2415 = vadd.f32 %v2393, 1.0
      %v2416 = vadd.f32 %v2395, 1.0
      %v2417 = vadd.f32 %v2397, 1.0
      %v2418 = vadd.f32 %v2399, 1.0
      %v2419 = vadd.f32 %v2401, 1.0
      %v2420 = vadd.f32 %v2403, 1.0
      %v2421 = vadd.f32 %v2405, 1.0
      %v2422 = vadd.f32 %v2407, 1.0
      %v2423 = vadd.f32 %v2409, 1.0
      %v2424 = vadd.f32 %v2411, 1.0
      %v2425 = vadd.f32 %v2413, 1.0
      %v2426 = vrcp.pop %v2414
      %v2427 = vmul.f32 1.0, %v2426
      %v2428 = vrcp.pop %v2415
      %v2429 = vmul.f32 1.0, %v2428
      %v2430 = vrcp.pop %v2416
      %v2431 = vmul.f32 1.0, %v2430
      %v2432 = vrcp.pop %v2417
      %v2433 = vmul.f32 1.0, %v2432
      %v2434 = vrcp.pop %v2418
      %v2435 = vmul.f32 1.0, %v2434
      %v2436 = vrcp.pop %v2419
      %v2437 = vmul.f32 1.0, %v2436
      %v2438 = vrcp.pop %v2420
      %v2439 = vmul.f32 1.0, %v2438
      %v2440 = vrcp.pop %v2421
      %v2441 = vmul.f32 1.0, %v2440
      %v2442 = vrcp.pop %v2422
      %v2443 = vmul.f32 1.0, %v2442
      %v2444 = vrcp.pop %v2423
      %v2445 = vmul.f32 1.0, %v2444
      %v2446 = vrcp.pop %v2424
      %v2447 = vmul.f32 1.0, %v2446
      %v2448 = vrcp.pop %v2425
      %v2449 = vmul.f32 1.0, %v2448
      %v2450 = vmul.f32 %v2262, %v2427
      %v2451 = vmul.f32 %v2264, %v2429
      %v2452 = vmul.f32 %v2364, %v2431
      %v2453 = vmul.f32 %v2266, %v2433
      %v2454 = vmul.f32 %v2268, %v2435
      %v2455 = vmul.f32 %v2367, %v2437
      %v2456 = vmul.f32 %v2272, %v2439
      %v2457 = vmul.f32 %v2274, %v2441
      %v2458 = vmul.f32 %v2372, %v2443
      %v2459 = vmul.f32 %v2276, %v2445
      %v2460 = vmul.f32 %v2278, %v2447
      %v2461 = vmul.f32 %v2375, %v2449
      %v2462 = vpack.c.bf16 %v2453, %v2450
      %v2463 = vpack.c.bf16 %v2454, %v2451
      %v2464 = vpack.c.bf16 %v2455, %v2452
      %v2465 = vpack.c.bf16 %v2459, %v2456
      %v2466 = vpack.c.bf16 %v2460, %v2457
      %v2467 = vpack.c.bf16 %v2461, %v2458
      %v2468 = vld [vmem:[%s13] sm:$0xf]
      %v2469 = vld [vmem:[%s13 + $0x4] sm:$0xf]
      %v2470 = vld [vmem:[%s13 + $0x8] sm:$0xf]
      %v2471 = vld [vmem:[%s13 + $0xc] sm:$0xf]
      %v2472 = vld [vmem:[%s13 + $0x10] sm:$0xf]
      %v2473 = vld [vmem:[%s13 + $0x14] sm:$0xf]
      %v2474 = vld [vmem:[%s13 + $0x18] sm:$0xf]
      %v2475 = vld [vmem:[%s13 + $0x1c] sm:$0xf]
      %v2476 = vld [vmem:[%s13 + $0x20] sm:$0xf]
      %v2477 = vld [vmem:[%s13 + $0x24] sm:$0xf]
      %v2478 = vld [vmem:[%s13 + $0x28] sm:$0xf]
      %v2479 = vld [vmem:[%s13 + $0x2c] sm:$0xf]
      %v2480 = vld [vmem:[%s13 + $0x30] sm:$0xf]
      %v2481 = vld [vmem:[%s13 + $0x34] sm:$0xf]
      %v2482 = vld [vmem:[%s13 + $0x38] sm:$0xf]
      %v2483 = vld [vmem:[%s13 + $0x3c] sm:$0xf]
      %v2484 = vld [vmem:[%s13 + $0x40] sm:$0xf]
      %v2485 = vld [vmem:[%s13 + $0x44] sm:$0xf]
      %v2486 = vld [vmem:[%s13 + $0x48] sm:$0xf]
      %v2487 = vld [vmem:[%s13 + $0x4c] sm:$0xf]
      %v2488 = vld [vmem:[%s13 + $0x50] sm:$0xf]
      %v2489 = vld [vmem:[%s13 + $0x54] sm:$0xf]
      %v2490 = vld [vmem:[%s13 + $0x58] sm:$0xf]
      %v2491 = vld [vmem:[%s13 + $0x5c] sm:$0xf]
      %v2492 = vld [vmem:[%s13 + $0x60] sm:$0xf]
      %v2493 = vld [vmem:[%s13 + $0x64] sm:$0xf]
      %v2494 = vld [vmem:[%s13 + $0x68] sm:$0xf]
      %v2495 = vld [vmem:[%s13 + $0x6c] sm:$0xf]
      %v2496 = vld [vmem:[%s13 + $0x70] sm:$0xf]
      %v2497 = vld [vmem:[%s13 + $0x74] sm:$0xf]
      %v2498 = vld [vmem:[%s13 + $0x78] sm:$0xf]
      %v2499 = vld [vmem:[%s13 + $0x7c] sm:$0xf]
      %v2500 = vld [vmem:[%s13 + $0x80] sm:$0xf]
      %v2501 = vld [vmem:[%s13 + $0x84] sm:$0xf]
      %v2502 = vld [vmem:[%s13 + $0x88] sm:$0xf]
      %v2503 = vld [vmem:[%s13 + $0x8c] sm:$0xf]
      %v2504 = vld [vmem:[%s13 + $0x90] sm:$0xf]
      %v2505 = vld [vmem:[%s13 + $0x94] sm:$0xf]
      %v2506 = vld [vmem:[%s13 + $0x98] sm:$0xf]
      %v2507 = vld [vmem:[%s13 + $0x9c] sm:$0xf]
      %v2508 = vld [vmem:[%s13 + $0xa0] sm:$0x3]
      %v2550 = vunpack.c.l.b16 %v2468
      %v2551 = vunpack.c.l.b16 %v2469
      %v2552 = vunpack.c.l.b16 %v2470
      %v2553 = vunpack.c.l.b16 %v2471
      %v2554 = vunpack.c.l.b16 %v2472
      %v2555 = vunpack.c.l.b16 %v2473
      %v2556 = vunpack.c.l.b16 %v2474
      %v2557 = vunpack.c.l.b16 %v2475
      %v2558 = vunpack.c.l.b16 %v2476
      %v2559 = vunpack.c.l.b16 %v2477
      %v2560 = vunpack.c.l.b16 %v2478
      %v2561 = vunpack.c.l.b16 %v2479
      %v2562 = vunpack.c.l.b16 %v2480
      %v2563 = vunpack.c.l.b16 %v2481
      %v2564 = vunpack.c.l.b16 %v2482
      %v2565 = vunpack.c.l.b16 %v2483
      %v2566 = vunpack.c.l.b16 %v2484
      %v2567 = vunpack.c.l.b16 %v2485
      %v2568 = vunpack.c.l.b16 %v2486
      %v2569 = vunpack.c.l.b16 %v2487
      %v2570 = vunpack.c.l.b16 %v2488
      %v2571 = vunpack.c.l.b16 %v2489
      %v2572 = vunpack.c.l.b16 %v2490
      %v2573 = vunpack.c.l.b16 %v2491
      %v2574 = vunpack.c.l.b16 %v2492
      %v2575 = vunpack.c.l.b16 %v2493
      %v2576 = vunpack.c.l.b16 %v2494
      %v2577 = vunpack.c.l.b16 %v2495
      %v2578 = vunpack.c.l.b16 %v2496
      %v2579 = vunpack.c.l.b16 %v2497
      %v2580 = vunpack.c.l.b16 %v2498
      %v2581 = vunpack.c.l.b16 %v2499
      %v2582 = vunpack.c.l.b16 %v2500
      %v2583 = vunpack.c.l.b16 %v2501
      %v2584 = vunpack.c.l.b16 %v2502
      %v2585 = vunpack.c.l.b16 %v2503
      %v2586 = vunpack.c.l.b16 %v2504
      %v2587 = vunpack.c.l.b16 %v2505
      %v2588 = vunpack.c.l.b16 %v2506
      %v2589 = vunpack.c.l.b16 %v2507
      %v2590 = vunpack.c.l.b16 %v2508
      %v2591 = vpack.c.b16 %v2551, %v2550
      %v2592 = vpack.c.b16 %v2553, %v2552
      %v2593 = vpack.c.b16 %v2555, %v2554
      %v2594 = vpack.c.b16 %v2557, %v2556
      %v2595 = vpack.c.b16 %v2559, %v2558
      %v2596 = vpack.c.b16 %v2561, %v2560
      %v2597 = vpack.c.b16 %v2563, %v2562
      %v2598 = vpack.c.b16 %v2565, %v2564
      %v2599 = vpack.c.b16 %v2567, %v2566
      %v2600 = vpack.c.b16 %v2569, %v2568
      %v2601 = vpack.c.b16 %v2571, %v2570
      %v2602 = vpack.c.b16 %v2573, %v2572
      %v2603 = vpack.c.b16 %v2575, %v2574
      %v2604 = vpack.c.b16 %v2577, %v2576
      %v2605 = vpack.c.b16 %v2579, %v2578
      %v2606 = vpack.c.b16 %v2581, %v2580
      %v2607 = vpack.c.b16 %v2583, %v2582
      %v2608 = vpack.c.b16 %v2585, %v2584
      %v2609 = vpack.c.b16 %v2587, %v2586
      %v2610 = vpack.c.b16 %v2589, %v2588
      %v2611 = vpack.c.b16 %v2590, %v2590
      %vm2632 = vcmask 556032
      %v2634 = vsel %vm2632, %v2464, 0
      %v2637 = vsel %vm2632, %v2467, 0
      %vm2639 = vcmask 1041408
      %v2641 = vsel %vm2639, %v2611, 0
      %2643 = vmatprep.subr.bf16.mxu0 0
      %2644 = vmatpush1.bf16.msra.mxu0 %v2598
      %2645 = vmatprep.subr.bf16.mxu0 0
      %2646 = vmatpush1.bf16.msra.mxu0 %v2597
      %2647 = vmatprep.subr.bf16.mxu0 0
      %2648 = vmatpush1.bf16.msra.mxu0 %v2596
      %2649 = vmatprep.subr.bf16.mxu0 0
      %2650 = vmatpush1.bf16.msra.mxu0 %v2595
      %2651 = vmatprep.subr.bf16.mxu0 0
      %2652 = vmatpush1.bf16.msra.mxu0 %v2594
      %2653 = vmatprep.subr.bf16.mxu0 0
      %2654 = vmatpush1.bf16.msra.mxu0 %v2593
      %2655 = vmatprep.subr.bf16.mxu0 0
      %2656 = vmatpush1.bf16.msra.mxu0 %v2592
      %2657 = vmatprep.subr.bf16.mxu0 0
      %2658 = vmatpush1.bf16.msra.mxu0 %v2591
      %2659 = vmatprep.subr.bf16.mxu0 0
      %2660 = vmatpush2.bf16.msra.mxu0 %v2606
      %2661 = vmatprep.subr.bf16.mxu0 0
      %2662 = vmatpush2.bf16.msra.mxu0 %v2605
      %2663 = vmatprep.subr.bf16.mxu0 0
      %2664 = vmatpush2.bf16.msra.mxu0 %v2604
      %2665 = vmatprep.subr.bf16.mxu0 0
      %2666 = vmatpush2.bf16.msra.mxu0 %v2603
      %2667 = vmatprep.subr.bf16.mxu0 0
      %2668 = vmatpush2.bf16.msra.mxu0 %v2602
      %2669 = vmatprep.subr.bf16.mxu0 0
      %2670 = vmatpush2.bf16.msra.mxu0 %v2601
      %2671 = vmatprep.subr.bf16.mxu0 0
      %2672 = vmatpush2.bf16.msra.mxu0 %v2600
      %2673 = vmatprep.subr.bf16.mxu0 0
      %2674 = vmatpush2.bf16.msra.mxu0 %v2599
      %2675 = vmatprep.mubr.bf16.mxu0 %v2463
      %2676 = vmatmul.mubr.bf16.gmra.mxu0 %v2462
      %v2677 = vpop.f32.mrf.mxu0
      %v2678 = vadd.f32 0.0, %v2677
      %v2679 = vpop.f32.mrf.mxu0
      %v2680 = vpop.f32.mrf.mxu0
      %v2681 = vadd.f32 0.0, %v2680
      %v2682 = vpop.f32.mrf.mxu0
      %2683 = vmatprep.mubr.bf16.mxu0 %v2466
      %2684 = vmatmul.mubr.bf16.gmra.mxu0 %v2465
      %v2685 = vpop.f32.mrf.mxu0
      %v2686 = vadd.f32 0.0, %v2685
      %v2687 = vpop.f32.mrf.mxu0
      %v2688 = vpop.f32.mrf.mxu0
      %v2689 = vadd.f32 0.0, %v2688
      %v2690 = vpop.f32.mrf.mxu0
      %2691 = vdwg.mxu0
      %2692 = vmatprep.subr.bf16.mxu0 0
      %2693 = vmatpush1.bf16.msra.mxu0 0
      %2694 = vmatprep.subr.bf16.mxu0 0
      %2695 = vmatpush1.bf16.msra.mxu0 0
      %2696 = vmatprep.subr.bf16.mxu0 0
      %2697 = vmatpush1.bf16.msra.mxu0 0
      %2698 = vmatprep.subr.bf16.mxu0 0
      %2699 = vmatpush1.bf16.msra.mxu0 %v2641
      %2700 = vmatprep.subr.bf16.mxu0 0
      %2701 = vmatpush1.bf16.msra.mxu0 %v2610
      %2702 = vmatprep.subr.bf16.mxu0 0
      %2703 = vmatpush1.bf16.msra.mxu0 %v2609
      %2704 = vmatprep.subr.bf16.mxu0 0
      %2705 = vmatpush1.bf16.msra.mxu0 %v2608
      %2706 = vmatprep.subr.bf16.mxu0 0
      %2707 = vmatpush1.bf16.msra.mxu0 %v2607
      %2708 = vmatprep.subr.bf16.mxu0 0
      %2709 = vmatpush2.bf16.msra.mxu0 0
      %2710 = vmatprep.subr.bf16.mxu0 0
      %2711 = vmatpush2.bf16.msra.mxu0 0
      %2712 = vmatprep.subr.bf16.mxu0 0
      %2713 = vmatpush2.bf16.msra.mxu0 0
      %2714 = vmatprep.subr.bf16.mxu0 0
      %2715 = vmatpush2.bf16.msra.mxu0 0
      %2716 = vmatprep.subr.bf16.mxu0 0
      %2717 = vmatpush2.bf16.msra.mxu0 0
      %2718 = vmatprep.subr.bf16.mxu0 0
      %2719 = vmatpush2.bf16.msra.mxu0 0
      %2720 = vmatprep.subr.bf16.mxu0 0
      %2721 = vmatpush2.bf16.msra.mxu0 0
      %2722 = vmatprep.subr.bf16.mxu0 0
      %2723 = vmatpush2.bf16.msra.mxu0 0
      %2724 = vmatprep.mubr.bf16.mxu0 0
      %2725 = vmatmul.mubr.bf16.gmra.mxu0 %v2634
      %v2726 = vpop.f32.mrf.mxu0
      %v2727 = vadd.f32 %v2678, %v2726
      %v2728 = vpop.f32.mrf.mxu0
      %v2729 = vpop.f32.mrf.mxu0
      %v2730 = vadd.f32 %v2681, %v2729
      %v2731 = vpop.f32.mrf.mxu0
      %2732 = vmatprep.mubr.bf16.mxu0 0
      %2733 = vmatmul.mubr.bf16.gmra.mxu0 %v2637
      %v2734 = vpop.f32.mrf.mxu0
      %v2735 = vadd.f32 %v2686, %v2734
      %v2736 = vpop.f32.mrf.mxu0
      %v2737 = vpop.f32.mrf.mxu0
      %v2738 = vadd.f32 %v2689, %v2737
      %v2739 = vpop.f32.mrf.mxu0
      %2740 = vdwg.mxu0
      %v2741 = vpack.c.bf16 %v2730, %v2727
      %v2742 = vpack.c.bf16 %v2738, %v2735
      %v2745 = vunpack.c.l.b16 %v2741
      %v2746 = vunpack.c.h.b16 %v2741
      %v2747 = vunpack.c.l.b16 %v2742
      %v2748 = vunpack.c.h.b16 %v2742
      %v2749 = vpack.c.b16 %v2745, %v2745
      %v2750 = vpack.c.b16 %v2746, %v2746
      %v2751 = vpack.c.b16 %v2747, %v2747
      %v2752 = vpack.c.b16 %v2748, %v2748
      %2753 = vrot.lane.b32.xlu0 %v2749, 16
      %v2754 = vpop.permute.xlu0 %2753
      %2755 = vrot.lane.b32.xlu0 %v2750, 16
      %v2756 = vpop.permute.xlu0 %2755
      %2757 = vrot.lane.b32.xlu0 %v2751, 16
      %v2758 = vpop.permute.xlu0 %2757
      %2759 = vrot.lane.b32.xlu0 %v2752, 16
      %v2760 = vpop.permute.xlu0 %2759
      %vm2765 = vcmask 945280
      %2766 = vst.msk [vmem:[#allocation4] sm:$0xf] %vm2765, %v2754
      %2767 = vst.msk [vmem:[#allocation4 + $0x8] sm:$0xf] %vm2765, %v2756
      %2768 = vst.msk [vmem:[#allocation4 + $0x10] sm:$0xf] %vm2765, %v2758
      %2769 = vst.msk [vmem:[#allocation4 + $0x18] sm:$0xf] %vm2765, %v2760
      %v2770 = vld [vmem:[#allocation4] sm:$0xf]
      %v2771 = vld [vmem:[#allocation4 + $0x8] sm:$0xf]
      %v2772 = vld [vmem:[#allocation4 + $0x10] sm:$0xf]
      %v2773 = vld [vmem:[#allocation4 + $0x18] sm:$0xf]
      %2778 = vrot.lane.b32.xlu0 %v2770, 123
      %v2779 = vpop.permute.xlu0 %2778
      %2780 = vrot.lane.b32.xlu0 %v2771, 123
      %v2781 = vpop.permute.xlu0 %2780
      %2782 = vrot.lane.b32.xlu0 %v2772, 123
      %v2783 = vpop.permute.xlu0 %2782
      %2784 = vrot.lane.b32.xlu0 %v2773, 123
      %v2785 = vpop.permute.xlu0 %2784
      %2790 = vst.msk [vmem:[#allocation2] sm:$0xf] %vm1161, %v2779
      %2791 = vst.msk [vmem:[#allocation2 + $0xc] sm:$0xf] %vm1161, %v2781
      %2792 = vst.msk [vmem:[#allocation2 + $0x18] sm:$0xf] %vm1161, %v2783
      %2793 = vst.msk [vmem:[#allocation2 + $0x24] sm:$0xf] %vm1161, %v2785
      %v2794 = vld [vmem:[#allocation4] sm:$0xf]
      %v2795 = vld [vmem:[#allocation4 + $0x8] sm:$0xf]
      %v2796 = vld [vmem:[#allocation4 + $0x10] sm:$0xf]
      %v2797 = vld [vmem:[#allocation4 + $0x18] sm:$0xf]
      %2802 = vrot.lane.b32.xlu0 %v2794, 122
      %v2803 = vpop.permute.xlu0 %2802
      %2804 = vrot.lane.b32.xlu0 %v2795, 122
      %v2805 = vpop.permute.xlu0 %2804
      %2806 = vrot.lane.b32.xlu0 %v2796, 122
      %v2807 = vpop.permute.xlu0 %2806
      %2808 = vrot.lane.b32.xlu0 %v2797, 122
      %v2809 = vpop.permute.xlu0 %2808
      %2814 = vst.msk [vmem:[#allocation2 + $0x30] sm:$0xf] %vm1161, %v2803
      %2815 = vst.msk [vmem:[#allocation2 + $0x3c] sm:$0xf] %vm1161, %v2805
      %2816 = vst.msk [vmem:[#allocation2 + $0x48] sm:$0xf] %vm1161, %v2807
      %2817 = vst.msk [vmem:[#allocation2 + $0x54] sm:$0xf] %vm1161, %v2809
      %v2818 = vld [vmem:[#allocation4] sm:$0xf]
      %v2819 = vld [vmem:[#allocation4 + $0x8] sm:$0xf]
      %v2820 = vld [vmem:[#allocation4 + $0x10] sm:$0xf]
      %v2821 = vld [vmem:[#allocation4 + $0x18] sm:$0xf]
      %2826 = vrot.lane.b32.xlu0 %v2818, 121
      %v2827 = vpop.permute.xlu0 %2826
      %2828 = vrot.lane.b32.xlu0 %v2819, 121
      %v2829 = vpop.permute.xlu0 %2828
      %2830 = vrot.lane.b32.xlu0 %v2820, 121
      %v2831 = vpop.permute.xlu0 %2830
      %2832 = vrot.lane.b32.xlu0 %v2821, 121
      %v2833 = vpop.permute.xlu0 %2832
      %2838 = vst.msk [vmem:[#allocation2 + $0x60] sm:$0xf] %vm1161, %v2827
      %2839 = vst.msk [vmem:[#allocation2 + $0x6c] sm:$0xf] %vm1161, %v2829
      %2840 = vst.msk [vmem:[#allocation2 + $0x78] sm:$0xf] %vm1161, %v2831
      %2841 = vst.msk [vmem:[#allocation2 + $0x84] sm:$0xf] %vm1161, %v2833
      %v2842 = vld [vmem:[#allocation4] sm:$0xf]
      %v2843 = vld [vmem:[#allocation4 + $0x8] sm:$0xf]
      %v2844 = vld [vmem:[#allocation4 + $0x10] sm:$0xf]
      %v2845 = vld [vmem:[#allocation4 + $0x18] sm:$0xf]
      %2850 = vrot.lane.b32.xlu0 %v2842, 113
      %v2851 = vpop.permute.xlu0 %2850
      %2852 = vrot.lane.b32.xlu0 %v2843, 113
      %v2853 = vpop.permute.xlu0 %2852
      %2854 = vrot.lane.b32.xlu0 %v2844, 113
      %v2855 = vpop.permute.xlu0 %2854
      %2856 = vrot.lane.b32.xlu0 %v2845, 113
      %v2857 = vpop.permute.xlu0 %2856
      %2862 = vst.msk [vmem:[#allocation2 + $0x90] sm:$0xf] %vm1161, %v2851
      %2863 = vst.msk [vmem:[#allocation2 + $0x9c] sm:$0xf] %vm1161, %v2853
      %2864 = vst.msk [vmem:[#allocation2 + $0xa8] sm:$0xf] %vm1161, %v2855
      %2865 = vst.msk [vmem:[#allocation2 + $0xb4] sm:$0xf] %vm1161, %v2857
      %v2866 = vld [vmem:[#allocation4] sm:$0xf]
      %v2867 = vld [vmem:[#allocation4 + $0x8] sm:$0xf]
      %v2868 = vld [vmem:[#allocation4 + $0x10] sm:$0xf]
      %v2869 = vld [vmem:[#allocation4 + $0x18] sm:$0xf]
      %2874 = vrot.lane.b32.xlu0 %v2866, 112
      %v2875 = vpop.permute.xlu0 %2874
      %2876 = vrot.lane.b32.xlu0 %v2867, 112
      %v2877 = vpop.permute.xlu0 %2876
      %2878 = vrot.lane.b32.xlu0 %v2868, 112
      %v2879 = vpop.permute.xlu0 %2878
      %2880 = vrot.lane.b32.xlu0 %v2869, 112
      %v2881 = vpop.permute.xlu0 %2880
      %2886 = vst.msk [vmem:[#allocation2 + $0xc0] sm:$0xf] %vm1161, %v2875
      %2887 = vst.msk [vmem:[#allocation2 + $0xcc] sm:$0xf] %vm1161, %v2877
      %2888 = vst.msk [vmem:[#allocation2 + $0xd8] sm:$0xf] %vm1161, %v2879
      %2889 = vst.msk [vmem:[#allocation2 + $0xe4] sm:$0xf] %vm1161, %v2881
      %v2890 = vld [vmem:[#allocation4] sm:$0xf]
      %v2891 = vld [vmem:[#allocation4 + $0x8] sm:$0xf]
      %v2892 = vld [vmem:[#allocation4 + $0x10] sm:$0xf]
      %v2893 = vld [vmem:[#allocation4 + $0x18] sm:$0xf]
      %2898 = vrot.lane.b32.xlu0 %v2890, 111
      %v2899 = vpop.permute.xlu0 %2898
      %2900 = vrot.lane.b32.xlu0 %v2891, 111
      %v2901 = vpop.permute.xlu0 %2900
      %2902 = vrot.lane.b32.xlu0 %v2892, 111
      %v2903 = vpop.permute.xlu0 %2902
      %2904 = vrot.lane.b32.xlu0 %v2893, 111
      %v2905 = vpop.permute.xlu0 %2904
      %2910 = vst.msk [vmem:[#allocation2 + $0xf0] sm:$0xf] %vm1161, %v2899
      %2911 = vst.msk [vmem:[#allocation2 + $0xfc] sm:$0xf] %vm1161, %v2901
      %2912 = vst.msk [vmem:[#allocation2 + $0x108] sm:$0xf] %vm1161, %v2903
      %2913 = vst.msk [vmem:[#allocation2 + $0x114] sm:$0xf] %vm1161, %v2905
      %v2914 = vld [vmem:[#allocation4] sm:$0xf]
      %v2915 = vld [vmem:[#allocation4 + $0x8] sm:$0xf]
      %v2916 = vld [vmem:[#allocation4 + $0x10] sm:$0xf]
      %v2917 = vld [vmem:[#allocation4 + $0x18] sm:$0xf]
      %2922 = vrot.lane.b32.xlu0 %v2914, 103
      %v2923 = vpop.permute.xlu0 %2922
      %2924 = vrot.lane.b32.xlu0 %v2915, 103
      %v2925 = vpop.permute.xlu0 %2924
      %2926 = vrot.lane.b32.xlu0 %v2916, 103
      %v2927 = vpop.permute.xlu0 %2926
      %2928 = vrot.lane.b32.xlu0 %v2917, 103
      %v2929 = vpop.permute.xlu0 %2928
      %2934 = vst.msk [vmem:[#allocation2 + $0x120] sm:$0xf] %vm1161, %v2923
      %2935 = vst.msk [vmem:[#allocation2 + $0x12c] sm:$0xf] %vm1161, %v2925
      %2936 = vst.msk [vmem:[#allocation2 + $0x138] sm:$0xf] %vm1161, %v2927
      %2937 = vst.msk [vmem:[#allocation2 + $0x144] sm:$0xf] %vm1161, %v2929
      %v2938 = vld [vmem:[#allocation4] sm:$0xf]
      %v2939 = vld [vmem:[#allocation4 + $0x8] sm:$0xf]
      %v2940 = vld [vmem:[#allocation4 + $0x10] sm:$0xf]
      %v2941 = vld [vmem:[#allocation4 + $0x18] sm:$0xf]
      %2946 = vrot.lane.b32.xlu0 %v2938, 102
      %v2947 = vpop.permute.xlu0 %2946
      %2948 = vrot.lane.b32.xlu0 %v2939, 102
      %v2949 = vpop.permute.xlu0 %2948
      %2950 = vrot.lane.b32.xlu0 %v2940, 102
      %v2951 = vpop.permute.xlu0 %2950
      %2952 = vrot.lane.b32.xlu0 %v2941, 102
      %v2953 = vpop.permute.xlu0 %2952
      %2958 = vst.msk [vmem:[#allocation2 + $0x150] sm:$0xf] %vm1161, %v2947
      %2959 = vst.msk [vmem:[#allocation2 + $0x15c] sm:$0xf] %vm1161, %v2949
      %2960 = vst.msk [vmem:[#allocation2 + $0x168] sm:$0xf] %vm1161, %v2951
      %2961 = vst.msk [vmem:[#allocation2 + $0x174] sm:$0xf] %vm1161, %v2953
      %v2962 = vld [vmem:[#allocation4] sm:$0xf]
      %v2963 = vld [vmem:[#allocation4 + $0x8] sm:$0xf]
      %v2964 = vld [vmem:[#allocation4 + $0x10] sm:$0xf]
      %v2965 = vld [vmem:[#allocation4 + $0x18] sm:$0xf]
      %2970 = vrot.lane.b32.xlu0 %v2962, 101
      %v2971 = vpop.permute.xlu0 %2970
      %2972 = vrot.lane.b32.xlu0 %v2963, 101
      %v2973 = vpop.permute.xlu0 %2972
      %2974 = vrot.lane.b32.xlu0 %v2964, 101
      %v2975 = vpop.permute.xlu0 %2974
      %2976 = vrot.lane.b32.xlu0 %v2965, 101
      %v2977 = vpop.permute.xlu0 %2976
      %2982 = vst.msk [vmem:[#allocation2 + $0x180] sm:$0xf] %vm1161, %v2971
      %2983 = vst.msk [vmem:[#allocation2 + $0x18c] sm:$0xf] %vm1161, %v2973
      %2984 = vst.msk [vmem:[#allocation2 + $0x198] sm:$0xf] %vm1161, %v2975
      %2985 = vst.msk [vmem:[#allocation2 + $0x1a4] sm:$0xf] %vm1161, %v2977
      %v2986 = vld [vmem:[%s5] sm:$0xff]
      %v2987 = vld [vmem:[%s5 + $0x8] sm:$0xf]
      %v2988 = vld [vmem:[#allocation2] sm:$0xf]
      %v2989 = vld [vmem:[#allocation2 + $0xc] sm:$0xf]
      %v2990 = vld [vmem:[#allocation2 + $0x18] sm:$0xf]
      %v2991 = vld [vmem:[#allocation2 + $0x24] sm:$0xf]
      %v2992 = vld [vmem:[#allocation2 + $0x30] sm:$0xf]
      %v2993 = vld [vmem:[#allocation2 + $0x3c] sm:$0xf]
      %v2994 = vld [vmem:[#allocation2 + $0x48] sm:$0xf]
      %v2995 = vld [vmem:[#allocation2 + $0x54] sm:$0xf]
      %v2996 = vld [vmem:[#allocation2 + $0x60] sm:$0xf]
      %v2997 = vld [vmem:[#allocation2 + $0x6c] sm:$0xf]
      %v2998 = vld [vmem:[#allocation2 + $0x78] sm:$0xf]
      %v2999 = vld [vmem:[#allocation2 + $0x84] sm:$0xf]
      %v3000 = vld [vmem:[#allocation2 + $0x90] sm:$0xf]
      %v3001 = vld [vmem:[#allocation2 + $0x9c] sm:$0xf]
      %v3002 = vld [vmem:[#allocation2 + $0xa8] sm:$0xf]
      %v3003 = vld [vmem:[#allocation2 + $0xb4] sm:$0xf]
      %v3004 = vld [vmem:[#allocation2 + $0xc0] sm:$0xf]
      %v3005 = vld [vmem:[#allocation2 + $0xcc] sm:$0xf]
      %v3006 = vld [vmem:[#allocation2 + $0xd8] sm:$0xf]
      %v3007 = vld [vmem:[#allocation2 + $0xe4] sm:$0xf]
      %v3008 = vld [vmem:[#allocation2 + $0xf0] sm:$0xf]
      %v3009 = vld [vmem:[#allocation2 + $0xfc] sm:$0xf]
      %v3010 = vld [vmem:[#allocation2 + $0x108] sm:$0xf]
      %v3011 = vld [vmem:[#allocation2 + $0x114] sm:$0xf]
      %v3012 = vld [vmem:[#allocation2 + $0x120] sm:$0xf]
      %v3013 = vld [vmem:[#allocation2 + $0x12c] sm:$0xf]
      %v3014 = vld [vmem:[#allocation2 + $0x138] sm:$0xf]
      %v3015 = vld [vmem:[#allocation2 + $0x144] sm:$0xf]
      %v3016 = vld [vmem:[#allocation2 + $0x150] sm:$0xf]
      %v3017 = vld [vmem:[#allocation2 + $0x15c] sm:$0xf]
      %v3018 = vld [vmem:[#allocation2 + $0x168] sm:$0xf]
      %v3019 = vld [vmem:[#allocation2 + $0x174] sm:$0xf]
      %v3020 = vld [vmem:[#allocation2 + $0x180] sm:$0xf]
      %v3021 = vld [vmem:[#allocation2 + $0x18c] sm:$0xf]
      %v3022 = vld [vmem:[#allocation2 + $0x198] sm:$0xf]
      %v3023 = vld [vmem:[#allocation2 + $0x1a4] sm:$0xf]
      %v3024 = vld [vmem:[%s6] sm:$0xff]
      %3026 = vset.pattern.permute.xlu0 0
      %3027 = vperm.xlu0 %3026, %v3024
      %v3028 = vpop.permute.xlu0 %3027
      %v3032 = vunpack.c.l.b16 %v2986
      %v3033 = vunpack.c.h.b16 %v2986
      %v3034 = vunpack.c.l.b16 %v2987
      %v3035 = vpack.c.b16 %v3032, %v3032
      %v3036 = vpack.c.b16 %v3033, %v3033
      %v3037 = vpack.c.b16 %v3034, %v3034
      %v3076 = vunpack.c.l.b16 %v2988
      %v3077 = vunpack.c.l.b16 %v2989
      %v3078 = vunpack.c.l.b16 %v2990
      %v3079 = vunpack.c.l.b16 %v2991
      %v3080 = vunpack.c.l.b16 %v2992
      %v3081 = vunpack.c.l.b16 %v2993
      %v3082 = vunpack.c.l.b16 %v2994
      %v3083 = vunpack.c.l.b16 %v2995
      %v3084 = vunpack.c.l.b16 %v2996
      %v3085 = vunpack.c.l.b16 %v2997
      %v3086 = vunpack.c.l.b16 %v2998
      %v3087 = vunpack.c.l.b16 %v2999
      %v3088 = vunpack.c.l.b16 %v3000
      %v3089 = vunpack.c.l.b16 %v3001
      %v3090 = vunpack.c.l.b16 %v3002
      %v3091 = vunpack.c.l.b16 %v3003
      %v3092 = vunpack.c.l.b16 %v3004
      %v3093 = vunpack.c.l.b16 %v3005
      %v3094 = vunpack.c.l.b16 %v3006
      %v3095 = vunpack.c.l.b16 %v3007
      %v3096 = vunpack.c.l.b16 %v3008
      %v3097 = vunpack.c.l.b16 %v3009
      %v3098 = vunpack.c.l.b16 %v3010
      %v3099 = vunpack.c.l.b16 %v3011
      %v3100 = vunpack.c.l.b16 %v3012
      %v3101 = vunpack.c.l.b16 %v3013
      %v3102 = vunpack.c.l.b16 %v3014
      %v3103 = vunpack.c.l.b16 %v3015
      %v3104 = vunpack.c.l.b16 %v3016
      %v3105 = vunpack.c.l.b16 %v3017
      %v3106 = vunpack.c.l.b16 %v3018
      %v3107 = vunpack.c.l.b16 %v3019
      %v3108 = vunpack.c.l.b16 %v3020
      %v3109 = vunpack.c.l.b16 %v3021
      %v3110 = vunpack.c.l.b16 %v3022
      %v3111 = vunpack.c.l.b16 %v3023
      %v3112 = vpack.c.b16 %v3077, %v3076
      %v3113 = vpack.c.b16 %v3079, %v3078
      %v3114 = vpack.c.b16 %v3081, %v3080
      %v3115 = vpack.c.b16 %v3083, %v3082
      %v3116 = vpack.c.b16 %v3085, %v3084
      %v3117 = vpack.c.b16 %v3087, %v3086
      %v3118 = vpack.c.b16 %v3089, %v3088
      %v3119 = vpack.c.b16 %v3091, %v3090
      %v3120 = vpack.c.b16 %v3093, %v3092
      %v3121 = vpack.c.b16 %v3095, %v3094
      %v3122 = vpack.c.b16 %v3097, %v3096
      %v3123 = vpack.c.b16 %v3099, %v3098
      %v3124 = vpack.c.b16 %v3101, %v3100
      %v3125 = vpack.c.b16 %v3103, %v3102
      %v3126 = vpack.c.b16 %v3105, %v3104
      %v3127 = vpack.c.b16 %v3107, %v3106
      %v3128 = vpack.c.b16 %v3109, %v3108
      %v3129 = vpack.c.b16 %v3111, %v3110
      %v3149 = vsel %vm2167, %v3037, 0
      %3151 = vmatprep.subr.bf16.mxu0 0
      %3152 = vmatpush1.bf16.msra.mxu0 %v3119
      %3153 = vmatprep.subr.bf16.mxu0 0
      %3154 = vmatpush1.bf16.msra.mxu0 %v3118
      %3155 = vmatprep.subr.bf16.mxu0 0
      %3156 = vmatpush1.bf16.msra.mxu0 %v3117
      %3157 = vmatprep.subr.bf16.mxu0 0
      %3158 = vmatpush1.bf16.msra.mxu0 %v3116
      %3159 = vmatprep.subr.bf16.mxu0 0
      %3160 = vmatpush1.bf16.msra.mxu0 %v3115
      %3161 = vmatprep.subr.bf16.mxu0 0
      %3162 = vmatpush1.bf16.msra.mxu0 %v3114
      %3163 = vmatprep.subr.bf16.mxu0 0
      %3164 = vmatpush1.bf16.msra.mxu0 %v3113
      %3165 = vmatprep.subr.bf16.mxu0 0
      %3166 = vmatpush1.bf16.msra.mxu0 %v3112
      %3167 = vmatprep.subr.bf16.mxu0 0
      %3168 = vmatpush2.bf16.msra.mxu0 %v3127
      %3169 = vmatprep.subr.bf16.mxu0 0
      %3170 = vmatpush2.bf16.msra.mxu0 %v3126
      %3171 = vmatprep.subr.bf16.mxu0 0
      %3172 = vmatpush2.bf16.msra.mxu0 %v3125
      %3173 = vmatprep.subr.bf16.mxu0 0
      %3174 = vmatpush2.bf16.msra.mxu0 %v3124
      %3175 = vmatprep.subr.bf16.mxu0 0
      %3176 = vmatpush2.bf16.msra.mxu0 %v3123
      %3177 = vmatprep.subr.bf16.mxu0 0
      %3178 = vmatpush2.bf16.msra.mxu0 %v3122
      %3179 = vmatprep.subr.bf16.mxu0 0
      %3180 = vmatpush2.bf16.msra.mxu0 %v3121
      %3181 = vmatprep.subr.bf16.mxu0 0
      %3182 = vmatpush2.bf16.msra.mxu0 %v3120
      %3183 = vmatprep.mubr.bf16.mxu0 %v3036
      %3184 = vmatmul.mubr.bf16.gmra.mxu0 %v3035
      %v3185 = vpop.f32.mrf.mxu0
      %v3186 = vadd.f32 %v3028, %v3185
      %v3187 = vpop.f32.mrf.mxu0
      %v3188 = vpop.f32.mrf.mxu0
      %v3189 = vpop.f32.mrf.mxu0
      %3190 = vdwg.mxu0
      %3191 = vmatprep.subr.bf16.mxu0 0
      %3192 = vmatpush1.bf16.msra.mxu0 0
      %3193 = vmatprep.subr.bf16.mxu0 0
      %3194 = vmatpush1.bf16.msra.mxu0 0
      %3195 = vmatprep.subr.bf16.mxu0 0
      %3196 = vmatpush1.bf16.msra.mxu0 0
      %3197 = vmatprep.subr.bf16.mxu0 0
      %3198 = vmatpush1.bf16.msra.mxu0 0
      %3199 = vmatprep.subr.bf16.mxu0 0
      %3200 = vmatpush1.bf16.msra.mxu0 0
      %3201 = vmatprep.subr.bf16.mxu0 0
      %3202 = vmatpush1.bf16.msra.mxu0 0
      %3203 = vmatprep.subr.bf16.mxu0 0
      %3204 = vmatpush1.bf16.msra.mxu0 %v3129
      %3205 = vmatprep.subr.bf16.mxu0 0
      %3206 = vmatpush1.bf16.msra.mxu0 %v3128
      %3207 = vmatprep.subr.bf16.mxu0 0
      %3208 = vmatpush2.bf16.msra.mxu0 0
      %3209 = vmatprep.subr.bf16.mxu0 0
      %3210 = vmatpush2.bf16.msra.mxu0 0
      %3211 = vmatprep.subr.bf16.mxu0 0
      %3212 = vmatpush2.bf16.msra.mxu0 0
      %3213 = vmatprep.subr.bf16.mxu0 0
      %3214 = vmatpush2.bf16.msra.mxu0 0
      %3215 = vmatprep.subr.bf16.mxu0 0
      %3216 = vmatpush2.bf16.msra.mxu0 0
      %3217 = vmatprep.subr.bf16.mxu0 0
      %3218 = vmatpush2.bf16.msra.mxu0 0
      %3219 = vmatprep.subr.bf16.mxu0 0
      %3220 = vmatpush2.bf16.msra.mxu0 0
      %3221 = vmatprep.subr.bf16.mxu0 0
      %3222 = vmatpush2.bf16.msra.mxu0 0
      %3223 = vmatprep.mubr.bf16.mxu0 0
      %3224 = vmatmul.mubr.bf16.gmra.mxu0 %v3149
      %v3225 = vpop.f32.mrf.mxu0
      %v3226 = vadd.f32 %v3186, %v3225
      %v3227 = vpop.f32.mrf.mxu0
      %v3228 = vpop.f32.mrf.mxu0
      %v3229 = vpop.f32.mrf.mxu0
      %3230 = vdwg.mxu0
      %v3231 = vld [vmem:[%s16] sm:$0x1]
      %v3233 = vlaneseq
      %v3234 = vshrl.u32 %v3233, 7
      %v3235 = vsub.s32 0, %v3234
      %v3236 = vrot.slane %v3231, %v3235
      %v3238 = vmul.f32 %v3226, %v3236
      %v3239 = vpack.c.bf16 %v3238, %v3238
      %v3241 = vunpack.c.l.b16 %v3239
      %v3242 = vpack.c.b16 %v3241, %v3241
      %3243 = vrot.lane.b32.xlu0 %v3242, 16
      %v3244 = vpop.permute.xlu0 %3243
      %3246 = vst.msk [vmem:[#allocation4] sm:$0xf] %vm2765, %v3244
      %v3247 = vld [vmem:[#allocation4] sm:$0xf]
      %3249 = vrot.lane.b32.xlu0 %v3247, 123
      %v3250 = vpop.permute.xlu0 %3249
      %3252 = vst.msk [vmem:[#allocation2] sm:$0xf] %vm1161, %v3250
      %v3253 = vld [vmem:[#allocation4] sm:$0xf]
      %3255 = vrot.lane.b32.xlu0 %v3253, 122
      %v3256 = vpop.permute.xlu0 %3255
      %3258 = vst.msk [vmem:[#allocation2 + $0xc] sm:$0xf] %vm1161, %v3256
      %v3259 = vld [vmem:[#allocation4] sm:$0xf]
      %3261 = vrot.lane.b32.xlu0 %v3259, 121
      %v3262 = vpop.permute.xlu0 %3261
      %3264 = vst.msk [vmem:[#allocation2 + $0x18] sm:$0xf] %vm1161, %v3262
      %v3265 = vld [vmem:[#allocation4] sm:$0xf]
      %3267 = vrot.lane.b32.xlu0 %v3265, 113
      %v3268 = vpop.permute.xlu0 %3267
      %3270 = vst.msk [vmem:[#allocation2 + $0x24] sm:$0xf] %vm1161, %v3268
      %v3271 = vld [vmem:[#allocation4] sm:$0xf]
      %3273 = vrot.lane.b32.xlu0 %v3271, 112
      %v3274 = vpop.permute.xlu0 %3273
      %3276 = vst.msk [vmem:[#allocation2 + $0x30] sm:$0xf] %vm1161, %v3274
      %v3277 = vld [vmem:[#allocation4] sm:$0xf]
      %3279 = vrot.lane.b32.xlu0 %v3277, 111
      %v3280 = vpop.permute.xlu0 %3279
      %3282 = vst.msk [vmem:[#allocation2 + $0x3c] sm:$0xf] %vm1161, %v3280
      %v3283 = vld [vmem:[#allocation4] sm:$0xf]
      %3285 = vrot.lane.b32.xlu0 %v3283, 103
      %v3286 = vpop.permute.xlu0 %3285
      %3288 = vst.msk [vmem:[#allocation2 + $0x48] sm:$0xf] %vm1161, %v3286
      %v3289 = vld [vmem:[#allocation4] sm:$0xf]
      %3291 = vrot.lane.b32.xlu0 %v3289, 102
      %v3292 = vpop.permute.xlu0 %3291
      %3294 = vst.msk [vmem:[#allocation2 + $0x54] sm:$0xf] %vm1161, %v3292
      %v3295 = vld [vmem:[#allocation4] sm:$0xf]
      %3297 = vrot.lane.b32.xlu0 %v3295, 101
      %v3298 = vpop.permute.xlu0 %3297
      %3300 = vst.msk [vmem:[#allocation2 + $0x60] sm:$0xf] %vm1161, %v3298
      %v3301 = vld [vmem:[%s7] sm:$0xf]
      %v3302 = vld [vmem:[%s7 + $0x4] sm:$0xf]
      %v3303 = vld [vmem:[%s7 + $0x8] sm:$0xf]
      %v3304 = vld [vmem:[%s7 + $0xc] sm:$0xf]
      %v3305 = vld [vmem:[#allocation2] sm:$0xf]
      %v3306 = vld [vmem:[#allocation2 + $0xc] sm:$0xf]
      %v3307 = vld [vmem:[#allocation2 + $0x18] sm:$0xf]
      %v3308 = vld [vmem:[#allocation2 + $0x24] sm:$0xf]
      %v3309 = vld [vmem:[#allocation2 + $0x30] sm:$0xf]
      %v3310 = vld [vmem:[#allocation2 + $0x3c] sm:$0xf]
      %v3311 = vld [vmem:[#allocation2 + $0x48] sm:$0xf]
      %v3312 = vld [vmem:[#allocation2 + $0x54] sm:$0xf]
      %v3313 = vld [vmem:[#allocation2 + $0x60] sm:$0xf]
      %v3314 = vld [vmem:[%s8] sm:$0xff]
      %v3315 = vld [vmem:[%s8 + $0x8] sm:$0xff]
      %v3316 = vld [vmem:[%s8 + $0x10] sm:$0xff]
      %v3317 = vld [vmem:[%s8 + $0x18] sm:$0xff]
      %3319 = vset.pattern.permute.xlu0 0
      %3320 = vperm.xlu0 %3319, %v3314
      %v3321 = vpop.permute.xlu0 %3320
      %3324 = vset.pattern.permute.xlu0 0
      %3325 = vperm.xlu0 %3324, %v3315
      %v3326 = vpop.permute.xlu0 %3325
      %3329 = vset.pattern.permute.xlu0 0
      %3330 = vperm.xlu0 %3329, %v3316
      %v3331 = vpop.permute.xlu0 %3330
      %3334 = vset.pattern.permute.xlu0 0
      %3335 = vperm.xlu0 %3334, %v3317
      %v3336 = vpop.permute.xlu0 %3335
      %v3342 = vunpack.c.l.b16 %v3301
      %v3343 = vunpack.c.l.b16 %v3302
      %v3344 = vunpack.c.l.b16 %v3303
      %v3345 = vunpack.c.l.b16 %v3304
      %v3346 = vpack.c.b16 %v3343, %v3342
      %v3347 = vpack.c.b16 %v3345, %v3344
      %v3357 = vunpack.c.l.b16 %v3305
      %v3358 = vunpack.c.l.b16 %v3306
      %v3359 = vunpack.c.l.b16 %v3307
      %v3360 = vunpack.c.l.b16 %v3308
      %v3361 = vunpack.c.l.b16 %v3309
      %v3362 = vunpack.c.l.b16 %v3310
      %v3363 = vunpack.c.l.b16 %v3311
      %v3364 = vunpack.c.l.b16 %v3312
      %v3365 = vunpack.c.l.b16 %v3313
      %v3366 = vpack.c.b16 %v3358, %v3357
      %v3367 = vpack.c.b16 %v3360, %v3359
      %v3368 = vpack.c.b16 %v3362, %v3361
      %v3369 = vpack.c.b16 %v3364, %v3363
      %v3370 = vpack.c.b16 %v3365, %v3365
      %v3376 = vsel %vm873, %v3346, 0
      %v3379 = vsel %vm873, %v3347, 0
      %v3382 = vsel %vm880, %v3370, 0
      %3384 = vmatprep.subr.bf16.mxu0 0
      %3385 = vmatpush1.bf16.msra.mxu0 0
      %3386 = vmatprep.subr.bf16.mxu0 0
      %3387 = vmatpush1.bf16.msra.mxu0 0
      %3388 = vmatprep.subr.bf16.mxu0 0
      %3389 = vmatpush1.bf16.msra.mxu0 0
      %3390 = vmatprep.subr.bf16.mxu0 0
      %3391 = vmatpush1.bf16.msra.mxu0 %v3382
      %3392 = vmatprep.subr.bf16.mxu0 0
      %3393 = vmatpush1.bf16.msra.mxu0 %v3369
      %3394 = vmatprep.subr.bf16.mxu0 0
      %3395 = vmatpush1.bf16.msra.mxu0 %v3368
      %3396 = vmatprep.subr.bf16.mxu0 0
      %3397 = vmatpush1.bf16.msra.mxu0 %v3367
      %3398 = vmatprep.subr.bf16.mxu0 0
      %3399 = vmatpush1.bf16.msra.mxu0 %v3366
      %3400 = vmatprep.subr.bf16.mxu0 0
      %3401 = vmatpush2.bf16.msra.mxu0 0
      %3402 = vmatprep.subr.bf16.mxu0 0
      %3403 = vmatpush2.bf16.msra.mxu0 0
      %3404 = vmatprep.subr.bf16.mxu0 0
      %3405 = vmatpush2.bf16.msra.mxu0 0
      %3406 = vmatprep.subr.bf16.mxu0 0
      %3407 = vmatpush2.bf16.msra.mxu0 0
      %3408 = vmatprep.subr.bf16.mxu0 0
      %3409 = vmatpush2.bf16.msra.mxu0 0
      %3410 = vmatprep.subr.bf16.mxu0 0
      %3411 = vmatpush2.bf16.msra.mxu0 0
      %3412 = vmatprep.subr.bf16.mxu0 0
      %3413 = vmatpush2.bf16.msra.mxu0 0
      %3414 = vmatprep.subr.bf16.mxu0 0
      %3415 = vmatpush2.bf16.msra.mxu0 0
      %3416 = vmatprep.mubr.bf16.mxu0 0
      %3417 = vmatmul.mubr.bf16.gmra.mxu0 %v3376
      %v3418 = vpop.f32.mrf.mxu0
      %v3419 = vadd.f32 %v3321, %v3418
      %v3420 = vpop.f32.mrf.mxu0
      %v3421 = vpop.f32.mrf.mxu0
      %v3422 = vadd.f32 %v3326, %v3421
      %v3423 = vpop.f32.mrf.mxu0
      %3424 = vmatprep.mubr.bf16.mxu0 0
      %3425 = vmatmul.mubr.bf16.gmra.mxu0 %v3379
      %v3426 = vpop.f32.mrf.mxu0
      %v3427 = vadd.f32 %v3331, %v3426
      %v3428 = vpop.f32.mrf.mxu0
      %v3429 = vpop.f32.mrf.mxu0
      %v3430 = vadd.f32 %v3336, %v3429
      %v3431 = vpop.f32.mrf.mxu0
      %3432 = vdwg.mxu0
      %v3433 = vxor.u32 %v3419, 2147483648
      %v3434 = vxor.u32 %v3422, 2147483648
      %v3435 = vxor.u32 %v3427, 2147483648
      %v3436 = vxor.u32 %v3430, 2147483648
      %v3437 = vmul.f32 %v3433, 1.442695
      %v3438 = vpow.pop %v3437
      %v3439 = vmul.f32 %v3434, 1.442695
      %v3440 = vpow.pop %v3439
      %v3441 = vmul.f32 %v3435, 1.442695
      %v3442 = vpow.pop %v3441
      %v3443 = vmul.f32 %v3436, 1.442695
      %v3444 = vpow.pop %v3443
      %v3445 = vadd.f32 %v3438, 1.0
      %v3446 = vadd.f32 %v3440, 1.0
      %v3447 = vadd.f32 %v3442, 1.0
      %v3448 = vadd.f32 %v3444, 1.0
      %v3449 = vrcp.pop %v3445
      %v3450 = vmul.f32 1.0, %v3449
      %v3451 = vrcp.pop %v3446
      %v3452 = vmul.f32 1.0, %v3451
      %v3453 = vrcp.pop %v3447
      %v3454 = vmul.f32 1.0, %v3453
      %v3455 = vrcp.pop %v3448
      %v3456 = vmul.f32 1.0, %v3455
      %v3457 = vmul.f32 %v3419, %v3450
      %v3458 = vmul.f32 %v3422, %v3452
      %v3459 = vmul.f32 %v3427, %v3454
      %v3460 = vmul.f32 %v3430, %v3456
      %v3461 = vpack.c.bf16 %v3458, %v3457
      %v3462 = vpack.c.bf16 %v3460, %v3459
      %v3463 = vld [vmem:[%s14] sm:$0xff]
      %v3464 = vld [vmem:[%s14 + $0x8] sm:$0xf]
      %v3465 = vld [vmem:[%s14 + $0xc] sm:$0xff]
      %v3466 = vld [vmem:[%s14 + $0x14] sm:$0xf]
      %v3467 = vld [vmem:[%s14 + $0x18] sm:$0xff]
      %v3468 = vld [vmem:[%s14 + $0x20] sm:$0xf]
      %v3469 = vld [vmem:[%s14 + $0x24] sm:$0xff]
      %v3470 = vld [vmem:[%s14 + $0x2c] sm:$0xf]
      %v3471 = vld [vmem:[%s14 + $0x30] sm:$0xff]
      %v3472 = vld [vmem:[%s14 + $0x38] sm:$0xf]
      %v3473 = vld [vmem:[%s14 + $0x3c] sm:$0xff]
      %v3474 = vld [vmem:[%s14 + $0x44] sm:$0xf]
      %v3475 = vld [vmem:[%s14 + $0x48] sm:$0xff]
      %v3476 = vld [vmem:[%s14 + $0x50] sm:$0xf]
      %v3477 = vld [vmem:[%s14 + $0x54] sm:$0xff]
      %v3478 = vld [vmem:[%s14 + $0x5c] sm:$0xf]
      %v3479 = vld [vmem:[%s14 + $0x60] sm:$0xff]
      %v3480 = vld [vmem:[%s14 + $0x68] sm:$0xf]
      %v3481 = vld [vmem:[%s14 + $0x6c] sm:$0xff]
      %v3482 = vld [vmem:[%s14 + $0x74] sm:$0xf]
      %v3483 = vld [vmem:[%s14 + $0x78] sm:$0xff]
      %v3484 = vld [vmem:[%s14 + $0x80] sm:$0xf]
      %v3485 = vld [vmem:[%s14 + $0x84] sm:$0xff]
      %v3486 = vld [vmem:[%s14 + $0x8c] sm:$0xf]
      %v3487 = vld [vmem:[%s14 + $0x90] sm:$0x33]
      %v3488 = vld [vmem:[%s14 + $0x98] sm:$0x3]
      %v3515 = vunpack.c.l.b16 %v3463
      %v3516 = vunpack.c.h.b16 %v3463
      %v3517 = vunpack.c.l.b16 %v3464
      %v3518 = vunpack.c.l.b16 %v3465
      %v3519 = vunpack.c.h.b16 %v3465
      %v3520 = vunpack.c.l.b16 %v3466
      %v3521 = vunpack.c.l.b16 %v3467
      %v3522 = vunpack.c.h.b16 %v3467
      %v3523 = vunpack.c.l.b16 %v3468
      %v3524 = vunpack.c.l.b16 %v3469
      %v3525 = vunpack.c.h.b16 %v3469
      %v3526 = vunpack.c.l.b16 %v3470
      %v3527 = vunpack.c.l.b16 %v3471
      %v3528 = vunpack.c.h.b16 %v3471
      %v3529 = vunpack.c.l.b16 %v3472
      %v3530 = vunpack.c.l.b16 %v3473
      %v3531 = vunpack.c.h.b16 %v3473
      %v3532 = vunpack.c.l.b16 %v3474
      %v3533 = vunpack.c.l.b16 %v3475
      %v3534 = vunpack.c.h.b16 %v3475
      %v3535 = vunpack.c.l.b16 %v3476
      %v3536 = vunpack.c.l.b16 %v3477
      %v3537 = vunpack.c.h.b16 %v3477
      %v3538 = vunpack.c.l.b16 %v3478
      %v3539 = vunpack.c.l.b16 %v3479
      %v3540 = vunpack.c.h.b16 %v3479
      %v3541 = vunpack.c.l.b16 %v3480
      %v3542 = vunpack.c.l.b16 %v3481
      %v3543 = vunpack.c.h.b16 %v3481
      %v3544 = vunpack.c.l.b16 %v3482
      %v3545 = vunpack.c.l.b16 %v3483
      %v3546 = vunpack.c.h.b16 %v3483
      %v3547 = vunpack.c.l.b16 %v3484
      %v3548 = vunpack.c.l.b16 %v3485
      %v3549 = vunpack.c.h.b16 %v3485
      %v3550 = vunpack.c.l.b16 %v3486
      %v3551 = vunpack.c.l.b16 %v3487
      %v3552 = vunpack.c.h.b16 %v3487
      %v3553 = vunpack.c.l.b16 %v3488
      %v3554 = vpack.c.b16 %v3518, %v3515
      %v3555 = vpack.c.b16 %v3519, %v3516
      %v3556 = vpack.c.b16 %v3520, %v3517
      %v3557 = vpack.c.b16 %v3524, %v3521
      %v3558 = vpack.c.b16 %v3525, %v3522
      %v3559 = vpack.c.b16 %v3526, %v3523
      %v3560 = vpack.c.b16 %v3530, %v3527
      %v3561 = vpack.c.b16 %v3531, %v3528
      %v3562 = vpack.c.b16 %v3532, %v3529
      %v3563 = vpack.c.b16 %v3536, %v3533
      %v3564 = vpack.c.b16 %v3537, %v3534
      %v3565 = vpack.c.b16 %v3538, %v3535
      %v3566 = vpack.c.b16 %v3542, %v3539
      %v3567 = vpack.c.b16 %v3543, %v3540
      %v3568 = vpack.c.b16 %v3544, %v3541
      %v3569 = vpack.c.b16 %v3548, %v3545
      %v3570 = vpack.c.b16 %v3549, %v3546
      %v3571 = vpack.c.b16 %v3550, %v3547
      %v3572 = vpack.c.b16 %v3551, %v3551
      %v3573 = vpack.c.b16 %v3552, %v3552
      %v3574 = vpack.c.b16 %v3553, %v3553
      %vm3593 = vcmask 818176
      %v3595 = vsel %vm3593, %v3461, 0
      %v3598 = vsel %vm3593, %v3462, 0
      %v3601 = vsel %vm2639, %v3572, 0
      %v3604 = vsel %vm2639, %v3573, 0
      %v3607 = vsel %vm2639, %v3574, 0
      %3609 = vmatprep.subr.bf16.mxu0 0
      %3610 = vmatpush1.bf16.msra.mxu0 0
      %3611 = vmatprep.subr.bf16.mxu0 %v3604
      %3612 = vmatpush1.bf16.msra.mxu0 %v3601
      %3613 = vmatprep.subr.bf16.mxu0 %v3570
      %3614 = vmatpush1.bf16.msra.mxu0 %v3569
      %3615 = vmatprep.subr.bf16.mxu0 %v3567
      %3616 = vmatpush1.bf16.msra.mxu0 %v3566
      %3617 = vmatprep.subr.bf16.mxu0 %v3564
      %3618 = vmatpush1.bf16.msra.mxu0 %v3563
      %3619 = vmatprep.subr.bf16.mxu0 %v3561
      %3620 = vmatpush1.bf16.msra.mxu0 %v3560
      %3621 = vmatprep.subr.bf16.mxu0 %v3558
      %3622 = vmatpush1.bf16.msra.mxu0 %v3557
      %3623 = vmatprep.subr.bf16.mxu0 %v3555
      %3624 = vmatpush1.bf16.msra.mxu0 %v3554
      %3625 = vmatprep.subr.bf16.mxu0 0
      %3626 = vmatpush2.bf16.msra.mxu0 0
      %3627 = vmatprep.subr.bf16.mxu0 0
      %3628 = vmatpush2.bf16.msra.mxu0 0
      %3629 = vmatprep.subr.bf16.mxu0 0
      %3630 = vmatpush2.bf16.msra.mxu0 0
      %3631 = vmatprep.subr.bf16.mxu0 0
      %3632 = vmatpush2.bf16.msra.mxu0 0
      %3633 = vmatprep.subr.bf16.mxu0 0
      %3634 = vmatpush2.bf16.msra.mxu0 0
      %3635 = vmatprep.subr.bf16.mxu0 0
      %3636 = vmatpush2.bf16.msra.mxu0 0
      %3637 = vmatprep.subr.bf16.mxu0 0
      %3638 = vmatpush2.bf16.msra.mxu0 0
      %3639 = vmatprep.subr.bf16.mxu0 0
      %3640 = vmatpush2.bf16.msra.mxu0 0
      %3641 = vmatprep.mubr.bf16.mxu0 0
      %3642 = vmatmul.mubr.bf16.gmra.mxu0 %v3595
      %v3643 = vpop.f32.mrf.mxu0
      %v3644 = vadd.f32 0.0, %v3643
      %v3645 = vpop.f32.mrf.mxu0
      %v3646 = vadd.f32 0.0, %v3645
      %v3647 = vpop.f32.mrf.mxu0
      %v3648 = vadd.f32 0.0, %v3647
      %v3649 = vpop.f32.mrf.mxu0
      %v3650 = vadd.f32 0.0, %v3649
      %3651 = vmatprep.mubr.bf16.mxu0 0
      %3652 = vmatmul.mubr.bf16.gmra.mxu0 %v3598
      %v3653 = vpop.f32.mrf.mxu0
      %v3654 = vadd.f32 0.0, %v3653
      %v3655 = vpop.f32.mrf.mxu0
      %v3656 = vadd.f32 0.0, %v3655
      %v3657 = vpop.f32.mrf.mxu0
      %v3658 = vadd.f32 0.0, %v3657
      %v3659 = vpop.f32.mrf.mxu0
      %v3660 = vadd.f32 0.0, %v3659
      %3661 = vdwg.mxu0
      %3662 = vmatprep.subr.bf16.mxu0 0
      %3663 = vmatpush1.bf16.msra.mxu0 0
      %3664 = vmatprep.subr.bf16.mxu0 0
      %3665 = vmatpush1.bf16.msra.mxu0 %v3607
      %3666 = vmatprep.subr.bf16.mxu0 0
      %3667 = vmatpush1.bf16.msra.mxu0 %v3571
      %3668 = vmatprep.subr.bf16.mxu0 0
      %3669 = vmatpush1.bf16.msra.mxu0 %v3568
      %3670 = vmatprep.subr.bf16.mxu0 0
      %3671 = vmatpush1.bf16.msra.mxu0 %v3565
      %3672 = vmatprep.subr.bf16.mxu0 0
      %3673 = vmatpush1.bf16.msra.mxu0 %v3562
      %3674 = vmatprep.subr.bf16.mxu0 0
      %3675 = vmatpush1.bf16.msra.mxu0 %v3559
      %3676 = vmatprep.subr.bf16.mxu0 0
      %3677 = vmatpush1.bf16.msra.mxu0 %v3556
      %3678 = vmatprep.subr.bf16.mxu0 0
      %3679 = vmatpush2.bf16.msra.mxu0 0
      %3680 = vmatprep.subr.bf16.mxu0 0
      %3681 = vmatpush2.bf16.msra.mxu0 0
      %3682 = vmatprep.subr.bf16.mxu0 0
      %3683 = vmatpush2.bf16.msra.mxu0 0
      %3684 = vmatprep.subr.bf16.mxu0 0
      %3685 = vmatpush2.bf16.msra.mxu0 0
      %3686 = vmatprep.subr.bf16.mxu0 0
      %3687 = vmatpush2.bf16.msra.mxu0 0
      %3688 = vmatprep.subr.bf16.mxu0 0
      %3689 = vmatpush2.bf16.msra.mxu0 0
      %3690 = vmatprep.subr.bf16.mxu0 0
      %3691 = vmatpush2.bf16.msra.mxu0 0
      %3692 = vmatprep.subr.bf16.mxu0 0
      %3693 = vmatpush2.bf16.msra.mxu0 0
      %3694 = vmatprep.mubr.bf16.mxu0 0
      %3695 = vmatmul.mubr.bf16.gmra.mxu0 %v3595
      %v3696 = vpop.f32.mrf.mxu0
      %v3697 = vadd.f32 0.0, %v3696
      %v3698 = vpop.f32.mrf.mxu0
      %v3699 = vpop.f32.mrf.mxu0
      %v3700 = vadd.f32 0.0, %v3699
      %v3701 = vpop.f32.mrf.mxu0
      %3702 = vmatprep.mubr.bf16.mxu0 0
      %3703 = vmatmul.mubr.bf16.gmra.mxu0 %v3598
      %v3704 = vpop.f32.mrf.mxu0
      %v3705 = vadd.f32 0.0, %v3704
      %v3706 = vpop.f32.mrf.mxu0
      %v3707 = vpop.f32.mrf.mxu0
      %v3708 = vadd.f32 0.0, %v3707
      %v3709 = vpop.f32.mrf.mxu0
      %3710 = vdwg.mxu0
      %v3711 = vpack.c.bf16 %v3648, %v3644
      %v3712 = vpack.c.bf16 %v3650, %v3646
      %v3713 = vpack.c.bf16 %v3700, %v3697
      %v3714 = vpack.c.bf16 %v3658, %v3654
      %v3715 = vpack.c.bf16 %v3660, %v3656
      %v3716 = vpack.c.bf16 %v3708, %v3705
      %v3723 = vunpack.c.l.b16 %v3711
      %v3724 = vunpack.c.l.b16 %v3712
      %v3725 = vunpack.c.l.b16 %v3713
      %v3726 = vunpack.c.h.b16 %v3711
      %v3727 = vunpack.c.h.b16 %v3712
      %v3728 = vunpack.c.h.b16 %v3713
      %v3729 = vunpack.c.l.b16 %v3714
      %v3730 = vunpack.c.l.b16 %v3715
      %v3731 = vunpack.c.l.b16 %v3716
      %v3732 = vunpack.c.h.b16 %v3714
      %v3733 = vunpack.c.h.b16 %v3715
      %v3734 = vunpack.c.h.b16 %v3716
      %v3735 = vpack.c.b16 %v3724, %v3723
      %v3736 = vpack.c.b16 %v3725, %v3725
      %v3737 = vpack.c.b16 %v3727, %v3726
      %v3738 = vpack.c.b16 %v3728, %v3728
      %v3739 = vpack.c.b16 %v3730, %v3729
      %v3740 = vpack.c.b16 %v3731, %v3731
      %v3741 = vpack.c.b16 %v3733, %v3732
      %v3742 = vpack.c.b16 %v3734, %v3734
      %3743 = vrot.lane.b32.xlu0 %v3735, 32
      %v3744 = vpop.permute.xlu0 %3743
      %3745 = vrot.lane.b32.xlu0 %v3736, 32
      %v3746 = vpop.permute.xlu0 %3745
      %3747 = vrot.lane.b32.xlu0 %v3737, 32
      %v3748 = vpop.permute.xlu0 %3747
      %3749 = vrot.lane.b32.xlu0 %v3738, 32
      %v3750 = vpop.permute.xlu0 %3749
      %3751 = vrot.lane.b32.xlu0 %v3739, 32
      %v3752 = vpop.permute.xlu0 %3751
      %3753 = vrot.lane.b32.xlu0 %v3740, 32
      %v3754 = vpop.permute.xlu0 %3753
      %3755 = vrot.lane.b32.xlu0 %v3741, 32
      %v3756 = vpop.permute.xlu0 %3755
      %3757 = vrot.lane.b32.xlu0 %v3742, 32
      %v3758 = vpop.permute.xlu0 %3757
      %v3759 = vrot.slane %v3744, 4
      %v3760 = vrot.slane %v3748, 4
      %v3761 = vrot.slane %v3752, 4
      %v3762 = vrot.slane %v3756, 4
      %v3763 = vsel %vm1140, %v3759, %v3744
      %v3764 = vsel %vm1140, %v3759, %v3746
      %v3765 = vsel %vm1140, %v3760, %v3748
      %v3766 = vsel %vm1140, %v3760, %v3750
      %v3767 = vsel %vm1140, %v3761, %v3752
      %v3768 = vsel %vm1140, %v3761, %v3754
      %v3769 = vsel %vm1140, %v3762, %v3756
      %v3770 = vsel %vm1140, %v3762, %v3758
      %3779 = vst.msk [vmem:[#allocation3] sm:$0xff] %vm1159, %v3763
      %3780 = vst.msk [vmem:[#allocation3 + $0x8] sm:$0xf] %vm1161, %v3764
      %3781 = vst.msk [vmem:[#allocation3 + $0x10] sm:$0xff] %vm1159, %v3765
      %3782 = vst.msk [vmem:[#allocation3 + $0x18] sm:$0xf] %vm1161, %v3766
      %3783 = vst.msk [vmem:[#allocation3 + $0x20] sm:$0xff] %vm1159, %v3767
      %3784 = vst.msk [vmem:[#allocation3 + $0x28] sm:$0xf] %vm1161, %v3768
      %3785 = vst.msk [vmem:[#allocation3 + $0x30] sm:$0xff] %vm1159, %v3769
      %3786 = vst.msk [vmem:[#allocation3 + $0x38] sm:$0xf] %vm1161, %v3770
      %v3787 = vld [vmem:[#allocation3] sm:$0xff]
      %v3788 = vld [vmem:[#allocation3 + $0x8] sm:$0xf]
      %v3789 = vld [vmem:[#allocation3 + $0x10] sm:$0xff]
      %v3790 = vld [vmem:[#allocation3 + $0x18] sm:$0xf]
      %v3791 = vld [vmem:[#allocation3 + $0x20] sm:$0xff]
      %v3792 = vld [vmem:[#allocation3 + $0x28] sm:$0xf]
      %v3793 = vld [vmem:[#allocation3 + $0x30] sm:$0xff]
      %v3794 = vld [vmem:[#allocation3 + $0x38] sm:$0xf]
      %3803 = vrot.lane.b32.xlu0 %v3787, 115
      %v3804 = vpop.permute.xlu0 %3803
      %3805 = vrot.lane.b32.xlu0 %v3788, 115
      %v3806 = vpop.permute.xlu0 %3805
      %3807 = vrot.lane.b32.xlu0 %v3789, 115
      %v3808 = vpop.permute.xlu0 %3807
      %3809 = vrot.lane.b32.xlu0 %v3790, 115
      %v3810 = vpop.permute.xlu0 %3809
      %3811 = vrot.lane.b32.xlu0 %v3791, 115
      %v3812 = vpop.permute.xlu0 %3811
      %3813 = vrot.lane.b32.xlu0 %v3792, 115
      %v3814 = vpop.permute.xlu0 %3813
      %3815 = vrot.lane.b32.xlu0 %v3793, 115
      %v3816 = vpop.permute.xlu0 %3815
      %3817 = vrot.lane.b32.xlu0 %v3794, 115
      %v3818 = vpop.permute.xlu0 %3817
      %v3819 = vrot.slane %v3804, 4
      %v3820 = vrot.slane %v3806, 4
      %v3821 = vrot.slane %v3808, 4
      %v3822 = vrot.slane %v3810, 4
      %v3823 = vrot.slane %v3812, 4
      %v3824 = vrot.slane %v3814, 4
      %v3825 = vrot.slane %v3816, 4
      %v3826 = vrot.slane %v3818, 4
      %v3827 = vsel %vm600, %v3819, %v3820
      %v3828 = vsel %vm602, %v3804, %v3827
      %v3829 = vsel %vm600, %v3821, %v3822
      %v3830 = vsel %vm602, %v3808, %v3829
      %v3831 = vsel %vm600, %v3823, %v3824
      %v3832 = vsel %vm602, %v3812, %v3831
      %v3833 = vsel %vm600, %v3825, %v3826
      %v3834 = vsel %vm602, %v3816, %v3833
      %3843 = vst [vmem:[#allocation2] sm:$0xff] %v3828
      %3844 = vst.msk [vmem:[#allocation2 + $0x8] sm:$0xf] %vm607, %v3806
      %3845 = vst [vmem:[#allocation2 + $0xc] sm:$0xff] %v3830
      %3846 = vst.msk [vmem:[#allocation2 + $0x14] sm:$0xf] %vm607, %v3810
      %3847 = vst [vmem:[#allocation2 + $0x18] sm:$0xff] %v3832
      %3848 = vst.msk [vmem:[#allocation2 + $0x20] sm:$0xf] %vm607, %v3814
      %3849 = vst [vmem:[#allocation2 + $0x24] sm:$0xff] %v3834
      %3850 = vst.msk [vmem:[#allocation2 + $0x2c] sm:$0xf] %vm607, %v3818
      %v3851 = vld [vmem:[#allocation3] sm:$0xff]
      %v3852 = vld [vmem:[#allocation3 + $0x8] sm:$0xf]
      %v3853 = vld [vmem:[#allocation3 + $0x10] sm:$0xff]
      %v3854 = vld [vmem:[#allocation3 + $0x18] sm:$0xf]
      %v3855 = vld [vmem:[#allocation3 + $0x20] sm:$0xff]
      %v3856 = vld [vmem:[#allocation3 + $0x28] sm:$0xf]
      %v3857 = vld [vmem:[#allocation3 + $0x30] sm:$0xff]
      %v3858 = vld [vmem:[#allocation3 + $0x38] sm:$0xf]
      %3867 = vrot.lane.b32.xlu0 %v3851, 114
      %v3868 = vpop.permute.xlu0 %3867
      %3869 = vrot.lane.b32.xlu0 %v3852, 114
      %v3870 = vpop.permute.xlu0 %3869
      %3871 = vrot.lane.b32.xlu0 %v3853, 114
      %v3872 = vpop.permute.xlu0 %3871
      %3873 = vrot.lane.b32.xlu0 %v3854, 114
      %v3874 = vpop.permute.xlu0 %3873
      %3875 = vrot.lane.b32.xlu0 %v3855, 114
      %v3876 = vpop.permute.xlu0 %3875
      %3877 = vrot.lane.b32.xlu0 %v3856, 114
      %v3878 = vpop.permute.xlu0 %3877
      %3879 = vrot.lane.b32.xlu0 %v3857, 114
      %v3880 = vpop.permute.xlu0 %3879
      %3881 = vrot.lane.b32.xlu0 %v3858, 114
      %v3882 = vpop.permute.xlu0 %3881
      %v3883 = vrot.slane %v3868, 4
      %v3884 = vrot.slane %v3870, 4
      %v3885 = vrot.slane %v3872, 4
      %v3886 = vrot.slane %v3874, 4
      %v3887 = vrot.slane %v3876, 4
      %v3888 = vrot.slane %v3878, 4
      %v3889 = vrot.slane %v3880, 4
      %v3890 = vrot.slane %v3882, 4
      %v3891 = vsel %vm600, %v3883, %v3884
      %v3892 = vsel %vm620, %v3868, %v3891
      %v3893 = vsel %vm600, %v3885, %v3886
      %v3894 = vsel %vm620, %v3872, %v3893
      %v3895 = vsel %vm600, %v3887, %v3888
      %v3896 = vsel %vm620, %v3876, %v3895
      %v3897 = vsel %vm600, %v3889, %v3890
      %v3898 = vsel %vm620, %v3880, %v3897
      %3907 = vst [vmem:[#allocation2 + $0x30] sm:$0xff] %v3892
      %3908 = vst.msk [vmem:[#allocation2 + $0x38] sm:$0xf] %vm607, %v3870
      %3909 = vst [vmem:[#allocation2 + $0x3c] sm:$0xff] %v3894
      %3910 = vst.msk [vmem:[#allocation2 + $0x44] sm:$0xf] %vm607, %v3874
      %3911 = vst [vmem:[#allocation2 + $0x48] sm:$0xff] %v3896
      %3912 = vst.msk [vmem:[#allocation2 + $0x50] sm:$0xf] %vm607, %v3878
      %3913 = vst [vmem:[#allocation2 + $0x54] sm:$0xff] %v3898
      %3914 = vst.msk [vmem:[#allocation2 + $0x5c] sm:$0xf] %vm607, %v3882
      %v3915 = vld [vmem:[#allocation3] sm:$0xff]
      %v3916 = vld [vmem:[#allocation3 + $0x8] sm:$0xf]
      %v3917 = vld [vmem:[#allocation3 + $0x10] sm:$0xff]
      %v3918 = vld [vmem:[#allocation3 + $0x18] sm:$0xf]
      %v3919 = vld [vmem:[#allocation3 + $0x20] sm:$0xff]
      %v3920 = vld [vmem:[#allocation3 + $0x28] sm:$0xf]
      %v3921 = vld [vmem:[#allocation3 + $0x30] sm:$0xff]
      %v3922 = vld [vmem:[#allocation3 + $0x38] sm:$0xf]
      %3931 = vrot.lane.b32.xlu0 %v3915, 113
      %v3932 = vpop.permute.xlu0 %3931
      %3933 = vrot.lane.b32.xlu0 %v3916, 113
      %v3934 = vpop.permute.xlu0 %3933
      %3935 = vrot.lane.b32.xlu0 %v3917, 113
      %v3936 = vpop.permute.xlu0 %3935
      %3937 = vrot.lane.b32.xlu0 %v3918, 113
      %v3938 = vpop.permute.xlu0 %3937
      %3939 = vrot.lane.b32.xlu0 %v3919, 113
      %v3940 = vpop.permute.xlu0 %3939
      %3941 = vrot.lane.b32.xlu0 %v3920, 113
      %v3942 = vpop.permute.xlu0 %3941
      %3943 = vrot.lane.b32.xlu0 %v3921, 113
      %v3944 = vpop.permute.xlu0 %3943
      %3945 = vrot.lane.b32.xlu0 %v3922, 113
      %v3946 = vpop.permute.xlu0 %3945
      %v3947 = vrot.slane %v3932, 4
      %v3948 = vrot.slane %v3934, 4
      %v3949 = vrot.slane %v3936, 4
      %v3950 = vrot.slane %v3938, 4
      %v3951 = vrot.slane %v3940, 4
      %v3952 = vrot.slane %v3942, 4
      %v3953 = vrot.slane %v3944, 4
      %v3954 = vrot.slane %v3946, 4
      %v3955 = vsel %vm600, %v3947, %v3948
      %v3956 = vsel %vm637, %v3932, %v3955
      %v3957 = vsel %vm600, %v3949, %v3950
      %v3958 = vsel %vm637, %v3936, %v3957
      %v3959 = vsel %vm600, %v3951, %v3952
      %v3960 = vsel %vm637, %v3940, %v3959
      %v3961 = vsel %vm600, %v3953, %v3954
      %v3962 = vsel %vm637, %v3944, %v3961
      %3971 = vst [vmem:[#allocation2 + $0x60] sm:$0xff] %v3956
      %3972 = vst.msk [vmem:[#allocation2 + $0x68] sm:$0xf] %vm607, %v3934
      %3973 = vst [vmem:[#allocation2 + $0x6c] sm:$0xff] %v3958
      %3974 = vst.msk [vmem:[#allocation2 + $0x74] sm:$0xf] %vm607, %v3938
      %3975 = vst [vmem:[#allocation2 + $0x78] sm:$0xff] %v3960
      %3976 = vst.msk [vmem:[#allocation2 + $0x80] sm:$0xf] %vm607, %v3942
      %3977 = vst [vmem:[#allocation2 + $0x84] sm:$0xff] %v3962
      %3978 = vst.msk [vmem:[#allocation2 + $0x8c] sm:$0xf] %vm607, %v3946
      %v3979 = vld [vmem:[#allocation3] sm:$0xff]
      %v3980 = vld [vmem:[#allocation3 + $0x8] sm:$0xf]
      %v3981 = vld [vmem:[#allocation3 + $0x10] sm:$0xff]
      %v3982 = vld [vmem:[#allocation3 + $0x18] sm:$0xf]
      %v3983 = vld [vmem:[#allocation3 + $0x20] sm:$0xff]
      %v3984 = vld [vmem:[#allocation3 + $0x28] sm:$0xf]
      %v3985 = vld [vmem:[#allocation3 + $0x30] sm:$0xff]
      %v3986 = vld [vmem:[#allocation3 + $0x38] sm:$0xf]
      %3995 = vrot.lane.b32.xlu0 %v3979, 97
      %v3996 = vpop.permute.xlu0 %3995
      %3997 = vrot.lane.b32.xlu0 %v3980, 97
      %v3998 = vpop.permute.xlu0 %3997
      %3999 = vrot.lane.b32.xlu0 %v3981, 97
      %v4000 = vpop.permute.xlu0 %3999
      %4001 = vrot.lane.b32.xlu0 %v3982, 97
      %v4002 = vpop.permute.xlu0 %4001
      %4003 = vrot.lane.b32.xlu0 %v3983, 97
      %v4004 = vpop.permute.xlu0 %4003
      %4005 = vrot.lane.b32.xlu0 %v3984, 97
      %v4006 = vpop.permute.xlu0 %4005
      %4007 = vrot.lane.b32.xlu0 %v3985, 97
      %v4008 = vpop.permute.xlu0 %4007
      %4009 = vrot.lane.b32.xlu0 %v3986, 97
      %v4010 = vpop.permute.xlu0 %4009
      %v4011 = vrot.slane %v3996, 4
      %v4012 = vrot.slane %v3998, 4
      %v4013 = vrot.slane %v4000, 4
      %v4014 = vrot.slane %v4002, 4
      %v4015 = vrot.slane %v4004, 4
      %v4016 = vrot.slane %v4006, 4
      %v4017 = vrot.slane %v4008, 4
      %v4018 = vrot.slane %v4010, 4
      %v4019 = vsel %vm600, %v4011, %v4012
      %v4020 = vsel %vm654, %v3996, %v4019
      %v4021 = vsel %vm600, %v4013, %v4014
      %v4022 = vsel %vm654, %v4000, %v4021
      %v4023 = vsel %vm600, %v4015, %v4016
      %v4024 = vsel %vm654, %v4004, %v4023
      %v4025 = vsel %vm600, %v4017, %v4018
      %v4026 = vsel %vm654, %v4008, %v4025
      %4035 = vst [vmem:[#allocation2 + $0x90] sm:$0xff] %v4020
      %4036 = vst.msk [vmem:[#allocation2 + $0x98] sm:$0xf] %vm607, %v3998
      %4037 = vst [vmem:[#allocation2 + $0x9c] sm:$0xff] %v4022
      %4038 = vst.msk [vmem:[#allocation2 + $0xa4] sm:$0xf] %vm607, %v4002
      %4039 = vst [vmem:[#allocation2 + $0xa8] sm:$0xff] %v4024
      %4040 = vst.msk [vmem:[#allocation2 + $0xb0] sm:$0xf] %vm607, %v4006
      %4041 = vst [vmem:[#allocation2 + $0xb4] sm:$0xff] %v4026
      %4042 = vst.msk [vmem:[#allocation2 + $0xbc] sm:$0xf] %vm607, %v4010
      %v4043 = vld [vmem:[#allocation3] sm:$0xff]
      %v4044 = vld [vmem:[#allocation3 + $0x8] sm:$0xf]
      %v4045 = vld [vmem:[#allocation3 + $0x10] sm:$0xff]
      %v4046 = vld [vmem:[#allocation3 + $0x18] sm:$0xf]
      %v4047 = vld [vmem:[#allocation3 + $0x20] sm:$0xff]
      %v4048 = vld [vmem:[#allocation3 + $0x28] sm:$0xf]
      %v4049 = vld [vmem:[#allocation3 + $0x30] sm:$0xff]
      %v4050 = vld [vmem:[#allocation3 + $0x38] sm:$0xf]
      %4059 = vrot.lane.b32.xlu0 %v4043, 96
      %v4060 = vpop.permute.xlu0 %4059
      %4061 = vrot.lane.b32.xlu0 %v4044, 96
      %v4062 = vpop.permute.xlu0 %4061
      %4063 = vrot.lane.b32.xlu0 %v4045, 96
      %v4064 = vpop.permute.xlu0 %4063
      %4065 = vrot.lane.b32.xlu0 %v4046, 96
      %v4066 = vpop.permute.xlu0 %4065
      %4067 = vrot.lane.b32.xlu0 %v4047, 96
      %v4068 = vpop.permute.xlu0 %4067
      %4069 = vrot.lane.b32.xlu0 %v4048, 96
      %v4070 = vpop.permute.xlu0 %4069
      %4071 = vrot.lane.b32.xlu0 %v4049, 96
      %v4072 = vpop.permute.xlu0 %4071
      %4073 = vrot.lane.b32.xlu0 %v4050, 96
      %v4074 = vpop.permute.xlu0 %4073
      %v4075 = vrot.slane %v4060, 4
      %v4076 = vrot.slane %v4062, 4
      %v4077 = vrot.slane %v4064, 4
      %v4078 = vrot.slane %v4066, 4
      %v4079 = vrot.slane %v4068, 4
      %v4080 = vrot.slane %v4070, 4
      %v4081 = vrot.slane %v4072, 4
      %v4082 = vrot.slane %v4074, 4
      %v4083 = vsel %vm600, %v4075, %v4076
      %v4084 = vsel %vm671, %v4060, %v4083
      %v4085 = vsel %vm600, %v4077, %v4078
      %v4086 = vsel %vm671, %v4064, %v4085
      %v4087 = vsel %vm600, %v4079, %v4080
      %v4088 = vsel %vm671, %v4068, %v4087
      %v4089 = vsel %vm600, %v4081, %v4082
      %v4090 = vsel %vm671, %v4072, %v4089
      %4099 = vst [vmem:[#allocation2 + $0xc0] sm:$0xff] %v4084
      %4100 = vst.msk [vmem:[#allocation2 + $0xc8] sm:$0xf] %vm607, %v4062
      %4101 = vst [vmem:[#allocation2 + $0xcc] sm:$0xff] %v4086
      %4102 = vst.msk [vmem:[#allocation2 + $0xd4] sm:$0xf] %vm607, %v4066
      %4103 = vst [vmem:[#allocation2 + $0xd8] sm:$0xff] %v4088
      %4104 = vst.msk [vmem:[#allocation2 + $0xe0] sm:$0xf] %vm607, %v4070
      %4105 = vst [vmem:[#allocation2 + $0xe4] sm:$0xff] %v4090
      %4106 = vst.msk [vmem:[#allocation2 + $0xec] sm:$0xf] %vm607, %v4074
      %v4107 = vld [vmem:[#allocation3] sm:$0xff]
      %v4108 = vld [vmem:[#allocation3 + $0x8] sm:$0xf]
      %v4109 = vld [vmem:[#allocation3 + $0x10] sm:$0xff]
      %v4110 = vld [vmem:[#allocation3 + $0x18] sm:$0xf]
      %v4111 = vld [vmem:[#allocation3 + $0x20] sm:$0xff]
      %v4112 = vld [vmem:[#allocation3 + $0x28] sm:$0xf]
      %v4113 = vld [vmem:[#allocation3 + $0x30] sm:$0xff]
      %v4114 = vld [vmem:[#allocation3 + $0x38] sm:$0xf]
      %4123 = vrot.lane.b32.xlu0 %v4107, 95
      %v4124 = vpop.permute.xlu0 %4123
      %4125 = vrot.lane.b32.xlu0 %v4108, 95
      %v4126 = vpop.permute.xlu0 %4125
      %4127 = vrot.lane.b32.xlu0 %v4109, 95
      %v4128 = vpop.permute.xlu0 %4127
      %4129 = vrot.lane.b32.xlu0 %v4110, 95
      %v4130 = vpop.permute.xlu0 %4129
      %4131 = vrot.lane.b32.xlu0 %v4111, 95
      %v4132 = vpop.permute.xlu0 %4131
      %4133 = vrot.lane.b32.xlu0 %v4112, 95
      %v4134 = vpop.permute.xlu0 %4133
      %4135 = vrot.lane.b32.xlu0 %v4113, 95
      %v4136 = vpop.permute.xlu0 %4135
      %4137 = vrot.lane.b32.xlu0 %v4114, 95
      %v4138 = vpop.permute.xlu0 %4137
      %v4139 = vrot.slane %v4124, 4
      %v4140 = vrot.slane %v4126, 4
      %v4141 = vrot.slane %v4128, 4
      %v4142 = vrot.slane %v4130, 4
      %v4143 = vrot.slane %v4132, 4
      %v4144 = vrot.slane %v4134, 4
      %v4145 = vrot.slane %v4136, 4
      %v4146 = vrot.slane %v4138, 4
      %v4147 = vsel %vm600, %v4139, %v4140
      %v4148 = vsel %vm688, %v4124, %v4147
      %v4149 = vsel %vm600, %v4141, %v4142
      %v4150 = vsel %vm688, %v4128, %v4149
      %v4151 = vsel %vm600, %v4143, %v4144
      %v4152 = vsel %vm688, %v4132, %v4151
      %v4153 = vsel %vm600, %v4145, %v4146
      %v4154 = vsel %vm688, %v4136, %v4153
      %4163 = vst [vmem:[#allocation2 + $0xf0] sm:$0xff] %v4148
      %4164 = vst.msk [vmem:[#allocation2 + $0xf8] sm:$0xf] %vm607, %v4126
      %4165 = vst [vmem:[#allocation2 + $0xfc] sm:$0xff] %v4150
      %4166 = vst.msk [vmem:[#allocation2 + $0x104] sm:$0xf] %vm607, %v4130
      %4167 = vst [vmem:[#allocation2 + $0x108] sm:$0xff] %v4152
      %4168 = vst.msk [vmem:[#allocation2 + $0x110] sm:$0xf] %vm607, %v4134
      %4169 = vst [vmem:[#allocation2 + $0x114] sm:$0xff] %v4154
      %4170 = vst.msk [vmem:[#allocation2 + $0x11c] sm:$0xf] %vm607, %v4138
      %v4171 = vld [vmem:[#allocation3] sm:$0xff]
      %v4172 = vld [vmem:[#allocation3 + $0x8] sm:$0xf]
      %v4173 = vld [vmem:[#allocation3 + $0x10] sm:$0xff]
      %v4174 = vld [vmem:[#allocation3 + $0x18] sm:$0xf]
      %v4175 = vld [vmem:[#allocation3 + $0x20] sm:$0xff]
      %v4176 = vld [vmem:[#allocation3 + $0x28] sm:$0xf]
      %v4177 = vld [vmem:[#allocation3 + $0x30] sm:$0xff]
      %v4178 = vld [vmem:[#allocation3 + $0x38] sm:$0xf]
      %4187 = vrot.lane.b32.xlu0 %v4171, 79
      %v4188 = vpop.permute.xlu0 %4187
      %4189 = vrot.lane.b32.xlu0 %v4172, 79
      %v4190 = vpop.permute.xlu0 %4189
      %4191 = vrot.lane.b32.xlu0 %v4173, 79
      %v4192 = vpop.permute.xlu0 %4191
      %4193 = vrot.lane.b32.xlu0 %v4174, 79
      %v4194 = vpop.permute.xlu0 %4193
      %4195 = vrot.lane.b32.xlu0 %v4175, 79
      %v4196 = vpop.permute.xlu0 %4195
      %4197 = vrot.lane.b32.xlu0 %v4176, 79
      %v4198 = vpop.permute.xlu0 %4197
      %4199 = vrot.lane.b32.xlu0 %v4177, 79
      %v4200 = vpop.permute.xlu0 %4199
      %4201 = vrot.lane.b32.xlu0 %v4178, 79
      %v4202 = vpop.permute.xlu0 %4201
      %v4203 = vrot.slane %v4188, 4
      %v4204 = vrot.slane %v4190, 4
      %v4205 = vrot.slane %v4192, 4
      %v4206 = vrot.slane %v4194, 4
      %v4207 = vrot.slane %v4196, 4
      %v4208 = vrot.slane %v4198, 4
      %v4209 = vrot.slane %v4200, 4
      %v4210 = vrot.slane %v4202, 4
      %v4211 = vsel %vm600, %v4203, %v4204
      %v4212 = vsel %vm705, %v4188, %v4211
      %v4213 = vsel %vm600, %v4205, %v4206
      %v4214 = vsel %vm705, %v4192, %v4213
      %v4215 = vsel %vm600, %v4207, %v4208
      %v4216 = vsel %vm705, %v4196, %v4215
      %v4217 = vsel %vm600, %v4209, %v4210
      %v4218 = vsel %vm705, %v4200, %v4217
      %4227 = vst [vmem:[#allocation2 + $0x120] sm:$0xff] %v4212
      %4228 = vst.msk [vmem:[#allocation2 + $0x128] sm:$0xf] %vm607, %v4190
      %4229 = vst [vmem:[#allocation2 + $0x12c] sm:$0xff] %v4214
      %4230 = vst.msk [vmem:[#allocation2 + $0x134] sm:$0xf] %vm607, %v4194
      %4231 = vst [vmem:[#allocation2 + $0x138] sm:$0xff] %v4216
      %4232 = vst.msk [vmem:[#allocation2 + $0x140] sm:$0xf] %vm607, %v4198
      %4233 = vst [vmem:[#allocation2 + $0x144] sm:$0xff] %v4218
      %4234 = vst.msk [vmem:[#allocation2 + $0x14c] sm:$0xf] %vm607, %v4202
      %v4235 = vld [vmem:[#allocation3] sm:$0xff]
      %v4236 = vld [vmem:[#allocation3 + $0x8] sm:$0xf]
      %v4237 = vld [vmem:[#allocation3 + $0x10] sm:$0xff]
      %v4238 = vld [vmem:[#allocation3 + $0x18] sm:$0xf]
      %v4239 = vld [vmem:[#allocation3 + $0x20] sm:$0xff]
      %v4240 = vld [vmem:[#allocation3 + $0x28] sm:$0xf]
      %v4241 = vld [vmem:[#allocation3 + $0x30] sm:$0xff]
      %v4242 = vld [vmem:[#allocation3 + $0x38] sm:$0xf]
      %4251 = vrot.lane.b32.xlu0 %v4235, 78
      %v4252 = vpop.permute.xlu0 %4251
      %4253 = vrot.lane.b32.xlu0 %v4236, 78
      %v4254 = vpop.permute.xlu0 %4253
      %4255 = vrot.lane.b32.xlu0 %v4237, 78
      %v4256 = vpop.permute.xlu0 %4255
      %4257 = vrot.lane.b32.xlu0 %v4238, 78
      %v4258 = vpop.permute.xlu0 %4257
      %4259 = vrot.lane.b32.xlu0 %v4239, 78
      %v4260 = vpop.permute.xlu0 %4259
      %4261 = vrot.lane.b32.xlu0 %v4240, 78
      %v4262 = vpop.permute.xlu0 %4261
      %4263 = vrot.lane.b32.xlu0 %v4241, 78
      %v4264 = vpop.permute.xlu0 %4263
      %4265 = vrot.lane.b32.xlu0 %v4242, 78
      %v4266 = vpop.permute.xlu0 %4265
      %v4267 = vrot.slane %v4252, 4
      %v4268 = vrot.slane %v4254, 4
      %v4269 = vrot.slane %v4256, 4
      %v4270 = vrot.slane %v4258, 4
      %v4271 = vrot.slane %v4260, 4
      %v4272 = vrot.slane %v4262, 4
      %v4273 = vrot.slane %v4264, 4
      %v4274 = vrot.slane %v4266, 4
      %v4275 = vsel %vm600, %v4267, %v4268
      %v4276 = vsel %vm722, %v4252, %v4275
      %v4277 = vsel %vm600, %v4269, %v4270
      %v4278 = vsel %vm722, %v4256, %v4277
      %v4279 = vsel %vm600, %v4271, %v4272
      %v4280 = vsel %vm722, %v4260, %v4279
      %v4281 = vsel %vm600, %v4273, %v4274
      %v4282 = vsel %vm722, %v4264, %v4281
      %4291 = vst [vmem:[#allocation2 + $0x150] sm:$0xff] %v4276
      %4292 = vst.msk [vmem:[#allocation2 + $0x158] sm:$0xf] %vm607, %v4254
      %4293 = vst [vmem:[#allocation2 + $0x15c] sm:$0xff] %v4278
      %4294 = vst.msk [vmem:[#allocation2 + $0x164] sm:$0xf] %vm607, %v4258
      %4295 = vst [vmem:[#allocation2 + $0x168] sm:$0xff] %v4280
      %4296 = vst.msk [vmem:[#allocation2 + $0x170] sm:$0xf] %vm607, %v4262
      %4297 = vst [vmem:[#allocation2 + $0x174] sm:$0xff] %v4282
      %4298 = vst.msk [vmem:[#allocation2 + $0x17c] sm:$0xf] %vm607, %v4266
      %v4299 = vld [vmem:[#allocation3] sm:$0xff]
      %v4300 = vld [vmem:[#allocation3 + $0x8] sm:$0xf]
      %v4301 = vld [vmem:[#allocation3 + $0x10] sm:$0xff]
      %v4302 = vld [vmem:[#allocation3 + $0x18] sm:$0xf]
      %v4303 = vld [vmem:[#allocation3 + $0x20] sm:$0xff]
      %v4304 = vld [vmem:[#allocation3 + $0x28] sm:$0xf]
      %v4305 = vld [vmem:[#allocation3 + $0x30] sm:$0xff]
      %v4306 = vld [vmem:[#allocation3 + $0x38] sm:$0xf]
      %4315 = vrot.lane.b32.xlu0 %v4299, 77
      %v4316 = vpop.permute.xlu0 %4315
      %4317 = vrot.lane.b32.xlu0 %v4300, 77
      %v4318 = vpop.permute.xlu0 %4317
      %4319 = vrot.lane.b32.xlu0 %v4301, 77
      %v4320 = vpop.permute.xlu0 %4319
      %4321 = vrot.lane.b32.xlu0 %v4302, 77
      %v4322 = vpop.permute.xlu0 %4321
      %4323 = vrot.lane.b32.xlu0 %v4303, 77
      %v4324 = vpop.permute.xlu0 %4323
      %4325 = vrot.lane.b32.xlu0 %v4304, 77
      %v4326 = vpop.permute.xlu0 %4325
      %4327 = vrot.lane.b32.xlu0 %v4305, 77
      %v4328 = vpop.permute.xlu0 %4327
      %4329 = vrot.lane.b32.xlu0 %v4306, 77
      %v4330 = vpop.permute.xlu0 %4329
      %v4331 = vrot.slane %v4316, 4
      %v4332 = vrot.slane %v4318, 4
      %v4333 = vrot.slane %v4320, 4
      %v4334 = vrot.slane %v4322, 4
      %v4335 = vrot.slane %v4324, 4
      %v4336 = vrot.slane %v4326, 4
      %v4337 = vrot.slane %v4328, 4
      %v4338 = vrot.slane %v4330, 4
      %v4339 = vsel %vm600, %v4331, %v4332
      %v4340 = vsel %vm739, %v4316, %v4339
      %v4341 = vsel %vm600, %v4333, %v4334
      %v4342 = vsel %vm739, %v4320, %v4341
      %v4343 = vsel %vm600, %v4335, %v4336
      %v4344 = vsel %vm739, %v4324, %v4343
      %v4345 = vsel %vm600, %v4337, %v4338
      %v4346 = vsel %vm739, %v4328, %v4345
      %4355 = vst [vmem:[#allocation2 + $0x180] sm:$0xff] %v4340
      %4356 = vst.msk [vmem:[#allocation2 + $0x188] sm:$0xf] %vm607, %v4318
      %4357 = vst [vmem:[#allocation2 + $0x18c] sm:$0xff] %v4342
      %4358 = vst.msk [vmem:[#allocation2 + $0x194] sm:$0xf] %vm607, %v4322
      %4359 = vst [vmem:[#allocation2 + $0x198] sm:$0xff] %v4344
      %4360 = vst.msk [vmem:[#allocation2 + $0x1a0] sm:$0xf] %vm607, %v4326
      %4361 = vst [vmem:[#allocation2 + $0x1a4] sm:$0xff] %v4346
      %4362 = vst.msk [vmem:[#allocation2 + $0x1ac] sm:$0xf] %vm607, %v4330
      %v4363 = vld [vmem:[%s9] sm:$0xff]
      %v4364 = vld [vmem:[%s9 + $0x8] sm:$0xf]
      %v4365 = vld [vmem:[%s9 + $0xc] sm:$0xff]
      %v4366 = vld [vmem:[%s9 + $0x14] sm:$0xf]
      %v4367 = vld [vmem:[%s9 + $0x18] sm:$0xff]
      %v4368 = vld [vmem:[%s9 + $0x20] sm:$0xf]
      %v4369 = vld [vmem:[%s9 + $0x24] sm:$0xff]
      %v4370 = vld [vmem:[%s9 + $0x2c] sm:$0xf]
      %v4371 = vld [vmem:[#allocation2] sm:$0xff]
      %v4372 = vld [vmem:[#allocation2 + $0x8] sm:$0xf]
      %v4373 = vld [vmem:[#allocation2 + $0xc] sm:$0xff]
      %v4374 = vld [vmem:[#allocation2 + $0x14] sm:$0xf]
      %v4375 = vld [vmem:[#allocation2 + $0x18] sm:$0xff]
      %v4376 = vld [vmem:[#allocation2 + $0x20] sm:$0xf]
      %v4377 = vld [vmem:[#allocation2 + $0x24] sm:$0xff]
      %v4378 = vld [vmem:[#allocation2 + $0x2c] sm:$0xf]
      %v4379 = vld [vmem:[#allocation2 + $0x30] sm:$0xff]
      %v4380 = vld [vmem:[#allocation2 + $0x38] sm:$0xf]
      %v4381 = vld [vmem:[#allocation2 + $0x3c] sm:$0xff]
      %v4382 = vld [vmem:[#allocation2 + $0x44] sm:$0xf]
      %v4383 = vld [vmem:[#allocation2 + $0x48] sm:$0xff]
      %v4384 = vld [vmem:[#allocation2 + $0x50] sm:$0xf]
      %v4385 = vld [vmem:[#allocation2 + $0x54] sm:$0xff]
      %v4386 = vld [vmem:[#allocation2 + $0x5c] sm:$0xf]
      %v4387 = vld [vmem:[#allocation2 + $0x60] sm:$0xff]
      %v4388 = vld [vmem:[#allocation2 + $0x68] sm:$0xf]
      %v4389 = vld [vmem:[#allocation2 + $0x6c] sm:$0xff]
      %v4390 = vld [vmem:[#allocation2 + $0x74] sm:$0xf]
      %v4391 = vld [vmem:[#allocation2 + $0x78] sm:$0xff]
      %v4392 = vld [vmem:[#allocation2 + $0x80] sm:$0xf]
      %v4393 = vld [vmem:[#allocation2 + $0x84] sm:$0xff]
      %v4394 = vld [vmem:[#allocation2 + $0x8c] sm:$0xf]
      %v4395 = vld [vmem:[#allocation2 + $0x90] sm:$0xff]
      %v4396 = vld [vmem:[#allocation2 + $0x98] sm:$0xf]
      %v4397 = vld [vmem:[#allocation2 + $0x9c] sm:$0xff]
      %v4398 = vld [vmem:[#allocation2 + $0xa4] sm:$0xf]
      %v4399 = vld [vmem:[#allocation2 + $0xa8] sm:$0xff]
      %v4400 = vld [vmem:[#allocation2 + $0xb0] sm:$0xf]
      %v4401 = vld [vmem:[#allocation2 + $0xb4] sm:$0xff]
      %v4402 = vld [vmem:[#allocation2 + $0xbc] sm:$0xf]
      %v4403 = vld [vmem:[#allocation2 + $0xc0] sm:$0xff]
      %v4404 = vld [vmem:[#allocation2 + $0xc8] sm:$0xf]
      %v4405 = vld [vmem:[#allocation2 + $0xcc] sm:$0xff]
      %v4406 = vld [vmem:[#allocation2 + $0xd4] sm:$0xf]
      %v4407 = vld [vmem:[#allocation2 + $0xd8] sm:$0xff]
      %v4408 = vld [vmem:[#allocation2 + $0xe0] sm:$0xf]
      %v4409 = vld [vmem:[#allocation2 + $0xe4] sm:$0xff]
      %v4410 = vld [vmem:[#allocation2 + $0xec] sm:$0xf]
      %v4411 = vld [vmem:[#allocation2 + $0xf0] sm:$0xff]
      %v4412 = vld [vmem:[#allocation2 + $0xf8] sm:$0xf]
      %v4413 = vld [vmem:[#allocation2 + $0xfc] sm:$0xff]
      %v4414 = vld [vmem:[#allocation2 + $0x104] sm:$0xf]
      %v4415 = vld [vmem:[#allocation2 + $0x108] sm:$0xff]
      %v4416 = vld [vmem:[#allocation2 + $0x110] sm:$0xf]
      %v4417 = vld [vmem:[#allocation2 + $0x114] sm:$0xff]
      %v4418 = vld [vmem:[#allocation2 + $0x11c] sm:$0xf]
      %v4419 = vld [vmem:[#allocation2 + $0x120] sm:$0xff]
      %v4420 = vld [vmem:[#allocation2 + $0x128] sm:$0xf]
      %v4421 = vld [vmem:[#allocation2 + $0x12c] sm:$0xff]
      %v4422 = vld [vmem:[#allocation2 + $0x134] sm:$0xf]
      %v4423 = vld [vmem:[#allocation2 + $0x138] sm:$0xff]
      %v4424 = vld [vmem:[#allocation2 + $0x140] sm:$0xf]
      %v4425 = vld [vmem:[#allocation2 + $0x144] sm:$0xff]
      %v4426 = vld [vmem:[#allocation2 + $0x14c] sm:$0xf]
      %v4427 = vld [vmem:[#allocation2 + $0x150] sm:$0xff]
      %v4428 = vld [vmem:[#allocation2 + $0x158] sm:$0xf]
      %v4429 = vld [vmem:[#allocation2 + $0x15c] sm:$0xff]
      %v4430 = vld [vmem:[#allocation2 + $0x164] sm:$0xf]
      %v4431 = vld [vmem:[#allocation2 + $0x168] sm:$0xff]
      %v4432 = vld [vmem:[#allocation2 + $0x170] sm:$0xf]
      %v4433 = vld [vmem:[#allocation2 + $0x174] sm:$0xff]
      %v4434 = vld [vmem:[#allocation2 + $0x17c] sm:$0xf]
      %v4435 = vld [vmem:[#allocation2 + $0x180] sm:$0xff]
      %v4436 = vld [vmem:[#allocation2 + $0x188] sm:$0xf]
      %v4437 = vld [vmem:[#allocation2 + $0x18c] sm:$0xff]
      %v4438 = vld [vmem:[#allocation2 + $0x194] sm:$0xf]
      %v4439 = vld [vmem:[#allocation2 + $0x198] sm:$0xff]
      %v4440 = vld [vmem:[#allocation2 + $0x1a0] sm:$0xf]
      %v4441 = vld [vmem:[#allocation2 + $0x1a4] sm:$0xff]
      %v4442 = vld [vmem:[#allocation2 + $0x1ac] sm:$0xf]
      %v4443 = vld [vmem:[%s10] sm:$0xff]
      %v4444 = vld [vmem:[%s10 + $0x8] sm:$0xff]
      %v4445 = vld [vmem:[%s10 + $0x10] sm:$0xff]
      %v4446 = vld [vmem:[%s10 + $0x18] sm:$0xff]
      %4448 = vset.pattern.permute.xlu0 0
      %4449 = vperm.xlu0 %4448, %v4443
      %v4450 = vpop.permute.xlu0 %4449
      %4453 = vset.pattern.permute.xlu0 0
      %4454 = vperm.xlu0 %4453, %v4444
      %v4455 = vpop.permute.xlu0 %4454
      %4458 = vset.pattern.permute.xlu0 0
      %4459 = vperm.xlu0 %4458, %v4445
      %v4460 = vpop.permute.xlu0 %4459
      %4463 = vset.pattern.permute.xlu0 0
      %4464 = vperm.xlu0 %4463, %v4446
      %v4465 = vpop.permute.xlu0 %4464
      %v4475 = vunpack.c.l.b16 %v4363
      %v4476 = vunpack.c.h.b16 %v4363
      %v4477 = vunpack.c.l.b16 %v4364
      %v4478 = vunpack.c.l.b16 %v4365
      %v4479 = vunpack.c.h.b16 %v4365
      %v4480 = vunpack.c.l.b16 %v4366
      %v4481 = vunpack.c.l.b16 %v4367
      %v4482 = vunpack.c.h.b16 %v4367
      %v4483 = vunpack.c.l.b16 %v4368
      %v4484 = vunpack.c.l.b16 %v4369
      %v4485 = vunpack.c.h.b16 %v4369
      %v4486 = vunpack.c.l.b16 %v4370
      %v4487 = vpack.c.b16 %v4478, %v4475
      %v4488 = vpack.c.b16 %v4479, %v4476
      %v4489 = vpack.c.b16 %v4480, %v4477
      %v4490 = vpack.c.b16 %v4484, %v4481
      %v4491 = vpack.c.b16 %v4485, %v4482
      %v4492 = vpack.c.b16 %v4486, %v4483
      %v4569 = vunpack.c.l.b16 %v4371
      %v4570 = vunpack.c.h.b16 %v4371
      %v4571 = vunpack.c.l.b16 %v4372
      %v4572 = vunpack.c.l.b16 %v4373
      %v4573 = vunpack.c.h.b16 %v4373
      %v4574 = vunpack.c.l.b16 %v4374
      %v4575 = vunpack.c.l.b16 %v4375
      %v4576 = vunpack.c.h.b16 %v4375
      %v4577 = vunpack.c.l.b16 %v4376
      %v4578 = vunpack.c.l.b16 %v4377
      %v4579 = vunpack.c.h.b16 %v4377
      %v4580 = vunpack.c.l.b16 %v4378
      %v4581 = vunpack.c.l.b16 %v4379
      %v4582 = vunpack.c.h.b16 %v4379
      %v4583 = vunpack.c.l.b16 %v4380
      %v4584 = vunpack.c.l.b16 %v4381
      %v4585 = vunpack.c.h.b16 %v4381
      %v4586 = vunpack.c.l.b16 %v4382
      %v4587 = vunpack.c.l.b16 %v4383
      %v4588 = vunpack.c.h.b16 %v4383
      %v4589 = vunpack.c.l.b16 %v4384
      %v4590 = vunpack.c.l.b16 %v4385
      %v4591 = vunpack.c.h.b16 %v4385
      %v4592 = vunpack.c.l.b16 %v4386
      %v4593 = vunpack.c.l.b16 %v4387
      %v4594 = vunpack.c.h.b16 %v4387
      %v4595 = vunpack.c.l.b16 %v4388
      %v4596 = vunpack.c.l.b16 %v4389
      %v4597 = vunpack.c.h.b16 %v4389
      %v4598 = vunpack.c.l.b16 %v4390
      %v4599 = vunpack.c.l.b16 %v4391
      %v4600 = vunpack.c.h.b16 %v4391
      %v4601 = vunpack.c.l.b16 %v4392
      %v4602 = vunpack.c.l.b16 %v4393
      %v4603 = vunpack.c.h.b16 %v4393
      %v4604 = vunpack.c.l.b16 %v4394
      %v4605 = vunpack.c.l.b16 %v4395
      %v4606 = vunpack.c.h.b16 %v4395
      %v4607 = vunpack.c.l.b16 %v4396
      %v4608 = vunpack.c.l.b16 %v4397
      %v4609 = vunpack.c.h.b16 %v4397
      %v4610 = vunpack.c.l.b16 %v4398
      %v4611 = vunpack.c.l.b16 %v4399
      %v4612 = vunpack.c.h.b16 %v4399
      %v4613 = vunpack.c.l.b16 %v4400
      %v4614 = vunpack.c.l.b16 %v4401
      %v4615 = vunpack.c.h.b16 %v4401
      %v4616 = vunpack.c.l.b16 %v4402
      %v4617 = vunpack.c.l.b16 %v4403
      %v4618 = vunpack.c.h.b16 %v4403
      %v4619 = vunpack.c.l.b16 %v4404
      %v4620 = vunpack.c.l.b16 %v4405
      %v4621 = vunpack.c.h.b16 %v4405
      %v4622 = vunpack.c.l.b16 %v4406
      %v4623 = vunpack.c.l.b16 %v4407
      %v4624 = vunpack.c.h.b16 %v4407
      %v4625 = vunpack.c.l.b16 %v4408
      %v4626 = vunpack.c.l.b16 %v4409
      %v4627 = vunpack.c.h.b16 %v4409
      %v4628 = vunpack.c.l.b16 %v4410
      %v4629 = vunpack.c.l.b16 %v4411
      %v4630 = vunpack.c.h.b16 %v4411
      %v4631 = vunpack.c.l.b16 %v4412
      %v4632 = vunpack.c.l.b16 %v4413
      %v4633 = vunpack.c.h.b16 %v4413
      %v4634 = vunpack.c.l.b16 %v4414
      %v4635 = vunpack.c.l.b16 %v4415
      %v4636 = vunpack.c.h.b16 %v4415
      %v4637 = vunpack.c.l.b16 %v4416
      %v4638 = vunpack.c.l.b16 %v4417
      %v4639 = vunpack.c.h.b16 %v4417
      %v4640 = vunpack.c.l.b16 %v4418
      %v4641 = vunpack.c.l.b16 %v4419
      %v4642 = vunpack.c.h.b16 %v4419
      %v4643 = vunpack.c.l.b16 %v4420
      %v4644 = vunpack.c.l.b16 %v4421
      %v4645 = vunpack.c.h.b16 %v4421
      %v4646 = vunpack.c.l.b16 %v4422
      %v4647 = vunpack.c.l.b16 %v4423
      %v4648 = vunpack.c.h.b16 %v4423
      %v4649 = vunpack.c.l.b16 %v4424
      %v4650 = vunpack.c.l.b16 %v4425
      %v4651 = vunpack.c.h.b16 %v4425
      %v4652 = vunpack.c.l.b16 %v4426
      %v4653 = vunpack.c.l.b16 %v4427
      %v4654 = vunpack.c.h.b16 %v4427
      %v4655 = vunpack.c.l.b16 %v4428
      %v4656 = vunpack.c.l.b16 %v4429
      %v4657 = vunpack.c.h.b16 %v4429
      %v4658 = vunpack.c.l.b16 %v4430
      %v4659 = vunpack.c.l.b16 %v4431
      %v4660 = vunpack.c.h.b16 %v4431
      %v4661 = vunpack.c.l.b16 %v4432
      %v4662 = vunpack.c.l.b16 %v4433
      %v4663 = vunpack.c.h.b16 %v4433
      %v4664 = vunpack.c.l.b16 %v4434
      %v4665 = vunpack.c.l.b16 %v4435
      %v4666 = vunpack.c.h.b16 %v4435
      %v4667 = vunpack.c.l.b16 %v4436
      %v4668 = vunpack.c.l.b16 %v4437
      %v4669 = vunpack.c.h.b16 %v4437
      %v4670 = vunpack.c.l.b16 %v4438
      %v4671 = vunpack.c.l.b16 %v4439
      %v4672 = vunpack.c.h.b16 %v4439
      %v4673 = vunpack.c.l.b16 %v4440
      %v4674 = vunpack.c.l.b16 %v4441
      %v4675 = vunpack.c.h.b16 %v4441
      %v4676 = vunpack.c.l.b16 %v4442
      %v4677 = vpack.c.b16 %v4572, %v4569
      %v4678 = vpack.c.b16 %v4573, %v4570
      %v4679 = vpack.c.b16 %v4574, %v4571
      %v4680 = vpack.c.b16 %v4578, %v4575
      %v4681 = vpack.c.b16 %v4579, %v4576
      %v4682 = vpack.c.b16 %v4580, %v4577
      %v4683 = vpack.c.b16 %v4584, %v4581
      %v4684 = vpack.c.b16 %v4585, %v4582
      %v4685 = vpack.c.b16 %v4586, %v4583
      %v4686 = vpack.c.b16 %v4590, %v4587
      %v4687 = vpack.c.b16 %v4591, %v4588
      %v4688 = vpack.c.b16 %v4592, %v4589
      %v4689 = vpack.c.b16 %v4596, %v4593
      %v4690 = vpack.c.b16 %v4597, %v4594
      %v4691 = vpack.c.b16 %v4598, %v4595
      %v4692 = vpack.c.b16 %v4602, %v4599
      %v4693 = vpack.c.b16 %v4603, %v4600
      %v4694 = vpack.c.b16 %v4604, %v4601
      %v4695 = vpack.c.b16 %v4608, %v4605
      %v4696 = vpack.c.b16 %v4609, %v4606
      %v4697 = vpack.c.b16 %v4610, %v4607
      %v4698 = vpack.c.b16 %v4614, %v4611
      %v4699 = vpack.c.b16 %v4615, %v4612
      %v4700 = vpack.c.b16 %v4616, %v4613
      %v4701 = vpack.c.b16 %v4620, %v4617
      %v4702 = vpack.c.b16 %v4621, %v4618
      %v4703 = vpack.c.b16 %v4622, %v4619
      %v4704 = vpack.c.b16 %v4626, %v4623
      %v4705 = vpack.c.b16 %v4627, %v4624
      %v4706 = vpack.c.b16 %v4628, %v4625
      %v4707 = vpack.c.b16 %v4632, %v4629
      %v4708 = vpack.c.b16 %v4633, %v4630
      %v4709 = vpack.c.b16 %v4634, %v4631
      %v4710 = vpack.c.b16 %v4638, %v4635
      %v4711 = vpack.c.b16 %v4639, %v4636
      %v4712 = vpack.c.b16 %v4640, %v4637
      %v4713 = vpack.c.b16 %v4644, %v4641
      %v4714 = vpack.c.b16 %v4645, %v4642
      %v4715 = vpack.c.b16 %v4646, %v4643
      %v4716 = vpack.c.b16 %v4650, %v4647
      %v4717 = vpack.c.b16 %v4651, %v4648
      %v4718 = vpack.c.b16 %v4652, %v4649
      %v4719 = vpack.c.b16 %v4656, %v4653
      %v4720 = vpack.c.b16 %v4657, %v4654
      %v4721 = vpack.c.b16 %v4658, %v4655
      %v4722 = vpack.c.b16 %v4662, %v4659
      %v4723 = vpack.c.b16 %v4663, %v4660
      %v4724 = vpack.c.b16 %v4664, %v4661
      %v4725 = vpack.c.b16 %v4668, %v4665
      %v4726 = vpack.c.b16 %v4669, %v4666
      %v4727 = vpack.c.b16 %v4670, %v4667
      %v4728 = vpack.c.b16 %v4674, %v4671
      %v4729 = vpack.c.b16 %v4675, %v4672
      %v4730 = vpack.c.b16 %v4676, %v4673
      %v4786 = vsel %vm2167, %v4489, 0
      %v4789 = vsel %vm2167, %v4492, 0
      %4791 = vmatprep.subr.bf16.mxu0 %v4699
      %4792 = vmatpush1.bf16.msra.mxu0 %v4698
      %4793 = vmatprep.subr.bf16.mxu0 %v4696
      %4794 = vmatpush1.bf16.msra.mxu0 %v4695
      %4795 = vmatprep.subr.bf16.mxu0 %v4693
      %4796 = vmatpush1.bf16.msra.mxu0 %v4692
      %4797 = vmatprep.subr.bf16.mxu0 %v4690
      %4798 = vmatpush1.bf16.msra.mxu0 %v4689
      %4799 = vmatprep.subr.bf16.mxu0 %v4687
      %4800 = vmatpush1.bf16.msra.mxu0 %v4686
      %4801 = vmatprep.subr.bf16.mxu0 %v4684
      %4802 = vmatpush1.bf16.msra.mxu0 %v4683
      %4803 = vmatprep.subr.bf16.mxu0 %v4681
      %4804 = vmatpush1.bf16.msra.mxu0 %v4680
      %4805 = vmatprep.subr.bf16.mxu0 %v4678
      %4806 = vmatpush1.bf16.msra.mxu0 %v4677
      %4807 = vmatprep.subr.bf16.mxu0 %v4723
      %4808 = vmatpush2.bf16.msra.mxu0 %v4722
      %4809 = vmatprep.subr.bf16.mxu0 %v4720
      %4810 = vmatpush2.bf16.msra.mxu0 %v4719
      %4811 = vmatprep.subr.bf16.mxu0 %v4717
      %4812 = vmatpush2.bf16.msra.mxu0 %v4716
      %4813 = vmatprep.subr.bf16.mxu0 %v4714
      %4814 = vmatpush2.bf16.msra.mxu0 %v4713
      %4815 = vmatprep.subr.bf16.mxu0 %v4711
      %4816 = vmatpush2.bf16.msra.mxu0 %v4710
      %4817 = vmatprep.subr.bf16.mxu0 %v4708
      %4818 = vmatpush2.bf16.msra.mxu0 %v4707
      %4819 = vmatprep.subr.bf16.mxu0 %v4705
      %4820 = vmatpush2.bf16.msra.mxu0 %v4704
      %4821 = vmatprep.subr.bf16.mxu0 %v4702
      %4822 = vmatpush2.bf16.msra.mxu0 %v4701
      %4823 = vmatprep.mubr.bf16.mxu0 %v4488
      %4824 = vmatmul.mubr.bf16.gmra.mxu0 %v4487
      %v4825 = vpop.f32.mrf.mxu0
      %v4826 = vadd.f32 %v4450, %v4825
      %v4827 = vpop.f32.mrf.mxu0
      %v4828 = vadd.f32 %v4450, %v4827
      %v4829 = vpop.f32.mrf.mxu0
      %v4830 = vadd.f32 %v4455, %v4829
      %v4831 = vpop.f32.mrf.mxu0
      %v4832 = vadd.f32 %v4455, %v4831
      %4833 = vmatprep.mubr.bf16.mxu0 %v4491
      %4834 = vmatmul.mubr.bf16.gmra.mxu0 %v4490
      %v4835 = vpop.f32.mrf.mxu0
      %v4836 = vadd.f32 %v4460, %v4835
      %v4837 = vpop.f32.mrf.mxu0
      %v4838 = vadd.f32 %v4460, %v4837
      %v4839 = vpop.f32.mrf.mxu0
      %v4840 = vadd.f32 %v4465, %v4839
      %v4841 = vpop.f32.mrf.mxu0
      %v4842 = vadd.f32 %v4465, %v4841
      %4843 = vdwg.mxu0
      %4844 = vmatprep.subr.bf16.mxu0 0
      %4845 = vmatpush1.bf16.msra.mxu0 0
      %4846 = vmatprep.subr.bf16.mxu0 0
      %4847 = vmatpush1.bf16.msra.mxu0 0
      %4848 = vmatprep.subr.bf16.mxu0 0
      %4849 = vmatpush1.bf16.msra.mxu0 0
      %4850 = vmatprep.subr.bf16.mxu0 0
      %4851 = vmatpush1.bf16.msra.mxu0 0
      %4852 = vmatprep.subr.bf16.mxu0 0
      %4853 = vmatpush1.bf16.msra.mxu0 0
      %4854 = vmatprep.subr.bf16.mxu0 0
      %4855 = vmatpush1.bf16.msra.mxu0 0
      %4856 = vmatprep.subr.bf16.mxu0 %v4729
      %4857 = vmatpush1.bf16.msra.mxu0 %v4728
      %4858 = vmatprep.subr.bf16.mxu0 %v4726
      %4859 = vmatpush1.bf16.msra.mxu0 %v4725
      %4860 = vmatprep.subr.bf16.mxu0 0
      %4861 = vmatpush2.bf16.msra.mxu0 0
      %4862 = vmatprep.subr.bf16.mxu0 0
      %4863 = vmatpush2.bf16.msra.mxu0 0
      %4864 = vmatprep.subr.bf16.mxu0 0
      %4865 = vmatpush2.bf16.msra.mxu0 0
      %4866 = vmatprep.subr.bf16.mxu0 0
      %4867 = vmatpush2.bf16.msra.mxu0 0
      %4868 = vmatprep.subr.bf16.mxu0 0
      %4869 = vmatpush2.bf16.msra.mxu0 0
      %4870 = vmatprep.subr.bf16.mxu0 0
      %4871 = vmatpush2.bf16.msra.mxu0 0
      %4872 = vmatprep.subr.bf16.mxu0 0
      %4873 = vmatpush2.bf16.msra.mxu0 0
      %4874 = vmatprep.subr.bf16.mxu0 0
      %4875 = vmatpush2.bf16.msra.mxu0 0
      %4876 = vmatprep.mubr.bf16.mxu0 0
      %4877 = vmatmul.mubr.bf16.gmra.mxu0 %v4786
      %v4878 = vpop.f32.mrf.mxu0
      %v4879 = vadd.f32 %v4826, %v4878
      %v4880 = vpop.f32.mrf.mxu0
      %v4881 = vadd.f32 %v4828, %v4880
      %v4882 = vpop.f32.mrf.mxu0
      %v4883 = vadd.f32 %v4830, %v4882
      %v4884 = vpop.f32.mrf.mxu0
      %v4885 = vadd.f32 %v4832, %v4884
      %4886 = vmatprep.mubr.bf16.mxu0 0
      %4887 = vmatmul.mubr.bf16.gmra.mxu0 %v4789
      %v4888 = vpop.f32.mrf.mxu0
      %v4889 = vadd.f32 %v4836, %v4888
      %v4890 = vpop.f32.mrf.mxu0
      %v4891 = vadd.f32 %v4838, %v4890
      %v4892 = vpop.f32.mrf.mxu0
      %v4893 = vadd.f32 %v4840, %v4892
      %v4894 = vpop.f32.mrf.mxu0
      %v4895 = vadd.f32 %v4842, %v4894
      %4896 = vdwg.mxu0
      %4897 = vmatprep.subr.bf16.mxu0 0
      %4898 = vmatpush1.bf16.msra.mxu0 %v4700
      %4899 = vmatprep.subr.bf16.mxu0 0
      %4900 = vmatpush1.bf16.msra.mxu0 %v4697
      %4901 = vmatprep.subr.bf16.mxu0 0
      %4902 = vmatpush1.bf16.msra.mxu0 %v4694
      %4903 = vmatprep.subr.bf16.mxu0 0
      %4904 = vmatpush1.bf16.msra.mxu0 %v4691
      %4905 = vmatprep.subr.bf16.mxu0 0
      %4906 = vmatpush1.bf16.msra.mxu0 %v4688
      %4907 = vmatprep.subr.bf16.mxu0 0
      %4908 = vmatpush1.bf16.msra.mxu0 %v4685
      %4909 = vmatprep.subr.bf16.mxu0 0
      %4910 = vmatpush1.bf16.msra.mxu0 %v4682
      %4911 = vmatprep.subr.bf16.mxu0 0
      %4912 = vmatpush1.bf16.msra.mxu0 %v4679
      %4913 = vmatprep.subr.bf16.mxu0 0
      %4914 = vmatpush2.bf16.msra.mxu0 %v4724
      %4915 = vmatprep.subr.bf16.mxu0 0
      %4916 = vmatpush2.bf16.msra.mxu0 %v4721
      %4917 = vmatprep.subr.bf16.mxu0 0
      %4918 = vmatpush2.bf16.msra.mxu0 %v4718
      %4919 = vmatprep.subr.bf16.mxu0 0
      %4920 = vmatpush2.bf16.msra.mxu0 %v4715
      %4921 = vmatprep.subr.bf16.mxu0 0
      %4922 = vmatpush2.bf16.msra.mxu0 %v4712
      %4923 = vmatprep.subr.bf16.mxu0 0
      %4924 = vmatpush2.bf16.msra.mxu0 %v4709
      %4925 = vmatprep.subr.bf16.mxu0 0
      %4926 = vmatpush2.bf16.msra.mxu0 %v4706
      %4927 = vmatprep.subr.bf16.mxu0 0
      %4928 = vmatpush2.bf16.msra.mxu0 %v4703
      %4929 = vmatprep.mubr.bf16.mxu0 %v4488
      %4930 = vmatmul.mubr.bf16.gmra.mxu0 %v4487
      %v4931 = vpop.f32.mrf.mxu0
      %v4932 = vadd.f32 %v4450, %v4931
      %v4933 = vpop.f32.mrf.mxu0
      %v4934 = vpop.f32.mrf.mxu0
      %v4935 = vadd.f32 %v4455, %v4934
      %v4936 = vpop.f32.mrf.mxu0
      %4937 = vmatprep.mubr.bf16.mxu0 %v4491
      %4938 = vmatmul.mubr.bf16.gmra.mxu0 %v4490
      %v4939 = vpop.f32.mrf.mxu0
      %v4940 = vadd.f32 %v4460, %v4939
      %v4941 = vpop.f32.mrf.mxu0
      %v4942 = vpop.f32.mrf.mxu0
      %v4943 = vadd.f32 %v4465, %v4942
      %v4944 = vpop.f32.mrf.mxu0
      %4945 = vdwg.mxu0
      %4946 = vmatprep.subr.bf16.mxu0 0
      %4947 = vmatpush1.bf16.msra.mxu0 0
      %4948 = vmatprep.subr.bf16.mxu0 0
      %4949 = vmatpush1.bf16.msra.mxu0 0
      %4950 = vmatprep.subr.bf16.mxu0 0
      %4951 = vmatpush1.bf16.msra.mxu0 0
      %4952 = vmatprep.subr.bf16.mxu0 0
      %4953 = vmatpush1.bf16.msra.mxu0 0
      %4954 = vmatprep.subr.bf16.mxu0 0
      %4955 = vmatpush1.bf16.msra.mxu0 0
      %4956 = vmatprep.subr.bf16.mxu0 0
      %4957 = vmatpush1.bf16.msra.mxu0 0
      %4958 = vmatprep.subr.bf16.mxu0 0
      %4959 = vmatpush1.bf16.msra.mxu0 %v4730
      %4960 = vmatprep.subr.bf16.mxu0 0
      %4961 = vmatpush1.bf16.msra.mxu0 %v4727
      %4962 = vmatprep.subr.bf16.mxu0 0
      %4963 = vmatpush2.bf16.msra.mxu0 0
      %4964 = vmatprep.subr.bf16.mxu0 0
      %4965 = vmatpush2.bf16.msra.mxu0 0
      %4966 = vmatprep.subr.bf16.mxu0 0
      %4967 = vmatpush2.bf16.msra.mxu0 0
      %4968 = vmatprep.subr.bf16.mxu0 0
      %4969 = vmatpush2.bf16.msra.mxu0 0
      %4970 = vmatprep.subr.bf16.mxu0 0
      %4971 = vmatpush2.bf16.msra.mxu0 0
      %4972 = vmatprep.subr.bf16.mxu0 0
      %4973 = vmatpush2.bf16.msra.mxu0 0
      %4974 = vmatprep.subr.bf16.mxu0 0
      %4975 = vmatpush2.bf16.msra.mxu0 0
      %4976 = vmatprep.subr.bf16.mxu0 0
      %4977 = vmatpush2.bf16.msra.mxu0 0
      %4978 = vmatprep.mubr.bf16.mxu0 0
      %4979 = vmatmul.mubr.bf16.gmra.mxu0 %v4786
      %v4980 = vpop.f32.mrf.mxu0
      %v4981 = vadd.f32 %v4932, %v4980
      %v4982 = vpop.f32.mrf.mxu0
      %v4983 = vpop.f32.mrf.mxu0
      %v4984 = vadd.f32 %v4935, %v4983
      %v4985 = vpop.f32.mrf.mxu0
      %4986 = vmatprep.mubr.bf16.mxu0 0
      %4987 = vmatmul.mubr.bf16.gmra.mxu0 %v4789
      %v4988 = vpop.f32.mrf.mxu0
      %v4989 = vadd.f32 %v4940, %v4988
      %v4990 = vpop.f32.mrf.mxu0
      %v4991 = vpop.f32.mrf.mxu0
      %v4992 = vadd.f32 %v4943, %v4991
      %v4993 = vpop.f32.mrf.mxu0
      %4994 = vdwg.mxu0
      %v4995 = vxor.u32 %v4879, 2147483648
      %v4996 = vxor.u32 %v4881, 2147483648
      %v4997 = vxor.u32 %v4981, 2147483648
      %v4998 = vxor.u32 %v4883, 2147483648
      %v4999 = vxor.u32 %v4885, 2147483648
      %v5000 = vxor.u32 %v4984, 2147483648
      %v5001 = vxor.u32 %v4889, 2147483648
      %v5002 = vxor.u32 %v4891, 2147483648
      %v5003 = vxor.u32 %v4989, 2147483648
      %v5004 = vxor.u32 %v4893, 2147483648
      %v5005 = vxor.u32 %v4895, 2147483648
      %v5006 = vxor.u32 %v4992, 2147483648
      %v5007 = vmul.f32 %v4995, 1.442695
      %v5008 = vpow.pop %v5007
      %v5009 = vmul.f32 %v4996, 1.442695
      %v5010 = vpow.pop %v5009
      %v5011 = vmul.f32 %v4997, 1.442695
      %v5012 = vpow.pop %v5011
      %v5013 = vmul.f32 %v4998, 1.442695
      %v5014 = vpow.pop %v5013
      %v5015 = vmul.f32 %v4999, 1.442695
      %v5016 = vpow.pop %v5015
      %v5017 = vmul.f32 %v5000, 1.442695
      %v5018 = vpow.pop %v5017
      %v5019 = vmul.f32 %v5001, 1.442695
      %v5020 = vpow.pop %v5019
      %v5021 = vmul.f32 %v5002, 1.442695
      %v5022 = vpow.pop %v5021
      %v5023 = vmul.f32 %v5003, 1.442695
      %v5024 = vpow.pop %v5023
      %v5025 = vmul.f32 %v5004, 1.442695
      %v5026 = vpow.pop %v5025
      %v5027 = vmul.f32 %v5005, 1.442695
      %v5028 = vpow.pop %v5027
      %v5029 = vmul.f32 %v5006, 1.442695
      %v5030 = vpow.pop %v5029
      %v5031 = vadd.f32 %v5008, 1.0
      %v5032 = vadd.f32 %v5010, 1.0
      %v5033 = vadd.f32 %v5012, 1.0
      %v5034 = vadd.f32 %v5014, 1.0
      %v5035 = vadd.f32 %v5016, 1.0
      %v5036 = vadd.f32 %v5018, 1.0
      %v5037 = vadd.f32 %v5020, 1.0
      %v5038 = vadd.f32 %v5022, 1.0
      %v5039 = vadd.f32 %v5024, 1.0
      %v5040 = vadd.f32 %v5026, 1.0
      %v5041 = vadd.f32 %v5028, 1.0
      %v5042 = vadd.f32 %v5030, 1.0
      %v5043 = vrcp.pop %v5031
      %v5044 = vmul.f32 1.0, %v5043
      %v5045 = vrcp.pop %v5032
      %v5046 = vmul.f32 1.0, %v5045
      %v5047 = vrcp.pop %v5033
      %v5048 = vmul.f32 1.0, %v5047
      %v5049 = vrcp.pop %v5034
      %v5050 = vmul.f32 1.0, %v5049
      %v5051 = vrcp.pop %v5035
      %v5052 = vmul.f32 1.0, %v5051
      %v5053 = vrcp.pop %v5036
      %v5054 = vmul.f32 1.0, %v5053
      %v5055 = vrcp.pop %v5037
      %v5056 = vmul.f32 1.0, %v5055
      %v5057 = vrcp.pop %v5038
      %v5058 = vmul.f32 1.0, %v5057
      %v5059 = vrcp.pop %v5039
      %v5060 = vmul.f32 1.0, %v5059
      %v5061 = vrcp.pop %v5040
      %v5062 = vmul.f32 1.0, %v5061
      %v5063 = vrcp.pop %v5041
      %v5064 = vmul.f32 1.0, %v5063
      %v5065 = vrcp.pop %v5042
      %v5066 = vmul.f32 1.0, %v5065
      %v5067 = vmul.f32 %v4879, %v5044
      %v5068 = vmul.f32 %v4881, %v5046
      %v5069 = vmul.f32 %v4981, %v5048
      %v5070 = vmul.f32 %v4883, %v5050
      %v5071 = vmul.f32 %v4885, %v5052
      %v5072 = vmul.f32 %v4984, %v5054
      %v5073 = vmul.f32 %v4889, %v5056
      %v5074 = vmul.f32 %v4891, %v5058
      %v5075 = vmul.f32 %v4989, %v5060
      %v5076 = vmul.f32 %v4893, %v5062
      %v5077 = vmul.f32 %v4895, %v5064
      %v5078 = vmul.f32 %v4992, %v5066
      %v5079 = vmul.f32 %v5067, %v578
      %v5080 = vmul.f32 %v5068, %v582
      %v5081 = vmul.f32 %v5069, %v586
      %v5082 = vmul.f32 %v5070, %v578
      %v5083 = vmul.f32 %v5071, %v582
      %v5084 = vmul.f32 %v5072, %v586
      %v5085 = vmul.f32 %v5073, %v578
      %v5086 = vmul.f32 %v5074, %v582
      %v5087 = vmul.f32 %v5075, %v586
      %v5088 = vmul.f32 %v5076, %v578
      %v5089 = vmul.f32 %v5077, %v582
      %v5090 = vmul.f32 %v5078, %v586
      %v5091 = vpack.c.bf16 %v5082, %v5079
      %v5092 = vpack.c.bf16 %v5083, %v5080
      %v5093 = vpack.c.bf16 %v5084, %v5081
      %v5094 = vpack.c.bf16 %v5088, %v5085
      %v5095 = vpack.c.bf16 %v5089, %v5086
      %v5096 = vpack.c.bf16 %v5090, %v5087
      %v5103 = vunpack.c.l.b16 %v5091
      %v5104 = vunpack.c.l.b16 %v5092
      %v5105 = vunpack.c.l.b16 %v5093
      %v5106 = vunpack.c.h.b16 %v5091
      %v5107 = vunpack.c.h.b16 %v5092
      %v5108 = vunpack.c.h.b16 %v5093
      %v5109 = vunpack.c.l.b16 %v5094
      %v5110 = vunpack.c.l.b16 %v5095
      %v5111 = vunpack.c.l.b16 %v5096
      %v5112 = vunpack.c.h.b16 %v5094
      %v5113 = vunpack.c.h.b16 %v5095
      %v5114 = vunpack.c.h.b16 %v5096
      %v5115 = vpack.c.b16 %v5104, %v5103
      %v5116 = vpack.c.b16 %v5105, %v5105
      %v5117 = vpack.c.b16 %v5107, %v5106
      %v5118 = vpack.c.b16 %v5108, %v5108
      %v5119 = vpack.c.b16 %v5110, %v5109
      %v5120 = vpack.c.b16 %v5111, %v5111
      %v5121 = vpack.c.b16 %v5113, %v5112
      %v5122 = vpack.c.b16 %v5114, %v5114
      %5123 = vrot.lane.b32.xlu0 %v5115, 32
      %v5124 = vpop.permute.xlu0 %5123
      %5125 = vrot.lane.b32.xlu0 %v5116, 32
      %v5126 = vpop.permute.xlu0 %5125
      %5127 = vrot.lane.b32.xlu0 %v5117, 32
      %v5128 = vpop.permute.xlu0 %5127
      %5129 = vrot.lane.b32.xlu0 %v5118, 32
      %v5130 = vpop.permute.xlu0 %5129
      %5131 = vrot.lane.b32.xlu0 %v5119, 32
      %v5132 = vpop.permute.xlu0 %5131
      %5133 = vrot.lane.b32.xlu0 %v5120, 32
      %v5134 = vpop.permute.xlu0 %5133
      %5135 = vrot.lane.b32.xlu0 %v5121, 32
      %v5136 = vpop.permute.xlu0 %5135
      %5137 = vrot.lane.b32.xlu0 %v5122, 32
      %v5138 = vpop.permute.xlu0 %5137
      %v5139 = vrot.slane %v5124, 4
      %v5140 = vrot.slane %v5128, 4
      %v5141 = vrot.slane %v5132, 4
      %v5142 = vrot.slane %v5136, 4
      %v5143 = vsel %vm1140, %v5139, %v5124
      %v5144 = vsel %vm1140, %v5139, %v5126
      %v5145 = vsel %vm1140, %v5140, %v5128
      %v5146 = vsel %vm1140, %v5140, %v5130
      %v5147 = vsel %vm1140, %v5141, %v5132
      %v5148 = vsel %vm1140, %v5141, %v5134
      %v5149 = vsel %vm1140, %v5142, %v5136
      %v5150 = vsel %vm1140, %v5142, %v5138
      %5159 = vst.msk [vmem:[#allocation3] sm:$0xff] %vm1159, %v5143
      %5160 = vst.msk [vmem:[#allocation3 + $0x8] sm:$0xf] %vm1161, %v5144
      %5161 = vst.msk [vmem:[#allocation3 + $0x10] sm:$0xff] %vm1159, %v5145
      %5162 = vst.msk [vmem:[#allocation3 + $0x18] sm:$0xf] %vm1161, %v5146
      %5163 = vst.msk [vmem:[#allocation3 + $0x20] sm:$0xff] %vm1159, %v5147
      %5164 = vst.msk [vmem:[#allocation3 + $0x28] sm:$0xf] %vm1161, %v5148
      %5165 = vst.msk [vmem:[#allocation3 + $0x30] sm:$0xff] %vm1159, %v5149
      %5166 = vst.msk [vmem:[#allocation3 + $0x38] sm:$0xf] %vm1161, %v5150
      %v5167 = vld [vmem:[#allocation3] sm:$0xff]
      %v5168 = vld [vmem:[#allocation3 + $0x8] sm:$0xf]
      %v5169 = vld [vmem:[#allocation3 + $0x10] sm:$0xff]
      %v5170 = vld [vmem:[#allocation3 + $0x18] sm:$0xf]
      %v5171 = vld [vmem:[#allocation3 + $0x20] sm:$0xff]
      %v5172 = vld [vmem:[#allocation3 + $0x28] sm:$0xf]
      %v5173 = vld [vmem:[#allocation3 + $0x30] sm:$0xff]
      %v5174 = vld [vmem:[#allocation3 + $0x38] sm:$0xf]
      %5183 = vrot.lane.b32.xlu0 %v5167, 115
      %v5184 = vpop.permute.xlu0 %5183
      %5185 = vrot.lane.b32.xlu0 %v5168, 115
      %v5186 = vpop.permute.xlu0 %5185
      %5187 = vrot.lane.b32.xlu0 %v5169, 115
      %v5188 = vpop.permute.xlu0 %5187
      %5189 = vrot.lane.b32.xlu0 %v5170, 115
      %v5190 = vpop.permute.xlu0 %5189
      %5191 = vrot.lane.b32.xlu0 %v5171, 115
      %v5192 = vpop.permute.xlu0 %5191
      %5193 = vrot.lane.b32.xlu0 %v5172, 115
      %v5194 = vpop.permute.xlu0 %5193
      %5195 = vrot.lane.b32.xlu0 %v5173, 115
      %v5196 = vpop.permute.xlu0 %5195
      %5197 = vrot.lane.b32.xlu0 %v5174, 115
      %v5198 = vpop.permute.xlu0 %5197
      %v5199 = vrot.slane %v5184, 4
      %v5200 = vrot.slane %v5186, 4
      %v5201 = vrot.slane %v5188, 4
      %v5202 = vrot.slane %v5190, 4
      %v5203 = vrot.slane %v5192, 4
      %v5204 = vrot.slane %v5194, 4
      %v5205 = vrot.slane %v5196, 4
      %v5206 = vrot.slane %v5198, 4
      %v5207 = vsel %vm600, %v5199, %v5200
      %v5208 = vsel %vm602, %v5184, %v5207
      %v5209 = vsel %vm600, %v5201, %v5202
      %v5210 = vsel %vm602, %v5188, %v5209
      %v5211 = vsel %vm600, %v5203, %v5204
      %v5212 = vsel %vm602, %v5192, %v5211
      %v5213 = vsel %vm600, %v5205, %v5206
      %v5214 = vsel %vm602, %v5196, %v5213
      %5223 = vst [vmem:[#allocation2] sm:$0xff] %v5208
      %5224 = vst.msk [vmem:[#allocation2 + $0x8] sm:$0xf] %vm607, %v5186
      %5225 = vst [vmem:[#allocation2 + $0xc] sm:$0xff] %v5210
      %5226 = vst.msk [vmem:[#allocation2 + $0x14] sm:$0xf] %vm607, %v5190
      %5227 = vst [vmem:[#allocation2 + $0x18] sm:$0xff] %v5212
      %5228 = vst.msk [vmem:[#allocation2 + $0x20] sm:$0xf] %vm607, %v5194
      %5229 = vst [vmem:[#allocation2 + $0x24] sm:$0xff] %v5214
      %5230 = vst.msk [vmem:[#allocation2 + $0x2c] sm:$0xf] %vm607, %v5198
      %v5231 = vld [vmem:[#allocation3] sm:$0xff]
      %v5232 = vld [vmem:[#allocation3 + $0x8] sm:$0xf]
      %v5233 = vld [vmem:[#allocation3 + $0x10] sm:$0xff]
      %v5234 = vld [vmem:[#allocation3 + $0x18] sm:$0xf]
      %v5235 = vld [vmem:[#allocation3 + $0x20] sm:$0xff]
      %v5236 = vld [vmem:[#allocation3 + $0x28] sm:$0xf]
      %v5237 = vld [vmem:[#allocation3 + $0x30] sm:$0xff]
      %v5238 = vld [vmem:[#allocation3 + $0x38] sm:$0xf]
      %5247 = vrot.lane.b32.xlu0 %v5231, 114
      %v5248 = vpop.permute.xlu0 %5247
      %5249 = vrot.lane.b32.xlu0 %v5232, 114
      %v5250 = vpop.permute.xlu0 %5249
      %5251 = vrot.lane.b32.xlu0 %v5233, 114
      %v5252 = vpop.permute.xlu0 %5251
      %5253 = vrot.lane.b32.xlu0 %v5234, 114
      %v5254 = vpop.permute.xlu0 %5253
      %5255 = vrot.lane.b32.xlu0 %v5235, 114
      %v5256 = vpop.permute.xlu0 %5255
      %5257 = vrot.lane.b32.xlu0 %v5236, 114
      %v5258 = vpop.permute.xlu0 %5257
      %5259 = vrot.lane.b32.xlu0 %v5237, 114
      %v5260 = vpop.permute.xlu0 %5259
      %5261 = vrot.lane.b32.xlu0 %v5238, 114
      %v5262 = vpop.permute.xlu0 %5261
      %v5263 = vrot.slane %v5248, 4
      %v5264 = vrot.slane %v5250, 4
      %v5265 = vrot.slane %v5252, 4
      %v5266 = vrot.slane %v5254, 4
      %v5267 = vrot.slane %v5256, 4
      %v5268 = vrot.slane %v5258, 4
      %v5269 = vrot.slane %v5260, 4
      %v5270 = vrot.slane %v5262, 4
      %v5271 = vsel %vm600, %v5263, %v5264
      %v5272 = vsel %vm620, %v5248, %v5271
      %v5273 = vsel %vm600, %v5265, %v5266
      %v5274 = vsel %vm620, %v5252, %v5273
      %v5275 = vsel %vm600, %v5267, %v5268
      %v5276 = vsel %vm620, %v5256, %v5275
      %v5277 = vsel %vm600, %v5269, %v5270
      %v5278 = vsel %vm620, %v5260, %v5277
      %5287 = vst [vmem:[#allocation2 + $0x30] sm:$0xff] %v5272
      %5288 = vst.msk [vmem:[#allocation2 + $0x38] sm:$0xf] %vm607, %v5250
      %5289 = vst [vmem:[#allocation2 + $0x3c] sm:$0xff] %v5274
      %5290 = vst.msk [vmem:[#allocation2 + $0x44] sm:$0xf] %vm607, %v5254
      %5291 = vst [vmem:[#allocation2 + $0x48] sm:$0xff] %v5276
      %5292 = vst.msk [vmem:[#allocation2 + $0x50] sm:$0xf] %vm607, %v5258
      %5293 = vst [vmem:[#allocation2 + $0x54] sm:$0xff] %v5278
      %5294 = vst.msk [vmem:[#allocation2 + $0x5c] sm:$0xf] %vm607, %v5262
      %v5295 = vld [vmem:[#allocation3] sm:$0xff]
      %v5296 = vld [vmem:[#allocation3 + $0x8] sm:$0xf]
      %v5297 = vld [vmem:[#allocation3 + $0x10] sm:$0xff]
      %v5298 = vld [vmem:[#allocation3 + $0x18] sm:$0xf]
      %v5299 = vld [vmem:[#allocation3 + $0x20] sm:$0xff]
      %v5300 = vld [vmem:[#allocation3 + $0x28] sm:$0xf]
      %v5301 = vld [vmem:[#allocation3 + $0x30] sm:$0xff]
      %v5302 = vld [vmem:[#allocation3 + $0x38] sm:$0xf]
      %5311 = vrot.lane.b32.xlu0 %v5295, 113
      %v5312 = vpop.permute.xlu0 %5311
      %5313 = vrot.lane.b32.xlu0 %v5296, 113
      %v5314 = vpop.permute.xlu0 %5313
      %5315 = vrot.lane.b32.xlu0 %v5297, 113
      %v5316 = vpop.permute.xlu0 %5315
      %5317 = vrot.lane.b32.xlu0 %v5298, 113
      %v5318 = vpop.permute.xlu0 %5317
      %5319 = vrot.lane.b32.xlu0 %v5299, 113
      %v5320 = vpop.permute.xlu0 %5319
      %5321 = vrot.lane.b32.xlu0 %v5300, 113
      %v5322 = vpop.permute.xlu0 %5321
      %5323 = vrot.lane.b32.xlu0 %v5301, 113
      %v5324 = vpop.permute.xlu0 %5323
      %5325 = vrot.lane.b32.xlu0 %v5302, 113
      %v5326 = vpop.permute.xlu0 %5325
      %v5327 = vrot.slane %v5312, 4
      %v5328 = vrot.slane %v5314, 4
      %v5329 = vrot.slane %v5316, 4
      %v5330 = vrot.slane %v5318, 4
      %v5331 = vrot.slane %v5320, 4
      %v5332 = vrot.slane %v5322, 4
      %v5333 = vrot.slane %v5324, 4
      %v5334 = vrot.slane %v5326, 4
      %v5335 = vsel %vm600, %v5327, %v5328
      %v5336 = vsel %vm637, %v5312, %v5335
      %v5337 = vsel %vm600, %v5329, %v5330
      %v5338 = vsel %vm637, %v5316, %v5337
      %v5339 = vsel %vm600, %v5331, %v5332
      %v5340 = vsel %vm637, %v5320, %v5339
      %v5341 = vsel %vm600, %v5333, %v5334
      %v5342 = vsel %vm637, %v5324, %v5341
      %5351 = vst [vmem:[#allocation2 + $0x60] sm:$0xff] %v5336
      %5352 = vst.msk [vmem:[#allocation2 + $0x68] sm:$0xf] %vm607, %v5314
      %5353 = vst [vmem:[#allocation2 + $0x6c] sm:$0xff] %v5338
      %5354 = vst.msk [vmem:[#allocation2 + $0x74] sm:$0xf] %vm607, %v5318
      %5355 = vst [vmem:[#allocation2 + $0x78] sm:$0xff] %v5340
      %5356 = vst.msk [vmem:[#allocation2 + $0x80] sm:$0xf] %vm607, %v5322
      %5357 = vst [vmem:[#allocation2 + $0x84] sm:$0xff] %v5342
      %5358 = vst.msk [vmem:[#allocation2 + $0x8c] sm:$0xf] %vm607, %v5326
      %v5359 = vld [vmem:[#allocation3] sm:$0xff]
      %v5360 = vld [vmem:[#allocation3 + $0x8] sm:$0xf]
      %v5361 = vld [vmem:[#allocation3 + $0x10] sm:$0xff]
      %v5362 = vld [vmem:[#allocation3 + $0x18] sm:$0xf]
      %v5363 = vld [vmem:[#allocation3 + $0x20] sm:$0xff]
      %v5364 = vld [vmem:[#allocation3 + $0x28] sm:$0xf]
      %v5365 = vld [vmem:[#allocation3 + $0x30] sm:$0xff]
      %v5366 = vld [vmem:[#allocation3 + $0x38] sm:$0xf]
      %5375 = vrot.lane.b32.xlu0 %v5359, 97
      %v5376 = vpop.permute.xlu0 %5375
      %5377 = vrot.lane.b32.xlu0 %v5360, 97
      %v5378 = vpop.permute.xlu0 %5377
      %5379 = vrot.lane.b32.xlu0 %v5361, 97
      %v5380 = vpop.permute.xlu0 %5379
      %5381 = vrot.lane.b32.xlu0 %v5362, 97
      %v5382 = vpop.permute.xlu0 %5381
      %5383 = vrot.lane.b32.xlu0 %v5363, 97
      %v5384 = vpop.permute.xlu0 %5383
      %5385 = vrot.lane.b32.xlu0 %v5364, 97
      %v5386 = vpop.permute.xlu0 %5385
      %5387 = vrot.lane.b32.xlu0 %v5365, 97
      %v5388 = vpop.permute.xlu0 %5387
      %5389 = vrot.lane.b32.xlu0 %v5366, 97
      %v5390 = vpop.permute.xlu0 %5389
      %v5391 = vrot.slane %v5376, 4
      %v5392 = vrot.slane %v5378, 4
      %v5393 = vrot.slane %v5380, 4
      %v5394 = vrot.slane %v5382, 4
      %v5395 = vrot.slane %v5384, 4
      %v5396 = vrot.slane %v5386, 4
      %v5397 = vrot.slane %v5388, 4
      %v5398 = vrot.slane %v5390, 4
      %v5399 = vsel %vm600, %v5391, %v5392
      %v5400 = vsel %vm654, %v5376, %v5399
      %v5401 = vsel %vm600, %v5393, %v5394
      %v5402 = vsel %vm654, %v5380, %v5401
      %v5403 = vsel %vm600, %v5395, %v5396
      %v5404 = vsel %vm654, %v5384, %v5403
      %v5405 = vsel %vm600, %v5397, %v5398
      %v5406 = vsel %vm654, %v5388, %v5405
      %5415 = vst [vmem:[#allocation2 + $0x90] sm:$0xff] %v5400
      %5416 = vst.msk [vmem:[#allocation2 + $0x98] sm:$0xf] %vm607, %v5378
      %5417 = vst [vmem:[#allocation2 + $0x9c] sm:$0xff] %v5402
      %5418 = vst.msk [vmem:[#allocation2 + $0xa4] sm:$0xf] %vm607, %v5382
      %5419 = vst [vmem:[#allocation2 + $0xa8] sm:$0xff] %v5404
      %5420 = vst.msk [vmem:[#allocation2 + $0xb0] sm:$0xf] %vm607, %v5386
      %5421 = vst [vmem:[#allocation2 + $0xb4] sm:$0xff] %v5406
      %5422 = vst.msk [vmem:[#allocation2 + $0xbc] sm:$0xf] %vm607, %v5390
      %v5423 = vld [vmem:[#allocation3] sm:$0xff]
      %v5424 = vld [vmem:[#allocation3 + $0x8] sm:$0xf]
      %v5425 = vld [vmem:[#allocation3 + $0x10] sm:$0xff]
      %v5426 = vld [vmem:[#allocation3 + $0x18] sm:$0xf]
      %v5427 = vld [vmem:[#allocation3 + $0x20] sm:$0xff]
      %v5428 = vld [vmem:[#allocation3 + $0x28] sm:$0xf]
      %v5429 = vld [vmem:[#allocation3 + $0x30] sm:$0xff]
      %v5430 = vld [vmem:[#allocation3 + $0x38] sm:$0xf]
      %5439 = vrot.lane.b32.xlu0 %v5423, 96
      %v5440 = vpop.permute.xlu0 %5439
      %5441 = vrot.lane.b32.xlu0 %v5424, 96
      %v5442 = vpop.permute.xlu0 %5441
      %5443 = vrot.lane.b32.xlu0 %v5425, 96
      %v5444 = vpop.permute.xlu0 %5443
      %5445 = vrot.lane.b32.xlu0 %v5426, 96
      %v5446 = vpop.permute.xlu0 %5445
      %5447 = vrot.lane.b32.xlu0 %v5427, 96
      %v5448 = vpop.permute.xlu0 %5447
      %5449 = vrot.lane.b32.xlu0 %v5428, 96
      %v5450 = vpop.permute.xlu0 %5449
      %5451 = vrot.lane.b32.xlu0 %v5429, 96
      %v5452 = vpop.permute.xlu0 %5451
      %5453 = vrot.lane.b32.xlu0 %v5430, 96
      %v5454 = vpop.permute.xlu0 %5453
      %v5455 = vrot.slane %v5440, 4
      %v5456 = vrot.slane %v5442, 4
      %v5457 = vrot.slane %v5444, 4
      %v5458 = vrot.slane %v5446, 4
      %v5459 = vrot.slane %v5448, 4
      %v5460 = vrot.slane %v5450, 4
      %v5461 = vrot.slane %v5452, 4
      %v5462 = vrot.slane %v5454, 4
      %v5463 = vsel %vm600, %v5455, %v5456
      %v5464 = vsel %vm671, %v5440, %v5463
      %v5465 = vsel %vm600, %v5457, %v5458
      %v5466 = vsel %vm671, %v5444, %v5465
      %v5467 = vsel %vm600, %v5459, %v5460
      %v5468 = vsel %vm671, %v5448, %v5467
      %v5469 = vsel %vm600, %v5461, %v5462
      %v5470 = vsel %vm671, %v5452, %v5469
      %5479 = vst [vmem:[#allocation2 + $0xc0] sm:$0xff] %v5464
      %5480 = vst.msk [vmem:[#allocation2 + $0xc8] sm:$0xf] %vm607, %v5442
      %5481 = vst [vmem:[#allocation2 + $0xcc] sm:$0xff] %v5466
      %5482 = vst.msk [vmem:[#allocation2 + $0xd4] sm:$0xf] %vm607, %v5446
      %5483 = vst [vmem:[#allocation2 + $0xd8] sm:$0xff] %v5468
      %5484 = vst.msk [vmem:[#allocation2 + $0xe0] sm:$0xf] %vm607, %v5450
      %5485 = vst [vmem:[#allocation2 + $0xe4] sm:$0xff] %v5470
      %5486 = vst.msk [vmem:[#allocation2 + $0xec] sm:$0xf] %vm607, %v5454
      %v5487 = vld [vmem:[#allocation3] sm:$0xff]
      %v5488 = vld [vmem:[#allocation3 + $0x8] sm:$0xf]
      %v5489 = vld [vmem:[#allocation3 + $0x10] sm:$0xff]
      %v5490 = vld [vmem:[#allocation3 + $0x18] sm:$0xf]
      %v5491 = vld [vmem:[#allocation3 + $0x20] sm:$0xff]
      %v5492 = vld [vmem:[#allocation3 + $0x28] sm:$0xf]
      %v5493 = vld [vmem:[#allocation3 + $0x30] sm:$0xff]
      %v5494 = vld [vmem:[#allocation3 + $0x38] sm:$0xf]
      %5503 = vrot.lane.b32.xlu0 %v5487, 95
      %v5504 = vpop.permute.xlu0 %5503
      %5505 = vrot.lane.b32.xlu0 %v5488, 95
      %v5506 = vpop.permute.xlu0 %5505
      %5507 = vrot.lane.b32.xlu0 %v5489, 95
      %v5508 = vpop.permute.xlu0 %5507
      %5509 = vrot.lane.b32.xlu0 %v5490, 95
      %v5510 = vpop.permute.xlu0 %5509
      %5511 = vrot.lane.b32.xlu0 %v5491, 95
      %v5512 = vpop.permute.xlu0 %5511
      %5513 = vrot.lane.b32.xlu0 %v5492, 95
      %v5514 = vpop.permute.xlu0 %5513
      %5515 = vrot.lane.b32.xlu0 %v5493, 95
      %v5516 = vpop.permute.xlu0 %5515
      %5517 = vrot.lane.b32.xlu0 %v5494, 95
      %v5518 = vpop.permute.xlu0 %5517
      %v5519 = vrot.slane %v5504, 4
      %v5520 = vrot.slane %v5506, 4
      %v5521 = vrot.slane %v5508, 4
      %v5522 = vrot.slane %v5510, 4
      %v5523 = vrot.slane %v5512, 4
      %v5524 = vrot.slane %v5514, 4
      %v5525 = vrot.slane %v5516, 4
      %v5526 = vrot.slane %v5518, 4
      %v5527 = vsel %vm600, %v5519, %v5520
      %v5528 = vsel %vm688, %v5504, %v5527
      %v5529 = vsel %vm600, %v5521, %v5522
      %v5530 = vsel %vm688, %v5508, %v5529
      %v5531 = vsel %vm600, %v5523, %v5524
      %v5532 = vsel %vm688, %v5512, %v5531
      %v5533 = vsel %vm600, %v5525, %v5526
      %v5534 = vsel %vm688, %v5516, %v5533
      %5543 = vst [vmem:[#allocation2 + $0xf0] sm:$0xff] %v5528
      %5544 = vst.msk [vmem:[#allocation2 + $0xf8] sm:$0xf] %vm607, %v5506
      %5545 = vst [vmem:[#allocation2 + $0xfc] sm:$0xff] %v5530
      %5546 = vst.msk [vmem:[#allocation2 + $0x104] sm:$0xf] %vm607, %v5510
      %5547 = vst [vmem:[#allocation2 + $0x108] sm:$0xff] %v5532
      %5548 = vst.msk [vmem:[#allocation2 + $0x110] sm:$0xf] %vm607, %v5514
      %5549 = vst [vmem:[#allocation2 + $0x114] sm:$0xff] %v5534
      %5550 = vst.msk [vmem:[#allocation2 + $0x11c] sm:$0xf] %vm607, %v5518
      %v5551 = vld [vmem:[#allocation3] sm:$0xff]
      %v5552 = vld [vmem:[#allocation3 + $0x8] sm:$0xf]
      %v5553 = vld [vmem:[#allocation3 + $0x10] sm:$0xff]
      %v5554 = vld [vmem:[#allocation3 + $0x18] sm:$0xf]
      %v5555 = vld [vmem:[#allocation3 + $0x20] sm:$0xff]
      %v5556 = vld [vmem:[#allocation3 + $0x28] sm:$0xf]
      %v5557 = vld [vmem:[#allocation3 + $0x30] sm:$0xff]
      %v5558 = vld [vmem:[#allocation3 + $0x38] sm:$0xf]
      %5567 = vrot.lane.b32.xlu0 %v5551, 79
      %v5568 = vpop.permute.xlu0 %5567
      %5569 = vrot.lane.b32.xlu0 %v5552, 79
      %v5570 = vpop.permute.xlu0 %5569
      %5571 = vrot.lane.b32.xlu0 %v5553, 79
      %v5572 = vpop.permute.xlu0 %5571
      %5573 = vrot.lane.b32.xlu0 %v5554, 79
      %v5574 = vpop.permute.xlu0 %5573
      %5575 = vrot.lane.b32.xlu0 %v5555, 79
      %v5576 = vpop.permute.xlu0 %5575
      %5577 = vrot.lane.b32.xlu0 %v5556, 79
      %v5578 = vpop.permute.xlu0 %5577
      %5579 = vrot.lane.b32.xlu0 %v5557, 79
      %v5580 = vpop.permute.xlu0 %5579
      %5581 = vrot.lane.b32.xlu0 %v5558, 79
      %v5582 = vpop.permute.xlu0 %5581
      %v5583 = vrot.slane %v5568, 4
      %v5584 = vrot.slane %v5570, 4
      %v5585 = vrot.slane %v5572, 4
      %v5586 = vrot.slane %v5574, 4
      %v5587 = vrot.slane %v5576, 4
      %v5588 = vrot.slane %v5578, 4
      %v5589 = vrot.slane %v5580, 4
      %v5590 = vrot.slane %v5582, 4
      %v5591 = vsel %vm600, %v5583, %v5584
      %v5592 = vsel %vm705, %v5568, %v5591
      %v5593 = vsel %vm600, %v5585, %v5586
      %v5594 = vsel %vm705, %v5572, %v5593
      %v5595 = vsel %vm600, %v5587, %v5588
      %v5596 = vsel %vm705, %v5576, %v5595
      %v5597 = vsel %vm600, %v5589, %v5590
      %v5598 = vsel %vm705, %v5580, %v5597
      %5607 = vst [vmem:[#allocation2 + $0x120] sm:$0xff] %v5592
      %5608 = vst.msk [vmem:[#allocation2 + $0x128] sm:$0xf] %vm607, %v5570
      %5609 = vst [vmem:[#allocation2 + $0x12c] sm:$0xff] %v5594
      %5610 = vst.msk [vmem:[#allocation2 + $0x134] sm:$0xf] %vm607, %v5574
      %5611 = vst [vmem:[#allocation2 + $0x138] sm:$0xff] %v5596
      %5612 = vst.msk [vmem:[#allocation2 + $0x140] sm:$0xf] %vm607, %v5578
      %5613 = vst [vmem:[#allocation2 + $0x144] sm:$0xff] %v5598
      %5614 = vst.msk [vmem:[#allocation2 + $0x14c] sm:$0xf] %vm607, %v5582
      %v5615 = vld [vmem:[#allocation3] sm:$0xff]
      %v5616 = vld [vmem:[#allocation3 + $0x8] sm:$0xf]
      %v5617 = vld [vmem:[#allocation3 + $0x10] sm:$0xff]
      %v5618 = vld [vmem:[#allocation3 + $0x18] sm:$0xf]
      %v5619 = vld [vmem:[#allocation3 + $0x20] sm:$0xff]
      %v5620 = vld [vmem:[#allocation3 + $0x28] sm:$0xf]
      %v5621 = vld [vmem:[#allocation3 + $0x30] sm:$0xff]
      %v5622 = vld [vmem:[#allocation3 + $0x38] sm:$0xf]
      %5631 = vrot.lane.b32.xlu0 %v5615, 78
      %v5632 = vpop.permute.xlu0 %5631
      %5633 = vrot.lane.b32.xlu0 %v5616, 78
      %v5634 = vpop.permute.xlu0 %5633
      %5635 = vrot.lane.b32.xlu0 %v5617, 78
      %v5636 = vpop.permute.xlu0 %5635
      %5637 = vrot.lane.b32.xlu0 %v5618, 78
      %v5638 = vpop.permute.xlu0 %5637
      %5639 = vrot.lane.b32.xlu0 %v5619, 78
      %v5640 = vpop.permute.xlu0 %5639
      %5641 = vrot.lane.b32.xlu0 %v5620, 78
      %v5642 = vpop.permute.xlu0 %5641
      %5643 = vrot.lane.b32.xlu0 %v5621, 78
      %v5644 = vpop.permute.xlu0 %5643
      %5645 = vrot.lane.b32.xlu0 %v5622, 78
      %v5646 = vpop.permute.xlu0 %5645
      %v5647 = vrot.slane %v5632, 4
      %v5648 = vrot.slane %v5634, 4
      %v5649 = vrot.slane %v5636, 4
      %v5650 = vrot.slane %v5638, 4
      %v5651 = vrot.slane %v5640, 4
      %v5652 = vrot.slane %v5642, 4
      %v5653 = vrot.slane %v5644, 4
      %v5654 = vrot.slane %v5646, 4
      %v5655 = vsel %vm600, %v5647, %v5648
      %v5656 = vsel %vm722, %v5632, %v5655
      %v5657 = vsel %vm600, %v5649, %v5650
      %v5658 = vsel %vm722, %v5636, %v5657
      %v5659 = vsel %vm600, %v5651, %v5652
      %v5660 = vsel %vm722, %v5640, %v5659
      %v5661 = vsel %vm600, %v5653, %v5654
      %v5662 = vsel %vm722, %v5644, %v5661
      %5671 = vst [vmem:[#allocation2 + $0x150] sm:$0xff] %v5656
      %5672 = vst.msk [vmem:[#allocation2 + $0x158] sm:$0xf] %vm607, %v5634
      %5673 = vst [vmem:[#allocation2 + $0x15c] sm:$0xff] %v5658
      %5674 = vst.msk [vmem:[#allocation2 + $0x164] sm:$0xf] %vm607, %v5638
      %5675 = vst [vmem:[#allocation2 + $0x168] sm:$0xff] %v5660
      %5676 = vst.msk [vmem:[#allocation2 + $0x170] sm:$0xf] %vm607, %v5642
      %5677 = vst [vmem:[#allocation2 + $0x174] sm:$0xff] %v5662
      %5678 = vst.msk [vmem:[#allocation2 + $0x17c] sm:$0xf] %vm607, %v5646
      %v5679 = vld [vmem:[#allocation3] sm:$0xff]
      %v5680 = vld [vmem:[#allocation3 + $0x8] sm:$0xf]
      %v5681 = vld [vmem:[#allocation3 + $0x10] sm:$0xff]
      %v5682 = vld [vmem:[#allocation3 + $0x18] sm:$0xf]
      %v5683 = vld [vmem:[#allocation3 + $0x20] sm:$0xff]
      %v5684 = vld [vmem:[#allocation3 + $0x28] sm:$0xf]
      %v5685 = vld [vmem:[#allocation3 + $0x30] sm:$0xff]
      %v5686 = vld [vmem:[#allocation3 + $0x38] sm:$0xf]
      %5695 = vrot.lane.b32.xlu0 %v5679, 77
      %v5696 = vpop.permute.xlu0 %5695
      %5697 = vrot.lane.b32.xlu0 %v5680, 77
      %v5698 = vpop.permute.xlu0 %5697
      %5699 = vrot.lane.b32.xlu0 %v5681, 77
      %v5700 = vpop.permute.xlu0 %5699
      %5701 = vrot.lane.b32.xlu0 %v5682, 77
      %v5702 = vpop.permute.xlu0 %5701
      %5703 = vrot.lane.b32.xlu0 %v5683, 77
      %v5704 = vpop.permute.xlu0 %5703
      %5705 = vrot.lane.b32.xlu0 %v5684, 77
      %v5706 = vpop.permute.xlu0 %5705
      %5707 = vrot.lane.b32.xlu0 %v5685, 77
      %v5708 = vpop.permute.xlu0 %5707
      %5709 = vrot.lane.b32.xlu0 %v5686, 77
      %v5710 = vpop.permute.xlu0 %5709
      %v5711 = vrot.slane %v5696, 4
      %v5712 = vrot.slane %v5698, 4
      %v5713 = vrot.slane %v5700, 4
      %v5714 = vrot.slane %v5702, 4
      %v5715 = vrot.slane %v5704, 4
      %v5716 = vrot.slane %v5706, 4
      %v5717 = vrot.slane %v5708, 4
      %v5718 = vrot.slane %v5710, 4
      %v5719 = vsel %vm600, %v5711, %v5712
      %v5720 = vsel %vm739, %v5696, %v5719
      %v5721 = vsel %vm600, %v5713, %v5714
      %v5722 = vsel %vm739, %v5700, %v5721
      %v5723 = vsel %vm600, %v5715, %v5716
      %v5724 = vsel %vm739, %v5704, %v5723
      %v5725 = vsel %vm600, %v5717, %v5718
      %v5726 = vsel %vm739, %v5708, %v5725
      %5735 = vst [vmem:[#allocation2 + $0x180] sm:$0xff] %v5720
      %5736 = vst.msk [vmem:[#allocation2 + $0x188] sm:$0xf] %vm607, %v5698
      %5737 = vst [vmem:[#allocation2 + $0x18c] sm:$0xff] %v5722
      %5738 = vst.msk [vmem:[#allocation2 + $0x194] sm:$0xf] %vm607, %v5702
      %5739 = vst [vmem:[#allocation2 + $0x198] sm:$0xff] %v5724
      %5740 = vst.msk [vmem:[#allocation2 + $0x1a0] sm:$0xf] %vm607, %v5706
      %5741 = vst [vmem:[#allocation2 + $0x1a4] sm:$0xff] %v5726
      %5742 = vst.msk [vmem:[#allocation2 + $0x1ac] sm:$0xf] %vm607, %v5710
      %v5743 = vld [vmem:[%s11] sm:$0x3f]
      %v5744 = vld [vmem:[#allocation2] sm:$0xff]
      %v5745 = vld [vmem:[#allocation2 + $0x8] sm:$0xf]
      %v5746 = vld [vmem:[#allocation2 + $0xc] sm:$0xff]
      %v5747 = vld [vmem:[#allocation2 + $0x14] sm:$0xf]
      %v5748 = vld [vmem:[#allocation2 + $0x18] sm:$0xff]
      %v5749 = vld [vmem:[#allocation2 + $0x20] sm:$0xf]
      %v5750 = vld [vmem:[#allocation2 + $0x24] sm:$0xff]
      %v5751 = vld [vmem:[#allocation2 + $0x2c] sm:$0xf]
      %v5752 = vld [vmem:[#allocation2 + $0x30] sm:$0xff]
      %v5753 = vld [vmem:[#allocation2 + $0x38] sm:$0xf]
      %v5754 = vld [vmem:[#allocation2 + $0x3c] sm:$0xff]
      %v5755 = vld [vmem:[#allocation2 + $0x44] sm:$0xf]
      %v5756 = vld [vmem:[#allocation2 + $0x48] sm:$0xff]
      %v5757 = vld [vmem:[#allocation2 + $0x50] sm:$0xf]
      %v5758 = vld [vmem:[#allocation2 + $0x54] sm:$0xff]
      %v5759 = vld [vmem:[#allocation2 + $0x5c] sm:$0xf]
      %v5760 = vld [vmem:[#allocation2 + $0x60] sm:$0xff]
      %v5761 = vld [vmem:[#allocation2 + $0x68] sm:$0xf]
      %v5762 = vld [vmem:[#allocation2 + $0x6c] sm:$0xff]
      %v5763 = vld [vmem:[#allocation2 + $0x74] sm:$0xf]
      %v5764 = vld [vmem:[#allocation2 + $0x78] sm:$0xff]
      %v5765 = vld [vmem:[#allocation2 + $0x80] sm:$0xf]
      %v5766 = vld [vmem:[#allocation2 + $0x84] sm:$0xff]
      %v5767 = vld [vmem:[#allocation2 + $0x8c] sm:$0xf]
      %v5768 = vld [vmem:[#allocation2 + $0x90] sm:$0xff]
      %v5769 = vld [vmem:[#allocation2 + $0x98] sm:$0xf]
      %v5770 = vld [vmem:[#allocation2 + $0x9c] sm:$0xff]
      %v5771 = vld [vmem:[#allocation2 + $0xa4] sm:$0xf]
      %v5772 = vld [vmem:[#allocation2 + $0xa8] sm:$0xff]
      %v5773 = vld [vmem:[#allocation2 + $0xb0] sm:$0xf]
      %v5774 = vld [vmem:[#allocation2 + $0xb4] sm:$0xff]
      %v5775 = vld [vmem:[#allocation2 + $0xbc] sm:$0xf]
      %v5776 = vld [vmem:[#allocation2 + $0xc0] sm:$0xff]
      %v5777 = vld [vmem:[#allocation2 + $0xc8] sm:$0xf]
      %v5778 = vld [vmem:[#allocation2 + $0xcc] sm:$0xff]
      %v5779 = vld [vmem:[#allocation2 + $0xd4] sm:$0xf]
      %v5780 = vld [vmem:[#allocation2 + $0xd8] sm:$0xff]
      %v5781 = vld [vmem:[#allocation2 + $0xe0] sm:$0xf]
      %v5782 = vld [vmem:[#allocation2 + $0xe4] sm:$0xff]
      %v5783 = vld [vmem:[#allocation2 + $0xec] sm:$0xf]
      %v5784 = vld [vmem:[#allocation2 + $0xf0] sm:$0xff]
      %v5785 = vld [vmem:[#allocation2 + $0xf8] sm:$0xf]
      %v5786 = vld [vmem:[#allocation2 + $0xfc] sm:$0xff]
      %v5787 = vld [vmem:[#allocation2 + $0x104] sm:$0xf]
      %v5788 = vld [vmem:[#allocation2 + $0x108] sm:$0xff]
      %v5789 = vld [vmem:[#allocation2 + $0x110] sm:$0xf]
      %v5790 = vld [vmem:[#allocation2 + $0x114] sm:$0xff]
      %v5791 = vld [vmem:[#allocation2 + $0x11c] sm:$0xf]
      %v5792 = vld [vmem:[#allocation2 + $0x120] sm:$0xff]
      %v5793 = vld [vmem:[#allocation2 + $0x128] sm:$0xf]
      %v5794 = vld [vmem:[#allocation2 + $0x12c] sm:$0xff]
      %v5795 = vld [vmem:[#allocation2 + $0x134] sm:$0xf]
      %v5796 = vld [vmem:[#allocation2 + $0x138] sm:$0xff]
      %v5797 = vld [vmem:[#allocation2 + $0x140] sm:$0xf]
      %v5798 = vld [vmem:[#allocation2 + $0x144] sm:$0xff]
      %v5799 = vld [vmem:[#allocation2 + $0x14c] sm:$0xf]
      %v5800 = vld [vmem:[#allocation2 + $0x150] sm:$0xff]
      %v5801 = vld [vmem:[#allocation2 + $0x158] sm:$0xf]
      %v5802 = vld [vmem:[#allocation2 + $0x15c] sm:$0xff]
      %v5803 = vld [vmem:[#allocation2 + $0x164] sm:$0xf]
      %v5804 = vld [vmem:[#allocation2 + $0x168] sm:$0xff]
      %v5805 = vld [vmem:[#allocation2 + $0x170] sm:$0xf]
      %v5806 = vld [vmem:[#allocation2 + $0x174] sm:$0xff]
      %v5807 = vld [vmem:[#allocation2 + $0x17c] sm:$0xf]
      %v5808 = vld [vmem:[#allocation2 + $0x180] sm:$0xff]
      %v5809 = vld [vmem:[#allocation2 + $0x188] sm:$0xf]
      %v5810 = vld [vmem:[#allocation2 + $0x18c] sm:$0xff]
      %v5811 = vld [vmem:[#allocation2 + $0x194] sm:$0xf]
      %v5812 = vld [vmem:[#allocation2 + $0x198] sm:$0xff]
      %v5813 = vld [vmem:[#allocation2 + $0x1a0] sm:$0xf]
      %v5814 = vld [vmem:[#allocation2 + $0x1a4] sm:$0xff]
      %v5815 = vld [vmem:[#allocation2 + $0x1ac] sm:$0xf]
      %v5816 = vld [vmem:[%s12] sm:$0x7]
      %5818 = vset.pattern.permute.xlu0 0
      %5819 = vperm.xlu0 %5818, %v5816
      %v5820 = vpop.permute.xlu0 %5819
      %v5823 = vcombine.high %v5743, %v5743
      %v5825 = vunpack.c.l.s4 1983009808
      %v5826 = vunpack.c.0.s8 %v5825
      %v5827 = vlaneseq
      %v5828 = vshrl.u32 %v5827, 7
      %v5829 = vsub.s32 %v5826, %v5828
      %v5830 = vrot.slane %v5743, %v5829
      %v5832 = vunpack.c.l.s4 1983009808
      %v5833 = vunpack.c.0.s8 %v5832
      %v5834 = vlaneseq
      %v5835 = vshrl.u32 %v5834, 7
      %v5836 = vsub.s32 %v5833, %v5835
      %v5837 = vrot.slane %v5823, %v5836
      %v5838 = vcombine.high %v5830, %v5830
      %v5913 = vunpack.c.l.b16 %v5744
      %v5914 = vunpack.c.h.b16 %v5744
      %v5915 = vunpack.c.l.b16 %v5745
      %v5916 = vunpack.c.l.b16 %v5746
      %v5917 = vunpack.c.h.b16 %v5746
      %v5918 = vunpack.c.l.b16 %v5747
      %v5919 = vunpack.c.l.b16 %v5748
      %v5920 = vunpack.c.h.b16 %v5748
      %v5921 = vunpack.c.l.b16 %v5749
      %v5922 = vunpack.c.l.b16 %v5750
      %v5923 = vunpack.c.h.b16 %v5750
      %v5924 = vunpack.c.l.b16 %v5751
      %v5925 = vunpack.c.l.b16 %v5752
      %v5926 = vunpack.c.h.b16 %v5752
      %v5927 = vunpack.c.l.b16 %v5753
      %v5928 = vunpack.c.l.b16 %v5754
      %v5929 = vunpack.c.h.b16 %v5754
      %v5930 = vunpack.c.l.b16 %v5755
      %v5931 = vunpack.c.l.b16 %v5756
      %v5932 = vunpack.c.h.b16 %v5756
      %v5933 = vunpack.c.l.b16 %v5757
      %v5934 = vunpack.c.l.b16 %v5758
      %v5935 = vunpack.c.h.b16 %v5758
      %v5936 = vunpack.c.l.b16 %v5759
      %v5937 = vunpack.c.l.b16 %v5760
      %v5938 = vunpack.c.h.b16 %v5760
      %v5939 = vunpack.c.l.b16 %v5761
      %v5940 = vunpack.c.l.b16 %v5762
      %v5941 = vunpack.c.h.b16 %v5762
      %v5942 = vunpack.c.l.b16 %v5763
      %v5943 = vunpack.c.l.b16 %v5764
      %v5944 = vunpack.c.h.b16 %v5764
      %v5945 = vunpack.c.l.b16 %v5765
      %v5946 = vunpack.c.l.b16 %v5766
      %v5947 = vunpack.c.h.b16 %v5766
      %v5948 = vunpack.c.l.b16 %v5767
      %v5949 = vunpack.c.l.b16 %v5768
      %v5950 = vunpack.c.h.b16 %v5768
      %v5951 = vunpack.c.l.b16 %v5769
      %v5952 = vunpack.c.l.b16 %v5770
      %v5953 = vunpack.c.h.b16 %v5770
      %v5954 = vunpack.c.l.b16 %v5771
      %v5955 = vunpack.c.l.b16 %v5772
      %v5956 = vunpack.c.h.b16 %v5772
      %v5957 = vunpack.c.l.b16 %v5773
      %v5958 = vunpack.c.l.b16 %v5774
      %v5959 = vunpack.c.h.b16 %v5774
      %v5960 = vunpack.c.l.b16 %v5775
      %v5961 = vunpack.c.l.b16 %v5776
      %v5962 = vunpack.c.h.b16 %v5776
      %v5963 = vunpack.c.l.b16 %v5777
      %v5964 = vunpack.c.l.b16 %v5778
      %v5965 = vunpack.c.h.b16 %v5778
      %v5966 = vunpack.c.l.b16 %v5779
      %v5967 = vunpack.c.l.b16 %v5780
      %v5968 = vunpack.c.h.b16 %v5780
      %v5969 = vunpack.c.l.b16 %v5781
      %v5970 = vunpack.c.l.b16 %v5782
      %v5971 = vunpack.c.h.b16 %v5782
      %v5972 = vunpack.c.l.b16 %v5783
      %v5973 = vunpack.c.l.b16 %v5784
      %v5974 = vunpack.c.h.b16 %v5784
      %v5975 = vunpack.c.l.b16 %v5785
      %v5976 = vunpack.c.l.b16 %v5786
      %v5977 = vunpack.c.h.b16 %v5786
      %v5978 = vunpack.c.l.b16 %v5787
      %v5979 = vunpack.c.l.b16 %v5788
      %v5980 = vunpack.c.h.b16 %v5788
      %v5981 = vunpack.c.l.b16 %v5789
      %v5982 = vunpack.c.l.b16 %v5790
      %v5983 = vunpack.c.h.b16 %v5790
      %v5984 = vunpack.c.l.b16 %v5791
      %v5985 = vunpack.c.l.b16 %v5792
      %v5986 = vunpack.c.h.b16 %v5792
      %v5987 = vunpack.c.l.b16 %v5793
      %v5988 = vunpack.c.l.b16 %v5794
      %v5989 = vunpack.c.h.b16 %v5794
      %v5990 = vunpack.c.l.b16 %v5795
      %v5991 = vunpack.c.l.b16 %v5796
      %v5992 = vunpack.c.h.b16 %v5796
      %v5993 = vunpack.c.l.b16 %v5797
      %v5994 = vunpack.c.l.b16 %v5798
      %v5995 = vunpack.c.h.b16 %v5798
      %v5996 = vunpack.c.l.b16 %v5799
      %v5997 = vunpack.c.l.b16 %v5800
      %v5998 = vunpack.c.h.b16 %v5800
      %v5999 = vunpack.c.l.b16 %v5801
      %v6000 = vunpack.c.l.b16 %v5802
      %v6001 = vunpack.c.h.b16 %v5802
      %v6002 = vunpack.c.l.b16 %v5803
      %v6003 = vunpack.c.l.b16 %v5804
      %v6004 = vunpack.c.h.b16 %v5804
      %v6005 = vunpack.c.l.b16 %v5805
      %v6006 = vunpack.c.l.b16 %v5806
      %v6007 = vunpack.c.h.b16 %v5806
      %v6008 = vunpack.c.l.b16 %v5807
      %v6009 = vunpack.c.l.b16 %v5808
      %v6010 = vunpack.c.h.b16 %v5808
      %v6011 = vunpack.c.l.b16 %v5809
      %v6012 = vunpack.c.l.b16 %v5810
      %v6013 = vunpack.c.h.b16 %v5810
      %v6014 = vunpack.c.l.b16 %v5811
      %v6015 = vunpack.c.l.b16 %v5812
      %v6016 = vunpack.c.h.b16 %v5812
      %v6017 = vunpack.c.l.b16 %v5813
      %v6018 = vunpack.c.l.b16 %v5814
      %v6019 = vunpack.c.h.b16 %v5814
      %v6020 = vunpack.c.l.b16 %v5815
      %v6021 = vpack.c.b16 %v5916, %v5913
      %v6022 = vpack.c.b16 %v5917, %v5914
      %v6023 = vpack.c.b16 %v5918, %v5915
      %v6024 = vpack.c.b16 %v5922, %v5919
      %v6025 = vpack.c.b16 %v5923, %v5920
      %v6026 = vpack.c.b16 %v5924, %v5921
      %v6027 = vpack.c.b16 %v5928, %v5925
      %v6028 = vpack.c.b16 %v5929, %v5926
      %v6029 = vpack.c.b16 %v5930, %v5927
      %v6030 = vpack.c.b16 %v5934, %v5931
      %v6031 = vpack.c.b16 %v5935, %v5932
      %v6032 = vpack.c.b16 %v5936, %v5933
      %v6033 = vpack.c.b16 %v5940, %v5937
      %v6034 = vpack.c.b16 %v5941, %v5938
      %v6035 = vpack.c.b16 %v5942, %v5939
      %v6036 = vpack.c.b16 %v5946, %v5943
      %v6037 = vpack.c.b16 %v5947, %v5944
      %v6038 = vpack.c.b16 %v5948, %v5945
      %v6039 = vpack.c.b16 %v5952, %v5949
      %v6040 = vpack.c.b16 %v5953, %v5950
      %v6041 = vpack.c.b16 %v5954, %v5951
      %v6042 = vpack.c.b16 %v5958, %v5955
      %v6043 = vpack.c.b16 %v5959, %v5956
      %v6044 = vpack.c.b16 %v5960, %v5957
      %v6045 = vpack.c.b16 %v5964, %v5961
      %v6046 = vpack.c.b16 %v5965, %v5962
      %v6047 = vpack.c.b16 %v5966, %v5963
      %v6048 = vpack.c.b16 %v5970, %v5967
      %v6049 = vpack.c.b16 %v5971, %v5968
      %v6050 = vpack.c.b16 %v5972, %v5969
      %v6051 = vpack.c.b16 %v5976, %v5973
      %v6052 = vpack.c.b16 %v5977, %v5974
      %v6053 = vpack.c.b16 %v5978, %v5975
      %v6054 = vpack.c.b16 %v5982, %v5979
      %v6055 = vpack.c.b16 %v5983, %v5980
      %v6056 = vpack.c.b16 %v5984, %v5981
      %v6057 = vpack.c.b16 %v5988, %v5985
      %v6058 = vpack.c.b16 %v5989, %v5986
      %v6059 = vpack.c.b16 %v5990, %v5987
      %v6060 = vpack.c.b16 %v5994, %v5991
      %v6061 = vpack.c.b16 %v5995, %v5992
      %v6062 = vpack.c.b16 %v5996, %v5993
      %v6063 = vpack.c.b16 %v6000, %v5997
      %v6064 = vpack.c.b16 %v6001, %v5998
      %v6065 = vpack.c.b16 %v6002, %v5999
      %v6066 = vpack.c.b16 %v6006, %v6003
      %v6067 = vpack.c.b16 %v6007, %v6004
      %v6068 = vpack.c.b16 %v6008, %v6005
      %v6069 = vpack.c.b16 %v6012, %v6009
      %v6070 = vpack.c.b16 %v6013, %v6010
      %v6071 = vpack.c.b16 %v6014, %v6011
      %v6072 = vpack.c.b16 %v6018, %v6015
      %v6073 = vpack.c.b16 %v6019, %v6016
      %v6074 = vpack.c.b16 %v6020, %v6017
      %v6130 = vsel %vm2167, %v5837, 0
      %6132 = vmatprep.subr.bf16.mxu0 %v6043
      %6133 = vmatpush1.bf16.msra.mxu0 %v6042
      %6134 = vmatprep.subr.bf16.mxu0 %v6040
      %6135 = vmatpush1.bf16.msra.mxu0 %v6039
      %6136 = vmatprep.subr.bf16.mxu0 %v6037
      %6137 = vmatpush1.bf16.msra.mxu0 %v6036
      %6138 = vmatprep.subr.bf16.mxu0 %v6034
      %6139 = vmatpush1.bf16.msra.mxu0 %v6033
      %6140 = vmatprep.subr.bf16.mxu0 %v6031
      %6141 = vmatpush1.bf16.msra.mxu0 %v6030
      %6142 = vmatprep.subr.bf16.mxu0 %v6028
      %6143 = vmatpush1.bf16.msra.mxu0 %v6027
      %6144 = vmatprep.subr.bf16.mxu0 %v6025
      %6145 = vmatpush1.bf16.msra.mxu0 %v6024
      %6146 = vmatprep.subr.bf16.mxu0 %v6022
      %6147 = vmatpush1.bf16.msra.mxu0 %v6021
      %6148 = vmatprep.subr.bf16.mxu0 %v6067
      %6149 = vmatpush2.bf16.msra.mxu0 %v6066
      %6150 = vmatprep.subr.bf16.mxu0 %v6064
      %6151 = vmatpush2.bf16.msra.mxu0 %v6063
      %6152 = vmatprep.subr.bf16.mxu0 %v6061
      %6153 = vmatpush2.bf16.msra.mxu0 %v6060
      %6154 = vmatprep.subr.bf16.mxu0 %v6058
      %6155 = vmatpush2.bf16.msra.mxu0 %v6057
      %6156 = vmatprep.subr.bf16.mxu0 %v6055
      %6157 = vmatpush2.bf16.msra.mxu0 %v6054
      %6158 = vmatprep.subr.bf16.mxu0 %v6052
      %6159 = vmatpush2.bf16.msra.mxu0 %v6051
      %6160 = vmatprep.subr.bf16.mxu0 %v6049
      %6161 = vmatpush2.bf16.msra.mxu0 %v6048
      %6162 = vmatprep.subr.bf16.mxu0 %v6046
      %6163 = vmatpush2.bf16.msra.mxu0 %v6045
      %6164 = vmatprep.mubr.bf16.mxu0 %v5838
      %6165 = vmatmul.mubr.bf16.gmra.mxu0 %v5830
      %v6166 = vpop.f32.mrf.mxu0
      %v6167 = vadd.f32 %v5820, %v6166
      %v6168 = vpop.f32.mrf.mxu0
      %v6169 = vadd.f32 %v5820, %v6168
      %v6170 = vpop.f32.mrf.mxu0
      %v6171 = vpop.f32.mrf.mxu0
      %6172 = vdwg.mxu0
      %6173 = vmatprep.subr.bf16.mxu0 0
      %6174 = vmatpush1.bf16.msra.mxu0 0
      %6175 = vmatprep.subr.bf16.mxu0 0
      %6176 = vmatpush1.bf16.msra.mxu0 0
      %6177 = vmatprep.subr.bf16.mxu0 0
      %6178 = vmatpush1.bf16.msra.mxu0 0
      %6179 = vmatprep.subr.bf16.mxu0 0
      %6180 = vmatpush1.bf16.msra.mxu0 0
      %6181 = vmatprep.subr.bf16.mxu0 0
      %6182 = vmatpush1.bf16.msra.mxu0 0
      %6183 = vmatprep.subr.bf16.mxu0 0
      %6184 = vmatpush1.bf16.msra.mxu0 0
      %6185 = vmatprep.subr.bf16.mxu0 %v6073
      %6186 = vmatpush1.bf16.msra.mxu0 %v6072
      %6187 = vmatprep.subr.bf16.mxu0 %v6070
      %6188 = vmatpush1.bf16.msra.mxu0 %v6069
      %6189 = vmatprep.subr.bf16.mxu0 0
      %6190 = vmatpush2.bf16.msra.mxu0 0
      %6191 = vmatprep.subr.bf16.mxu0 0
      %6192 = vmatpush2.bf16.msra.mxu0 0
      %6193 = vmatprep.subr.bf16.mxu0 0
      %6194 = vmatpush2.bf16.msra.mxu0 0
      %6195 = vmatprep.subr.bf16.mxu0 0
      %6196 = vmatpush2.bf16.msra.mxu0 0
      %6197 = vmatprep.subr.bf16.mxu0 0
      %6198 = vmatpush2.bf16.msra.mxu0 0
      %6199 = vmatprep.subr.bf16.mxu0 0
      %6200 = vmatpush2.bf16.msra.mxu0 0
      %6201 = vmatprep.subr.bf16.mxu0 0
      %6202 = vmatpush2.bf16.msra.mxu0 0
      %6203 = vmatprep.subr.bf16.mxu0 0
      %6204 = vmatpush2.bf16.msra.mxu0 0
      %6205 = vmatprep.mubr.bf16.mxu0 0
      %6206 = vmatmul.mubr.bf16.gmra.mxu0 %v6130
      %v6207 = vpop.f32.mrf.mxu0
      %v6208 = vadd.f32 %v6167, %v6207
      %v6209 = vpop.f32.mrf.mxu0
      %v6210 = vadd.f32 %v6169, %v6209
      %v6211 = vpop.f32.mrf.mxu0
      %v6212 = vpop.f32.mrf.mxu0
      %6213 = vdwg.mxu0
      %6214 = vmatprep.subr.bf16.mxu0 0
      %6215 = vmatpush1.bf16.msra.mxu0 %v6044
      %6216 = vmatprep.subr.bf16.mxu0 0
      %6217 = vmatpush1.bf16.msra.mxu0 %v6041
      %6218 = vmatprep.subr.bf16.mxu0 0
      %6219 = vmatpush1.bf16.msra.mxu0 %v6038
      %6220 = vmatprep.subr.bf16.mxu0 0
      %6221 = vmatpush1.bf16.msra.mxu0 %v6035
      %6222 = vmatprep.subr.bf16.mxu0 0
      %6223 = vmatpush1.bf16.msra.mxu0 %v6032
      %6224 = vmatprep.subr.bf16.mxu0 0
      %6225 = vmatpush1.bf16.msra.mxu0 %v6029
      %6226 = vmatprep.subr.bf16.mxu0 0
      %6227 = vmatpush1.bf16.msra.mxu0 %v6026
      %6228 = vmatprep.subr.bf16.mxu0 0
      %6229 = vmatpush1.bf16.msra.mxu0 %v6023
      %6230 = vmatprep.subr.bf16.mxu0 0
      %6231 = vmatpush2.bf16.msra.mxu0 %v6068
      %6232 = vmatprep.subr.bf16.mxu0 0
      %6233 = vmatpush2.bf16.msra.mxu0 %v6065
      %6234 = vmatprep.subr.bf16.mxu0 0
      %6235 = vmatpush2.bf16.msra.mxu0 %v6062
      %6236 = vmatprep.subr.bf16.mxu0 0
      %6237 = vmatpush2.bf16.msra.mxu0 %v6059
      %6238 = vmatprep.subr.bf16.mxu0 0
      %6239 = vmatpush2.bf16.msra.mxu0 %v6056
      %6240 = vmatprep.subr.bf16.mxu0 0
      %6241 = vmatpush2.bf16.msra.mxu0 %v6053
      %6242 = vmatprep.subr.bf16.mxu0 0
      %6243 = vmatpush2.bf16.msra.mxu0 %v6050
      %6244 = vmatprep.subr.bf16.mxu0 0
      %6245 = vmatpush2.bf16.msra.mxu0 %v6047
      %6246 = vmatprep.mubr.bf16.mxu0 %v5838
      %6247 = vmatmul.mubr.bf16.gmra.mxu0 %v5830
      %v6248 = vpop.f32.mrf.mxu0
      %v6249 = vadd.f32 %v5820, %v6248
      %v6250 = vpop.f32.mrf.mxu0
      %v6251 = vpop.f32.mrf.mxu0
      %v6252 = vpop.f32.mrf.mxu0
      %6253 = vdwg.mxu0
      %6254 = vmatprep.subr.bf16.mxu0 0
      %6255 = vmatpush1.bf16.msra.mxu0 0
      %6256 = vmatprep.subr.bf16.mxu0 0
      %6257 = vmatpush1.bf16.msra.mxu0 0
      %6258 = vmatprep.subr.bf16.mxu0 0
      %6259 = vmatpush1.bf16.msra.mxu0 0
      %6260 = vmatprep.subr.bf16.mxu0 0
      %6261 = vmatpush1.bf16.msra.mxu0 0
      %6262 = vmatprep.subr.bf16.mxu0 0
      %6263 = vmatpush1.bf16.msra.mxu0 0
      %6264 = vmatprep.subr.bf16.mxu0 0
      %6265 = vmatpush1.bf16.msra.mxu0 0
      %6266 = vmatprep.subr.bf16.mxu0 0
      %6267 = vmatpush1.bf16.msra.mxu0 %v6074
      %6268 = vmatprep.subr.bf16.mxu0 0
      %6269 = vmatpush1.bf16.msra.mxu0 %v6071
      %6270 = vmatprep.subr.bf16.mxu0 0
      %6271 = vmatpush2.bf16.msra.mxu0 0
      %6272 = vmatprep.subr.bf16.mxu0 0
      %6273 = vmatpush2.bf16.msra.mxu0 0
      %6274 = vmatprep.subr.bf16.mxu0 0
      %6275 = vmatpush2.bf16.msra.mxu0 0
      %6276 = vmatprep.subr.bf16.mxu0 0
      %6277 = vmatpush2.bf16.msra.mxu0 0
      %6278 = vmatprep.subr.bf16.mxu0 0
      %6279 = vmatpush2.bf16.msra.mxu0 0
      %6280 = vmatprep.subr.bf16.mxu0 0
      %6281 = vmatpush2.bf16.msra.mxu0 0
      %6282 = vmatprep.subr.bf16.mxu0 0
      %6283 = vmatpush2.bf16.msra.mxu0 0
      %6284 = vmatprep.subr.bf16.mxu0 0
      %6285 = vmatpush2.bf16.msra.mxu0 0
      %6286 = vmatprep.mubr.bf16.mxu0 0
      %6287 = vmatmul.mubr.bf16.gmra.mxu0 %v6130
      %v6288 = vpop.f32.mrf.mxu0
      %v6289 = vadd.f32 %v6249, %v6288
      %v6290 = vpop.f32.mrf.mxu0
      %v6291 = vpop.f32.mrf.mxu0
      %v6292 = vpop.f32.mrf.mxu0
      %6293 = vdwg.mxu0
      %v6296 = vcombine.low %v6208, %v6210
      %6298 = vst [vmem:[%s548] sm:$0x77] %v6296
      %vm6299 = vcmask 550912
      %6300 = vst.msk [vmem:[%s548 + $0x8] sm:$0x7] %vm6299, %v6289
      %vm6301 = vcmask 1042976
      %6302 = vst.msk [vmem:[%s548 + $0x8] sm:$0x7] %vm6301, 0.0
      %p6303 = scmp.lt.s32.totalorder %s28, 1
      %s6304 = scalar_select %p6303, %s28, 1
      %s6305 = smul.addr %s6304, 3
      %s6306 = smul.addr %s6305, 4
      %s6307 = scalar_lea.vmem %s17, %s6306
      // Predicated region
      $region89: #{autoencoder_forward.1} parent=87 // pred_check
        %p6308 = pneg %p408
      $region90: #{autoencoder_forward.1} parent=87 // pred_check_branch
        %6310 = sbr.rel (%p6308) target = $region92
      $region91: #{autoencoder_forward.1} parent=87 // pred_region
        _
      $region92: #{autoencoder_forward.1} parent=87 // pred_fallthru
        _
    $region88: #{autoencoder_forward.1} parent=5 // pred_fallthru
      _
    %p6311 = scmp.le.s32.totalorder 2, %s23
    // Predicated region
    $region93: #{autoencoder_forward.1} parent=5 // pred_check
      %p6312 = pneg %p6311
    $region94: #{autoencoder_forward.1} parent=5 // pred_check_branch
      %6314 = sbr.rel (%p6312) target = $region96
    $region95: #{autoencoder_forward.1} parent=5 // pred_region
      %s6315 = ssub.s32 %s23, 2
      // Predicated region
      $region97: #{autoencoder_forward.1} parent=95 // pred_check
        %p6316 = pneg %p414
      $region98: #{autoencoder_forward.1} parent=95 // pred_check_branch
        %6318 = sbr.rel (%p6316) target = $region100
      $region99: #{autoencoder_forward.1} parent=95 // pred_region
        %p6319 = scmp.lt.s32.totalorder %s29, 1
        %s6320 = scalar_select %p6319, %s29, 1
        %s6321 = smul.addr %s6320, 3
        %s6322 = smul.addr %s6321, 4
        %s6323 = scalar_lea.vmem %s17, %s6322
      $region100: #{autoencoder_forward.1} parent=95 // pred_fallthru
        _
    $region96: #{autoencoder_forward.1} parent=5 // pred_fallthru
      _
  $region6: #{autoencoder_forward.1} parent=0 // loop_footer
    %s27 = sadd.s32 1, %s23
  $region7: #{autoencoder_forward.1} parent=0 // loop_footer_branch
    %22 = sbr.rel target = $region3
  $region8: #{autoencoder_forward.1} parent=0 // loop_exit
    _

</llo_original>
